<compile_context>
chip_gen: v7x
topology: tpu7x:2x2x1
jax: 0.10.0
libtpu: 0.0.40
codegen_flags: <defaults>
</compile_context>

<pallas_src>
import jax
import jax.numpy as jnp
from jax import lax
from jax.experimental import pallas as pl
from jax.experimental.pallas import tpu as pltpu

N_CH1 = 40        # conv channels
K_T = 13          # temporal kernel width of conv1
POOL_W = 35       # avg-pool window along W
POOL_S = 7        # avg-pool stride along W
BN_EPS = 1e-5
H2 = 13           # spatial-conv output height: (E + 12) - E + 1 == 13 always
R = H2 * N_CH1    # fused conv output rows (row r = h*40 + c)


def _round_up(v, m):
    return (v + m - 1) // m * m


# ---------------------------------------------------------------------------
# In-kernel im2col into a sublane-aligned VMEM scratch.
#   xcat[t*H1p + r, w] = xpad[r, w + t]
# The 13 static lane-offset slices lower to lane shifts; the stores land at
# 8-aligned sublane offsets (H1p % 8 == 0), so no sublane retiling occurs.
# ---------------------------------------------------------------------------
def _im2col_into(x_ref, xcat_ref):
    h1p = xcat_ref.shape[0] // K_T          # static
    w1 = xcat_ref.shape[1]                  # static
    x = x_ref[...]                          # (H1p, Wpad), read once
    for t in range(K_T):
        xcat_ref[pl.ds(t * h1p, h1p), :] = x[:, t:t + w1]


# ---------------------------------------------------------------------------
# Kernel 1: fused conv (one MXU matmul per batch element) -> packed BN stats.
# Only the tiny (R, 2) statistics hit HBM; the conv output stays in VMEM.
# ---------------------------------------------------------------------------
def conv_stats_kernel(x_ref, w_ref, stats_ref, xcat_ref):
    # x_ref     : (H1p, Wpad)    padded input slab of one batch element
    # w_ref     : (R, K_T*H1p)   block-banded composed conv weight (no bias)
    # stats_ref : (R, 2)         [:,0] = row sum, [:,1] = row sum of squares
    # xcat_ref  : (K_T*H1p, W1)  VMEM scratch (im2col)
    _im2col_into(x_ref, xcat_ref)
    y = jnp.dot(w_ref[...], xcat_ref[...],
                preferred_element_type=jnp.float32)          # (R, W1)
    s = jnp.sum(y, axis=-1, keepdims=True)
    q = jnp.sum(y * y, axis=-1, keepdims=True)
    stats_ref[...] = jnp.concatenate([s, q], axis=-1)        # (R, 2)


# ---------------------------------------------------------------------------
# Kernel 2: recompute fused conv + BN affine + square + avg-pool + log + FC.
# ---------------------------------------------------------------------------
def bn_pool_fc_kernel(x_ref, w_ref, scale_ref, shift_ref, pool_ref, wfc_ref,
                      bfc_ref, o_ref, xcat_ref):
    # x_ref    : (H1p, Wpad)             padded input slab of one batch element
    # w_ref    : (R, K_T*H1p)            composed conv weight
    # scale_ref: (R, 1)                  gamma / sqrt(var + eps), tiled per row
    # shift_ref: (R, 1)                  beta - mean * scale,     tiled per row
    # pool_ref : (W1, n_pool)            constant avg-pool matrix (1/35 window)
    # wfc_ref  : (n_classes, R, n_pool)  FC weight, rows matched to conv rows
    # bfc_ref  : (n_classes, 1)
    # o_ref    : (n_classes, 1)
    # xcat_ref : (K_T*H1p, W1)           VMEM scratch (im2col)
    _im2col_into(x_ref, xcat_ref)
    y = jnp.dot(w_ref[...], xcat_ref[...],
                preferred_element_type=jnp.float32)          # (R, W1)
    zn = y * scale_ref[...] + shift_ref[...]                 # BN affine
    sq = zn * zn                                             # torch.square
    # Overlapping (35, stride 7) average pooling as one MXU matmul.
    pooled = jnp.dot(sq, pool_ref[...],
                     preferred_element_type=jnp.float32)     # (R, n_pool)
    feat = jnp.log(pooled)
    # TODO(synk): F.dropout (p=0.5, training=True by default) is stochastic;
    # applied as identity here.
    # FC: broadcast multiply + two lane reductions (VPU/XLU), no degenerate
    # N=1 MXU matmuls.
    prods = wfc_ref[...] * feat[None]                        # (C, R, n_pool)
    per_row = jnp.sum(prods, axis=-1)                        # (C, R)
    vals = jnp.sum(per_row, axis=-1, keepdims=True)          # (C, 1)
    o_ref[...] = vals + bfc_ref[...]


# ---------------------------------------------------------------------------
# Weight-only transforms, hoisted out of the per-forward path (compute once).
# ---------------------------------------------------------------------------
def prepare_params(params, input_ch, T):
    w1, w2 = params["w1"], params["w2"]
    wfc, bfc = params["wfc"], params["bfc"]
    E = input_ch
    H1 = E + 12
    H1p = _round_up(H1, 8)
    W1 = T + 2
    n_pool = (W1 - POOL_W) // POOL_S + 1
    n_classes = wfc.shape[0]
    assert wfc.shape[1] == N_CH1 * H2 * n_pool
    hi = lax.Precision.HIGHEST

    # Fold conv1 into conv2:  Wc[o,e,t] = sum_c w2[o,c,e] * w1[c,t].
    # conv1's bias is dropped on purpose: it cancels exactly through the
    # batch-statistics BatchNorm.
    wc = jnp.einsum("oce,ct->oet", w2.astype(jnp.float32),
                    w1.astype(jnp.float32), precision=hi)       # (40, E, 13)
    wc = jnp.pad(wc, ((0, 0), (0, H1p - E), (0, 0)))            # (40, H1p, 13)
    # w_big[h*40+o, t*H1p+r] = wc[o, r-h, t]  (zero outside the band)
    w_big = jnp.stack([jnp.roll(wc, h, axis=1) for h in range(H2)], axis=0)
    w_big = jnp.transpose(w_big, (0, 1, 3, 2)).reshape(R, K_T * H1p)

    # Constant average-pooling matrix: pool_mat[w, p] = 1/35 inside window p.
    w_idx = jnp.arange(W1)[:, None]
    p_idx = jnp.arange(n_pool)[None, :]
    pool_mat = (((w_idx >= POOL_S * p_idx) & (w_idx < POOL_S * p_idx + POOL_W))
                .astype(jnp.float32) / POOL_W)                  # (W1, n_pool)

    # PyTorch flatten order is (c, h, p); conv rows are r = h*40 + c.
    wfc3 = jnp.transpose(
        wfc.reshape(n_classes, N_CH1, H2, n_pool), (0, 2, 1, 3)
    ).reshape(n_classes, R, n_pool)
    bfc_col = bfc.reshape(n_classes, 1)

    return dict(w_big=w_big, pool_mat=pool_mat, wfc3=wfc3, bfc_col=bfc_col,
                gamma=params["gamma"], beta=params["beta"])


# ---------------------------------------------------------------------------
# Forward wrapper
# ---------------------------------------------------------------------------
def shallow_convnet_forward(x, prep):
    w_big, pool_mat = prep["w_big"], prep["pool_mat"]
    wfc3, bfc_col = prep["wfc3"], prep["bfc_col"]
    gamma, beta = prep["gamma"], prep["beta"]

    B, E, T, one = x.shape
    assert one == 1
    H1 = E + 12
    H1p = _round_up(H1, 8)
    W1 = T + 2
    Wpad = T + 14
    K = K_T * H1p
    n_pool = pool_mat.shape[1]
    n_classes = wfc3.shape[0]

    # ---- input: x.permute(0,3,1,2) -> (B,1,E,T); drop singleton; pad ----
    # 6 zero rows top, 6 (+ alignment) bottom, 7 zero cols left/right.
    xs = x[..., 0].astype(jnp.float32)                              # (B, E, T)
    xpad = jnp.pad(xs, ((0, 0), (6, 6 + (H1p - H1)), (7, 7)))       # (B,H1p,Wpad)

    # ---- kernel 1: fused conv -> packed BN statistics (grid over batch) ----
    stats = pl.pallas_call(
        conv_stats_kernel,
        grid=(B,),
        in_specs=[
            pl.BlockSpec((None, H1p, Wpad), lambda b: (b, 0, 0)),
            pl.BlockSpec((R, K), lambda b: (0, 0)),
        ],
        out_specs=pl.BlockSpec((None, R, 2), lambda b: (b, 0, 0)),
        out_shape=jax.ShapeDtypeStruct((B, R, 2), jnp.float32),
        scratch_shapes=[pltpu.VMEM((K, W1), jnp.float32)],
        compiler_params=pltpu.CompilerParams(
            dimension_semantics=("parallel",)),
    )(xpad, w_big)

    # ---- BatchNorm batch statistics: tiny 40-element epilogue ----
    count = B * H2 * W1
    st = stats.reshape(B, H2, N_CH1, 2)
    ch_sum = jnp.sum(st[..., 0], axis=(0, 1))
    ch_sq = jnp.sum(st[..., 1], axis=(0, 1))
    mean = ch_sum / count
    var = ch_sq / count - mean * mean            # biased variance (PyTorch BN)
    scale = gamma * lax.rsqrt(var + BN_EPS)
    shift = beta - mean * scale
    scale_rows = jnp.tile(scale, (H2,)).reshape(R, 1)
    shift_rows = jnp.tile(shift, (H2,)).reshape(R, 1)

    # ---- kernel 2: recompute conv + BN + square + pool + log + FC ----
    out = pl.pallas_call(
        bn_pool_fc_kernel,
        grid=(B,),
        in_specs=[
            pl.BlockSpec((None, H1p, Wpad), lambda b: (b, 0, 0)),
            pl.BlockSpec((R, K), lambda b: (0, 0)),
            pl.BlockSpec((R, 1), lambda b: (0, 0)),
            pl.BlockSpec((R, 1), lambda b: (0, 0)),
            pl.BlockSpec((W1, n_pool), lambda b: (0, 0)),
            pl.BlockSpec((n_classes, R, n_pool), lambda b: (0, 0, 0)),
            pl.BlockSpec((n_classes, 1), lambda b: (0, 0)),
        ],
        out_specs=pl.BlockSpec((None, n_classes, 1), lambda b: (b, 0, 0)),
        out_shape=jax.ShapeDtypeStruct((B, n_classes, 1), jnp.float32),
        scratch_shapes=[pltpu.VMEM((K, W1), jnp.float32)],
        compiler_params=pltpu.CompilerParams(
            dimension_semantics=("parallel",)),
    )(xpad, w_big, scale_rows, shift_rows, pool_mat, wfc3, bfc_col)

    return out[:, :, 0]


# ---------------------------------------------------------------------------
# Pure-JAX reference (semantics check against the PyTorch module)
# ---------------------------------------------------------------------------
def reference_forward(x, params):
    w1, b1, w2 = params["w1"], params["b1"], params["w2"]
    gamma, beta = params["gamma"], params["beta"]
    wfc, bfc = params["wfc"], params["bfc"]
    B, E, T, _ = x.shape
    hi = lax.Precision.HIGHEST

    xp = jnp.transpose(x, (0, 3, 1, 2)).astype(jnp.float32)          # (B,1,E,T)
    k1 = w1.reshape(N_CH1, 1, 1, K_T)
    y1 = lax.conv_general_dilated(xp, k1, (1, 1), ((6, 6), (7, 7)),
                                  dimension_numbers=("NCHW", "OIHW", "NCHW"),
                                  precision=hi)
    y1 = y1 + b1.reshape(1, N_CH1, 1, 1)
    k2 = w2.reshape(N_CH1, N_CH1, E, 1)
    y2 = lax.conv_general_dilated(y1, k2, (1, 1), "VALID",
                                  dimension_numbers=("NCHW", "OIHW", "NCHW"),
                                  precision=hi)
    mean = jnp.mean(y2, axis=(0, 2, 3), keepdims=True)
    var = jnp.mean((y2 - mean) ** 2, axis=(0, 2, 3), keepdims=True)
    y2 = (y2 - mean) * lax.rsqrt(var + BN_EPS)
    y2 = y2 * gamma.reshape(1, -1, 1, 1) + beta.reshape(1, -1, 1, 1)
    y2 = y2 * y2
    pooled = lax.reduce_window(y2, 0.0, lax.add, (1, 1, 1, POOL_W),
                               (1, 1, 1, POOL_S), "VALID") / POOL_W
    feat = jnp.log(pooled).reshape(B, -1)
    return jnp.dot(feat, wfc.T, precision=hi) + bfc


if __name__ == "__main__":
    # input_ch=6 -> H1 = 18 (not a multiple of 8) exercises the alignment pad.
    B, input_ch, T, n_classes = 2, 6, 40, 4
    n_pool = (T + 2 - POOL_W) // POOL_S + 1
    fc_ch = N_CH1 * H2 * n_pool            # = 1040

    key = jax.random.PRNGKey(0)
    ks = jax.random.split(key, 8)
    params = dict(
        w1=0.1 * jax.random.normal(ks[0], (N_CH1, K_T), jnp.float32),
        b1=0.1 * jax.random.normal(ks[1], (N_CH1,), jnp.float32),
        w2=0.1 * jax.random.normal(ks[2], (N_CH1, N_CH1, input_ch), jnp.float32),
        gamma=1.0 + 0.1 * jax.random.normal(ks[3], (N_CH1,), jnp.float32),
        beta=0.1 * jax.random.normal(ks[4], (N_CH1,), jnp.float32),
        wfc=0.05 * jax.random.normal(ks[5], (n_classes, fc_ch), jnp.float32),
        bfc=0.05 * jax.random.normal(ks[6], (n_classes,), jnp.float32),
    )
    x = jax.random.normal(ks[7], (B, input_ch, T, 1), jnp.float32)

    # Weight-only transforms: computed once, outside the forward jit graph.
    prep = prepare_params(params, input_ch, T)
    prep = jax.tree_util.tree_map(jax.block_until_ready, prep)

    out = jax.jit(shallow_convnet_forward)(x, prep)
    out = jax.block_until_ready(out)

    assert out.shape == (B, n_classes)
    assert bool(jnp.all(jnp.isfinite(out)))

    ref = reference_forward(x, params)
    max_err = float(jnp.max(jnp.abs(out - ref)))
    if max_err > 2e-2:
        raise AssertionError(f"Pallas output mismatch vs reference, max abs err = {max_err}")

    print("KERNEL_OK")
</pallas_src>

<mosaic_0001>
module attributes {stable_mosaic.version = 11 : i64} {
  func.func @conv_stats_kernel(%arg0: i32, %arg1: memref<1x24x54xf32, #tpu.memory_space<vmem>>, %arg2: memref<520x312xf32, #tpu.memory_space<vmem>>, %arg3: memref<1x520x2xf32, #tpu.memory_space<vmem>>, %arg4: memref<312x42xf32, #tpu.memory_space<vmem>>) attributes {dimension_semantics = [#tpu.dimension_semantics<parallel>], iteration_bounds = array<i64: 2>, scalar_prefetch = 0 : i64, scratch_operands = 1 : i64, tpu.core_type = #tpu.core_type<tc>, window_params = [{transform_indices = @transform_0, window_bounds = array<i64: 1, 24, 54>}, {pipeline_mode = #tpu.pipeline_mode<synchronous>, transform_indices = @transform_1, window_bounds = array<i64: 520, 312>}, {transform_indices = @transform_2, window_bounds = array<i64: 1, 520, 2>}]} {
    %c0 = arith.constant 0 : index
    %c0_0 = arith.constant 0 : index
    %c0_1 = arith.constant 0 : index
    %0 = vector.load %arg1[%c0, %c0_0, %c0_1] : memref<1x24x54xf32, #tpu.memory_space<vmem>>, vector<1x24x54xf32>
    %1 = vector.shape_cast %0 : vector<1x24x54xf32> to vector<24x54xf32>
    %2 = vector.extract_strided_slice %1 {offsets = [0, 0], sizes = [24, 42], strides = [1, 1]} : vector<24x54xf32> to vector<24x42xf32>
    %c0_2 = arith.constant 0 : index
    %c0_3 = arith.constant 0 : index
    %3 = vector.load %arg4[%c0_2, %c0_3] : memref<312x42xf32, #tpu.memory_space<vmem>>, vector<24x42xf32>
    tpu.vector_store %arg4[%c0_2, %c0_3], %2 {strides = array<i32>} : memref<312x42xf32, #tpu.memory_space<vmem>>, vector<24x42xf32>,
    %4 = vector.extract_strided_slice %1 {offsets = [0, 1], sizes = [24, 42], strides = [1, 1]} : vector<24x54xf32> to vector<24x42xf32>
    %c24 = arith.constant 24 : index
    %c0_4 = arith.constant 0 : index
    %5 = vector.load %arg4[%c24, %c0_4] : memref<312x42xf32, #tpu.memory_space<vmem>>, vector<24x42xf32>
    tpu.vector_store %arg4[%c24, %c0_4], %4 {strides = array<i32>} : memref<312x42xf32, #tpu.memory_space<vmem>>, vector<24x42xf32>,
    %6 = vector.extract_strided_slice %1 {offsets = [0, 2], sizes = [24, 42], strides = [1, 1]} : vector<24x54xf32> to vector<24x42xf32>
    %c48 = arith.constant 48 : index
    %c0_5 = arith.constant 0 : index
    %7 = vector.load %arg4[%c48, %c0_5] : memref<312x42xf32, #tpu.memory_space<vmem>>, vector<24x42xf32>
    tpu.vector_store %arg4[%c48, %c0_5], %6 {strides = array<i32>} : memref<312x42xf32, #tpu.memory_space<vmem>>, vector<24x42xf32>,
    %8 = vector.extract_strided_slice %1 {offsets = [0, 3], sizes = [24, 42], strides = [1, 1]} : vector<24x54xf32> to vector<24x42xf32>
    %c72 = arith.constant 72 : index
    %c0_6 = arith.constant 0 : index
    %9 = vector.load %arg4[%c72, %c0_6] : memref<312x42xf32, #tpu.memory_space<vmem>>, vector<24x42xf32>
    tpu.vector_store %arg4[%c72, %c0_6], %8 {strides = array<i32>} : memref<312x42xf32, #tpu.memory_space<vmem>>, vector<24x42xf32>,
    %10 = vector.extract_strided_slice %1 {offsets = [0, 4], sizes = [24, 42], strides = [1, 1]} : vector<24x54xf32> to vector<24x42xf32>
    %c96 = arith.constant 96 : index
    %c0_7 = arith.constant 0 : index
    %11 = vector.load %arg4[%c96, %c0_7] : memref<312x42xf32, #tpu.memory_space<vmem>>, vector<24x42xf32>
    tpu.vector_store %arg4[%c96, %c0_7], %10 {strides = array<i32>} : memref<312x42xf32, #tpu.memory_space<vmem>>, vector<24x42xf32>,
    %12 = vector.extract_strided_slice %1 {offsets = [0, 5], sizes = [24, 42], strides = [1, 1]} : vector<24x54xf32> to vector<24x42xf32>
    %c120 = arith.constant 120 : index
    %c0_8 = arith.constant 0 : index
    %13 = vector.load %arg4[%c120, %c0_8] : memref<312x42xf32, #tpu.memory_space<vmem>>, vector<24x42xf32>
    tpu.vector_store %arg4[%c120, %c0_8], %12 {strides = array<i32>} : memref<312x42xf32, #tpu.memory_space<vmem>>, vector<24x42xf32>,
    %14 = vector.extract_strided_slice %1 {offsets = [0, 6], sizes = [24, 42], strides = [1, 1]} : vector<24x54xf32> to vector<24x42xf32>
    %c144 = arith.constant 144 : index
    %c0_9 = arith.constant 0 : index
    %15 = vector.load %arg4[%c144, %c0_9] : memref<312x42xf32, #tpu.memory_space<vmem>>, vector<24x42xf32>
    tpu.vector_store %arg4[%c144, %c0_9], %14 {strides = array<i32>} : memref<312x42xf32, #tpu.memory_space<vmem>>, vector<24x42xf32>,
    %16 = vector.extract_strided_slice %1 {offsets = [0, 7], sizes = [24, 42], strides = [1, 1]} : vector<24x54xf32> to vector<24x42xf32>
    %c168 = arith.constant 168 : index
    %c0_10 = arith.constant 0 : index
    %17 = vector.load %arg4[%c168, %c0_10] : memref<312x42xf32, #tpu.memory_space<vmem>>, vector<24x42xf32>
    tpu.vector_store %arg4[%c168, %c0_10], %16 {strides = array<i32>} : memref<312x42xf32, #tpu.memory_space<vmem>>, vector<24x42xf32>,
    %18 = vector.extract_strided_slice %1 {offsets = [0, 8], sizes = [24, 42], strides = [1, 1]} : vector<24x54xf32> to vector<24x42xf32>
    %c192 = arith.constant 192 : index
    %c0_11 = arith.constant 0 : index
    %19 = vector.load %arg4[%c192, %c0_11] : memref<312x42xf32, #tpu.memory_space<vmem>>, vector<24x42xf32>
    tpu.vector_store %arg4[%c192, %c0_11], %18 {strides = array<i32>} : memref<312x42xf32, #tpu.memory_space<vmem>>, vector<24x42xf32>,
    %20 = vector.extract_strided_slice %1 {offsets = [0, 9], sizes = [24, 42], strides = [1, 1]} : vector<24x54xf32> to vector<24x42xf32>
    %c216 = arith.constant 216 : index
    %c0_12 = arith.constant 0 : index
    %21 = vector.load %arg4[%c216, %c0_12] : memref<312x42xf32, #tpu.memory_space<vmem>>, vector<24x42xf32>
    tpu.vector_store %arg4[%c216, %c0_12], %20 {strides = array<i32>} : memref<312x42xf32, #tpu.memory_space<vmem>>, vector<24x42xf32>,
    %22 = vector.extract_strided_slice %1 {offsets = [0, 10], sizes = [24, 42], strides = [1, 1]} : vector<24x54xf32> to vector<24x42xf32>
    %c240 = arith.constant 240 : index
    %c0_13 = arith.constant 0 : index
    %23 = vector.load %arg4[%c240, %c0_13] : memref<312x42xf32, #tpu.memory_space<vmem>>, vector<24x42xf32>
    tpu.vector_store %arg4[%c240, %c0_13], %22 {strides = array<i32>} : memref<312x42xf32, #tpu.memory_space<vmem>>, vector<24x42xf32>,
    %24 = vector.extract_strided_slice %1 {offsets = [0, 11], sizes = [24, 42], strides = [1, 1]} : vector<24x54xf32> to vector<24x42xf32>
    %c264 = arith.constant 264 : index
    %c0_14 = arith.constant 0 : index
    %25 = vector.load %arg4[%c264, %c0_14] : memref<312x42xf32, #tpu.memory_space<vmem>>, vector<24x42xf32>
    tpu.vector_store %arg4[%c264, %c0_14], %24 {strides = array<i32>} : memref<312x42xf32, #tpu.memory_space<vmem>>, vector<24x42xf32>,
    %26 = vector.extract_strided_slice %1 {offsets = [0, 12], sizes = [24, 42], strides = [1, 1]} : vector<24x54xf32> to vector<24x42xf32>
    %c288 = arith.constant 288 : index
    %c0_15 = arith.constant 0 : index
    %27 = vector.load %arg4[%c288, %c0_15] : memref<312x42xf32, #tpu.memory_space<vmem>>, vector<24x42xf32>
    tpu.vector_store %arg4[%c288, %c0_15], %26 {strides = array<i32>} : memref<312x42xf32, #tpu.memory_space<vmem>>, vector<24x42xf32>,
    %c0_16 = arith.constant 0 : index
    %c0_17 = arith.constant 0 : index
    %28 = vector.load %arg2[%c0_16, %c0_17] : memref<520x312xf32, #tpu.memory_space<vmem>>, vector<520x312xf32>
    %c0_18 = arith.constant 0 : index
    %c0_19 = arith.constant 0 : index
    %29 = vector.load %arg4[%c0_18, %c0_19] : memref<312x42xf32, #tpu.memory_space<vmem>>, vector<312x42xf32>
    %cst = arith.constant dense<0.000000e+00> : vector<520x42xf32>
    %30 = tpu.matmul %28, %29, %cst {dimension_numbers = #tpu.dot_dimension_numbers<[1], [0], [0], [1], [0, 0, 1, 1], [], []>} : vector<520x312xf32>, vector<312x42xf32>, vector<520x42xf32> -> vector<520x42xf32>
    %cst_20 = arith.constant dense<0.000000e+00> : vector<520xf32>
    %31 = vector.multi_reduction <add>, %30, %cst_20 [1] : vector<520x42xf32> to vector<520xf32>
    %32 = vector.shape_cast %31 : vector<520xf32> to vector<520x1xf32>
    %33 = arith.mulf %30, %30 : vector<520x42xf32>
    %cst_21 = arith.constant dense<0.000000e+00> : vector<520xf32>
    %34 = vector.multi_reduction <add>, %33, %cst_21 [1] : vector<520x42xf32> to vector<520xf32>
    %35 = vector.shape_cast %34 : vector<520xf32> to vector<520x1xf32>
    %36 = tpu.concatenate %32, %35 in 1 : vector<520x1xf32>, vector<520x1xf32> -> vector<520x2xf32>
    %c0_22 = arith.constant 0 : index
    %c0_23 = arith.constant 0 : index
    %c0_24 = arith.constant 0 : index
    %37 = vector.load %arg3[%c0_22, %c0_23, %c0_24] : memref<1x520x2xf32, #tpu.memory_space<vmem>>, vector<1x520x2xf32>
    %38 = vector.shape_cast %37 : vector<1x520x2xf32> to vector<520x2xf32>
    %39 = vector.shape_cast %36 : vector<520x2xf32> to vector<1x520x2xf32>
    tpu.vector_store %arg3[%c0_22, %c0_23, %c0_24], %39 {strides = array<i32>} : memref<1x520x2xf32, #tpu.memory_space<vmem>>, vector<1x520x2xf32>,
    return
  }
  func.func @transform_0(%arg0: i32) -> (i32, i32, i32) {
    %c0_i32 = arith.constant 0 : i32
    %c0_i32_0 = arith.constant 0 : i32
    %c0_i32_1 = arith.constant 0 : i32
    return %arg0, %c0_i32, %c0_i32_0 : i32, i32, i32
  }
  func.func @transform_1(%arg0: i32) -> (i32, i32) {
    %c0_i32 = arith.constant 0 : i32
    %c0_i32_0 = arith.constant 0 : i32
    %c0_i32_1 = arith.constant 0 : i32
    return %c0_i32, %c0_i32_0 : i32, i32
  }
  func.func @transform_2(%arg0: i32) -> (i32, i32, i32) {
    %c0_i32 = arith.constant 0 : i32
    %c0_i32_0 = arith.constant 0 : i32
    %c0_i32_1 = arith.constant 0 : i32
    return %arg0, %c0_i32, %c0_i32_0 : i32, i32, i32
  }
}

module attributes {stable_mosaic.version = 11 : i64} {
  func.func @bn_pool_fc_kernel(%arg0: i32, %arg1: memref<1x24x54xf32, #tpu.memory_space<vmem>>, %arg2: memref<520x312xf32, #tpu.memory_space<vmem>>, %arg3: memref<520x1xf32, #tpu.memory_space<vmem>>, %arg4: memref<520x1xf32, #tpu.memory_space<vmem>>, %arg5: memref<42x2xf32, #tpu.memory_space<vmem>>, %arg6: memref<4x520x2xf32, #tpu.memory_space<vmem>>, %arg7: memref<4x1xf32, #tpu.memory_space<vmem>>, %arg8: memref<1x4x1xf32, #tpu.memory_space<vmem>>, %arg9: memref<312x42xf32, #tpu.memory_space<vmem>>) attributes {dimension_semantics = [#tpu.dimension_semantics<parallel>], iteration_bounds = array<i64: 2>, scalar_prefetch = 0 : i64, scratch_operands = 1 : i64, tpu.core_type = #tpu.core_type<tc>, window_params = [{transform_indices = @transform_0, window_bounds = array<i64: 1, 24, 54>}, {pipeline_mode = #tpu.pipeline_mode<synchronous>, transform_indices = @transform_1, window_bounds = array<i64: 520, 312>}, {pipeline_mode = #tpu.pipeline_mode<synchronous>, transform_indices = @transform_2, window_bounds = array<i64: 520, 1>}, {pipeline_mode = #tpu.pipeline_mode<synchronous>, transform_indices = @transform_3, window_bounds = array<i64: 520, 1>}, {pipeline_mode = #tpu.pipeline_mode<synchronous>, transform_indices = @transform_4, window_bounds = array<i64: 42, 2>}, {pipeline_mode = #tpu.pipeline_mode<synchronous>, transform_indices = @transform_5, window_bounds = array<i64: 4, 520, 2>}, {pipeline_mode = #tpu.pipeline_mode<synchronous>, transform_indices = @transform_6, window_bounds = array<i64: 4, 1>}, {transform_indices = @transform_7, window_bounds = array<i64: 1, 4, 1>}]} {
    %c0 = arith.constant 0 : index
    %c0_0 = arith.constant 0 : index
    %c0_1 = arith.constant 0 : index
    %0 = vector.load %arg1[%c0, %c0_0, %c0_1] : memref<1x24x54xf32, #tpu.memory_space<vmem>>, vector<1x24x54xf32>
    %1 = vector.shape_cast %0 : vector<1x24x54xf32> to vector<24x54xf32>
    %2 = vector.extract_strided_slice %1 {offsets = [0, 0], sizes = [24, 42], strides = [1, 1]} : vector<24x54xf32> to vector<24x42xf32>
    %c0_2 = arith.constant 0 : index
    %c0_3 = arith.constant 0 : index
    %3 = vector.load %arg9[%c0_2, %c0_3] : memref<312x42xf32, #tpu.memory_space<vmem>>, vector<24x42xf32>
    tpu.vector_store %arg9[%c0_2, %c0_3], %2 {strides = array<i32>} : memref<312x42xf32, #tpu.memory_space<vmem>>, vector<24x42xf32>,
    %4 = vector.extract_strided_slice %1 {offsets = [0, 1], sizes = [24, 42], strides = [1, 1]} : vector<24x54xf32> to vector<24x42xf32>
    %c24 = arith.constant 24 : index
    %c0_4 = arith.constant 0 : index
    %5 = vector.load %arg9[%c24, %c0_4] : memref<312x42xf32, #tpu.memory_space<vmem>>, vector<24x42xf32>
    tpu.vector_store %arg9[%c24, %c0_4], %4 {strides = array<i32>} : memref<312x42xf32, #tpu.memory_space<vmem>>, vector<24x42xf32>,
    %6 = vector.extract_strided_slice %1 {offsets = [0, 2], sizes = [24, 42], strides = [1, 1]} : vector<24x54xf32> to vector<24x42xf32>
    %c48 = arith.constant 48 : index
    %c0_5 = arith.constant 0 : index
    %7 = vector.load %arg9[%c48, %c0_5] : memref<312x42xf32, #tpu.memory_space<vmem>>, vector<24x42xf32>
    tpu.vector_store %arg9[%c48, %c0_5], %6 {strides = array<i32>} : memref<312x42xf32, #tpu.memory_space<vmem>>, vector<24x42xf32>,
    %8 = vector.extract_strided_slice %1 {offsets = [0, 3], sizes = [24, 42], strides = [1, 1]} : vector<24x54xf32> to vector<24x42xf32>
    %c72 = arith.constant 72 : index
    %c0_6 = arith.constant 0 : index
    %9 = vector.load %arg9[%c72, %c0_6] : memref<312x42xf32, #tpu.memory_space<vmem>>, vector<24x42xf32>
    tpu.vector_store %arg9[%c72, %c0_6], %8 {strides = array<i32>} : memref<312x42xf32, #tpu.memory_space<vmem>>, vector<24x42xf32>,
    %10 = vector.extract_strided_slice %1 {offsets = [0, 4], sizes = [24, 42], strides = [1, 1]} : vector<24x54xf32> to vector<24x42xf32>
    %c96 = arith.constant 96 : index
    %c0_7 = arith.constant 0 : index
    %11 = vector.load %arg9[%c96, %c0_7] : memref<312x42xf32, #tpu.memory_space<vmem>>, vector<24x42xf32>
    tpu.vector_store %arg9[%c96, %c0_7], %10 {strides = array<i32>} : memref<312x42xf32, #tpu.memory_space<vmem>>, vector<24x42xf32>,
    %12 = vector.extract_strided_slice %1 {offsets = [0, 5], sizes = [24, 42], strides = [1, 1]} : vector<24x54xf32> to vector<24x42xf32>
    %c120 = arith.constant 120 : index
    %c0_8 = arith.constant 0 : index
    %13 = vector.load %arg9[%c120, %c0_8] : memref<312x42xf32, #tpu.memory_space<vmem>>, vector<24x42xf32>
    tpu.vector_store %arg9[%c120, %c0_8], %12 {strides = array<i32>} : memref<312x42xf32, #tpu.memory_space<vmem>>, vector<24x42xf32>,
    %14 = vector.extract_strided_slice %1 {offsets = [0, 6], sizes = [24, 42], strides = [1, 1]} : vector<24x54xf32> to vector<24x42xf32>
    %c144 = arith.constant 144 : index
    %c0_9 = arith.constant 0 : index
    %15 = vector.load %arg9[%c144, %c0_9] : memref<312x42xf32, #tpu.memory_space<vmem>>, vector<24x42xf32>
    tpu.vector_store %arg9[%c144, %c0_9], %14 {strides = array<i32>} : memref<312x42xf32, #tpu.memory_space<vmem>>, vector<24x42xf32>,
    %16 = vector.extract_strided_slice %1 {offsets = [0, 7], sizes = [24, 42], strides = [1, 1]} : vector<24x54xf32> to vector<24x42xf32>
    %c168 = arith.constant 168 : index
    %c0_10 = arith.constant 0 : index
    %17 = vector.load %arg9[%c168, %c0_10] : memref<312x42xf32, #tpu.memory_space<vmem>>, vector<24x42xf32>
    tpu.vector_store %arg9[%c168, %c0_10], %16 {strides = array<i32>} : memref<312x42xf32, #tpu.memory_space<vmem>>, vector<24x42xf32>,
    %18 = vector.extract_strided_slice %1 {offsets = [0, 8], sizes = [24, 42], strides = [1, 1]} : vector<24x54xf32> to vector<24x42xf32>
    %c192 = arith.constant 192 : index
    %c0_11 = arith.constant 0 : index
    %19 = vector.load %arg9[%c192, %c0_11] : memref<312x42xf32, #tpu.memory_space<vmem>>, vector<24x42xf32>
    tpu.vector_store %arg9[%c192, %c0_11], %18 {strides = array<i32>} : memref<312x42xf32, #tpu.memory_space<vmem>>, vector<24x42xf32>,
    %20 = vector.extract_strided_slice %1 {offsets = [0, 9], sizes = [24, 42], strides = [1, 1]} : vector<24x54xf32> to vector<24x42xf32>
    %c216 = arith.constant 216 : index
    %c0_12 = arith.constant 0 : index
    %21 = vector.load %arg9[%c216, %c0_12] : memref<312x42xf32, #tpu.memory_space<vmem>>, vector<24x42xf32>
    tpu.vector_store %arg9[%c216, %c0_12], %20 {strides = array<i32>} : memref<312x42xf32, #tpu.memory_space<vmem>>, vector<24x42xf32>,
    %22 = vector.extract_strided_slice %1 {offsets = [0, 10], sizes = [24, 42], strides = [1, 1]} : vector<24x54xf32> to vector<24x42xf32>
    %c240 = arith.constant 240 : index
    %c0_13 = arith.constant 0 : index
    %23 = vector.load %arg9[%c240, %c0_13] : memref<312x42xf32, #tpu.memory_space<vmem>>, vector<24x42xf32>
    tpu.vector_store %arg9[%c240, %c0_13], %22 {strides = array<i32>} : memref<312x42xf32, #tpu.memory_space<vmem>>, vector<24x42xf32>,
    %24 = vector.extract_strided_slice %1 {offsets = [0, 11], sizes = [24, 42], strides = [1, 1]} : vector<24x54xf32> to vector<24x42xf32>
    %c264 = arith.constant 264 : index
    %c0_14 = arith.constant 0 : index
    %25 = vector.load %arg9[%c264, %c0_14] : memref<312x42xf32, #tpu.memory_space<vmem>>, vector<24x42xf32>
    tpu.vector_store %arg9[%c264, %c0_14], %24 {strides = array<i32>} : memref<312x42xf32, #tpu.memory_space<vmem>>, vector<24x42xf32>,
    %26 = vector.extract_strided_slice %1 {offsets = [0, 12], sizes = [24, 42], strides = [1, 1]} : vector<24x54xf32> to vector<24x42xf32>
    %c288 = arith.constant 288 : index
    %c0_15 = arith.constant 0 : index
    %27 = vector.load %arg9[%c288, %c0_15] : memref<312x42xf32, #tpu.memory_space<vmem>>, vector<24x42xf32>
    tpu.vector_store %arg9[%c288, %c0_15], %26 {strides = array<i32>} : memref<312x42xf32, #tpu.memory_space<vmem>>, vector<24x42xf32>,
    %c0_16 = arith.constant 0 : index
    %c0_17 = arith.constant 0 : index
    %28 = vector.load %arg2[%c0_16, %c0_17] : memref<520x312xf32, #tpu.memory_space<vmem>>, vector<520x312xf32>
    %c0_18 = arith.constant 0 : index
    %c0_19 = arith.constant 0 : index
    %29 = vector.load %arg9[%c0_18, %c0_19] : memref<312x42xf32, #tpu.memory_space<vmem>>, vector<312x42xf32>
    %cst = arith.constant dense<0.000000e+00> : vector<520x42xf32>
    %30 = tpu.matmul %28, %29, %cst {dimension_numbers = #tpu.dot_dimension_numbers<[1], [0], [0], [1], [0, 0, 1, 1], [], []>} : vector<520x312xf32>, vector<312x42xf32>, vector<520x42xf32> -> vector<520x42xf32>
    %c0_20 = arith.constant 0 : index
    %c0_21 = arith.constant 0 : index
    %31 = vector.load %arg3[%c0_20, %c0_21] : memref<520x1xf32, #tpu.memory_space<vmem>>, vector<520x1xf32>
    %32 = vector.broadcast %31 : vector<520x1xf32> to vector<520x42xf32>
    %33 = arith.mulf %30, %32 : vector<520x42xf32>
    %c0_22 = arith.constant 0 : index
    %c0_23 = arith.constant 0 : index
    %34 = vector.load %arg4[%c0_22, %c0_23] : memref<520x1xf32, #tpu.memory_space<vmem>>, vector<520x1xf32>
    %35 = vector.broadcast %34 : vector<520x1xf32> to vector<520x42xf32>
    %36 = arith.addf %33, %35 : vector<520x42xf32>
    %37 = arith.mulf %36, %36 : vector<520x42xf32>
    %c0_24 = arith.constant 0 : index
    %c0_25 = arith.constant 0 : index
    %38 = vector.load %arg5[%c0_24, %c0_25] : memref<42x2xf32, #tpu.memory_space<vmem>>, vector<42x2xf32>
    %cst_26 = arith.constant dense<0.000000e+00> : vector<520x2xf32>
    %39 = tpu.matmul %37, %38, %cst_26 {dimension_numbers = #tpu.dot_dimension_numbers<[1], [0], [0], [1], [0, 0, 1, 1], [], []>} : vector<520x42xf32>, vector<42x2xf32>, vector<520x2xf32> -> vector<520x2xf32>
    %40 = math.log %39 : vector<520x2xf32>
    %c0_27 = arith.constant 0 : index
    %c0_28 = arith.constant 0 : index
    %c0_29 = arith.constant 0 : index
    %41 = vector.load %arg6[%c0_27, %c0_28, %c0_29] : memref<4x520x2xf32, #tpu.memory_space<vmem>>, vector<4x520x2xf32>
    %42 = vector.shape_cast %40 : vector<520x2xf32> to vector<1x520x2xf32>
    %43 = vector.broadcast %42 : vector<1x520x2xf32> to vector<4x520x2xf32>
    %44 = arith.mulf %41, %43 : vector<4x520x2xf32>
    %cst_30 = arith.constant dense<0.000000e+00> : vector<4x520xf32>
    %45 = vector.multi_reduction <add>, %44, %cst_30 [2] : vector<4x520x2xf32> to vector<4x520xf32>
    %cst_31 = arith.constant dense<0.000000e+00> : vector<4xf32>
    %46 = vector.multi_reduction <add>, %45, %cst_31 [1] : vector<4x520xf32> to vector<4xf32>
    %47 = vector.shape_cast %46 : vector<4xf32> to vector<4x1xf32>
    %c0_32 = arith.constant 0 : index
    %c0_33 = arith.constant 0 : index
    %48 = vector.load %arg7[%c0_32, %c0_33] : memref<4x1xf32, #tpu.memory_space<vmem>>, vector<4x1xf32>
    %49 = arith.addf %47, %48 : vector<4x1xf32>
    %c0_34 = arith.constant 0 : index
    %c0_35 = arith.constant 0 : index
    %c0_36 = arith.constant 0 : index
    %50 = vector.load %arg8[%c0_34, %c0_35, %c0_36] : memref<1x4x1xf32, #tpu.memory_space<vmem>>, vector<1x4x1xf32>
    %51 = vector.shape_cast %50 : vector<1x4x1xf32> to vector<4x1xf32>
    %52 = vector.shape_cast %49 : vector<4x1xf32> to vector<1x4x1xf32>
    tpu.vector_store %arg8[%c0_34, %c0_35, %c0_36], %52 {strides = array<i32>} : memref<1x4x1xf32, #tpu.memory_space<vmem>>, vector<1x4x1xf32>,
    return
  }
  func.func @transform_0(%arg0: i32) -> (i32, i32, i32) {
    %c0_i32 = arith.constant 0 : i32
    %c0_i32_0 = arith.constant 0 : i32
    %c0_i32_1 = arith.constant 0 : i32
    return %arg0, %c0_i32, %c0_i32_0 : i32, i32, i32
  }
  func.func @transform_1(%arg0: i32) -> (i32, i32) {
    %c0_i32 = arith.constant 0 : i32
    %c0_i32_0 = arith.constant 0 : i32
    %c0_i32_1 = arith.constant 0 : i32
    return %c0_i32, %c0_i32_0 : i32, i32
  }
  func.func @transform_2(%arg0: i32) -> (i32, i32) {
    %c0_i32 = arith.constant 0 : i32
    %c0_i32_0 = arith.constant 0 : i32
    %c0_i32_1 = arith.constant 0 : i32
    return %c0_i32, %c0_i32_0 : i32, i32
  }
  func.func @transform_3(%arg0: i32) -> (i32, i32) {
    %c0_i32 = arith.constant 0 : i32
    %c0_i32_0 = arith.constant 0 : i32
    %c0_i32_1 = arith.constant 0 : i32
    return %c0_i32, %c0_i32_0 : i32, i32
  }
  func.func @transform_4(%arg0: i32) -> (i32, i32) {
    %c0_i32 = arith.constant 0 : i32
    %c0_i32_0 = arith.constant 0 : i32
    %c0_i32_1 = arith.constant 0 : i32
    return %c0_i32, %c0_i32_0 : i32, i32
  }
  func.func @transform_5(%arg0: i32) -> (i32, i32, i32) {
    %c0_i32 = arith.constant 0 : i32
    %c0_i32_0 = arith.constant 0 : i32
    %c0_i32_1 = arith.constant 0 : i32
    %c0_i32_2 = arith.constant 0 : i32
    return %c0_i32, %c0_i32_0, %c0_i32_1 : i32, i32, i32
  }
  func.func @transform_6(%arg0: i32) -> (i32, i32) {
    %c0_i32 = arith.constant 0 : i32
    %c0_i32_0 = arith.constant 0 : i32
    %c0_i32_1 = arith.constant 0 : i32
    return %c0_i32, %c0_i32_0 : i32, i32
  }
  func.func @transform_7(%arg0: i32) -> (i32, i32, i32) {
    %c0_i32 = arith.constant 0 : i32
    %c0_i32_0 = arith.constant 0 : i32
    %c0_i32_1 = arith.constant 0 : i32
    return %arg0, %c0_i32, %c0_i32_0 : i32, i32, i32
  }
}

</mosaic_0001>

<llo_original>
// kernel: tile.18
$region0: #{tile.18}
  #allocation0 [shape = 's32[1]{0}', space=sflag, size = 0x4, scoped, tag = 'scoped memory for tile.18']
  %s0 = inlined_call_operand.vmem [shape: f32[40], index: 0, kind: input, shape index: {}]
  %s1 = inlined_call_operand.vmem [shape: f32[13,40], index: 1, kind: output, shape index: {}]
  // Predicated region
  $region2: #{tile.18} parent=0 // pred_check
    _
  $region3: #{tile.18} parent=0 // pred_check_branch
    %3 = sbr.rel (0) target = $region5
  $region4: #{tile.18} parent=0 // pred_region
    _
  $region5: #{tile.18} parent=0 // pred_fallthru
    _
  %v4 = vld [vmem:[%s0] ss:$0 sm:$0xff]
  %5 = vst [vmem:[%s1] sm:$0xff] %v4
  %s6 = scalar_lea.vmem %s1, 8
  %7 = vst [vmem:[%s6] sm:$0xff] %v4

// kernel: tile.0
$region0: #{tile.0}
  %s0 = inlined_call_operand.vmem [shape: f32[13,40], index: 0, kind: input, shape index: {}]
  %s1 = inlined_call_operand.vmem [shape: f32[520,1], index: 1, kind: output, shape index: {}]
  %v2 = vld [vmem:[%s0] sm:$0xff]
  %vm3 = vcmask 7168
  %4 = vst.msk [vmem:[%s1] ss:$40 sm:$0xf] %vm3, %v2
  %5 = vst.msk [vmem:[%s1] ss:$40 sm:$0xf0] %vm3, %v2
  %s6 = scalar_lea.vmem %s0, 8
  %v7 = vld [vmem:[%s6] sm:$0x1f]
  %vm8 = vcmask 7168
  %s9 = scalar_lea.vmem %s1, 320
  %10 = vst.msk [vmem:[%s9] ss:$40 sm:$0xf] %vm8, %v7
  %s11 = scalar_lea.vmem %s1, 476
  %12 = vst.msk [vmem:[%s11] sm:$0x10] %vm8, %v7
  %v13 = vld [vmem:[%s0] sm:$0xff]
  %14 = vrot.lane.b32.xlu0 %v13, 127
  %v15 = vpop.permute.xlu0 %14
  %vm16 = vcmask 7168
  %s17 = scalar_lea.vmem %s1, 1
  %18 = vst.msk [vmem:[%s17] ss:$40 sm:$0xf] %vm16, %v15
  %s19 = scalar_lea.vmem %s1, 1
  %20 = vst.msk [vmem:[%s19] ss:$40 sm:$0xf0] %vm16, %v15
  %s21 = scalar_lea.vmem %s0, 8
  %v22 = vld [vmem:[%s21] sm:$0x1f]
  %23 = vrot.lane.b32.xlu0 %v22, 127
  %v24 = vpop.permute.xlu0 %23
  %vm25 = vcmask 7168
  %s26 = scalar_lea.vmem %s1, 321
  %27 = vst.msk [vmem:[%s26] ss:$40 sm:$0xf] %vm25, %v24
  %s28 = scalar_lea.vmem %s1, 477
  %29 = vst.msk [vmem:[%s28] sm:$0x10] %vm25, %v24
  %v30 = vld [vmem:[%s0] sm:$0xff]
  %31 = vrot.lane.b32.xlu0 %v30, 126
  %v32 = vpop.permute.xlu0 %31
  %vm33 = vcmask 7168
  %s34 = scalar_lea.vmem %s1, 2
  %35 = vst.msk [vmem:[%s34] ss:$40 sm:$0xf] %vm33, %v32
  %s36 = scalar_lea.vmem %s1, 2
  %37 = vst.msk [vmem:[%s36] ss:$40 sm:$0xf0] %vm33, %v32
  %s38 = scalar_lea.vmem %s0, 8
  %v39 = vld [vmem:[%s38] sm:$0x1f]
  %40 = vrot.lane.b32.xlu0 %v39, 126
  %v41 = vpop.permute.xlu0 %40
  %vm42 = vcmask 7168
  %s43 = scalar_lea.vmem %s1, 322
  %44 = vst.msk [vmem:[%s43] ss:$40 sm:$0xf] %vm42, %v41
  %s45 = scalar_lea.vmem %s1, 478
  %46 = vst.msk [vmem:[%s45] sm:$0x10] %vm42, %v41
  %v47 = vld [vmem:[%s0] sm:$0xff]
  %48 = vrot.lane.b32.xlu0 %v47, 125
  %v49 = vpop.permute.xlu0 %48
  %vm50 = vcmask 7168
  %s51 = scalar_lea.vmem %s1, 3
  %52 = vst.msk [vmem:[%s51] ss:$40 sm:$0xf] %vm50, %v49
  %s53 = scalar_lea.vmem %s1, 3
  %54 = vst.msk [vmem:[%s53] ss:$40 sm:$0xf0] %vm50, %v49
  %s55 = scalar_lea.vmem %s0, 8
  %v56 = vld [vmem:[%s55] sm:$0x1f]
  %57 = vrot.lane.b32.xlu0 %v56, 125
  %v58 = vpop.permute.xlu0 %57
  %vm59 = vcmask 7168
  %s60 = scalar_lea.vmem %s1, 323
  %61 = vst.msk [vmem:[%s60] ss:$40 sm:$0xf] %vm59, %v58
  %s62 = scalar_lea.vmem %s1, 479
  %63 = vst.msk [vmem:[%s62] sm:$0x10] %vm59, %v58
  %v64 = vld [vmem:[%s0] sm:$0xff]
  %65 = vrot.lane.b32.xlu0 %v64, 124
  %v66 = vpop.permute.xlu0 %65
  %vm67 = vcmask 7168
  %s68 = scalar_lea.vmem %s1, 4
  %69 = vst.msk [vmem:[%s68] ss:$40 sm:$0xf] %vm67, %v66
  %s70 = scalar_lea.vmem %s1, 4
  %71 = vst.msk [vmem:[%s70] ss:$40 sm:$0xf0] %vm67, %v66
  %s72 = scalar_lea.vmem %s0, 8
  %v73 = vld [vmem:[%s72] sm:$0x1f]
  %74 = vrot.lane.b32.xlu0 %v73, 124
  %v75 = vpop.permute.xlu0 %74
  %vm76 = vcmask 7168
  %s77 = scalar_lea.vmem %s1, 324
  %78 = vst.msk [vmem:[%s77] ss:$40 sm:$0xf] %vm76, %v75
  %s79 = scalar_lea.vmem %s1, 480
  %80 = vst.msk [vmem:[%s79] sm:$0x10] %vm76, %v75
  %v81 = vld [vmem:[%s0] sm:$0xff]
  %82 = vrot.lane.b32.xlu0 %v81, 123
  %v83 = vpop.permute.xlu0 %82
  %vm84 = vcmask 7168
  %s85 = scalar_lea.vmem %s1, 5
  %86 = vst.msk [vmem:[%s85] ss:$40 sm:$0xf] %vm84, %v83
  %s87 = scalar_lea.vmem %s1, 5
  %88 = vst.msk [vmem:[%s87] ss:$40 sm:$0xf0] %vm84, %v83
  %s89 = scalar_lea.vmem %s0, 8
  %v90 = vld [vmem:[%s89] sm:$0x1f]
  %91 = vrot.lane.b32.xlu0 %v90, 123
  %v92 = vpop.permute.xlu0 %91
  %vm93 = vcmask 7168
  %s94 = scalar_lea.vmem %s1, 325
  %95 = vst.msk [vmem:[%s94] ss:$40 sm:$0xf] %vm93, %v92
  %s96 = scalar_lea.vmem %s1, 481
  %97 = vst.msk [vmem:[%s96] sm:$0x10] %vm93, %v92
  %v98 = vld [vmem:[%s0] sm:$0xff]
  %99 = vrot.lane.b32.xlu0 %v98, 122
  %v100 = vpop.permute.xlu0 %99
  %vm101 = vcmask 7168
  %s102 = scalar_lea.vmem %s1, 6
  %103 = vst.msk [vmem:[%s102] ss:$40 sm:$0xf] %vm101, %v100
  %s104 = scalar_lea.vmem %s1, 6
  %105 = vst.msk [vmem:[%s104] ss:$40 sm:$0xf0] %vm101, %v100
  %s106 = scalar_lea.vmem %s0, 8
  %v107 = vld [vmem:[%s106] sm:$0x1f]
  %108 = vrot.lane.b32.xlu0 %v107, 122
  %v109 = vpop.permute.xlu0 %108
  %vm110 = vcmask 7168
  %s111 = scalar_lea.vmem %s1, 326
  %112 = vst.msk [vmem:[%s111] ss:$40 sm:$0xf] %vm110, %v109
  %s113 = scalar_lea.vmem %s1, 482
  %114 = vst.msk [vmem:[%s113] sm:$0x10] %vm110, %v109
  %v115 = vld [vmem:[%s0] sm:$0xff]
  %116 = vrot.lane.b32.xlu0 %v115, 121
  %v117 = vpop.permute.xlu0 %116
  %vm118 = vcmask 7168
  %s119 = scalar_lea.vmem %s1, 7
  %120 = vst.msk [vmem:[%s119] ss:$40 sm:$0xf] %vm118, %v117
  %s121 = scalar_lea.vmem %s1, 7
  %122 = vst.msk [vmem:[%s121] ss:$40 sm:$0xf0] %vm118, %v117
  %s123 = scalar_lea.vmem %s0, 8
  %v124 = vld [vmem:[%s123] sm:$0x1f]
  %125 = vrot.lane.b32.xlu0 %v124, 121
  %v126 = vpop.permute.xlu0 %125
  %vm127 = vcmask 7168
  %s128 = scalar_lea.vmem %s1, 327
  %129 = vst.msk [vmem:[%s128] ss:$40 sm:$0xf] %vm127, %v126
  %s130 = scalar_lea.vmem %s1, 483
  %131 = vst.msk [vmem:[%s130] sm:$0x10] %vm127, %v126
  %v132 = vld.sshfl [vmem:[%s0] sm:$0xff pattern:$0x65472103]
  %133 = vrot.lane.b32.xlu0 %v132, 120
  %v134 = vpop.permute.xlu0 %133
  %vm135 = vcmask 7168
  %s136 = scalar_lea.vmem %s1, 128
  %137 = vst.msk [vmem:[%s136] ss:$-120 sm:$0x3] %vm135, %v134
  %s138 = scalar_lea.vmem %s1, 4294967264
  %139 = vst.msk [vmem:[%s138] ss:$40 sm:$0xc] %vm135, %v134
  %s140 = scalar_lea.vmem %s1, 768
  %141 = vst.msk [vmem:[%s140] ss:$-120 sm:$0x30] %vm135, %v134
  %s142 = scalar_lea.vmem %s1, 4294967264
  %143 = vst.msk [vmem:[%s142] ss:$40 sm:$0xc0] %vm135, %v134
  %s144 = scalar_lea.vmem %s0, 8
  %v145 = vld.sshfl [vmem:[%s144] sm:$0xff pattern:$0x44442103]
  %146 = vrot.lane.b32.xlu0 %v145, 120
  %v147 = vpop.permute.xlu0 %146
  %vm148 = vcmask 7168
  %s149 = scalar_lea.vmem %s1, 448
  %150 = vst.msk [vmem:[%s149] ss:$-120 sm:$0x3] %vm148, %v147
  %s151 = scalar_lea.vmem %s1, 288
  %152 = vst.msk [vmem:[%s151] ss:$40 sm:$0xc] %vm148, %v147
  %s153 = scalar_lea.vmem %s1, 484
  %154 = vst.msk [vmem:[%s153] sm:$0x10] %vm148, %v147
  %v155 = vld.sshfl [vmem:[%s0] sm:$0xff pattern:$0x65472103]
  %156 = vrot.lane.b32.xlu0 %v155, 119
  %v157 = vpop.permute.xlu0 %156
  %vm158 = vcmask 7168
  %s159 = scalar_lea.vmem %s1, 129
  %160 = vst.msk [vmem:[%s159] ss:$-120 sm:$0x3] %vm158, %v157
  %s161 = scalar_lea.vmem %s1, 4294967265
  %162 = vst.msk [vmem:[%s161] ss:$40 sm:$0xc] %vm158, %v157
  %s163 = scalar_lea.vmem %s1, 769
  %164 = vst.msk [vmem:[%s163] ss:$-120 sm:$0x30] %vm158, %v157
  %s165 = scalar_lea.vmem %s1, 4294967265
  %166 = vst.msk [vmem:[%s165] ss:$40 sm:$0xc0] %vm158, %v157
  %s167 = scalar_lea.vmem %s0, 8
  %v168 = vld.sshfl [vmem:[%s167] sm:$0xff pattern:$0x44442103]
  %169 = vrot.lane.b32.xlu0 %v168, 119
  %v170 = vpop.permute.xlu0 %169
  %vm171 = vcmask 7168
  %s172 = scalar_lea.vmem %s1, 449
  %173 = vst.msk [vmem:[%s172] ss:$-120 sm:$0x3] %vm171, %v170
  %s174 = scalar_lea.vmem %s1, 289
  %175 = vst.msk [vmem:[%s174] ss:$40 sm:$0xc] %vm171, %v170
  %s176 = scalar_lea.vmem %s1, 485
  %177 = vst.msk [vmem:[%s176] sm:$0x10] %vm171, %v170
  %v178 = vld.sshfl [vmem:[%s0] sm:$0xff pattern:$0x65472103]
  %179 = vrot.lane.b32.xlu0 %v178, 118
  %v180 = vpop.permute.xlu0 %179
  %vm181 = vcmask 7168
  %s182 = scalar_lea.vmem %s1, 130
  %183 = vst.msk [vmem:[%s182] ss:$-120 sm:$0x3] %vm181, %v180
  %s184 = scalar_lea.vmem %s1, 4294967266
  %185 = vst.msk [vmem:[%s184] ss:$40 sm:$0xc] %vm181, %v180
  %s186 = scalar_lea.vmem %s1, 770
  %187 = vst.msk [vmem:[%s186] ss:$-120 sm:$0x30] %vm181, %v180
  %s188 = scalar_lea.vmem %s1, 4294967266
  %189 = vst.msk [vmem:[%s188] ss:$40 sm:$0xc0] %vm181, %v180
  %s190 = scalar_lea.vmem %s0, 8
  %v191 = vld.sshfl [vmem:[%s190] sm:$0xff pattern:$0x44442103]
  %192 = vrot.lane.b32.xlu0 %v191, 118
  %v193 = vpop.permute.xlu0 %192
  %vm194 = vcmask 7168
  %s195 = scalar_lea.vmem %s1, 450
  %196 = vst.msk [vmem:[%s195] ss:$-120 sm:$0x3] %vm194, %v193
  %s197 = scalar_lea.vmem %s1, 290
  %198 = vst.msk [vmem:[%s197] ss:$40 sm:$0xc] %vm194, %v193
  %s199 = scalar_lea.vmem %s1, 486
  %200 = vst.msk [vmem:[%s199] sm:$0x10] %vm194, %v193
  %v201 = vld.sshfl [vmem:[%s0] sm:$0xff pattern:$0x65472103]
  %202 = vrot.lane.b32.xlu0 %v201, 117
  %v203 = vpop.permute.xlu0 %202
  %vm204 = vcmask 7168
  %s205 = scalar_lea.vmem %s1, 131
  %206 = vst.msk [vmem:[%s205] ss:$-120 sm:$0x3] %vm204, %v203
  %s207 = scalar_lea.vmem %s1, 4294967267
  %208 = vst.msk [vmem:[%s207] ss:$40 sm:$0xc] %vm204, %v203
  %s209 = scalar_lea.vmem %s1, 771
  %210 = vst.msk [vmem:[%s209] ss:$-120 sm:$0x30] %vm204, %v203
  %s211 = scalar_lea.vmem %s1, 4294967267
  %212 = vst.msk [vmem:[%s211] ss:$40 sm:$0xc0] %vm204, %v203
  %s213 = scalar_lea.vmem %s0, 8
  %v214 = vld.sshfl [vmem:[%s213] sm:$0xff pattern:$0x44442103]
  %215 = vrot.lane.b32.xlu0 %v214, 117
  %v216 = vpop.permute.xlu0 %215
  %vm217 = vcmask 7168
  %s218 = scalar_lea.vmem %s1, 451
  %219 = vst.msk [vmem:[%s218] ss:$-120 sm:$0x3] %vm217, %v216
  %s220 = scalar_lea.vmem %s1, 291
  %221 = vst.msk [vmem:[%s220] ss:$40 sm:$0xc] %vm217, %v216
  %s222 = scalar_lea.vmem %s1, 487
  %223 = vst.msk [vmem:[%s222] sm:$0x10] %vm217, %v216
  %v224 = vld.sshfl [vmem:[%s0] sm:$0xff pattern:$0x65472103]
  %225 = vrot.lane.b32.xlu0 %v224, 116
  %v226 = vpop.permute.xlu0 %225
  %vm227 = vcmask 7168
  %s228 = scalar_lea.vmem %s1, 132
  %229 = vst.msk [vmem:[%s228] ss:$-120 sm:$0x3] %vm227, %v226
  %s230 = scalar_lea.vmem %s1, 4294967268
  %231 = vst.msk [vmem:[%s230] ss:$40 sm:$0xc] %vm227, %v226
  %s232 = scalar_lea.vmem %s1, 772
  %233 = vst.msk [vmem:[%s232] ss:$-120 sm:$0x30] %vm227, %v226
  %s234 = scalar_lea.vmem %s1, 4294967268
  %235 = vst.msk [vmem:[%s234] ss:$40 sm:$0xc0] %vm227, %v226
  %s236 = scalar_lea.vmem %s0, 8
  %v237 = vld.sshfl [vmem:[%s236] sm:$0xff pattern:$0x44442103]
  %238 = vrot.lane.b32.xlu0 %v237, 116
  %v239 = vpop.permute.xlu0 %238
  %vm240 = vcmask 7168
  %s241 = scalar_lea.vmem %s1, 452
  %242 = vst.msk [vmem:[%s241] ss:$-120 sm:$0x3] %vm240, %v239
  %s243 = scalar_lea.vmem %s1, 292
  %244 = vst.msk [vmem:[%s243] ss:$40 sm:$0xc] %vm240, %v239
  %s245 = scalar_lea.vmem %s1, 488
  %246 = vst.msk [vmem:[%s245] sm:$0x10] %vm240, %v239
  %v247 = vld.sshfl [vmem:[%s0] sm:$0xff pattern:$0x65472103]
  %248 = vrot.lane.b32.xlu0 %v247, 115
  %v249 = vpop.permute.xlu0 %248
  %vm250 = vcmask 7168
  %s251 = scalar_lea.vmem %s1, 133
  %252 = vst.msk [vmem:[%s251] ss:$-120 sm:$0x3] %vm250, %v249
  %s253 = scalar_lea.vmem %s1, 4294967269
  %254 = vst.msk [vmem:[%s253] ss:$40 sm:$0xc] %vm250, %v249
  %s255 = scalar_lea.vmem %s1, 773
  %256 = vst.msk [vmem:[%s255] ss:$-120 sm:$0x30] %vm250, %v249
  %s257 = scalar_lea.vmem %s1, 4294967269
  %258 = vst.msk [vmem:[%s257] ss:$40 sm:$0xc0] %vm250, %v249
  %s259 = scalar_lea.vmem %s0, 8
  %v260 = vld.sshfl [vmem:[%s259] sm:$0xff pattern:$0x44442103]
  %261 = vrot.lane.b32.xlu0 %v260, 115
  %v262 = vpop.permute.xlu0 %261
  %vm263 = vcmask 7168
  %s264 = scalar_lea.vmem %s1, 453
  %265 = vst.msk [vmem:[%s264] ss:$-120 sm:$0x3] %vm263, %v262
  %s266 = scalar_lea.vmem %s1, 293
  %267 = vst.msk [vmem:[%s266] ss:$40 sm:$0xc] %vm263, %v262
  %s268 = scalar_lea.vmem %s1, 489
  %269 = vst.msk [vmem:[%s268] sm:$0x10] %vm263, %v262
  %v270 = vld.sshfl [vmem:[%s0] sm:$0xff pattern:$0x65472103]
  %271 = vrot.lane.b32.xlu0 %v270, 114
  %v272 = vpop.permute.xlu0 %271
  %vm273 = vcmask 7168
  %s274 = scalar_lea.vmem %s1, 134
  %275 = vst.msk [vmem:[%s274] ss:$-120 sm:$0x3] %vm273, %v272
  %s276 = scalar_lea.vmem %s1, 4294967270
  %277 = vst.msk [vmem:[%s276] ss:$40 sm:$0xc] %vm273, %v272
  %s278 = scalar_lea.vmem %s1, 774
  %279 = vst.msk [vmem:[%s278] ss:$-120 sm:$0x30] %vm273, %v272
  %s280 = scalar_lea.vmem %s1, 4294967270
  %281 = vst.msk [vmem:[%s280] ss:$40 sm:$0xc0] %vm273, %v272
  %s282 = scalar_lea.vmem %s0, 8
  %v283 = vld.sshfl [vmem:[%s282] sm:$0xff pattern:$0x44442103]
  %284 = vrot.lane.b32.xlu0 %v283, 114
  %v285 = vpop.permute.xlu0 %284
  %vm286 = vcmask 7168
  %s287 = scalar_lea.vmem %s1, 454
  %288 = vst.msk [vmem:[%s287] ss:$-120 sm:$0x3] %vm286, %v285
  %s289 = scalar_lea.vmem %s1, 294
  %290 = vst.msk [vmem:[%s289] ss:$40 sm:$0xc] %vm286, %v285
  %s291 = scalar_lea.vmem %s1, 490
  %292 = vst.msk [vmem:[%s291] sm:$0x10] %vm286, %v285
  %v293 = vld.sshfl [vmem:[%s0] sm:$0xff pattern:$0x65472103]
  %294 = vrot.lane.b32.xlu0 %v293, 113
  %v295 = vpop.permute.xlu0 %294
  %vm296 = vcmask 7168
  %s297 = scalar_lea.vmem %s1, 135
  %298 = vst.msk [vmem:[%s297] ss:$-120 sm:$0x3] %vm296, %v295
  %s299 = scalar_lea.vmem %s1, 4294967271
  %300 = vst.msk [vmem:[%s299] ss:$40 sm:$0xc] %vm296, %v295
  %s301 = scalar_lea.vmem %s1, 775
  %302 = vst.msk [vmem:[%s301] ss:$-120 sm:$0x30] %vm296, %v295
  %s303 = scalar_lea.vmem %s1, 4294967271
  %304 = vst.msk [vmem:[%s303] ss:$40 sm:$0xc0] %vm296, %v295
  %s305 = scalar_lea.vmem %s0, 8
  %v306 = vld.sshfl [vmem:[%s305] sm:$0xff pattern:$0x44442103]
  %307 = vrot.lane.b32.xlu0 %v306, 113
  %v308 = vpop.permute.xlu0 %307
  %vm309 = vcmask 7168
  %s310 = scalar_lea.vmem %s1, 455
  %311 = vst.msk [vmem:[%s310] ss:$-120 sm:$0x3] %vm309, %v308
  %s312 = scalar_lea.vmem %s1, 295
  %313 = vst.msk [vmem:[%s312] ss:$40 sm:$0xc] %vm309, %v308
  %s314 = scalar_lea.vmem %s1, 491
  %315 = vst.msk [vmem:[%s314] sm:$0x10] %vm309, %v308
  %v316 = vld.sshfl [vmem:[%s0] sm:$0xff pattern:$0x54761032]
  %317 = vrot.lane.b32.xlu0 %v316, 112
  %v318 = vpop.permute.xlu0 %317
  %vm319 = vcmask 7168
  %s320 = scalar_lea.vmem %s1, 96
  %321 = vst.msk [vmem:[%s320] ss:$40 sm:$0x3] %vm319, %v318
  %s322 = scalar_lea.vmem %s1, 4294967232
  %323 = vst.msk [vmem:[%s322] ss:$40 sm:$0xc] %vm319, %v318
  %s324 = scalar_lea.vmem %s1, 96
  %325 = vst.msk [vmem:[%s324] ss:$40 sm:$0x30] %vm319, %v318
  %s326 = scalar_lea.vmem %s1, 4294967232
  %327 = vst.msk [vmem:[%s326] ss:$40 sm:$0xc0] %vm319, %v318
  %s328 = scalar_lea.vmem %s0, 8
  %v329 = vld.sshfl [vmem:[%s328] sm:$0xff pattern:$0x44441032]
  %330 = vrot.lane.b32.xlu0 %v329, 112
  %v331 = vpop.permute.xlu0 %330
  %vm332 = vcmask 7168
  %s333 = scalar_lea.vmem %s1, 416
  %334 = vst.msk [vmem:[%s333] ss:$40 sm:$0x3] %vm332, %v331
  %s335 = scalar_lea.vmem %s1, 256
  %336 = vst.msk [vmem:[%s335] ss:$40 sm:$0xc] %vm332, %v331
  %s337 = scalar_lea.vmem %s1, 492
  %338 = vst.msk [vmem:[%s337] sm:$0x10] %vm332, %v331
  %v339 = vld.sshfl [vmem:[%s0] sm:$0xff pattern:$0x54761032]
  %340 = vrot.lane.b32.xlu0 %v339, 111
  %v341 = vpop.permute.xlu0 %340
  %vm342 = vcmask 7168
  %s343 = scalar_lea.vmem %s1, 97
  %344 = vst.msk [vmem:[%s343] ss:$40 sm:$0x3] %vm342, %v341
  %s345 = scalar_lea.vmem %s1, 4294967233
  %346 = vst.msk [vmem:[%s345] ss:$40 sm:$0xc] %vm342, %v341
  %s347 = scalar_lea.vmem %s1, 97
  %348 = vst.msk [vmem:[%s347] ss:$40 sm:$0x30] %vm342, %v341
  %s349 = scalar_lea.vmem %s1, 4294967233
  %350 = vst.msk [vmem:[%s349] ss:$40 sm:$0xc0] %vm342, %v341
  %s351 = scalar_lea.vmem %s0, 8
  %v352 = vld.sshfl [vmem:[%s351] sm:$0xff pattern:$0x44441032]
  %353 = vrot.lane.b32.xlu0 %v352, 111
  %v354 = vpop.permute.xlu0 %353
  %vm355 = vcmask 7168
  %s356 = scalar_lea.vmem %s1, 417
  %357 = vst.msk [vmem:[%s356] ss:$40 sm:$0x3] %vm355, %v354
  %s358 = scalar_lea.vmem %s1, 257
  %359 = vst.msk [vmem:[%s358] ss:$40 sm:$0xc] %vm355, %v354
  %s360 = scalar_lea.vmem %s1, 493
  %361 = vst.msk [vmem:[%s360] sm:$0x10] %vm355, %v354
  %v362 = vld.sshfl [vmem:[%s0] sm:$0xff pattern:$0x54761032]
  %363 = vrot.lane.b32.xlu0 %v362, 110
  %v364 = vpop.permute.xlu0 %363
  %vm365 = vcmask 7168
  %s366 = scalar_lea.vmem %s1, 98
  %367 = vst.msk [vmem:[%s366] ss:$40 sm:$0x3] %vm365, %v364
  %s368 = scalar_lea.vmem %s1, 4294967234
  %369 = vst.msk [vmem:[%s368] ss:$40 sm:$0xc] %vm365, %v364
  %s370 = scalar_lea.vmem %s1, 98
  %371 = vst.msk [vmem:[%s370] ss:$40 sm:$0x30] %vm365, %v364
  %s372 = scalar_lea.vmem %s1, 4294967234
  %373 = vst.msk [vmem:[%s372] ss:$40 sm:$0xc0] %vm365, %v364
  %s374 = scalar_lea.vmem %s0, 8
  %v375 = vld.sshfl [vmem:[%s374] sm:$0xff pattern:$0x44441032]
  %376 = vrot.lane.b32.xlu0 %v375, 110
  %v377 = vpop.permute.xlu0 %376
  %vm378 = vcmask 7168
  %s379 = scalar_lea.vmem %s1, 418
  %380 = vst.msk [vmem:[%s379] ss:$40 sm:$0x3] %vm378, %v377
  %s381 = scalar_lea.vmem %s1, 258
  %382 = vst.msk [vmem:[%s381] ss:$40 sm:$0xc] %vm378, %v377
  %s383 = scalar_lea.vmem %s1, 494
  %384 = vst.msk [vmem:[%s383] sm:$0x10] %vm378, %v377
  %v385 = vld.sshfl [vmem:[%s0] sm:$0xff pattern:$0x54761032]
  %386 = vrot.lane.b32.xlu0 %v385, 109
  %v387 = vpop.permute.xlu0 %386
  %vm388 = vcmask 7168
  %s389 = scalar_lea.vmem %s1, 99
  %390 = vst.msk [vmem:[%s389] ss:$40 sm:$0x3] %vm388, %v387
  %s391 = scalar_lea.vmem %s1, 4294967235
  %392 = vst.msk [vmem:[%s391] ss:$40 sm:$0xc] %vm388, %v387
  %s393 = scalar_lea.vmem %s1, 99
  %394 = vst.msk [vmem:[%s393] ss:$40 sm:$0x30] %vm388, %v387
  %s395 = scalar_lea.vmem %s1, 4294967235
  %396 = vst.msk [vmem:[%s395] ss:$40 sm:$0xc0] %vm388, %v387
  %s397 = scalar_lea.vmem %s0, 8
  %v398 = vld.sshfl [vmem:[%s397] sm:$0xff pattern:$0x44441032]
  %399 = vrot.lane.b32.xlu0 %v398, 109
  %v400 = vpop.permute.xlu0 %399
  %vm401 = vcmask 7168
  %s402 = scalar_lea.vmem %s1, 419
  %403 = vst.msk [vmem:[%s402] ss:$40 sm:$0x3] %vm401, %v400
  %s404 = scalar_lea.vmem %s1, 259
  %405 = vst.msk [vmem:[%s404] ss:$40 sm:$0xc] %vm401, %v400
  %s406 = scalar_lea.vmem %s1, 495
  %407 = vst.msk [vmem:[%s406] sm:$0x10] %vm401, %v400
  %v408 = vld.sshfl [vmem:[%s0] sm:$0xff pattern:$0x54761032]
  %409 = vrot.lane.b32.xlu0 %v408, 108
  %v410 = vpop.permute.xlu0 %409
  %vm411 = vcmask 7168
  %s412 = scalar_lea.vmem %s1, 100
  %413 = vst.msk [vmem:[%s412] ss:$40 sm:$0x3] %vm411, %v410
  %s414 = scalar_lea.vmem %s1, 4294967236
  %415 = vst.msk [vmem:[%s414] ss:$40 sm:$0xc] %vm411, %v410
  %s416 = scalar_lea.vmem %s1, 100
  %417 = vst.msk [vmem:[%s416] ss:$40 sm:$0x30] %vm411, %v410
  %s418 = scalar_lea.vmem %s1, 4294967236
  %419 = vst.msk [vmem:[%s418] ss:$40 sm:$0xc0] %vm411, %v410
  %s420 = scalar_lea.vmem %s0, 8
  %v421 = vld.sshfl [vmem:[%s420] sm:$0xff pattern:$0x44441032]
  %422 = vrot.lane.b32.xlu0 %v421, 108
  %v423 = vpop.permute.xlu0 %422
  %vm424 = vcmask 7168
  %s425 = scalar_lea.vmem %s1, 420
  %426 = vst.msk [vmem:[%s425] ss:$40 sm:$0x3] %vm424, %v423
  %s427 = scalar_lea.vmem %s1, 260
  %428 = vst.msk [vmem:[%s427] ss:$40 sm:$0xc] %vm424, %v423
  %s429 = scalar_lea.vmem %s1, 496
  %430 = vst.msk [vmem:[%s429] sm:$0x10] %vm424, %v423
  %v431 = vld.sshfl [vmem:[%s0] sm:$0xff pattern:$0x54761032]
  %432 = vrot.lane.b32.xlu0 %v431, 107
  %v433 = vpop.permute.xlu0 %432
  %vm434 = vcmask 7168
  %s435 = scalar_lea.vmem %s1, 101
  %436 = vst.msk [vmem:[%s435] ss:$40 sm:$0x3] %vm434, %v433
  %s437 = scalar_lea.vmem %s1, 4294967237
  %438 = vst.msk [vmem:[%s437] ss:$40 sm:$0xc] %vm434, %v433
  %s439 = scalar_lea.vmem %s1, 101
  %440 = vst.msk [vmem:[%s439] ss:$40 sm:$0x30] %vm434, %v433
  %s441 = scalar_lea.vmem %s1, 4294967237
  %442 = vst.msk [vmem:[%s441] ss:$40 sm:$0xc0] %vm434, %v433
  %s443 = scalar_lea.vmem %s0, 8
  %v444 = vld.sshfl [vmem:[%s443] sm:$0xff pattern:$0x44441032]
  %445 = vrot.lane.b32.xlu0 %v444, 107
  %v446 = vpop.permute.xlu0 %445
  %vm447 = vcmask 7168
  %s448 = scalar_lea.vmem %s1, 421
  %449 = vst.msk [vmem:[%s448] ss:$40 sm:$0x3] %vm447, %v446
  %s450 = scalar_lea.vmem %s1, 261
  %451 = vst.msk [vmem:[%s450] ss:$40 sm:$0xc] %vm447, %v446
  %s452 = scalar_lea.vmem %s1, 497
  %453 = vst.msk [vmem:[%s452] sm:$0x10] %vm447, %v446
  %v454 = vld.sshfl [vmem:[%s0] sm:$0xff pattern:$0x54761032]
  %455 = vrot.lane.b32.xlu0 %v454, 106
  %v456 = vpop.permute.xlu0 %455
  %vm457 = vcmask 7168
  %s458 = scalar_lea.vmem %s1, 102
  %459 = vst.msk [vmem:[%s458] ss:$40 sm:$0x3] %vm457, %v456
  %s460 = scalar_lea.vmem %s1, 4294967238
  %461 = vst.msk [vmem:[%s460] ss:$40 sm:$0xc] %vm457, %v456
  %s462 = scalar_lea.vmem %s1, 102
  %463 = vst.msk [vmem:[%s462] ss:$40 sm:$0x30] %vm457, %v456
  %s464 = scalar_lea.vmem %s1, 4294967238
  %465 = vst.msk [vmem:[%s464] ss:$40 sm:$0xc0] %vm457, %v456
  %s466 = scalar_lea.vmem %s0, 8
  %v467 = vld.sshfl [vmem:[%s466] sm:$0xff pattern:$0x44441032]
  %468 = vrot.lane.b32.xlu0 %v467, 106
  %v469 = vpop.permute.xlu0 %468
  %vm470 = vcmask 7168
  %s471 = scalar_lea.vmem %s1, 422
  %472 = vst.msk [vmem:[%s471] ss:$40 sm:$0x3] %vm470, %v469
  %s473 = scalar_lea.vmem %s1, 262
  %474 = vst.msk [vmem:[%s473] ss:$40 sm:$0xc] %vm470, %v469
  %s475 = scalar_lea.vmem %s1, 498
  %476 = vst.msk [vmem:[%s475] sm:$0x10] %vm470, %v469
  %v477 = vld.sshfl [vmem:[%s0] sm:$0xff pattern:$0x54761032]
  %478 = vrot.lane.b32.xlu0 %v477, 105
  %v479 = vpop.permute.xlu0 %478
  %vm480 = vcmask 7168
  %s481 = scalar_lea.vmem %s1, 103
  %482 = vst.msk [vmem:[%s481] ss:$40 sm:$0x3] %vm480, %v479
  %s483 = scalar_lea.vmem %s1, 4294967239
  %484 = vst.msk [vmem:[%s483] ss:$40 sm:$0xc] %vm480, %v479
  %s485 = scalar_lea.vmem %s1, 103
  %486 = vst.msk [vmem:[%s485] ss:$40 sm:$0x30] %vm480, %v479
  %s487 = scalar_lea.vmem %s1, 4294967239
  %488 = vst.msk [vmem:[%s487] ss:$40 sm:$0xc0] %vm480, %v479
  %s489 = scalar_lea.vmem %s0, 8
  %v490 = vld.sshfl [vmem:[%s489] sm:$0xff pattern:$0x44441032]
  %491 = vrot.lane.b32.xlu0 %v490, 105
  %v492 = vpop.permute.xlu0 %491
  %vm493 = vcmask 7168
  %s494 = scalar_lea.vmem %s1, 423
  %495 = vst.msk [vmem:[%s494] ss:$40 sm:$0x3] %vm493, %v492
  %s496 = scalar_lea.vmem %s1, 263
  %497 = vst.msk [vmem:[%s496] ss:$40 sm:$0xc] %vm493, %v492
  %s498 = scalar_lea.vmem %s1, 499
  %499 = vst.msk [vmem:[%s498] sm:$0x10] %vm493, %v492
  %v500 = vld.sshfl [vmem:[%s0] sm:$0xff pattern:$0x47650321]
  %501 = vrot.lane.b32.xlu0 %v500, 104
  %v502 = vpop.permute.xlu0 %501
  %vm503 = vcmask 7168
  %s504 = scalar_lea.vmem %s1, 64
  %505 = vst.msk [vmem:[%s504] ss:$40 sm:$0x7] %vm503, %v502
  %s506 = scalar_lea.vmem %s1, 4294966720
  %507 = vst.msk [vmem:[%s506] ss:$200 sm:$0x18] %vm503, %v502
  %s508 = scalar_lea.vmem %s1, 64
  %509 = vst.msk [vmem:[%s508] ss:$40 sm:$0x60] %vm503, %v502
  %s510 = scalar_lea.vmem %s1, 177
  %511 = vst.msk [vmem:[%s510] sm:$0x80] %vm503, %v502
  %s512 = scalar_lea.vmem %s0, 8
  %v513 = vld.sshfl [vmem:[%s512] sm:$0xff pattern:$0x44440321]
  %514 = vrot.lane.b32.xlu0 %v513, 104
  %v515 = vpop.permute.xlu0 %514
  %vm516 = vcmask 7168
  %s517 = scalar_lea.vmem %s1, 384
  %518 = vst.msk [vmem:[%s517] ss:$40 sm:$0x7] %vm516, %v515
  %s519 = scalar_lea.vmem %s1, 341
  %520 = vst.msk [vmem:[%s519] sm:$0x8] %vm516, %v515
  %s521 = scalar_lea.vmem %s1, 500
  %522 = vst.msk [vmem:[%s521] sm:$0x10] %vm516, %v515
  %v523 = vld.sshfl [vmem:[%s0] sm:$0xff pattern:$0x47650321]
  %524 = vrot.lane.b32.xlu0 %v523, 103
  %v525 = vpop.permute.xlu0 %524
  %vm526 = vcmask 7168
  %s527 = scalar_lea.vmem %s1, 65
  %528 = vst.msk [vmem:[%s527] ss:$40 sm:$0x7] %vm526, %v525
  %s529 = scalar_lea.vmem %s1, 4294966721
  %530 = vst.msk [vmem:[%s529] ss:$200 sm:$0x18] %vm526, %v525
  %s531 = scalar_lea.vmem %s1, 65
  %532 = vst.msk [vmem:[%s531] ss:$40 sm:$0x60] %vm526, %v525
  %s533 = scalar_lea.vmem %s1, 178
  %534 = vst.msk [vmem:[%s533] sm:$0x80] %vm526, %v525
  %s535 = scalar_lea.vmem %s0, 8
  %v536 = vld.sshfl [vmem:[%s535] sm:$0xff pattern:$0x44440321]
  %537 = vrot.lane.b32.xlu0 %v536, 103
  %v538 = vpop.permute.xlu0 %537
  %vm539 = vcmask 7168
  %s540 = scalar_lea.vmem %s1, 385
  %541 = vst.msk [vmem:[%s540] ss:$40 sm:$0x7] %vm539, %v538
  %s542 = scalar_lea.vmem %s1, 342
  %543 = vst.msk [vmem:[%s542] sm:$0x8] %vm539, %v538
  %s544 = scalar_lea.vmem %s1, 501
  %545 = vst.msk [vmem:[%s544] sm:$0x10] %vm539, %v538
  %v546 = vld.sshfl [vmem:[%s0] sm:$0xff pattern:$0x47650321]
  %547 = vrot.lane.b32.xlu0 %v546, 102
  %v548 = vpop.permute.xlu0 %547
  %vm549 = vcmask 7168
  %s550 = scalar_lea.vmem %s1, 66
  %551 = vst.msk [vmem:[%s550] ss:$40 sm:$0x7] %vm549, %v548
  %s552 = scalar_lea.vmem %s1, 4294966722
  %553 = vst.msk [vmem:[%s552] ss:$200 sm:$0x18] %vm549, %v548
  %s554 = scalar_lea.vmem %s1, 66
  %555 = vst.msk [vmem:[%s554] ss:$40 sm:$0x60] %vm549, %v548
  %s556 = scalar_lea.vmem %s1, 179
  %557 = vst.msk [vmem:[%s556] sm:$0x80] %vm549, %v548
  %s558 = scalar_lea.vmem %s0, 8
  %v559 = vld.sshfl [vmem:[%s558] sm:$0xff pattern:$0x44440321]
  %560 = vrot.lane.b32.xlu0 %v559, 102
  %v561 = vpop.permute.xlu0 %560
  %vm562 = vcmask 7168
  %s563 = scalar_lea.vmem %s1, 386
  %564 = vst.msk [vmem:[%s563] ss:$40 sm:$0x7] %vm562, %v561
  %s565 = scalar_lea.vmem %s1, 343
  %566 = vst.msk [vmem:[%s565] sm:$0x8] %vm562, %v561
  %s567 = scalar_lea.vmem %s1, 502
  %568 = vst.msk [vmem:[%s567] sm:$0x10] %vm562, %v561
  %v569 = vld.sshfl [vmem:[%s0] sm:$0xff pattern:$0x47650321]
  %570 = vrot.lane.b32.xlu0 %v569, 101
  %v571 = vpop.permute.xlu0 %570
  %vm572 = vcmask 7168
  %s573 = scalar_lea.vmem %s1, 67
  %574 = vst.msk [vmem:[%s573] ss:$40 sm:$0x7] %vm572, %v571
  %s575 = scalar_lea.vmem %s1, 4294966723
  %576 = vst.msk [vmem:[%s575] ss:$200 sm:$0x18] %vm572, %v571
  %s577 = scalar_lea.vmem %s1, 67
  %578 = vst.msk [vmem:[%s577] ss:$40 sm:$0x60] %vm572, %v571
  %s579 = scalar_lea.vmem %s1, 180
  %580 = vst.msk [vmem:[%s579] sm:$0x80] %vm572, %v571
  %s581 = scalar_lea.vmem %s0, 8
  %v582 = vld.sshfl [vmem:[%s581] sm:$0xff pattern:$0x44440321]
  %583 = vrot.lane.b32.xlu0 %v582, 101
  %v584 = vpop.permute.xlu0 %583
  %vm585 = vcmask 7168
  %s586 = scalar_lea.vmem %s1, 387
  %587 = vst.msk [vmem:[%s586] ss:$40 sm:$0x7] %vm585, %v584
  %s588 = scalar_lea.vmem %s1, 344
  %589 = vst.msk [vmem:[%s588] sm:$0x8] %vm585, %v584
  %s590 = scalar_lea.vmem %s1, 503
  %591 = vst.msk [vmem:[%s590] sm:$0x10] %vm585, %v584
  %v592 = vld.sshfl [vmem:[%s0] sm:$0xff pattern:$0x47650321]
  %593 = vrot.lane.b32.xlu0 %v592, 100
  %v594 = vpop.permute.xlu0 %593
  %vm595 = vcmask 7168
  %s596 = scalar_lea.vmem %s1, 68
  %597 = vst.msk [vmem:[%s596] ss:$40 sm:$0x7] %vm595, %v594
  %s598 = scalar_lea.vmem %s1, 4294966724
  %599 = vst.msk [vmem:[%s598] ss:$200 sm:$0x18] %vm595, %v594
  %s600 = scalar_lea.vmem %s1, 68
  %601 = vst.msk [vmem:[%s600] ss:$40 sm:$0x60] %vm595, %v594
  %s602 = scalar_lea.vmem %s1, 181
  %603 = vst.msk [vmem:[%s602] sm:$0x80] %vm595, %v594
  %s604 = scalar_lea.vmem %s0, 8
  %v605 = vld.sshfl [vmem:[%s604] sm:$0xff pattern:$0x44440321]
  %606 = vrot.lane.b32.xlu0 %v605, 100
  %v607 = vpop.permute.xlu0 %606
  %vm608 = vcmask 7168
  %s609 = scalar_lea.vmem %s1, 388
  %610 = vst.msk [vmem:[%s609] ss:$40 sm:$0x7] %vm608, %v607
  %s611 = scalar_lea.vmem %s1, 345
  %612 = vst.msk [vmem:[%s611] sm:$0x8] %vm608, %v607
  %s613 = scalar_lea.vmem %s1, 504
  %614 = vst.msk [vmem:[%s613] sm:$0x10] %vm608, %v607
  %v615 = vld.sshfl [vmem:[%s0] sm:$0xff pattern:$0x47650321]
  %616 = vrot.lane.b32.xlu0 %v615, 99
  %v617 = vpop.permute.xlu0 %616
  %vm618 = vcmask 7168
  %s619 = scalar_lea.vmem %s1, 69
  %620 = vst.msk [vmem:[%s619] ss:$40 sm:$0x7] %vm618, %v617
  %s621 = scalar_lea.vmem %s1, 4294966725
  %622 = vst.msk [vmem:[%s621] ss:$200 sm:$0x18] %vm618, %v617
  %s623 = scalar_lea.vmem %s1, 69
  %624 = vst.msk [vmem:[%s623] ss:$40 sm:$0x60] %vm618, %v617
  %s625 = scalar_lea.vmem %s1, 182
  %626 = vst.msk [vmem:[%s625] sm:$0x80] %vm618, %v617
  %s627 = scalar_lea.vmem %s0, 8
  %v628 = vld.sshfl [vmem:[%s627] sm:$0xff pattern:$0x44440321]
  %629 = vrot.lane.b32.xlu0 %v628, 99
  %v630 = vpop.permute.xlu0 %629
  %vm631 = vcmask 7168
  %s632 = scalar_lea.vmem %s1, 389
  %633 = vst.msk [vmem:[%s632] ss:$40 sm:$0x7] %vm631, %v630
  %s634 = scalar_lea.vmem %s1, 346
  %635 = vst.msk [vmem:[%s634] sm:$0x8] %vm631, %v630
  %s636 = scalar_lea.vmem %s1, 505
  %637 = vst.msk [vmem:[%s636] sm:$0x10] %vm631, %v630
  %v638 = vld.sshfl [vmem:[%s0] sm:$0xff pattern:$0x47650321]
  %639 = vrot.lane.b32.xlu0 %v638, 98
  %v640 = vpop.permute.xlu0 %639
  %vm641 = vcmask 7168
  %s642 = scalar_lea.vmem %s1, 70
  %643 = vst.msk [vmem:[%s642] ss:$40 sm:$0x7] %vm641, %v640
  %s644 = scalar_lea.vmem %s1, 4294966726
  %645 = vst.msk [vmem:[%s644] ss:$200 sm:$0x18] %vm641, %v640
  %s646 = scalar_lea.vmem %s1, 70
  %647 = vst.msk [vmem:[%s646] ss:$40 sm:$0x60] %vm641, %v640
  %s648 = scalar_lea.vmem %s1, 183
  %649 = vst.msk [vmem:[%s648] sm:$0x80] %vm641, %v640
  %s650 = scalar_lea.vmem %s0, 8
  %v651 = vld.sshfl [vmem:[%s650] sm:$0xff pattern:$0x44440321]
  %652 = vrot.lane.b32.xlu0 %v651, 98
  %v653 = vpop.permute.xlu0 %652
  %vm654 = vcmask 7168
  %s655 = scalar_lea.vmem %s1, 390
  %656 = vst.msk [vmem:[%s655] ss:$40 sm:$0x7] %vm654, %v653
  %s657 = scalar_lea.vmem %s1, 347
  %658 = vst.msk [vmem:[%s657] sm:$0x8] %vm654, %v653
  %s659 = scalar_lea.vmem %s1, 506
  %660 = vst.msk [vmem:[%s659] sm:$0x10] %vm654, %v653
  %v661 = vld.sshfl [vmem:[%s0] sm:$0xff pattern:$0x47650321]
  %662 = vrot.lane.b32.xlu0 %v661, 97
  %v663 = vpop.permute.xlu0 %662
  %vm664 = vcmask 7168
  %s665 = scalar_lea.vmem %s1, 71
  %666 = vst.msk [vmem:[%s665] ss:$40 sm:$0x7] %vm664, %v663
  %s667 = scalar_lea.vmem %s1, 4294966727
  %668 = vst.msk [vmem:[%s667] ss:$200 sm:$0x18] %vm664, %v663
  %s669 = scalar_lea.vmem %s1, 71
  %670 = vst.msk [vmem:[%s669] ss:$40 sm:$0x60] %vm664, %v663
  %s671 = scalar_lea.vmem %s1, 184
  %672 = vst.msk [vmem:[%s671] sm:$0x80] %vm664, %v663
  %s673 = scalar_lea.vmem %s0, 8
  %v674 = vld.sshfl [vmem:[%s673] sm:$0xff pattern:$0x44440321]
  %675 = vrot.lane.b32.xlu0 %v674, 97
  %v676 = vpop.permute.xlu0 %675
  %vm677 = vcmask 7168
  %s678 = scalar_lea.vmem %s1, 391
  %679 = vst.msk [vmem:[%s678] ss:$40 sm:$0x7] %vm677, %v676
  %s680 = scalar_lea.vmem %s1, 348
  %681 = vst.msk [vmem:[%s680] sm:$0x8] %vm677, %v676
  %s682 = scalar_lea.vmem %s1, 507
  %683 = vst.msk [vmem:[%s682] sm:$0x10] %vm677, %v676
  %v684 = vld [vmem:[%s0] sm:$0xff]
  %685 = vrot.lane.b32.xlu0 %v684, 96
  %v686 = vpop.permute.xlu0 %685
  %vm687 = vcmask 7168
  %s688 = scalar_lea.vmem %s1, 32
  %689 = vst.msk [vmem:[%s688] ss:$40 sm:$0xf] %vm687, %v686
  %s690 = scalar_lea.vmem %s1, 32
  %691 = vst.msk [vmem:[%s690] ss:$40 sm:$0xf0] %vm687, %v686
  %s692 = scalar_lea.vmem %s0, 8
  %v693 = vld [vmem:[%s692] sm:$0x1f]
  %694 = vrot.lane.b32.xlu0 %v693, 96
  %v695 = vpop.permute.xlu0 %694
  %vm696 = vcmask 7168
  %s697 = scalar_lea.vmem %s1, 352
  %698 = vst.msk [vmem:[%s697] ss:$40 sm:$0xf] %vm696, %v695
  %s699 = scalar_lea.vmem %s1, 508
  %700 = vst.msk [vmem:[%s699] sm:$0x10] %vm696, %v695
  %v701 = vld [vmem:[%s0] sm:$0xff]
  %702 = vrot.lane.b32.xlu0 %v701, 95
  %v703 = vpop.permute.xlu0 %702
  %vm704 = vcmask 7168
  %s705 = scalar_lea.vmem %s1, 33
  %706 = vst.msk [vmem:[%s705] ss:$40 sm:$0xf] %vm704, %v703
  %s707 = scalar_lea.vmem %s1, 33
  %708 = vst.msk [vmem:[%s707] ss:$40 sm:$0xf0] %vm704, %v703
  %s709 = scalar_lea.vmem %s0, 8
  %v710 = vld [vmem:[%s709] sm:$0x1f]
  %711 = vrot.lane.b32.xlu0 %v710, 95
  %v712 = vpop.permute.xlu0 %711
  %vm713 = vcmask 7168
  %s714 = scalar_lea.vmem %s1, 353
  %715 = vst.msk [vmem:[%s714] ss:$40 sm:$0xf] %vm713, %v712
  %s716 = scalar_lea.vmem %s1, 509
  %717 = vst.msk [vmem:[%s716] sm:$0x10] %vm713, %v712
  %v718 = vld [vmem:[%s0] sm:$0xff]
  %719 = vrot.lane.b32.xlu0 %v718, 94
  %v720 = vpop.permute.xlu0 %719
  %vm721 = vcmask 7168
  %s722 = scalar_lea.vmem %s1, 34
  %723 = vst.msk [vmem:[%s722] ss:$40 sm:$0xf] %vm721, %v720
  %s724 = scalar_lea.vmem %s1, 34
  %725 = vst.msk [vmem:[%s724] ss:$40 sm:$0xf0] %vm721, %v720
  %s726 = scalar_lea.vmem %s0, 8
  %v727 = vld [vmem:[%s726] sm:$0x1f]
  %728 = vrot.lane.b32.xlu0 %v727, 94
  %v729 = vpop.permute.xlu0 %728
  %vm730 = vcmask 7168
  %s731 = scalar_lea.vmem %s1, 354
  %732 = vst.msk [vmem:[%s731] ss:$40 sm:$0xf] %vm730, %v729
  %s733 = scalar_lea.vmem %s1, 510
  %734 = vst.msk [vmem:[%s733] sm:$0x10] %vm730, %v729
  %v735 = vld [vmem:[%s0] sm:$0xff]
  %736 = vrot.lane.b32.xlu0 %v735, 93
  %v737 = vpop.permute.xlu0 %736
  %vm738 = vcmask 7168
  %s739 = scalar_lea.vmem %s1, 35
  %740 = vst.msk [vmem:[%s739] ss:$40 sm:$0xf] %vm738, %v737
  %s741 = scalar_lea.vmem %s1, 35
  %742 = vst.msk [vmem:[%s741] ss:$40 sm:$0xf0] %vm738, %v737
  %s743 = scalar_lea.vmem %s0, 8
  %v744 = vld [vmem:[%s743] sm:$0x1f]
  %745 = vrot.lane.b32.xlu0 %v744, 93
  %v746 = vpop.permute.xlu0 %745
  %vm747 = vcmask 7168
  %s748 = scalar_lea.vmem %s1, 355
  %749 = vst.msk [vmem:[%s748] ss:$40 sm:$0xf] %vm747, %v746
  %s750 = scalar_lea.vmem %s1, 511
  %751 = vst.msk [vmem:[%s750] sm:$0x10] %vm747, %v746
  %v752 = vld [vmem:[%s0] sm:$0xff]
  %753 = vrot.lane.b32.xlu0 %v752, 92
  %v754 = vpop.permute.xlu0 %753
  %vm755 = vcmask 7168
  %s756 = scalar_lea.vmem %s1, 36
  %757 = vst.msk [vmem:[%s756] ss:$40 sm:$0xf] %vm755, %v754
  %s758 = scalar_lea.vmem %s1, 36
  %759 = vst.msk [vmem:[%s758] ss:$40 sm:$0xf0] %vm755, %v754
  %s760 = scalar_lea.vmem %s0, 8
  %v761 = vld [vmem:[%s760] sm:$0x1f]
  %762 = vrot.lane.b32.xlu0 %v761, 92
  %v763 = vpop.permute.xlu0 %762
  %vm764 = vcmask 7168
  %s765 = scalar_lea.vmem %s1, 356
  %766 = vst.msk [vmem:[%s765] ss:$40 sm:$0xf] %vm764, %v763
  %s767 = scalar_lea.vmem %s1, 512
  %768 = vst.msk [vmem:[%s767] sm:$0x10] %vm764, %v763
  %v769 = vld [vmem:[%s0] sm:$0xff]
  %770 = vrot.lane.b32.xlu0 %v769, 91
  %v771 = vpop.permute.xlu0 %770
  %vm772 = vcmask 7168
  %s773 = scalar_lea.vmem %s1, 37
  %774 = vst.msk [vmem:[%s773] ss:$40 sm:$0xf] %vm772, %v771
  %s775 = scalar_lea.vmem %s1, 37
  %776 = vst.msk [vmem:[%s775] ss:$40 sm:$0xf0] %vm772, %v771
  %s777 = scalar_lea.vmem %s0, 8
  %v778 = vld [vmem:[%s777] sm:$0x1f]
  %779 = vrot.lane.b32.xlu0 %v778, 91
  %v780 = vpop.permute.xlu0 %779
  %vm781 = vcmask 7168
  %s782 = scalar_lea.vmem %s1, 357
  %783 = vst.msk [vmem:[%s782] ss:$40 sm:$0xf] %vm781, %v780
  %s784 = scalar_lea.vmem %s1, 513
  %785 = vst.msk [vmem:[%s784] sm:$0x10] %vm781, %v780
  %v786 = vld [vmem:[%s0] sm:$0xff]
  %787 = vrot.lane.b32.xlu0 %v786, 90
  %v788 = vpop.permute.xlu0 %787
  %vm789 = vcmask 7168
  %s790 = scalar_lea.vmem %s1, 38
  %791 = vst.msk [vmem:[%s790] ss:$40 sm:$0xf] %vm789, %v788
  %s792 = scalar_lea.vmem %s1, 38
  %793 = vst.msk [vmem:[%s792] ss:$40 sm:$0xf0] %vm789, %v788
  %s794 = scalar_lea.vmem %s0, 8
  %v795 = vld [vmem:[%s794] sm:$0x1f]
  %796 = vrot.lane.b32.xlu0 %v795, 90
  %v797 = vpop.permute.xlu0 %796
  %vm798 = vcmask 7168
  %s799 = scalar_lea.vmem %s1, 358
  %800 = vst.msk [vmem:[%s799] ss:$40 sm:$0xf] %vm798, %v797
  %s801 = scalar_lea.vmem %s1, 514
  %802 = vst.msk [vmem:[%s801] sm:$0x10] %vm798, %v797
  %v803 = vld [vmem:[%s0] sm:$0xff]
  %804 = vrot.lane.b32.xlu0 %v803, 89
  %v805 = vpop.permute.xlu0 %804
  %vm806 = vcmask 7168
  %s807 = scalar_lea.vmem %s1, 39
  %808 = vst.msk [vmem:[%s807] ss:$40 sm:$0xf] %vm806, %v805
  %s809 = scalar_lea.vmem %s1, 39
  %810 = vst.msk [vmem:[%s809] ss:$40 sm:$0xf0] %vm806, %v805
  %s811 = scalar_lea.vmem %s0, 8
  %v812 = vld [vmem:[%s811] sm:$0x1f]
  %813 = vrot.lane.b32.xlu0 %v812, 89
  %v814 = vpop.permute.xlu0 %813
  %vm815 = vcmask 7168
  %s816 = scalar_lea.vmem %s1, 359
  %817 = vst.msk [vmem:[%s816] ss:$40 sm:$0xf] %vm815, %v814
  %s818 = scalar_lea.vmem %s1, 515
  %819 = vst.msk [vmem:[%s818] sm:$0x10] %vm815, %v814

// kernel: shallow_convnet_forward.2
$region0: #{shallow_convnet_forward.2}
  #allocation0 [shape = 'u32[]', space=smem, size = 0x4, offset = 0x4, fixed_abs, tag = 'smem constant byte address 0x4 - core index']
  #allocation1 [shape = 'u32[144,128]{1,0:T(1,128)}', space=vmem, size = 0x12000, scoped, tag = 'internal scratch']
  #allocation2 [shape = 'f32[312,42]{1,0:T(8,128)}', space=vmem, size = 0x27000, scoped, tag = 'scratch operand']
  %s0 = inlined_call_operand.vmem [shape: f32[2,24,54], index: 0, kind: input, shape index: {}]
  %s1 = inlined_call_operand.hbm [shape: f32[520,312], index: 1, kind: input, shape index: {}]
  %s2 = inlined_call_operand.vmem [shape: f32[2,520,2], index: 2, kind: output, shape index: {}]
  %s3 = sld [smem:[#allocation0]]
  $region45: #{shallow_convnet_forward.2} parent=0
    _
  %s5 = ssub.s32 1, %s3
  %s6 = scalar_select 0, %s5, %s3
  $region1: #{shallow_convnet_forward.2} parent=0
    #allocation3 [shape = 'u8[798720]{0}', space=vmem, size = 0xc3000, scoped, tag = 'input window, operand 1, single buffered']
    #allocation4 [shape = 's32[2]{0}', space=sflag, size = 0x8, scoped, tag = 'scoped memory for shallow_convnet_forward.2']
    %7 = vsyncpa [#allocation4], 0
    loop: start=0, step=1, limit=4
    $region2: #{shallow_convnet_forward.2} parent=1 // loop_pre_header
      _
    $region3: #{shallow_convnet_forward.2} parent=1 // loop_header
      %s9 = sphi 0, %s13
      %p10 = scmp.ge.s32.totalorder %s9, 4
      %s19 = sphi 0, %s21
      %s22 = sphi 0, %s19
      %s23 = sphi 0, %s22
      %s39 = sphi 0, %s23
      %s43 = sphi 0, %s43
      %s45 = sphi 0, %s43
      %s46 = sphi 0, %s45
      %s60 = sphi 0, %s46
      %s66 = sphi 0, %s68
      %s69 = sphi 0, %s66
      %s70 = sphi 0, %s69
      %s86 = sphi 0, %s70
    $region4: #{shallow_convnet_forward.2} parent=1 // loop_header_branch
      %12 = sbr.rel (%p10) target = $region8
    $region5: #{shallow_convnet_forward.2} parent=1 // loop_body
      %s14 = ssub.s32 %s9, 1
      %s15 = ssub.s32 %s9, 2
      %s16 = sadd.s32 %s9, 1
      %s17 = ssub.s32 %s9, %s16
      %p18 = scmp.eq.s32.totalorder %s17, 0
      %s20 = sadd.s32 %s19, 1
      %s21 = scalar_select %p18, %s19, %s20
      %p24 = pneg %p18
      %p25 = scmp.eq.s32.totalorder %s9, 1
      %p26 = por %p24, %p25
      %p27 = scmp.ne.s32.totalorder %s19, %s22
      %p28 = scmp.eq.s32.totalorder %s9, 0
      %p29 = por %p27, %p28
      %p30 = scmp.ne.s32.totalorder %s19, %s22
      %p31 = scmp.eq.s32.totalorder %s14, 1
      %p32 = por %p30, %p31
      %p33 = scmp.ne.s32.totalorder %s22, %s23
      %p34 = scmp.eq.s32.totalorder %s14, 0
      %p35 = por %p33, %p34
      %p36 = scmp.ne.s32.totalorder %s22, %s23
      %p37 = scmp.eq.s32.totalorder %s15, 1
      %p38 = por %p36, %p37
      %p40 = scmp.ne.s32.totalorder %s23, %s39
      %p41 = scmp.eq.s32.totalorder %s15, 0
      %p42 = por %p40, %p41
      %s44 = sadd.s32 %s43, 1
      %p47 = scmp.eq.s32.totalorder %s9, 1
      %p48 = scmp.ne.s32.totalorder %s43, %s45
      %p49 = scmp.eq.s32.totalorder %s9, 0
      %p50 = por %p48, %p49
      %p51 = scmp.ne.s32.totalorder %s43, %s45
      %p52 = scmp.eq.s32.totalorder %s14, 1
      %p53 = por %p51, %p52
      %p54 = scmp.ne.s32.totalorder %s45, %s46
      %p55 = scmp.eq.s32.totalorder %s14, 0
      %p56 = por %p54, %p55
      %p57 = scmp.ne.s32.totalorder %s45, %s46
      %p58 = scmp.eq.s32.totalorder %s15, 1
      %p59 = por %p57, %p58
      %p61 = scmp.ne.s32.totalorder %s46, %s60
      %p62 = scmp.eq.s32.totalorder %s15, 0
      %p63 = por %p61, %p62
      %s64 = ssub.s32 %s9, %s16
      %p65 = scmp.eq.s32.totalorder %s64, 0
      %s67 = sadd.s32 %s66, 1
      %s68 = scalar_select %p65, %s66, %s67
      %p71 = pneg %p65
      %p72 = scmp.eq.s32.totalorder %s9, 1
      %p73 = por %p71, %p72
      %p74 = scmp.ne.s32.totalorder %s66, %s69
      %p75 = scmp.eq.s32.totalorder %s9, 0
      %p76 = por %p74, %p75
      %p77 = scmp.ne.s32.totalorder %s66, %s69
      %p78 = scmp.eq.s32.totalorder %s14, 1
      %p79 = por %p77, %p78
      %p80 = scmp.ne.s32.totalorder %s69, %s70
      %p81 = scmp.eq.s32.totalorder %s14, 0
      %p82 = por %p80, %p81
      %p83 = scmp.ne.s32.totalorder %s69, %s70
      %p84 = scmp.eq.s32.totalorder %s15, 1
      %p85 = por %p83, %p84
      %p87 = scmp.ne.s32.totalorder %s70, %s86
      %p88 = scmp.eq.s32.totalorder %s15, 0
      %p89 = por %p87, %p88
      %p90 = scmp.le.s32.totalorder 1, %s9
      %p91 = scmp.lt.s32.totalorder %s9, 3
      %p92 = pnand %p90, %p91
      %p93 = pneg %p92
      // Predicated region
      $region9: #{shallow_convnet_forward.2} parent=5 // pred_check
        _
      $region10: #{shallow_convnet_forward.2} parent=5 // pred_check_branch
        %95 = sbr.rel (%p92) target = $region12
      $region11: #{shallow_convnet_forward.2} parent=5 // pred_region
        %s96 = ssub.s32 %s9, 1
        // Predicated region
        $region13: #{shallow_convnet_forward.2} parent=11 // pred_check
          %p97 = pneg %p56
        $region14: #{shallow_convnet_forward.2} parent=11 // pred_check_branch
          %99 = sbr.rel (%p97) target = $region16
        $region15: #{shallow_convnet_forward.2} parent=11 // pred_region
          %s101 = ssub.s32 24960, 24960
          %102 = vsyncadd [#allocation4], %s101
          %s103 = sshll.u32 [#allocation3], 4
          %s104 = int_to_ptr.vmem [resolvable:$true] %s103
          %109 = dma.hbm_to_vmem [thread:$0]  %s1, 24960, %s104, [#allocation4], 384, 384, 24
        $region16: #{shallow_convnet_forward.2} parent=11 // pred_fallthru
          _
      $region12: #{shallow_convnet_forward.2} parent=5 // pred_fallthru
        _
      %p110 = scmp.lt.s32.totalorder %s9, 2
      // Predicated region
      $region17: #{shallow_convnet_forward.2} parent=5 // pred_check
        %p111 = pneg %p110
      $region18: #{shallow_convnet_forward.2} parent=5 // pred_check_branch
        %113 = sbr.rel (%p111) target = $region20
      $region19: #{shallow_convnet_forward.2} parent=5 // pred_region
        // Predicated region
        $region21: #{shallow_convnet_forward.2} parent=19 // pred_check
          %p114 = pneg %p29
        $region22: #{shallow_convnet_forward.2} parent=19 // pred_check_branch
          %116 = sbr.rel (%p114) target = $region24
        $region23: #{shallow_convnet_forward.2} parent=19 // pred_region
          %p117 = scmp.lt.s32.totalorder %s9, 1
          %s118 = scalar_select %p117, %s9, 1
          %s119 = smul.addr %s118, 3
          %s120 = smul.addr %s119, 8
          %s121 = scalar_lea.vmem %s0, %s120
        $region24: #{shallow_convnet_forward.2} parent=19 // pred_fallthru
          _
      $region20: #{shallow_convnet_forward.2} parent=5 // pred_fallthru
        _
      %p122 = scmp.le.s32.totalorder 1, %s9
      %p123 = scmp.lt.s32.totalorder %s9, 3
      %p124 = pnand %p122, %p123
      %p125 = pneg %p124
      // Predicated region
      $region25: #{shallow_convnet_forward.2} parent=5 // pred_check
        _
      $region26: #{shallow_convnet_forward.2} parent=5 // pred_check_branch
        %127 = sbr.rel (%p124) target = $region28
      $region27: #{shallow_convnet_forward.2} parent=5 // pred_region
        %s128 = ssub.s32 %s9, 1
        // Predicated region
        $region29: #{shallow_convnet_forward.2} parent=27 // pred_check
          %p129 = pneg %p56
        $region30: #{shallow_convnet_forward.2} parent=27 // pred_check_branch
          %131 = sbr.rel (%p129) target = $region32
        $region31: #{shallow_convnet_forward.2} parent=27 // pred_region
          %132 = dma.done [#allocation4], 24960
        $region32: #{shallow_convnet_forward.2} parent=27 // pred_fallthru
          _
        %p133 = scmp.lt.s32.totalorder %s14, 1
        %s134 = scalar_select %p133, %s14, 1
        %s135 = smul.addr %s134, 3
        %s136 = smul.addr %s135, 8
        %s137 = scalar_lea.vmem %s0, %s136
        %p138 = pneg %p35
        %p139 = pneg %p32
        %p140 = pneg %p56
        %p141 = pneg %p53
        %p142 = pneg %p82
        %p143 = pneg %p79
        %p144 = scmp.lt.s32.totalorder %s14, 1
        %s145 = scalar_select %p144, %s14, 1
        %s146 = smul.addr %s145, 65
        %s147 = smul.addr %s146, 8
        %s148 = scalar_lea.vmem %s2, %s147
        %p149 = scmp.lt.s32.totalorder %s14, 1
        %s150 = scalar_select %p149, %s14, 1
        %s151 = smul.addr %s150, 3
        %s152 = smul.addr %s151, 8
        %s153 = scalar_lea.vmem %s0, %s152
        %p154 = scmp.lt.s32.totalorder %s14, 1
        %s155 = scalar_select %p154, %s14, 1
        %s156 = smul.addr %s155, 65
        %s157 = smul.addr %s156, 8
        %s158 = scalar_lea.vmem %s2, %s157
        %v159 = vld [vmem:[%s153] sm:$0xff]
        %v160 = vld [vmem:[%s153 + $0x8] sm:$0xff]
        %v161 = vld [vmem:[%s153 + $0x10] sm:$0xff]
        %vm162 = vcmask 343040
        %163 = vst.msk [vmem:[#allocation2] sm:$0xff] %vm162, %v159
        %164 = vst.msk [vmem:[#allocation2 + $0x8] sm:$0xff] %vm162, %v160
        %165 = vst.msk [vmem:[#allocation2 + $0x10] sm:$0xff] %vm162, %v161
        %169 = vrot.lane.b32.xlu0 %v159, 127
        %v170 = vpop.permute.xlu0 %169
        %171 = vrot.lane.b32.xlu0 %v160, 127
        %v172 = vpop.permute.xlu0 %171
        %173 = vrot.lane.b32.xlu0 %v161, 127
        %v174 = vpop.permute.xlu0 %173
        %178 = vst.msk [vmem:[#allocation2 + $0x18] sm:$0xff] %vm162, %v170
        %179 = vst.msk [vmem:[#allocation2 + $0x20] sm:$0xff] %vm162, %v172
        %180 = vst.msk [vmem:[#allocation2 + $0x28] sm:$0xff] %vm162, %v174
        %181 = vrot.lane.b32.xlu0 %v159, 126
        %v182 = vpop.permute.xlu0 %181
        %183 = vrot.lane.b32.xlu0 %v160, 126
        %v184 = vpop.permute.xlu0 %183
        %185 = vrot.lane.b32.xlu0 %v161, 126
        %v186 = vpop.permute.xlu0 %185
        %190 = vst.msk [vmem:[#allocation2 + $0x30] sm:$0xff] %vm162, %v182
        %191 = vst.msk [vmem:[#allocation2 + $0x38] sm:$0xff] %vm162, %v184
        %192 = vst.msk [vmem:[#allocation2 + $0x40] sm:$0xff] %vm162, %v186
        %193 = vrot.lane.b32.xlu0 %v159, 125
        %v194 = vpop.permute.xlu0 %193
        %195 = vrot.lane.b32.xlu0 %v160, 125
        %v196 = vpop.permute.xlu0 %195
        %197 = vrot.lane.b32.xlu0 %v161, 125
        %v198 = vpop.permute.xlu0 %197
        %202 = vst.msk [vmem:[#allocation2 + $0x48] sm:$0xff] %vm162, %v194
        %203 = vst.msk [vmem:[#allocation2 + $0x50] sm:$0xff] %vm162, %v196
        %204 = vst.msk [vmem:[#allocation2 + $0x58] sm:$0xff] %vm162, %v198
        %205 = vrot.lane.b32.xlu0 %v159, 124
        %v206 = vpop.permute.xlu0 %205
        %207 = vrot.lane.b32.xlu0 %v160, 124
        %v208 = vpop.permute.xlu0 %207
        %209 = vrot.lane.b32.xlu0 %v161, 124
        %v210 = vpop.permute.xlu0 %209
        %214 = vst.msk [vmem:[#allocation2 + $0x60] sm:$0xff] %vm162, %v206
        %215 = vst.msk [vmem:[#allocation2 + $0x68] sm:$0xff] %vm162, %v208
        %216 = vst.msk [vmem:[#allocation2 + $0x70] sm:$0xff] %vm162, %v210
        %217 = vrot.lane.b32.xlu0 %v159, 123
        %v218 = vpop.permute.xlu0 %217
        %219 = vrot.lane.b32.xlu0 %v160, 123
        %v220 = vpop.permute.xlu0 %219
        %221 = vrot.lane.b32.xlu0 %v161, 123
        %v222 = vpop.permute.xlu0 %221
        %226 = vst.msk [vmem:[#allocation2 + $0x78] sm:$0xff] %vm162, %v218
        %227 = vst.msk [vmem:[#allocation2 + $0x80] sm:$0xff] %vm162, %v220
        %228 = vst.msk [vmem:[#allocation2 + $0x88] sm:$0xff] %vm162, %v222
        %229 = vrot.lane.b32.xlu0 %v159, 122
        %v230 = vpop.permute.xlu0 %229
        %231 = vrot.lane.b32.xlu0 %v160, 122
        %v232 = vpop.permute.xlu0 %231
        %233 = vrot.lane.b32.xlu0 %v161, 122
        %v234 = vpop.permute.xlu0 %233
        %238 = vst.msk [vmem:[#allocation2 + $0x90] sm:$0xff] %vm162, %v230
        %239 = vst.msk [vmem:[#allocation2 + $0x98] sm:$0xff] %vm162, %v232
        %240 = vst.msk [vmem:[#allocation2 + $0xa0] sm:$0xff] %vm162, %v234
        %241 = vrot.lane.b32.xlu0 %v159, 121
        %v242 = vpop.permute.xlu0 %241
        %243 = vrot.lane.b32.xlu0 %v160, 121
        %v244 = vpop.permute.xlu0 %243
        %245 = vrot.lane.b32.xlu0 %v161, 121
        %v246 = vpop.permute.xlu0 %245
        %250 = vst.msk [vmem:[#allocation2 + $0xa8] sm:$0xff] %vm162, %v242
        %251 = vst.msk [vmem:[#allocation2 + $0xb0] sm:$0xff] %vm162, %v244
        %252 = vst.msk [vmem:[#allocation2 + $0xb8] sm:$0xff] %vm162, %v246
        %253 = vrot.lane.b32.xlu0 %v159, 120
        %v254 = vpop.permute.xlu0 %253
        %255 = vrot.lane.b32.xlu0 %v160, 120
        %v256 = vpop.permute.xlu0 %255
        %257 = vrot.lane.b32.xlu0 %v161, 120
        %v258 = vpop.permute.xlu0 %257
        %262 = vst.msk [vmem:[#allocation2 + $0xc0] sm:$0xff] %vm162, %v254
        %263 = vst.msk [vmem:[#allocation2 + $0xc8] sm:$0xff] %vm162, %v256
        %264 = vst.msk [vmem:[#allocation2 + $0xd0] sm:$0xff] %vm162, %v258
        %265 = vrot.lane.b32.xlu0 %v159, 119
        %v266 = vpop.permute.xlu0 %265
        %267 = vrot.lane.b32.xlu0 %v160, 119
        %v268 = vpop.permute.xlu0 %267
        %269 = vrot.lane.b32.xlu0 %v161, 119
        %v270 = vpop.permute.xlu0 %269
        %274 = vst.msk [vmem:[#allocation2 + $0xd8] sm:$0xff] %vm162, %v266
        %275 = vst.msk [vmem:[#allocation2 + $0xe0] sm:$0xff] %vm162, %v268
        %276 = vst.msk [vmem:[#allocation2 + $0xe8] sm:$0xff] %vm162, %v270
        %277 = vrot.lane.b32.xlu0 %v159, 118
        %v278 = vpop.permute.xlu0 %277
        %279 = vrot.lane.b32.xlu0 %v160, 118
        %v280 = vpop.permute.xlu0 %279
        %281 = vrot.lane.b32.xlu0 %v161, 118
        %v282 = vpop.permute.xlu0 %281
        %286 = vst.msk [vmem:[#allocation2 + $0xf0] sm:$0xff] %vm162, %v278
        %287 = vst.msk [vmem:[#allocation2 + $0xf8] sm:$0xff] %vm162, %v280
        %288 = vst.msk [vmem:[#allocation2 + $0x100] sm:$0xff] %vm162, %v282
        %289 = vrot.lane.b32.xlu0 %v159, 117
        %v290 = vpop.permute.xlu0 %289
        %291 = vrot.lane.b32.xlu0 %v160, 117
        %v292 = vpop.permute.xlu0 %291
        %293 = vrot.lane.b32.xlu0 %v161, 117
        %v294 = vpop.permute.xlu0 %293
        %298 = vst.msk [vmem:[#allocation2 + $0x108] sm:$0xff] %vm162, %v290
        %299 = vst.msk [vmem:[#allocation2 + $0x110] sm:$0xff] %vm162, %v292
        %300 = vst.msk [vmem:[#allocation2 + $0x118] sm:$0xff] %vm162, %v294
        %301 = vrot.lane.b32.xlu0 %v159, 116
        %v302 = vpop.permute.xlu0 %301
        %303 = vrot.lane.b32.xlu0 %v160, 116
        %v304 = vpop.permute.xlu0 %303
        %305 = vrot.lane.b32.xlu0 %v161, 116
        %v306 = vpop.permute.xlu0 %305
        %310 = vst.msk [vmem:[#allocation2 + $0x120] sm:$0xff] %vm162, %v302
        %311 = vst.msk [vmem:[#allocation2 + $0x128] sm:$0xff] %vm162, %v304
        %312 = vst.msk [vmem:[#allocation2 + $0x130] sm:$0xff] %vm162, %v306
        %v313 = vld [vmem:[#allocation3] sm:$0xff]
        %v314 = vld [vmem:[#allocation3 + $0x8] sm:$0xff]
        %v315 = vld [vmem:[#allocation3 + $0x10] sm:$0xff]
        %v316 = vld [vmem:[#allocation3 + $0x18] sm:$0xff]
        %v317 = vld [vmem:[#allocation3 + $0x20] sm:$0xff]
        %v318 = vld [vmem:[#allocation3 + $0x28] sm:$0xff]
        %v319 = vld [vmem:[#allocation3 + $0x30] sm:$0xff]
        %v320 = vld [vmem:[#allocation3 + $0x38] sm:$0xff]
        %v321 = vld [vmem:[#allocation3 + $0x40] sm:$0xff]
        %v322 = vld [vmem:[#allocation3 + $0x48] sm:$0xff]
        %v323 = vld [vmem:[#allocation3 + $0x50] sm:$0xff]
        %v324 = vld [vmem:[#allocation3 + $0x58] sm:$0xff]
        %v325 = vld [vmem:[#allocation3 + $0x60] sm:$0xff]
        %v326 = vld [vmem:[#allocation3 + $0x68] sm:$0xff]
        %v327 = vld [vmem:[#allocation3 + $0x70] sm:$0xff]
        %v328 = vld [vmem:[#allocation3 + $0x78] sm:$0xff]
        %v329 = vld [vmem:[#allocation3 + $0x80] sm:$0xff]
        %v330 = vld [vmem:[#allocation3 + $0x88] sm:$0xff]
        %v331 = vld [vmem:[#allocation3 + $0x90] sm:$0xff]
        %v332 = vld [vmem:[#allocation3 + $0x98] sm:$0xff]
        %v333 = vld [vmem:[#allocation3 + $0xa0] sm:$0xff]
        %v334 = vld [vmem:[#allocation3 + $0xa8] sm:$0xff]
        %v335 = vld [vmem:[#allocation3 + $0xb0] sm:$0xff]
        %v336 = vld [vmem:[#allocation3 + $0xb8] sm:$0xff]
        %v337 = vld [vmem:[#allocation3 + $0xc0] sm:$0xff]
        %v338 = vld [vmem:[#allocation3 + $0xc8] sm:$0xff]
        %v339 = vld [vmem:[#allocation3 + $0xd0] sm:$0xff]
        %v340 = vld [vmem:[#allocation3 + $0xd8] sm:$0xff]
        %v341 = vld [vmem:[#allocation3 + $0xe0] sm:$0xff]
        %v342 = vld [vmem:[#allocation3 + $0xe8] sm:$0xff]
        %v343 = vld [vmem:[#allocation3 + $0xf0] sm:$0xff]
        %v344 = vld [vmem:[#allocation3 + $0xf8] sm:$0xff]
        %v345 = vld [vmem:[#allocation3 + $0x100] sm:$0xff]
        %v346 = vld [vmem:[#allocation3 + $0x108] sm:$0xff]
        %v347 = vld [vmem:[#allocation3 + $0x110] sm:$0xff]
        %v348 = vld [vmem:[#allocation3 + $0x118] sm:$0xff]
        %v349 = vld [vmem:[#allocation3 + $0x120] sm:$0xff]
        %v350 = vld [vmem:[#allocation3 + $0x128] sm:$0xff]
        %v351 = vld [vmem:[#allocation3 + $0x130] sm:$0xff]
        %v352 = vld [vmem:[#allocation3 + $0x138] sm:$0xff]
        %v353 = vld [vmem:[#allocation3 + $0x140] sm:$0xff]
        %v354 = vld [vmem:[#allocation3 + $0x148] sm:$0xff]
        %v355 = vld [vmem:[#allocation3 + $0x150] sm:$0xff]
        %v356 = vld [vmem:[#allocation3 + $0x158] sm:$0xff]
        %v357 = vld [vmem:[#allocation3 + $0x160] sm:$0xff]
        %v358 = vld [vmem:[#allocation3 + $0x168] sm:$0xff]
        %v359 = vld [vmem:[#allocation3 + $0x170] sm:$0xff]
        %v360 = vld [vmem:[#allocation3 + $0x178] sm:$0xff]
        %v361 = vld [vmem:[#allocation3 + $0x180] sm:$0xff]
        %v362 = vld [vmem:[#allocation3 + $0x188] sm:$0xff]
        %v363 = vld [vmem:[#allocation3 + $0x190] sm:$0xff]
        %v364 = vld [vmem:[#allocation3 + $0x198] sm:$0xff]
        %v365 = vld [vmem:[#allocation3 + $0x1a0] sm:$0xff]
        %v366 = vld [vmem:[#allocation3 + $0x1a8] sm:$0xff]
        %v367 = vld [vmem:[#allocation3 + $0x1b0] sm:$0xff]
        %v368 = vld [vmem:[#allocation3 + $0x1b8] sm:$0xff]
        %v369 = vld [vmem:[#allocation3 + $0x1c0] sm:$0xff]
        %v370 = vld [vmem:[#allocation3 + $0x1c8] sm:$0xff]
        %v371 = vld [vmem:[#allocation3 + $0x1d0] sm:$0xff]
        %v372 = vld [vmem:[#allocation3 + $0x1d8] sm:$0xff]
        %v373 = vld [vmem:[#allocation3 + $0x1e0] sm:$0xff]
        %v374 = vld [vmem:[#allocation3 + $0x1e8] sm:$0xff]
        %v375 = vld [vmem:[#allocation3 + $0x1f0] sm:$0xff]
        %v376 = vld [vmem:[#allocation3 + $0x1f8] sm:$0xff]
        %v377 = vld [vmem:[#allocation3 + $0x200] sm:$0xff]
        %v378 = vld [vmem:[#allocation3 + $0x208] sm:$0xff]
        %v379 = vld [vmem:[#allocation3 + $0x210] sm:$0xff]
        %v380 = vld [vmem:[#allocation3 + $0x218] sm:$0xff]
        %v381 = vld [vmem:[#allocation3 + $0x220] sm:$0xff]
        %v382 = vld [vmem:[#allocation3 + $0x228] sm:$0xff]
        %v383 = vld [vmem:[#allocation3 + $0x230] sm:$0xff]
        %v384 = vld [vmem:[#allocation3 + $0x238] sm:$0xff]
        %v385 = vld [vmem:[#allocation3 + $0x240] sm:$0xff]
        %v386 = vld [vmem:[#allocation3 + $0x248] sm:$0xff]
        %v387 = vld [vmem:[#allocation3 + $0x250] sm:$0xff]
        %v388 = vld [vmem:[#allocation3 + $0x258] sm:$0xff]
        %v389 = vld [vmem:[#allocation3 + $0x260] sm:$0xff]
        %v390 = vld [vmem:[#allocation3 + $0x268] sm:$0xff]
        %v391 = vld [vmem:[#allocation3 + $0x270] sm:$0xff]
        %v392 = vld [vmem:[#allocation3 + $0x278] sm:$0xff]
        %v393 = vld [vmem:[#allocation3 + $0x280] sm:$0xff]
        %v394 = vld [vmem:[#allocation3 + $0x288] sm:$0xff]
        %v395 = vld [vmem:[#allocation3 + $0x290] sm:$0xff]
        %v396 = vld [vmem:[#allocation3 + $0x298] sm:$0xff]
        %v397 = vld [vmem:[#allocation3 + $0x2a0] sm:$0xff]
        %v398 = vld [vmem:[#allocation3 + $0x2a8] sm:$0xff]
        %v399 = vld [vmem:[#allocation3 + $0x2b0] sm:$0xff]
        %v400 = vld [vmem:[#allocation3 + $0x2b8] sm:$0xff]
        %v401 = vld [vmem:[#allocation3 + $0x2c0] sm:$0xff]
        %v402 = vld [vmem:[#allocation3 + $0x2c8] sm:$0xff]
        %v403 = vld [vmem:[#allocation3 + $0x2d0] sm:$0xff]
        %v404 = vld [vmem:[#allocation3 + $0x2d8] sm:$0xff]
        %v405 = vld [vmem:[#allocation3 + $0x2e0] sm:$0xff]
        %v406 = vld [vmem:[#allocation3 + $0x2e8] sm:$0xff]
        %v407 = vld [vmem:[#allocation3 + $0x2f0] sm:$0xff]
        %v408 = vld [vmem:[#allocation3 + $0x2f8] sm:$0xff]
        %v409 = vld [vmem:[#allocation3 + $0x300] sm:$0xff]
        %v410 = vld [vmem:[#allocation3 + $0x308] sm:$0xff]
        %v411 = vld [vmem:[#allocation3 + $0x310] sm:$0xff]
        %v412 = vld [vmem:[#allocation3 + $0x318] sm:$0xff]
        %v413 = vld [vmem:[#allocation3 + $0x320] sm:$0xff]
        %v414 = vld [vmem:[#allocation3 + $0x328] sm:$0xff]
        %v415 = vld [vmem:[#allocation3 + $0x330] sm:$0xff]
        %v416 = vld [vmem:[#allocation3 + $0x338] sm:$0xff]
        %v417 = vld [vmem:[#allocation3 + $0x340] sm:$0xff]
        %v418 = vld [vmem:[#allocation3 + $0x348] sm:$0xff]
        %v419 = vld [vmem:[#allocation3 + $0x350] sm:$0xff]
        %v420 = vld [vmem:[#allocation3 + $0x358] sm:$0xff]
        %v421 = vld [vmem:[#allocation3 + $0x360] sm:$0xff]
        %v422 = vld [vmem:[#allocation3 + $0x368] sm:$0xff]
        %v423 = vld [vmem:[#allocation3 + $0x370] sm:$0xff]
        %v424 = vld [vmem:[#allocation3 + $0x378] sm:$0xff]
        %v425 = vld [vmem:[#allocation3 + $0x380] sm:$0xff]
        %v426 = vld [vmem:[#allocation3 + $0x388] sm:$0xff]
        %v427 = vld [vmem:[#allocation3 + $0x390] sm:$0xff]
        %v428 = vld [vmem:[#allocation3 + $0x398] sm:$0xff]
        %v429 = vld [vmem:[#allocation3 + $0x3a0] sm:$0xff]
        %v430 = vld [vmem:[#allocation3 + $0x3a8] sm:$0xff]
        %v431 = vld [vmem:[#allocation3 + $0x3b0] sm:$0xff]
        %v432 = vld [vmem:[#allocation3 + $0x3b8] sm:$0xff]
        %v433 = vld [vmem:[#allocation3 + $0x3c0] sm:$0xff]
        %v434 = vld [vmem:[#allocation3 + $0x3c8] sm:$0xff]
        %v435 = vld [vmem:[#allocation3 + $0x3d0] sm:$0xff]
        %v436 = vld [vmem:[#allocation3 + $0x3d8] sm:$0xff]
        %v437 = vld [vmem:[#allocation3 + $0x3e0] sm:$0xff]
        %v438 = vld [vmem:[#allocation3 + $0x3e8] sm:$0xff]
        %v439 = vld [vmem:[#allocation3 + $0x3f0] sm:$0xff]
        %v440 = vld [vmem:[#allocation3 + $0x3f8] sm:$0xff]
        %v441 = vld [vmem:[#allocation3 + $0x400] sm:$0xff]
        %v442 = vld [vmem:[#allocation3 + $0x408] sm:$0xff]
        %v443 = vld [vmem:[#allocation3 + $0x410] sm:$0xff]
        %v444 = vld [vmem:[#allocation3 + $0x418] sm:$0xff]
        %v445 = vld [vmem:[#allocation3 + $0x420] sm:$0xff]
        %v446 = vld [vmem:[#allocation3 + $0x428] sm:$0xff]
        %v447 = vld [vmem:[#allocation3 + $0x430] sm:$0xff]
        %v448 = vld [vmem:[#allocation3 + $0x438] sm:$0xff]
        %v449 = vld [vmem:[#allocation3 + $0x440] sm:$0xff]
        %v450 = vld [vmem:[#allocation3 + $0x448] sm:$0xff]
        %v451 = vld [vmem:[#allocation3 + $0x450] sm:$0xff]
        %v452 = vld [vmem:[#allocation3 + $0x458] sm:$0xff]
        %v453 = vld [vmem:[#allocation3 + $0x460] sm:$0xff]
        %v454 = vld [vmem:[#allocation3 + $0x468] sm:$0xff]
        %v455 = vld [vmem:[#allocation3 + $0x470] sm:$0xff]
        %v456 = vld [vmem:[#allocation3 + $0x478] sm:$0xff]
        %v457 = vld [vmem:[#allocation3 + $0x480] sm:$0xff]
        %v458 = vld [vmem:[#allocation3 + $0x488] sm:$0xff]
        %v459 = vld [vmem:[#allocation3 + $0x490] sm:$0xff]
        %v460 = vld [vmem:[#allocation3 + $0x498] sm:$0xff]
        %v461 = vld [vmem:[#allocation3 + $0x4a0] sm:$0xff]
        %v462 = vld [vmem:[#allocation3 + $0x4a8] sm:$0xff]
        %v463 = vld [vmem:[#allocation3 + $0x4b0] sm:$0xff]
        %v464 = vld [vmem:[#allocation3 + $0x4b8] sm:$0xff]
        %v465 = vld [vmem:[#allocation3 + $0x4c0] sm:$0xff]
        %v466 = vld [vmem:[#allocation3 + $0x4c8] sm:$0xff]
        %v467 = vld [vmem:[#allocation3 + $0x4d0] sm:$0xff]
        %v468 = vld [vmem:[#allocation3 + $0x4d8] sm:$0xff]
        %v469 = vld [vmem:[#allocation3 + $0x4e0] sm:$0xff]
        %v470 = vld [vmem:[#allocation3 + $0x4e8] sm:$0xff]
        %v471 = vld [vmem:[#allocation3 + $0x4f0] sm:$0xff]
        %v472 = vld [vmem:[#allocation3 + $0x4f8] sm:$0xff]
        %v473 = vld [vmem:[#allocation3 + $0x500] sm:$0xff]
        %v474 = vld [vmem:[#allocation3 + $0x508] sm:$0xff]
        %v475 = vld [vmem:[#allocation3 + $0x510] sm:$0xff]
        %v476 = vld [vmem:[#allocation3 + $0x518] sm:$0xff]
        %v477 = vld [vmem:[#allocation3 + $0x520] sm:$0xff]
        %v478 = vld [vmem:[#allocation3 + $0x528] sm:$0xff]
        %v479 = vld [vmem:[#allocation3 + $0x530] sm:$0xff]
        %v480 = vld [vmem:[#allocation3 + $0x538] sm:$0xff]
        %v481 = vld [vmem:[#allocation3 + $0x540] sm:$0xff]
        %v482 = vld [vmem:[#allocation3 + $0x548] sm:$0xff]
        %v483 = vld [vmem:[#allocation3 + $0x550] sm:$0xff]
        %v484 = vld [vmem:[#allocation3 + $0x558] sm:$0xff]
        %v485 = vld [vmem:[#allocation3 + $0x560] sm:$0xff]
        %v486 = vld [vmem:[#allocation3 + $0x568] sm:$0xff]
        %v487 = vld [vmem:[#allocation3 + $0x570] sm:$0xff]
        %v488 = vld [vmem:[#allocation3 + $0x578] sm:$0xff]
        %v489 = vld [vmem:[#allocation3 + $0x580] sm:$0xff]
        %v490 = vld [vmem:[#allocation3 + $0x588] sm:$0xff]
        %v491 = vld [vmem:[#allocation3 + $0x590] sm:$0xff]
        %v492 = vld [vmem:[#allocation3 + $0x598] sm:$0xff]
        %v493 = vld [vmem:[#allocation3 + $0x5a0] sm:$0xff]
        %v494 = vld [vmem:[#allocation3 + $0x5a8] sm:$0xff]
        %v495 = vld [vmem:[#allocation3 + $0x5b0] sm:$0xff]
        %v496 = vld [vmem:[#allocation3 + $0x5b8] sm:$0xff]
        %v497 = vld [vmem:[#allocation3 + $0x5c0] sm:$0xff]
        %v498 = vld [vmem:[#allocation3 + $0x5c8] sm:$0xff]
        %v499 = vld [vmem:[#allocation3 + $0x5d0] sm:$0xff]
        %v500 = vld [vmem:[#allocation3 + $0x5d8] sm:$0xff]
        %v501 = vld [vmem:[#allocation3 + $0x5e0] sm:$0xff]
        %v502 = vld [vmem:[#allocation3 + $0x5e8] sm:$0xff]
        %v503 = vld [vmem:[#allocation3 + $0x5f0] sm:$0xff]
        %v504 = vld [vmem:[#allocation3 + $0x5f8] sm:$0xff]
        %v505 = vld [vmem:[#allocation3 + $0x600] sm:$0xff]
        %v506 = vld [vmem:[#allocation3 + $0x608] sm:$0xff]
        %v507 = vld [vmem:[#allocation3 + $0x610] sm:$0xff]
        %v508 = vld [vmem:[#allocation2] sm:$0xff]
        %v509 = vld [vmem:[#allocation2 + $0x8] sm:$0xff]
        %v510 = vld [vmem:[#allocation2 + $0x10] sm:$0xff]
        %v511 = vld [vmem:[#allocation2 + $0x18] sm:$0xff]
        %v512 = vld [vmem:[#allocation2 + $0x20] sm:$0xff]
        %v513 = vld [vmem:[#allocation2 + $0x28] sm:$0xff]
        %v514 = vld [vmem:[#allocation2 + $0x30] sm:$0xff]
        %v515 = vld [vmem:[#allocation2 + $0x38] sm:$0xff]
        %v516 = vld [vmem:[#allocation2 + $0x40] sm:$0xff]
        %v517 = vld [vmem:[#allocation2 + $0x48] sm:$0xff]
        %v518 = vld [vmem:[#allocation2 + $0x50] sm:$0xff]
        %v519 = vld [vmem:[#allocation2 + $0x58] sm:$0xff]
        %v520 = vld [vmem:[#allocation2 + $0x60] sm:$0xff]
        %v521 = vld [vmem:[#allocation2 + $0x68] sm:$0xff]
        %v522 = vld [vmem:[#allocation2 + $0x70] sm:$0xff]
        %v523 = vld [vmem:[#allocation2 + $0x78] sm:$0xff]
        %v524 = vld [vmem:[#allocation2 + $0x80] sm:$0xff]
        %v525 = vld [vmem:[#allocation2 + $0x88] sm:$0xff]
        %v526 = vld [vmem:[#allocation2 + $0x90] sm:$0xff]
        %v527 = vld [vmem:[#allocation2 + $0x98] sm:$0xff]
        %v528 = vld [vmem:[#allocation2 + $0xa0] sm:$0xff]
        %v529 = vld [vmem:[#allocation2 + $0xa8] sm:$0xff]
        %v530 = vld [vmem:[#allocation2 + $0xb0] sm:$0xff]
        %v531 = vld [vmem:[#allocation2 + $0xb8] sm:$0xff]
        %v532 = vld [vmem:[#allocation2 + $0xc0] sm:$0xff]
        %v533 = vld [vmem:[#allocation2 + $0xc8] sm:$0xff]
        %v534 = vld [vmem:[#allocation2 + $0xd0] sm:$0xff]
        %v535 = vld [vmem:[#allocation2 + $0xd8] sm:$0xff]
        %v536 = vld [vmem:[#allocation2 + $0xe0] sm:$0xff]
        %v537 = vld [vmem:[#allocation2 + $0xe8] sm:$0xff]
        %v538 = vld [vmem:[#allocation2 + $0xf0] sm:$0xff]
        %v539 = vld [vmem:[#allocation2 + $0xf8] sm:$0xff]
        %v540 = vld [vmem:[#allocation2 + $0x100] sm:$0xff]
        %v541 = vld [vmem:[#allocation2 + $0x108] sm:$0xff]
        %v542 = vld [vmem:[#allocation2 + $0x110] sm:$0xff]
        %v543 = vld [vmem:[#allocation2 + $0x118] sm:$0xff]
        %v544 = vld [vmem:[#allocation2 + $0x120] sm:$0xff]
        %v545 = vld [vmem:[#allocation2 + $0x128] sm:$0xff]
        %v546 = vld [vmem:[#allocation2 + $0x130] sm:$0xff]
        %vm547 = vcmask 457728
        %v549 = vsel %vm547, %v315, 0
        %v552 = vsel %vm547, %v318, 0
        %v555 = vsel %vm547, %v321, 0
        %v558 = vsel %vm547, %v324, 0
        %v561 = vsel %vm547, %v327, 0
        %v564 = vsel %vm547, %v330, 0
        %v567 = vsel %vm547, %v333, 0
        %v570 = vsel %vm547, %v336, 0
        %v573 = vsel %vm547, %v339, 0
        %v576 = vsel %vm547, %v342, 0
        %v579 = vsel %vm547, %v345, 0
        %v582 = vsel %vm547, %v348, 0
        %v585 = vsel %vm547, %v351, 0
        %v588 = vsel %vm547, %v354, 0
        %v591 = vsel %vm547, %v357, 0
        %v594 = vsel %vm547, %v360, 0
        %v597 = vsel %vm547, %v363, 0
        %v600 = vsel %vm547, %v366, 0
        %v603 = vsel %vm547, %v369, 0
        %v606 = vsel %vm547, %v372, 0
        %v609 = vsel %vm547, %v375, 0
        %v612 = vsel %vm547, %v378, 0
        %v615 = vsel %vm547, %v381, 0
        %v618 = vsel %vm547, %v384, 0
        %v621 = vsel %vm547, %v387, 0
        %v624 = vsel %vm547, %v390, 0
        %v627 = vsel %vm547, %v393, 0
        %v630 = vsel %vm547, %v396, 0
        %v633 = vsel %vm547, %v399, 0
        %v636 = vsel %vm547, %v402, 0
        %v639 = vsel %vm547, %v405, 0
        %v642 = vsel %vm547, %v408, 0
        %v645 = vsel %vm547, %v411, 0
        %v648 = vsel %vm547, %v414, 0
        %v651 = vsel %vm547, %v417, 0
        %v654 = vsel %vm547, %v420, 0
        %v657 = vsel %vm547, %v423, 0
        %v660 = vsel %vm547, %v426, 0
        %v663 = vsel %vm547, %v429, 0
        %v666 = vsel %vm547, %v432, 0
        %v669 = vsel %vm547, %v435, 0
        %v672 = vsel %vm547, %v438, 0
        %v675 = vsel %vm547, %v441, 0
        %v678 = vsel %vm547, %v444, 0
        %v681 = vsel %vm547, %v447, 0
        %v684 = vsel %vm547, %v450, 0
        %v687 = vsel %vm547, %v453, 0
        %v690 = vsel %vm547, %v456, 0
        %v693 = vsel %vm547, %v459, 0
        %v696 = vsel %vm547, %v462, 0
        %v699 = vsel %vm547, %v465, 0
        %v702 = vsel %vm547, %v468, 0
        %v705 = vsel %vm547, %v471, 0
        %v708 = vsel %vm547, %v474, 0
        %v711 = vsel %vm547, %v477, 0
        %v714 = vsel %vm547, %v480, 0
        %v717 = vsel %vm547, %v483, 0
        %v720 = vsel %vm547, %v486, 0
        %v723 = vsel %vm547, %v489, 0
        %v726 = vsel %vm547, %v492, 0
        %v729 = vsel %vm547, %v495, 0
        %v732 = vsel %vm547, %v498, 0
        %v735 = vsel %vm547, %v501, 0
        %v738 = vsel %vm547, %v504, 0
        %v741 = vsel %vm547, %v507, 0
        %743 = vmatprep.subr.mxu0 0.0
        %744 = vmatpush1.msra.mxu0 %v508
        %745 = vmatprep.subr.mxu0 0.0
        %746 = vmatpush1.msra.mxu0 %v509
        %747 = vmatprep.subr.mxu0 0.0
        %748 = vmatpush1.msra.mxu0 %v510
        %749 = vmatprep.subr.mxu0 0.0
        %750 = vmatpush1.msra.mxu0 %v511
        %751 = vmatprep.subr.mxu0 0.0
        %752 = vmatpush1.msra.mxu0 %v512
        %753 = vmatprep.subr.mxu0 0.0
        %754 = vmatpush1.msra.mxu0 %v513
        %755 = vmatprep.subr.mxu0 0.0
        %756 = vmatpush1.msra.mxu0 %v514
        %757 = vmatprep.subr.mxu0 0.0
        %758 = vmatpush1.msra.mxu0 %v515
        %759 = vmatprep.subr.mxu0 0.0
        %760 = vmatpush1.msra.mxu0 %v516
        %761 = vmatprep.subr.mxu0 0.0
        %762 = vmatpush1.msra.mxu0 %v517
        %763 = vmatprep.subr.mxu0 0.0
        %764 = vmatpush1.msra.mxu0 %v518
        %765 = vmatprep.subr.mxu0 0.0
        %766 = vmatpush1.msra.mxu0 %v519
        %767 = vmatprep.subr.mxu0 0.0
        %768 = vmatpush1.msra.mxu0 %v520
        %769 = vmatprep.subr.mxu0 0.0
        %770 = vmatpush1.msra.mxu0 %v521
        %771 = vmatprep.subr.mxu0 0.0
        %772 = vmatpush1.msra.mxu0 %v522
        %773 = vmatprep.subr.mxu0 0.0
        %774 = vmatpush1.msra.mxu0 %v523
        %775 = vmatprep.subr.mxu0 0.0
        %776 = vmatpush1.msra.mxu0 %v524
        %777 = vmatprep.subr.mxu0 0.0
        %778 = vmatpush1.msra.mxu0 %v525
        %779 = vmatprep.subr.mxu0 0.0
        %780 = vmatpush1.msra.mxu0 %v526
        %781 = vmatprep.subr.mxu0 0.0
        %782 = vmatpush1.msra.mxu0 %v527
        %783 = vmatprep.subr.mxu0 0.0
        %784 = vmatpush1.msra.mxu0 %v528
        %785 = vmatprep.subr.mxu0 0.0
        %786 = vmatpush1.msra.mxu0 %v529
        %787 = vmatprep.subr.mxu0 0.0
        %788 = vmatpush1.msra.mxu0 %v530
        %789 = vmatprep.subr.mxu0 0.0
        %790 = vmatpush1.msra.mxu0 %v531
        %791 = vmatprep.subr.mxu0 0.0
        %792 = vmatpush1.msra.mxu0 %v532
        %793 = vmatprep.subr.mxu0 0.0
        %794 = vmatpush1.msra.mxu0 %v533
        %795 = vmatprep.subr.mxu0 0.0
        %796 = vmatpush1.msra.mxu0 %v534
        %797 = vmatprep.subr.mxu0 0.0
        %798 = vmatpush1.msra.mxu0 %v535
        %799 = vmatprep.subr.mxu0 0.0
        %800 = vmatpush1.msra.mxu0 %v536
        %801 = vmatprep.subr.mxu0 0.0
        %802 = vmatpush1.msra.mxu0 %v537
        %803 = vmatprep.subr.mxu0 0.0
        %804 = vmatpush1.msra.mxu0 %v538
        %805 = vmatprep.subr.mxu0 0.0
        %806 = vmatpush1.msra.mxu0 %v539
        %807 = vmatprep.mubr.f32.mxu0 %v314
        %808 = vmatmul.mubr.f32.gmra.mrb[0].mxu0 %v313
        %v809 = vpop.f32.mrb[0].mxu0
        %v810 = vadd.f32 0.0, %v809
        %v811 = vpop.f32.mrb[0].mxu0
        %812 = vmatprep.mubr.f32.mxu0 %v317
        %813 = vmatmul.mubr.f32.gmra.mrb[0].mxu0 %v316
        %v814 = vpop.f32.mrb[0].mxu0
        %v815 = vadd.f32 0.0, %v814
        %v816 = vpop.f32.mrb[0].mxu0
        %817 = vmatprep.mubr.f32.mxu0 %v320
        %818 = vmatmul.mubr.f32.gmra.mrb[0].mxu0 %v319
        %v819 = vpop.f32.mrb[0].mxu0
        %v820 = vadd.f32 0.0, %v819
        %v821 = vpop.f32.mrb[0].mxu0
        %822 = vmatprep.mubr.f32.mxu0 %v323
        %823 = vmatmul.mubr.f32.gmra.mrb[0].mxu0 %v322
        %v824 = vpop.f32.mrb[0].mxu0
        %v825 = vadd.f32 0.0, %v824
        %v826 = vpop.f32.mrb[0].mxu0
        %827 = vmatprep.mubr.f32.mxu0 %v326
        %828 = vmatmul.mubr.f32.gmra.mrb[0].mxu0 %v325
        %v829 = vpop.f32.mrb[0].mxu0
        %v830 = vadd.f32 0.0, %v829
        %v831 = vpop.f32.mrb[0].mxu0
        %832 = vmatprep.mubr.f32.mxu0 %v329
        %833 = vmatmul.mubr.f32.gmra.mrb[0].mxu0 %v328
        %v834 = vpop.f32.mrb[0].mxu0
        %v835 = vadd.f32 0.0, %v834
        %v836 = vpop.f32.mrb[0].mxu0
        %837 = vmatprep.mubr.f32.mxu0 %v332
        %838 = vmatmul.mubr.f32.gmra.mrb[0].mxu0 %v331
        %v839 = vpop.f32.mrb[0].mxu0
        %v840 = vadd.f32 0.0, %v839
        %v841 = vpop.f32.mrb[0].mxu0
        %842 = vmatprep.mubr.f32.mxu0 %v335
        %843 = vmatmul.mubr.f32.gmra.mrb[0].mxu0 %v334
        %v844 = vpop.f32.mrb[0].mxu0
        %v845 = vadd.f32 0.0, %v844
        %v846 = vpop.f32.mrb[0].mxu0
        %847 = vmatprep.mubr.f32.mxu0 %v338
        %848 = vmatmul.mubr.f32.gmra.mrb[0].mxu0 %v337
        %v849 = vpop.f32.mrb[0].mxu0
        %v850 = vadd.f32 0.0, %v849
        %v851 = vpop.f32.mrb[0].mxu0
        %852 = vmatprep.mubr.f32.mxu0 %v341
        %853 = vmatmul.mubr.f32.gmra.mrb[0].mxu0 %v340
        %v854 = vpop.f32.mrb[0].mxu0
        %v855 = vadd.f32 0.0, %v854
        %v856 = vpop.f32.mrb[0].mxu0
        %857 = vmatprep.mubr.f32.mxu0 %v344
        %858 = vmatmul.mubr.f32.gmra.mrb[0].mxu0 %v343
        %v859 = vpop.f32.mrb[0].mxu0
        %v860 = vadd.f32 0.0, %v859
        %v861 = vpop.f32.mrb[0].mxu0
        %862 = vmatprep.mubr.f32.mxu0 %v347
        %863 = vmatmul.mubr.f32.gmra.mrb[0].mxu0 %v346
        %v864 = vpop.f32.mrb[0].mxu0
        %v865 = vadd.f32 0.0, %v864
        %v866 = vpop.f32.mrb[0].mxu0
        %867 = vmatprep.mubr.f32.mxu0 %v350
        %868 = vmatmul.mubr.f32.gmra.mrb[0].mxu0 %v349
        %v869 = vpop.f32.mrb[0].mxu0
        %v870 = vadd.f32 0.0, %v869
        %v871 = vpop.f32.mrb[0].mxu0
        %872 = vmatprep.mubr.f32.mxu0 %v353
        %873 = vmatmul.mubr.f32.gmra.mrb[0].mxu0 %v352
        %v874 = vpop.f32.mrb[0].mxu0
        %v875 = vadd.f32 0.0, %v874
        %v876 = vpop.f32.mrb[0].mxu0
        %877 = vmatprep.mubr.f32.mxu0 %v356
        %878 = vmatmul.mubr.f32.gmra.mrb[0].mxu0 %v355
        %v879 = vpop.f32.mrb[0].mxu0
        %v880 = vadd.f32 0.0, %v879
        %v881 = vpop.f32.mrb[0].mxu0
        %882 = vmatprep.mubr.f32.mxu0 %v359
        %883 = vmatmul.mubr.f32.gmra.mrb[0].mxu0 %v358
        %v884 = vpop.f32.mrb[0].mxu0
        %v885 = vadd.f32 0.0, %v884
        %v886 = vpop.f32.mrb[0].mxu0
        %887 = vmatprep.mubr.f32.mxu0 %v362
        %888 = vmatmul.mubr.f32.gmra.mrb[0].mxu0 %v361
        %v889 = vpop.f32.mrb[0].mxu0
        %v890 = vadd.f32 0.0, %v889
        %v891 = vpop.f32.mrb[0].mxu0
        %892 = vmatprep.mubr.f32.mxu0 %v365
        %893 = vmatmul.mubr.f32.gmra.mrb[0].mxu0 %v364
        %v894 = vpop.f32.mrb[0].mxu0
        %v895 = vadd.f32 0.0, %v894
        %v896 = vpop.f32.mrb[0].mxu0
        %897 = vmatprep.mubr.f32.mxu0 %v368
        %898 = vmatmul.mubr.f32.gmra.mrb[0].mxu0 %v367
        %v899 = vpop.f32.mrb[0].mxu0
        %v900 = vadd.f32 0.0, %v899
        %v901 = vpop.f32.mrb[0].mxu0
        %902 = vmatprep.mubr.f32.mxu0 %v371
        %903 = vmatmul.mubr.f32.gmra.mrb[0].mxu0 %v370
        %v904 = vpop.f32.mrb[0].mxu0
        %v905 = vadd.f32 0.0, %v904
        %v906 = vpop.f32.mrb[0].mxu0
        %907 = vmatprep.mubr.f32.mxu0 %v374
        %908 = vmatmul.mubr.f32.gmra.mrb[0].mxu0 %v373
        %v909 = vpop.f32.mrb[0].mxu0
        %v910 = vadd.f32 0.0, %v909
        %v911 = vpop.f32.mrb[0].mxu0
        %912 = vmatprep.mubr.f32.mxu0 %v377
        %913 = vmatmul.mubr.f32.gmra.mrb[0].mxu0 %v376
        %v914 = vpop.f32.mrb[0].mxu0
        %v915 = vadd.f32 0.0, %v914
        %v916 = vpop.f32.mrb[0].mxu0
        %917 = vmatprep.mubr.f32.mxu0 %v380
        %918 = vmatmul.mubr.f32.gmra.mrb[0].mxu0 %v379
        %v919 = vpop.f32.mrb[0].mxu0
        %v920 = vadd.f32 0.0, %v919
        %v921 = vpop.f32.mrb[0].mxu0
        %922 = vmatprep.mubr.f32.mxu0 %v383
        %923 = vmatmul.mubr.f32.gmra.mrb[0].mxu0 %v382
        %v924 = vpop.f32.mrb[0].mxu0
        %v925 = vadd.f32 0.0, %v924
        %v926 = vpop.f32.mrb[0].mxu0
        %927 = vmatprep.mubr.f32.mxu0 %v386
        %928 = vmatmul.mubr.f32.gmra.mrb[0].mxu0 %v385
        %v929 = vpop.f32.mrb[0].mxu0
        %v930 = vadd.f32 0.0, %v929
        %v931 = vpop.f32.mrb[0].mxu0
        %932 = vmatprep.mubr.f32.mxu0 %v389
        %933 = vmatmul.mubr.f32.gmra.mrb[0].mxu0 %v388
        %v934 = vpop.f32.mrb[0].mxu0
        %v935 = vadd.f32 0.0, %v934
        %v936 = vpop.f32.mrb[0].mxu0
        %937 = vmatprep.mubr.f32.mxu0 %v392
        %938 = vmatmul.mubr.f32.gmra.mrb[0].mxu0 %v391
        %v939 = vpop.f32.mrb[0].mxu0
        %v940 = vadd.f32 0.0, %v939
        %v941 = vpop.f32.mrb[0].mxu0
        %942 = vmatprep.mubr.f32.mxu0 %v395
        %943 = vmatmul.mubr.f32.gmra.mrb[0].mxu0 %v394
        %v944 = vpop.f32.mrb[0].mxu0
        %v945 = vadd.f32 0.0, %v944
        %v946 = vpop.f32.mrb[0].mxu0
        %947 = vmatprep.mubr.f32.mxu0 %v398
        %948 = vmatmul.mubr.f32.gmra.mrb[0].mxu0 %v397
        %v949 = vpop.f32.mrb[0].mxu0
        %v950 = vadd.f32 0.0, %v949
        %v951 = vpop.f32.mrb[0].mxu0
        %952 = vmatprep.mubr.f32.mxu0 %v401
        %953 = vmatmul.mubr.f32.gmra.mrb[0].mxu0 %v400
        %v954 = vpop.f32.mrb[0].mxu0
        %v955 = vadd.f32 0.0, %v954
        %v956 = vpop.f32.mrb[0].mxu0
        %957 = vmatprep.mubr.f32.mxu0 %v404
        %958 = vmatmul.mubr.f32.gmra.mrb[0].mxu0 %v403
        %v959 = vpop.f32.mrb[0].mxu0
        %v960 = vadd.f32 0.0, %v959
        %v961 = vpop.f32.mrb[0].mxu0
        %962 = vmatprep.mubr.f32.mxu0 %v407
        %963 = vmatmul.mubr.f32.gmra.mrb[0].mxu0 %v406
        %v964 = vpop.f32.mrb[0].mxu0
        %v965 = vadd.f32 0.0, %v964
        %v966 = vpop.f32.mrb[0].mxu0
        %967 = vmatprep.mubr.f32.mxu0 %v410
        %968 = vmatmul.mubr.f32.gmra.mrb[0].mxu0 %v409
        %v969 = vpop.f32.mrb[0].mxu0
        %v970 = vadd.f32 0.0, %v969
        %v971 = vpop.f32.mrb[0].mxu0
        %972 = vmatprep.mubr.f32.mxu0 %v413
        %973 = vmatmul.mubr.f32.gmra.mrb[0].mxu0 %v412
        %v974 = vpop.f32.mrb[0].mxu0
        %v975 = vadd.f32 0.0, %v974
        %v976 = vpop.f32.mrb[0].mxu0
        %977 = vmatprep.mubr.f32.mxu0 %v416
        %978 = vmatmul.mubr.f32.gmra.mrb[0].mxu0 %v415
        %v979 = vpop.f32.mrb[0].mxu0
        %v980 = vadd.f32 0.0, %v979
        %v981 = vpop.f32.mrb[0].mxu0
        %982 = vmatprep.mubr.f32.mxu0 %v419
        %983 = vmatmul.mubr.f32.gmra.mrb[0].mxu0 %v418
        %v984 = vpop.f32.mrb[0].mxu0
        %v985 = vadd.f32 0.0, %v984
        %v986 = vpop.f32.mrb[0].mxu0
        %987 = vmatprep.mubr.f32.mxu0 %v422
        %988 = vmatmul.mubr.f32.gmra.mrb[0].mxu0 %v421
        %v989 = vpop.f32.mrb[0].mxu0
        %v990 = vadd.f32 0.0, %v989
        %v991 = vpop.f32.mrb[0].mxu0
        %992 = vmatprep.mubr.f32.mxu0 %v425
        %993 = vmatmul.mubr.f32.gmra.mrb[0].mxu0 %v424
        %v994 = vpop.f32.mrb[0].mxu0
        %v995 = vadd.f32 0.0, %v994
        %v996 = vpop.f32.mrb[0].mxu0
        %997 = vmatprep.mubr.f32.mxu0 %v428
        %998 = vmatmul.mubr.f32.gmra.mrb[0].mxu0 %v427
        %v999 = vpop.f32.mrb[0].mxu0
        %v1000 = vadd.f32 0.0, %v999
        %v1001 = vpop.f32.mrb[0].mxu0
        %1002 = vmatprep.mubr.f32.mxu0 %v431
        %1003 = vmatmul.mubr.f32.gmra.mrb[0].mxu0 %v430
        %v1004 = vpop.f32.mrb[0].mxu0
        %v1005 = vadd.f32 0.0, %v1004
        %v1006 = vpop.f32.mrb[0].mxu0
        %1007 = vmatprep.mubr.f32.mxu0 %v434
        %1008 = vmatmul.mubr.f32.gmra.mrb[0].mxu0 %v433
        %v1009 = vpop.f32.mrb[0].mxu0
        %v1010 = vadd.f32 0.0, %v1009
        %v1011 = vpop.f32.mrb[0].mxu0
        %1012 = vmatprep.mubr.f32.mxu0 %v437
        %1013 = vmatmul.mubr.f32.gmra.mrb[0].mxu0 %v436
        %v1014 = vpop.f32.mrb[0].mxu0
        %v1015 = vadd.f32 0.0, %v1014
        %v1016 = vpop.f32.mrb[0].mxu0
        %1017 = vmatprep.mubr.f32.mxu0 %v440
        %1018 = vmatmul.mubr.f32.gmra.mrb[0].mxu0 %v439
        %v1019 = vpop.f32.mrb[0].mxu0
        %v1020 = vadd.f32 0.0, %v1019
        %v1021 = vpop.f32.mrb[0].mxu0
        %1022 = vmatprep.mubr.f32.mxu0 %v443
        %1023 = vmatmul.mubr.f32.gmra.mrb[0].mxu0 %v442
        %v1024 = vpop.f32.mrb[0].mxu0
        %v1025 = vadd.f32 0.0, %v1024
        %v1026 = vpop.f32.mrb[0].mxu0
        %1027 = vmatprep.mubr.f32.mxu0 %v446
        %1028 = vmatmul.mubr.f32.gmra.mrb[0].mxu0 %v445
        %v1029 = vpop.f32.mrb[0].mxu0
        %v1030 = vadd.f32 0.0, %v1029
        %v1031 = vpop.f32.mrb[0].mxu0
        %1032 = vmatprep.mubr.f32.mxu0 %v449
        %1033 = vmatmul.mubr.f32.gmra.mrb[0].mxu0 %v448
        %v1034 = vpop.f32.mrb[0].mxu0
        %v1035 = vadd.f32 0.0, %v1034
        %v1036 = vpop.f32.mrb[0].mxu0
        %1037 = vmatprep.mubr.f32.mxu0 %v452
        %1038 = vmatmul.mubr.f32.gmra.mrb[0].mxu0 %v451
        %v1039 = vpop.f32.mrb[0].mxu0
        %v1040 = vadd.f32 0.0, %v1039
        %v1041 = vpop.f32.mrb[0].mxu0
        %1042 = vmatprep.mubr.f32.mxu0 %v455
        %1043 = vmatmul.mubr.f32.gmra.mrb[0].mxu0 %v454
        %v1044 = vpop.f32.mrb[0].mxu0
        %v1045 = vadd.f32 0.0, %v1044
        %v1046 = vpop.f32.mrb[0].mxu0
        %1047 = vmatprep.mubr.f32.mxu0 %v458
        %1048 = vmatmul.mubr.f32.gmra.mrb[0].mxu0 %v457
        %v1049 = vpop.f32.mrb[0].mxu0
        %v1050 = vadd.f32 0.0, %v1049
        %v1051 = vpop.f32.mrb[0].mxu0
        %1052 = vmatprep.mubr.f32.mxu0 %v461
        %1053 = vmatmul.mubr.f32.gmra.mrb[0].mxu0 %v460
        %v1054 = vpop.f32.mrb[0].mxu0
        %v1055 = vadd.f32 0.0, %v1054
        %v1056 = vpop.f32.mrb[0].mxu0
        %1057 = vmatprep.mubr.f32.mxu0 %v464
        %1058 = vmatmul.mubr.f32.gmra.mrb[0].mxu0 %v463
        %v1059 = vpop.f32.mrb[0].mxu0
        %v1060 = vadd.f32 0.0, %v1059
        %v1061 = vpop.f32.mrb[0].mxu0
        %1062 = vmatprep.mubr.f32.mxu0 %v467
        %1063 = vmatmul.mubr.f32.gmra.mrb[0].mxu0 %v466
        %v1064 = vpop.f32.mrb[0].mxu0
        %v1065 = vadd.f32 0.0, %v1064
        %v1066 = vpop.f32.mrb[0].mxu0
        %1067 = vmatprep.mubr.f32.mxu0 %v470
        %1068 = vmatmul.mubr.f32.gmra.mrb[0].mxu0 %v469
        %v1069 = vpop.f32.mrb[0].mxu0
        %v1070 = vadd.f32 0.0, %v1069
        %v1071 = vpop.f32.mrb[0].mxu0
        %1072 = vmatprep.mubr.f32.mxu0 %v473
        %1073 = vmatmul.mubr.f32.gmra.mrb[0].mxu0 %v472
        %v1074 = vpop.f32.mrb[0].mxu0
        %v1075 = vadd.f32 0.0, %v1074
        %v1076 = vpop.f32.mrb[0].mxu0
        %1077 = vmatprep.mubr.f32.mxu0 %v476
        %1078 = vmatmul.mubr.f32.gmra.mrb[0].mxu0 %v475
        %v1079 = vpop.f32.mrb[0].mxu0
        %v1080 = vadd.f32 0.0, %v1079
        %v1081 = vpop.f32.mrb[0].mxu0
        %1082 = vmatprep.mubr.f32.mxu0 %v479
        %1083 = vmatmul.mubr.f32.gmra.mrb[0].mxu0 %v478
        %v1084 = vpop.f32.mrb[0].mxu0
        %v1085 = vadd.f32 0.0, %v1084
        %v1086 = vpop.f32.mrb[0].mxu0
        %1087 = vmatprep.mubr.f32.mxu0 %v482
        %1088 = vmatmul.mubr.f32.gmra.mrb[0].mxu0 %v481
        %v1089 = vpop.f32.mrb[0].mxu0
        %v1090 = vadd.f32 0.0, %v1089
        %v1091 = vpop.f32.mrb[0].mxu0
        %1092 = vmatprep.mubr.f32.mxu0 %v485
        %1093 = vmatmul.mubr.f32.gmra.mrb[0].mxu0 %v484
        %v1094 = vpop.f32.mrb[0].mxu0
        %v1095 = vadd.f32 0.0, %v1094
        %v1096 = vpop.f32.mrb[0].mxu0
        %1097 = vmatprep.mubr.f32.mxu0 %v488
        %1098 = vmatmul.mubr.f32.gmra.mrb[0].mxu0 %v487
        %v1099 = vpop.f32.mrb[0].mxu0
        %v1100 = vadd.f32 0.0, %v1099
        %v1101 = vpop.f32.mrb[0].mxu0
        %1102 = vmatprep.mubr.f32.mxu0 %v491
        %1103 = vmatmul.mubr.f32.gmra.mrb[0].mxu0 %v490
        %v1104 = vpop.f32.mrb[0].mxu0
        %v1105 = vadd.f32 0.0, %v1104
        %v1106 = vpop.f32.mrb[0].mxu0
        %1107 = vmatprep.mubr.f32.mxu0 %v494
        %1108 = vmatmul.mubr.f32.gmra.mrb[0].mxu0 %v493
        %v1109 = vpop.f32.mrb[0].mxu0
        %v1110 = vadd.f32 0.0, %v1109
        %v1111 = vpop.f32.mrb[0].mxu0
        %1112 = vmatprep.mubr.f32.mxu0 %v497
        %1113 = vmatmul.mubr.f32.gmra.mrb[0].mxu0 %v496
        %v1114 = vpop.f32.mrb[0].mxu0
        %v1115 = vadd.f32 0.0, %v1114
        %v1116 = vpop.f32.mrb[0].mxu0
        %1117 = vmatprep.mubr.f32.mxu0 %v500
        %1118 = vmatmul.mubr.f32.gmra.mrb[0].mxu0 %v499
        %v1119 = vpop.f32.mrb[0].mxu0
        %v1120 = vadd.f32 0.0, %v1119
        %v1121 = vpop.f32.mrb[0].mxu0
        %1122 = vmatprep.mubr.f32.mxu0 %v503
        %1123 = vmatmul.mubr.f32.gmra.mrb[0].mxu0 %v502
        %v1124 = vpop.f32.mrb[0].mxu0
        %v1125 = vadd.f32 0.0, %v1124
        %v1126 = vpop.f32.mrb[0].mxu0
        %1127 = vmatprep.mubr.f32.mxu0 %v506
        %1128 = vmatmul.mubr.f32.gmra.mrb[0].mxu0 %v505
        %v1129 = vpop.f32.mrb[0].mxu0
        %v1130 = vadd.f32 0.0, %v1129
        %v1131 = vpop.f32.mrb[0].mxu0
        %1132 = vdwg.mxu0
        %1133 = vmatprep.subr.mxu0 0.0
        %1134 = vmatpush1.msra.mxu0 %v540
        %1135 = vmatprep.subr.mxu0 0.0
        %1136 = vmatpush1.msra.mxu0 %v541
        %1137 = vmatprep.subr.mxu0 0.0
        %1138 = vmatpush1.msra.mxu0 %v542
        %1139 = vmatprep.subr.mxu0 0.0
        %1140 = vmatpush1.msra.mxu0 %v543
        %1141 = vmatprep.subr.mxu0 0.0
        %1142 = vmatpush1.msra.mxu0 %v544
        %1143 = vmatprep.subr.mxu0 0.0
        %1144 = vmatpush1.msra.mxu0 %v545
        %1145 = vmatprep.subr.mxu0 0.0
        %1146 = vmatpush1.msra.mxu0 %v546
        %1147 = vmatprep.subr.mxu0 0.0
        %1148 = vmatpush1.msra.mxu0 0.0
        %1149 = vmatprep.subr.mxu0 0.0
        %1150 = vmatpush1.msra.mxu0 0.0
        %1151 = vmatprep.subr.mxu0 0.0
        %1152 = vmatpush1.msra.mxu0 0.0
        %1153 = vmatprep.subr.mxu0 0.0
        %1154 = vmatpush1.msra.mxu0 0.0
        %1155 = vmatprep.subr.mxu0 0.0
        %1156 = vmatpush1.msra.mxu0 0.0
        %1157 = vmatprep.subr.mxu0 0.0
        %1158 = vmatpush1.msra.mxu0 0.0
        %1159 = vmatprep.subr.mxu0 0.0
        %1160 = vmatpush1.msra.mxu0 0.0
        %1161 = vmatprep.subr.mxu0 0.0
        %1162 = vmatpush1.msra.mxu0 0.0
        %1163 = vmatprep.subr.mxu0 0.0
        %1164 = vmatpush1.msra.mxu0 0.0
        %1165 = vmatprep.subr.mxu0 0.0
        %1166 = vmatpush1.msra.mxu0 0.0
        %1167 = vmatprep.subr.mxu0 0.0
        %1168 = vmatpush1.msra.mxu0 0.0
        %1169 = vmatprep.subr.mxu0 0.0
        %1170 = vmatpush1.msra.mxu0 0.0
        %1171 = vmatprep.subr.mxu0 0.0
        %1172 = vmatpush1.msra.mxu0 0.0
        %1173 = vmatprep.subr.mxu0 0.0
        %1174 = vmatpush1.msra.mxu0 0.0
        %1175 = vmatprep.subr.mxu0 0.0
        %1176 = vmatpush1.msra.mxu0 0.0
        %1177 = vmatprep.subr.mxu0 0.0
        %1178 = vmatpush1.msra.mxu0 0.0
        %1179 = vmatprep.subr.mxu0 0.0
        %1180 = vmatpush1.msra.mxu0 0.0
        %1181 = vmatprep.subr.mxu0 0.0
        %1182 = vmatpush1.msra.mxu0 0.0
        %1183 = vmatprep.subr.mxu0 0.0
        %1184 = vmatpush1.msra.mxu0 0.0
        %1185 = vmatprep.subr.mxu0 0.0
        %1186 = vmatpush1.msra.mxu0 0.0
        %1187 = vmatprep.subr.mxu0 0.0
        %1188 = vmatpush1.msra.mxu0 0.0
        %1189 = vmatprep.subr.mxu0 0.0
        %1190 = vmatpush1.msra.mxu0 0.0
        %1191 = vmatprep.subr.mxu0 0.0
        %1192 = vmatpush1.msra.mxu0 0.0
        %1193 = vmatprep.subr.mxu0 0.0
        %1194 = vmatpush1.msra.mxu0 0.0
        %1195 = vmatprep.subr.mxu0 0.0
        %1196 = vmatpush1.msra.mxu0 0.0
        %1197 = vmatprep.mubr.f32.mxu0 0.0
        %1198 = vmatmul.mubr.f32.gmra.mrb[0].mxu0 %v549
        %v1199 = vpop.f32.mrb[0].mxu0
        %v1200 = vadd.f32 %v810, %v1199
        %v1201 = vpop.f32.mrb[0].mxu0
        %1202 = vmatprep.mubr.f32.mxu0 0.0
        %1203 = vmatmul.mubr.f32.gmra.mrb[0].mxu0 %v552
        %v1204 = vpop.f32.mrb[0].mxu0
        %v1205 = vadd.f32 %v815, %v1204
        %v1206 = vpop.f32.mrb[0].mxu0
        %1207 = vmatprep.mubr.f32.mxu0 0.0
        %1208 = vmatmul.mubr.f32.gmra.mrb[0].mxu0 %v555
        %v1209 = vpop.f32.mrb[0].mxu0
        %v1210 = vadd.f32 %v820, %v1209
        %v1211 = vpop.f32.mrb[0].mxu0
        %1212 = vmatprep.mubr.f32.mxu0 0.0
        %1213 = vmatmul.mubr.f32.gmra.mrb[0].mxu0 %v558
        %v1214 = vpop.f32.mrb[0].mxu0
        %v1215 = vadd.f32 %v825, %v1214
        %v1216 = vpop.f32.mrb[0].mxu0
        %1217 = vmatprep.mubr.f32.mxu0 0.0
        %1218 = vmatmul.mubr.f32.gmra.mrb[0].mxu0 %v561
        %v1219 = vpop.f32.mrb[0].mxu0
        %v1220 = vadd.f32 %v830, %v1219
        %v1221 = vpop.f32.mrb[0].mxu0
        %1222 = vmatprep.mubr.f32.mxu0 0.0
        %1223 = vmatmul.mubr.f32.gmra.mrb[0].mxu0 %v564
        %v1224 = vpop.f32.mrb[0].mxu0
        %v1225 = vadd.f32 %v835, %v1224
        %v1226 = vpop.f32.mrb[0].mxu0
        %1227 = vmatprep.mubr.f32.mxu0 0.0
        %1228 = vmatmul.mubr.f32.gmra.mrb[0].mxu0 %v567
        %v1229 = vpop.f32.mrb[0].mxu0
        %v1230 = vadd.f32 %v840, %v1229
        %v1231 = vpop.f32.mrb[0].mxu0
        %1232 = vmatprep.mubr.f32.mxu0 0.0
        %1233 = vmatmul.mubr.f32.gmra.mrb[0].mxu0 %v570
        %v1234 = vpop.f32.mrb[0].mxu0
        %v1235 = vadd.f32 %v845, %v1234
        %v1236 = vpop.f32.mrb[0].mxu0
        %1237 = vmatprep.mubr.f32.mxu0 0.0
        %1238 = vmatmul.mubr.f32.gmra.mrb[0].mxu0 %v573
        %v1239 = vpop.f32.mrb[0].mxu0
        %v1240 = vadd.f32 %v850, %v1239
        %v1241 = vpop.f32.mrb[0].mxu0
        %1242 = vmatprep.mubr.f32.mxu0 0.0
        %1243 = vmatmul.mubr.f32.gmra.mrb[0].mxu0 %v576
        %v1244 = vpop.f32.mrb[0].mxu0
        %v1245 = vadd.f32 %v855, %v1244
        %v1246 = vpop.f32.mrb[0].mxu0
        %1247 = vmatprep.mubr.f32.mxu0 0.0
        %1248 = vmatmul.mubr.f32.gmra.mrb[0].mxu0 %v579
        %v1249 = vpop.f32.mrb[0].mxu0
        %v1250 = vadd.f32 %v860, %v1249
        %v1251 = vpop.f32.mrb[0].mxu0
        %1252 = vmatprep.mubr.f32.mxu0 0.0
        %1253 = vmatmul.mubr.f32.gmra.mrb[0].mxu0 %v582
        %v1254 = vpop.f32.mrb[0].mxu0
        %v1255 = vadd.f32 %v865, %v1254
        %v1256 = vpop.f32.mrb[0].mxu0
        %1257 = vmatprep.mubr.f32.mxu0 0.0
        %1258 = vmatmul.mubr.f32.gmra.mrb[0].mxu0 %v585
        %v1259 = vpop.f32.mrb[0].mxu0
        %v1260 = vadd.f32 %v870, %v1259
        %v1261 = vpop.f32.mrb[0].mxu0
        %1262 = vmatprep.mubr.f32.mxu0 0.0
        %1263 = vmatmul.mubr.f32.gmra.mrb[0].mxu0 %v588
        %v1264 = vpop.f32.mrb[0].mxu0
        %v1265 = vadd.f32 %v875, %v1264
        %v1266 = vpop.f32.mrb[0].mxu0
        %1267 = vmatprep.mubr.f32.mxu0 0.0
        %1268 = vmatmul.mubr.f32.gmra.mrb[0].mxu0 %v591
        %v1269 = vpop.f32.mrb[0].mxu0
        %v1270 = vadd.f32 %v880, %v1269
        %v1271 = vpop.f32.mrb[0].mxu0
        %1272 = vmatprep.mubr.f32.mxu0 0.0
        %1273 = vmatmul.mubr.f32.gmra.mrb[0].mxu0 %v594
        %v1274 = vpop.f32.mrb[0].mxu0
        %v1275 = vadd.f32 %v885, %v1274
        %v1276 = vpop.f32.mrb[0].mxu0
        %1277 = vmatprep.mubr.f32.mxu0 0.0
        %1278 = vmatmul.mubr.f32.gmra.mrb[0].mxu0 %v597
        %v1279 = vpop.f32.mrb[0].mxu0
        %v1280 = vadd.f32 %v890, %v1279
        %v1281 = vpop.f32.mrb[0].mxu0
        %1282 = vmatprep.mubr.f32.mxu0 0.0
        %1283 = vmatmul.mubr.f32.gmra.mrb[0].mxu0 %v600
        %v1284 = vpop.f32.mrb[0].mxu0
        %v1285 = vadd.f32 %v895, %v1284
        %v1286 = vpop.f32.mrb[0].mxu0
        %1287 = vmatprep.mubr.f32.mxu0 0.0
        %1288 = vmatmul.mubr.f32.gmra.mrb[0].mxu0 %v603
        %v1289 = vpop.f32.mrb[0].mxu0
        %v1290 = vadd.f32 %v900, %v1289
        %v1291 = vpop.f32.mrb[0].mxu0
        %1292 = vmatprep.mubr.f32.mxu0 0.0
        %1293 = vmatmul.mubr.f32.gmra.mrb[0].mxu0 %v606
        %v1294 = vpop.f32.mrb[0].mxu0
        %v1295 = vadd.f32 %v905, %v1294
        %v1296 = vpop.f32.mrb[0].mxu0
        %1297 = vmatprep.mubr.f32.mxu0 0.0
        %1298 = vmatmul.mubr.f32.gmra.mrb[0].mxu0 %v609
        %v1299 = vpop.f32.mrb[0].mxu0
        %v1300 = vadd.f32 %v910, %v1299
        %v1301 = vpop.f32.mrb[0].mxu0
        %1302 = vmatprep.mubr.f32.mxu0 0.0
        %1303 = vmatmul.mubr.f32.gmra.mrb[0].mxu0 %v612
        %v1304 = vpop.f32.mrb[0].mxu0
        %v1305 = vadd.f32 %v915, %v1304
        %v1306 = vpop.f32.mrb[0].mxu0
        %1307 = vmatprep.mubr.f32.mxu0 0.0
        %1308 = vmatmul.mubr.f32.gmra.mrb[0].mxu0 %v615
        %v1309 = vpop.f32.mrb[0].mxu0
        %v1310 = vadd.f32 %v920, %v1309
        %v1311 = vpop.f32.mrb[0].mxu0
        %1312 = vmatprep.mubr.f32.mxu0 0.0
        %1313 = vmatmul.mubr.f32.gmra.mrb[0].mxu0 %v618
        %v1314 = vpop.f32.mrb[0].mxu0
        %v1315 = vadd.f32 %v925, %v1314
        %v1316 = vpop.f32.mrb[0].mxu0
        %1317 = vmatprep.mubr.f32.mxu0 0.0
        %1318 = vmatmul.mubr.f32.gmra.mrb[0].mxu0 %v621
        %v1319 = vpop.f32.mrb[0].mxu0
        %v1320 = vadd.f32 %v930, %v1319
        %v1321 = vpop.f32.mrb[0].mxu0
        %1322 = vmatprep.mubr.f32.mxu0 0.0
        %1323 = vmatmul.mubr.f32.gmra.mrb[0].mxu0 %v624
        %v1324 = vpop.f32.mrb[0].mxu0
        %v1325 = vadd.f32 %v935, %v1324
        %v1326 = vpop.f32.mrb[0].mxu0
        %1327 = vmatprep.mubr.f32.mxu0 0.0
        %1328 = vmatmul.mubr.f32.gmra.mrb[0].mxu0 %v627
        %v1329 = vpop.f32.mrb[0].mxu0
        %v1330 = vadd.f32 %v940, %v1329
        %v1331 = vpop.f32.mrb[0].mxu0
        %1332 = vmatprep.mubr.f32.mxu0 0.0
        %1333 = vmatmul.mubr.f32.gmra.mrb[0].mxu0 %v630
        %v1334 = vpop.f32.mrb[0].mxu0
        %v1335 = vadd.f32 %v945, %v1334
        %v1336 = vpop.f32.mrb[0].mxu0
        %1337 = vmatprep.mubr.f32.mxu0 0.0
        %1338 = vmatmul.mubr.f32.gmra.mrb[0].mxu0 %v633
        %v1339 = vpop.f32.mrb[0].mxu0
        %v1340 = vadd.f32 %v950, %v1339
        %v1341 = vpop.f32.mrb[0].mxu0
        %1342 = vmatprep.mubr.f32.mxu0 0.0
        %1343 = vmatmul.mubr.f32.gmra.mrb[0].mxu0 %v636
        %v1344 = vpop.f32.mrb[0].mxu0
        %v1345 = vadd.f32 %v955, %v1344
        %v1346 = vpop.f32.mrb[0].mxu0
        %1347 = vmatprep.mubr.f32.mxu0 0.0
        %1348 = vmatmul.mubr.f32.gmra.mrb[0].mxu0 %v639
        %v1349 = vpop.f32.mrb[0].mxu0
        %v1350 = vadd.f32 %v960, %v1349
        %v1351 = vpop.f32.mrb[0].mxu0
        %1352 = vmatprep.mubr.f32.mxu0 0.0
        %1353 = vmatmul.mubr.f32.gmra.mrb[0].mxu0 %v642
        %v1354 = vpop.f32.mrb[0].mxu0
        %v1355 = vadd.f32 %v965, %v1354
        %v1356 = vpop.f32.mrb[0].mxu0
        %1357 = vmatprep.mubr.f32.mxu0 0.0
        %1358 = vmatmul.mubr.f32.gmra.mrb[0].mxu0 %v645
        %v1359 = vpop.f32.mrb[0].mxu0
        %v1360 = vadd.f32 %v970, %v1359
        %v1361 = vpop.f32.mrb[0].mxu0
        %1362 = vmatprep.mubr.f32.mxu0 0.0
        %1363 = vmatmul.mubr.f32.gmra.mrb[0].mxu0 %v648
        %v1364 = vpop.f32.mrb[0].mxu0
        %v1365 = vadd.f32 %v975, %v1364
        %v1366 = vpop.f32.mrb[0].mxu0
        %1367 = vmatprep.mubr.f32.mxu0 0.0
        %1368 = vmatmul.mubr.f32.gmra.mrb[0].mxu0 %v651
        %v1369 = vpop.f32.mrb[0].mxu0
        %v1370 = vadd.f32 %v980, %v1369
        %v1371 = vpop.f32.mrb[0].mxu0
        %1372 = vmatprep.mubr.f32.mxu0 0.0
        %1373 = vmatmul.mubr.f32.gmra.mrb[0].mxu0 %v654
        %v1374 = vpop.f32.mrb[0].mxu0
        %v1375 = vadd.f32 %v985, %v1374
        %v1376 = vpop.f32.mrb[0].mxu0
        %1377 = vmatprep.mubr.f32.mxu0 0.0
        %1378 = vmatmul.mubr.f32.gmra.mrb[0].mxu0 %v657
        %v1379 = vpop.f32.mrb[0].mxu0
        %v1380 = vadd.f32 %v990, %v1379
        %v1381 = vpop.f32.mrb[0].mxu0
        %1382 = vmatprep.mubr.f32.mxu0 0.0
        %1383 = vmatmul.mubr.f32.gmra.mrb[0].mxu0 %v660
        %v1384 = vpop.f32.mrb[0].mxu0
        %v1385 = vadd.f32 %v995, %v1384
        %v1386 = vpop.f32.mrb[0].mxu0
        %1387 = vmatprep.mubr.f32.mxu0 0.0
        %1388 = vmatmul.mubr.f32.gmra.mrb[0].mxu0 %v663
        %v1389 = vpop.f32.mrb[0].mxu0
        %v1390 = vadd.f32 %v1000, %v1389
        %v1391 = vpop.f32.mrb[0].mxu0
        %1392 = vmatprep.mubr.f32.mxu0 0.0
        %1393 = vmatmul.mubr.f32.gmra.mrb[0].mxu0 %v666
        %v1394 = vpop.f32.mrb[0].mxu0
        %v1395 = vadd.f32 %v1005, %v1394
        %v1396 = vpop.f32.mrb[0].mxu0
        %1397 = vmatprep.mubr.f32.mxu0 0.0
        %1398 = vmatmul.mubr.f32.gmra.mrb[0].mxu0 %v669
        %v1399 = vpop.f32.mrb[0].mxu0
        %v1400 = vadd.f32 %v1010, %v1399
        %v1401 = vpop.f32.mrb[0].mxu0
        %1402 = vmatprep.mubr.f32.mxu0 0.0
        %1403 = vmatmul.mubr.f32.gmra.mrb[0].mxu0 %v672
        %v1404 = vpop.f32.mrb[0].mxu0
        %v1405 = vadd.f32 %v1015, %v1404
        %v1406 = vpop.f32.mrb[0].mxu0
        %1407 = vmatprep.mubr.f32.mxu0 0.0
        %1408 = vmatmul.mubr.f32.gmra.mrb[0].mxu0 %v675
        %v1409 = vpop.f32.mrb[0].mxu0
        %v1410 = vadd.f32 %v1020, %v1409
        %v1411 = vpop.f32.mrb[0].mxu0
        %1412 = vmatprep.mubr.f32.mxu0 0.0
        %1413 = vmatmul.mubr.f32.gmra.mrb[0].mxu0 %v678
        %v1414 = vpop.f32.mrb[0].mxu0
        %v1415 = vadd.f32 %v1025, %v1414
        %v1416 = vpop.f32.mrb[0].mxu0
        %1417 = vmatprep.mubr.f32.mxu0 0.0
        %1418 = vmatmul.mubr.f32.gmra.mrb[0].mxu0 %v681
        %v1419 = vpop.f32.mrb[0].mxu0
        %v1420 = vadd.f32 %v1030, %v1419
        %v1421 = vpop.f32.mrb[0].mxu0
        %1422 = vmatprep.mubr.f32.mxu0 0.0
        %1423 = vmatmul.mubr.f32.gmra.mrb[0].mxu0 %v684
        %v1424 = vpop.f32.mrb[0].mxu0
        %v1425 = vadd.f32 %v1035, %v1424
        %v1426 = vpop.f32.mrb[0].mxu0
        %1427 = vmatprep.mubr.f32.mxu0 0.0
        %1428 = vmatmul.mubr.f32.gmra.mrb[0].mxu0 %v687
        %v1429 = vpop.f32.mrb[0].mxu0
        %v1430 = vadd.f32 %v1040, %v1429
        %v1431 = vpop.f32.mrb[0].mxu0
        %1432 = vmatprep.mubr.f32.mxu0 0.0
        %1433 = vmatmul.mubr.f32.gmra.mrb[0].mxu0 %v690
        %v1434 = vpop.f32.mrb[0].mxu0
        %v1435 = vadd.f32 %v1045, %v1434
        %v1436 = vpop.f32.mrb[0].mxu0
        %1437 = vmatprep.mubr.f32.mxu0 0.0
        %1438 = vmatmul.mubr.f32.gmra.mrb[0].mxu0 %v693
        %v1439 = vpop.f32.mrb[0].mxu0
        %v1440 = vadd.f32 %v1050, %v1439
        %v1441 = vpop.f32.mrb[0].mxu0
        %1442 = vmatprep.mubr.f32.mxu0 0.0
        %1443 = vmatmul.mubr.f32.gmra.mrb[0].mxu0 %v696
        %v1444 = vpop.f32.mrb[0].mxu0
        %v1445 = vadd.f32 %v1055, %v1444
        %v1446 = vpop.f32.mrb[0].mxu0
        %1447 = vmatprep.mubr.f32.mxu0 0.0
        %1448 = vmatmul.mubr.f32.gmra.mrb[0].mxu0 %v699
        %v1449 = vpop.f32.mrb[0].mxu0
        %v1450 = vadd.f32 %v1060, %v1449
        %v1451 = vpop.f32.mrb[0].mxu0
        %1452 = vmatprep.mubr.f32.mxu0 0.0
        %1453 = vmatmul.mubr.f32.gmra.mrb[0].mxu0 %v702
        %v1454 = vpop.f32.mrb[0].mxu0
        %v1455 = vadd.f32 %v1065, %v1454
        %v1456 = vpop.f32.mrb[0].mxu0
        %1457 = vmatprep.mubr.f32.mxu0 0.0
        %1458 = vmatmul.mubr.f32.gmra.mrb[0].mxu0 %v705
        %v1459 = vpop.f32.mrb[0].mxu0
        %v1460 = vadd.f32 %v1070, %v1459
        %v1461 = vpop.f32.mrb[0].mxu0
        %1462 = vmatprep.mubr.f32.mxu0 0.0
        %1463 = vmatmul.mubr.f32.gmra.mrb[0].mxu0 %v708
        %v1464 = vpop.f32.mrb[0].mxu0
        %v1465 = vadd.f32 %v1075, %v1464
        %v1466 = vpop.f32.mrb[0].mxu0
        %1467 = vmatprep.mubr.f32.mxu0 0.0
        %1468 = vmatmul.mubr.f32.gmra.mrb[0].mxu0 %v711
        %v1469 = vpop.f32.mrb[0].mxu0
        %v1470 = vadd.f32 %v1080, %v1469
        %v1471 = vpop.f32.mrb[0].mxu0
        %1472 = vmatprep.mubr.f32.mxu0 0.0
        %1473 = vmatmul.mubr.f32.gmra.mrb[0].mxu0 %v714
        %v1474 = vpop.f32.mrb[0].mxu0
        %v1475 = vadd.f32 %v1085, %v1474
        %v1476 = vpop.f32.mrb[0].mxu0
        %1477 = vmatprep.mubr.f32.mxu0 0.0
        %1478 = vmatmul.mubr.f32.gmra.mrb[0].mxu0 %v717
        %v1479 = vpop.f32.mrb[0].mxu0
        %v1480 = vadd.f32 %v1090, %v1479
        %v1481 = vpop.f32.mrb[0].mxu0
        %1482 = vmatprep.mubr.f32.mxu0 0.0
        %1483 = vmatmul.mubr.f32.gmra.mrb[0].mxu0 %v720
        %v1484 = vpop.f32.mrb[0].mxu0
        %v1485 = vadd.f32 %v1095, %v1484
        %v1486 = vpop.f32.mrb[0].mxu0
        %1487 = vmatprep.mubr.f32.mxu0 0.0
        %1488 = vmatmul.mubr.f32.gmra.mrb[0].mxu0 %v723
        %v1489 = vpop.f32.mrb[0].mxu0
        %v1490 = vadd.f32 %v1100, %v1489
        %v1491 = vpop.f32.mrb[0].mxu0
        %1492 = vmatprep.mubr.f32.mxu0 0.0
        %1493 = vmatmul.mubr.f32.gmra.mrb[0].mxu0 %v726
        %v1494 = vpop.f32.mrb[0].mxu0
        %v1495 = vadd.f32 %v1105, %v1494
        %v1496 = vpop.f32.mrb[0].mxu0
        %1497 = vmatprep.mubr.f32.mxu0 0.0
        %1498 = vmatmul.mubr.f32.gmra.mrb[0].mxu0 %v729
        %v1499 = vpop.f32.mrb[0].mxu0
        %v1500 = vadd.f32 %v1110, %v1499
        %v1501 = vpop.f32.mrb[0].mxu0
        %1502 = vmatprep.mubr.f32.mxu0 0.0
        %1503 = vmatmul.mubr.f32.gmra.mrb[0].mxu0 %v732
        %v1504 = vpop.f32.mrb[0].mxu0
        %v1505 = vadd.f32 %v1115, %v1504
        %v1506 = vpop.f32.mrb[0].mxu0
        %1507 = vmatprep.mubr.f32.mxu0 0.0
        %1508 = vmatmul.mubr.f32.gmra.mrb[0].mxu0 %v735
        %v1509 = vpop.f32.mrb[0].mxu0
        %v1510 = vadd.f32 %v1120, %v1509
        %v1511 = vpop.f32.mrb[0].mxu0
        %1512 = vmatprep.mubr.f32.mxu0 0.0
        %1513 = vmatmul.mubr.f32.gmra.mrb[0].mxu0 %v738
        %v1514 = vpop.f32.mrb[0].mxu0
        %v1515 = vadd.f32 %v1125, %v1514
        %v1516 = vpop.f32.mrb[0].mxu0
        %1517 = vmatprep.mubr.f32.mxu0 0.0
        %1518 = vmatmul.mubr.f32.gmra.mrb[0].mxu0 %v741
        %v1519 = vpop.f32.mrb[0].mxu0
        %v1520 = vadd.f32 %v1130, %v1519
        %v1521 = vpop.f32.mrb[0].mxu0
        %1522 = vdwg.mxu0
        %v1523 = vsel %vm162, %v1200, 0.0
        %1524 = vadd.xlane.f32.xlu0 %v1523
        %v1525 = vpop.xlane.xlu0 %1524
        %v1526 = vsel %vm162, %v1205, 0.0
        %1527 = vadd.xlane.f32.xlu0 %v1526
        %v1528 = vpop.xlane.xlu0 %1527
        %v1529 = vsel %vm162, %v1210, 0.0
        %1530 = vadd.xlane.f32.xlu0 %v1529
        %v1531 = vpop.xlane.xlu0 %1530
        %v1532 = vsel %vm162, %v1215, 0.0
        %1533 = vadd.xlane.f32.xlu0 %v1532
        %v1534 = vpop.xlane.xlu0 %1533
        %v1535 = vsel %vm162, %v1220, 0.0
        %1536 = vadd.xlane.f32.xlu0 %v1535
        %v1537 = vpop.xlane.xlu0 %1536
        %v1538 = vsel %vm162, %v1225, 0.0
        %1539 = vadd.xlane.f32.xlu0 %v1538
        %v1540 = vpop.xlane.xlu0 %1539
        %v1541 = vsel %vm162, %v1230, 0.0
        %1542 = vadd.xlane.f32.xlu0 %v1541
        %v1543 = vpop.xlane.xlu0 %1542
        %v1544 = vsel %vm162, %v1235, 0.0
        %1545 = vadd.xlane.f32.xlu0 %v1544
        %v1546 = vpop.xlane.xlu0 %1545
        %v1547 = vsel %vm162, %v1240, 0.0
        %1548 = vadd.xlane.f32.xlu0 %v1547
        %v1549 = vpop.xlane.xlu0 %1548
        %v1550 = vsel %vm162, %v1245, 0.0
        %1551 = vadd.xlane.f32.xlu0 %v1550
        %v1552 = vpop.xlane.xlu0 %1551
        %v1553 = vsel %vm162, %v1250, 0.0
        %1554 = vadd.xlane.f32.xlu0 %v1553
        %v1555 = vpop.xlane.xlu0 %1554
        %v1556 = vsel %vm162, %v1255, 0.0
        %1557 = vadd.xlane.f32.xlu0 %v1556
        %v1558 = vpop.xlane.xlu0 %1557
        %v1559 = vsel %vm162, %v1260, 0.0
        %1560 = vadd.xlane.f32.xlu0 %v1559
        %v1561 = vpop.xlane.xlu0 %1560
        %v1562 = vsel %vm162, %v1265, 0.0
        %1563 = vadd.xlane.f32.xlu0 %v1562
        %v1564 = vpop.xlane.xlu0 %1563
        %v1565 = vsel %vm162, %v1270, 0.0
        %1566 = vadd.xlane.f32.xlu0 %v1565
        %v1567 = vpop.xlane.xlu0 %1566
        %v1568 = vsel %vm162, %v1275, 0.0
        %1569 = vadd.xlane.f32.xlu0 %v1568
        %v1570 = vpop.xlane.xlu0 %1569
        %v1571 = vsel %vm162, %v1280, 0.0
        %1572 = vadd.xlane.f32.xlu0 %v1571
        %v1573 = vpop.xlane.xlu0 %1572
        %v1574 = vsel %vm162, %v1285, 0.0
        %1575 = vadd.xlane.f32.xlu0 %v1574
        %v1576 = vpop.xlane.xlu0 %1575
        %v1577 = vsel %vm162, %v1290, 0.0
        %1578 = vadd.xlane.f32.xlu0 %v1577
        %v1579 = vpop.xlane.xlu0 %1578
        %v1580 = vsel %vm162, %v1295, 0.0
        %1581 = vadd.xlane.f32.xlu0 %v1580
        %v1582 = vpop.xlane.xlu0 %1581
        %v1583 = vsel %vm162, %v1300, 0.0
        %1584 = vadd.xlane.f32.xlu0 %v1583
        %v1585 = vpop.xlane.xlu0 %1584
        %v1586 = vsel %vm162, %v1305, 0.0
        %1587 = vadd.xlane.f32.xlu0 %v1586
        %v1588 = vpop.xlane.xlu0 %1587
        %v1589 = vsel %vm162, %v1310, 0.0
        %1590 = vadd.xlane.f32.xlu0 %v1589
        %v1591 = vpop.xlane.xlu0 %1590
        %v1592 = vsel %vm162, %v1315, 0.0
        %1593 = vadd.xlane.f32.xlu0 %v1592
        %v1594 = vpop.xlane.xlu0 %1593
        %v1595 = vsel %vm162, %v1320, 0.0
        %1596 = vadd.xlane.f32.xlu0 %v1595
        %v1597 = vpop.xlane.xlu0 %1596
        %v1598 = vsel %vm162, %v1325, 0.0
        %1599 = vadd.xlane.f32.xlu0 %v1598
        %v1600 = vpop.xlane.xlu0 %1599
        %v1601 = vsel %vm162, %v1330, 0.0
        %1602 = vadd.xlane.f32.xlu0 %v1601
        %v1603 = vpop.xlane.xlu0 %1602
        %v1604 = vsel %vm162, %v1335, 0.0
        %1605 = vadd.xlane.f32.xlu0 %v1604
        %v1606 = vpop.xlane.xlu0 %1605
        %v1607 = vsel %vm162, %v1340, 0.0
        %1608 = vadd.xlane.f32.xlu0 %v1607
        %v1609 = vpop.xlane.xlu0 %1608
        %v1610 = vsel %vm162, %v1345, 0.0
        %1611 = vadd.xlane.f32.xlu0 %v1610
        %v1612 = vpop.xlane.xlu0 %1611
        %v1613 = vsel %vm162, %v1350, 0.0
        %1614 = vadd.xlane.f32.xlu0 %v1613
        %v1615 = vpop.xlane.xlu0 %1614
        %v1616 = vsel %vm162, %v1355, 0.0
        %1617 = vadd.xlane.f32.xlu0 %v1616
        %v1618 = vpop.xlane.xlu0 %1617
        %v1619 = vsel %vm162, %v1360, 0.0
        %1620 = vadd.xlane.f32.xlu0 %v1619
        %v1621 = vpop.xlane.xlu0 %1620
        %v1622 = vsel %vm162, %v1365, 0.0
        %1623 = vadd.xlane.f32.xlu0 %v1622
        %v1624 = vpop.xlane.xlu0 %1623
        %v1625 = vsel %vm162, %v1370, 0.0
        %1626 = vadd.xlane.f32.xlu0 %v1625
        %v1627 = vpop.xlane.xlu0 %1626
        %v1628 = vsel %vm162, %v1375, 0.0
        %1629 = vadd.xlane.f32.xlu0 %v1628
        %v1630 = vpop.xlane.xlu0 %1629
        %v1631 = vsel %vm162, %v1380, 0.0
        %1632 = vadd.xlane.f32.xlu0 %v1631
        %v1633 = vpop.xlane.xlu0 %1632
        %v1634 = vsel %vm162, %v1385, 0.0
        %1635 = vadd.xlane.f32.xlu0 %v1634
        %v1636 = vpop.xlane.xlu0 %1635
        %v1637 = vsel %vm162, %v1390, 0.0
        %1638 = vadd.xlane.f32.xlu0 %v1637
        %v1639 = vpop.xlane.xlu0 %1638
        %v1640 = vsel %vm162, %v1395, 0.0
        %1641 = vadd.xlane.f32.xlu0 %v1640
        %v1642 = vpop.xlane.xlu0 %1641
        %v1643 = vsel %vm162, %v1400, 0.0
        %1644 = vadd.xlane.f32.xlu0 %v1643
        %v1645 = vpop.xlane.xlu0 %1644
        %v1646 = vsel %vm162, %v1405, 0.0
        %1647 = vadd.xlane.f32.xlu0 %v1646
        %v1648 = vpop.xlane.xlu0 %1647
        %v1649 = vsel %vm162, %v1410, 0.0
        %1650 = vadd.xlane.f32.xlu0 %v1649
        %v1651 = vpop.xlane.xlu0 %1650
        %v1652 = vsel %vm162, %v1415, 0.0
        %1653 = vadd.xlane.f32.xlu0 %v1652
        %v1654 = vpop.xlane.xlu0 %1653
        %v1655 = vsel %vm162, %v1420, 0.0
        %1656 = vadd.xlane.f32.xlu0 %v1655
        %v1657 = vpop.xlane.xlu0 %1656
        %v1658 = vsel %vm162, %v1425, 0.0
        %1659 = vadd.xlane.f32.xlu0 %v1658
        %v1660 = vpop.xlane.xlu0 %1659
        %v1661 = vsel %vm162, %v1430, 0.0
        %1662 = vadd.xlane.f32.xlu0 %v1661
        %v1663 = vpop.xlane.xlu0 %1662
        %v1664 = vsel %vm162, %v1435, 0.0
        %1665 = vadd.xlane.f32.xlu0 %v1664
        %v1666 = vpop.xlane.xlu0 %1665
        %v1667 = vsel %vm162, %v1440, 0.0
        %1668 = vadd.xlane.f32.xlu0 %v1667
        %v1669 = vpop.xlane.xlu0 %1668
        %v1670 = vsel %vm162, %v1445, 0.0
        %1671 = vadd.xlane.f32.xlu0 %v1670
        %v1672 = vpop.xlane.xlu0 %1671
        %v1673 = vsel %vm162, %v1450, 0.0
        %1674 = vadd.xlane.f32.xlu0 %v1673
        %v1675 = vpop.xlane.xlu0 %1674
        %v1676 = vsel %vm162, %v1455, 0.0
        %1677 = vadd.xlane.f32.xlu0 %v1676
        %v1678 = vpop.xlane.xlu0 %1677
        %v1679 = vsel %vm162, %v1460, 0.0
        %1680 = vadd.xlane.f32.xlu0 %v1679
        %v1681 = vpop.xlane.xlu0 %1680
        %v1682 = vsel %vm162, %v1465, 0.0
        %1683 = vadd.xlane.f32.xlu0 %v1682
        %v1684 = vpop.xlane.xlu0 %1683
        %v1685 = vsel %vm162, %v1470, 0.0
        %1686 = vadd.xlane.f32.xlu0 %v1685
        %v1687 = vpop.xlane.xlu0 %1686
        %v1688 = vsel %vm162, %v1475, 0.0
        %1689 = vadd.xlane.f32.xlu0 %v1688
        %v1690 = vpop.xlane.xlu0 %1689
        %v1691 = vsel %vm162, %v1480, 0.0
        %1692 = vadd.xlane.f32.xlu0 %v1691
        %v1693 = vpop.xlane.xlu0 %1692
        %v1694 = vsel %vm162, %v1485, 0.0
        %1695 = vadd.xlane.f32.xlu0 %v1694
        %v1696 = vpop.xlane.xlu0 %1695
        %v1697 = vsel %vm162, %v1490, 0.0
        %1698 = vadd.xlane.f32.xlu0 %v1697
        %v1699 = vpop.xlane.xlu0 %1698
        %v1700 = vsel %vm162, %v1495, 0.0
        %1701 = vadd.xlane.f32.xlu0 %v1700
        %v1702 = vpop.xlane.xlu0 %1701
        %v1703 = vsel %vm162, %v1500, 0.0
        %1704 = vadd.xlane.f32.xlu0 %v1703
        %v1705 = vpop.xlane.xlu0 %1704
        %v1706 = vsel %vm162, %v1505, 0.0
        %1707 = vadd.xlane.f32.xlu0 %v1706
        %v1708 = vpop.xlane.xlu0 %1707
        %v1709 = vsel %vm162, %v1510, 0.0
        %1710 = vadd.xlane.f32.xlu0 %v1709
        %v1711 = vpop.xlane.xlu0 %1710
        %v1712 = vsel %vm162, %v1515, 0.0
        %1713 = vadd.xlane.f32.xlu0 %v1712
        %v1714 = vpop.xlane.xlu0 %1713
        %v1715 = vsel %vm162, %v1520, 0.0
        %1716 = vadd.xlane.f32.xlu0 %v1715
        %v1717 = vpop.xlane.xlu0 %1716
        %v1718 = vmul.f32 %v1200, %v1200
        %v1719 = vmul.f32 %v1205, %v1205
        %v1720 = vmul.f32 %v1210, %v1210
        %v1721 = vmul.f32 %v1215, %v1215
        %v1722 = vmul.f32 %v1220, %v1220
        %v1723 = vmul.f32 %v1225, %v1225
        %v1724 = vmul.f32 %v1230, %v1230
        %v1725 = vmul.f32 %v1235, %v1235
        %v1726 = vmul.f32 %v1240, %v1240
        %v1727 = vmul.f32 %v1245, %v1245
        %v1728 = vmul.f32 %v1250, %v1250
        %v1729 = vmul.f32 %v1255, %v1255
        %v1730 = vmul.f32 %v1260, %v1260
        %v1731 = vmul.f32 %v1265, %v1265
        %v1732 = vmul.f32 %v1270, %v1270
        %v1733 = vmul.f32 %v1275, %v1275
        %v1734 = vmul.f32 %v1280, %v1280
        %v1735 = vmul.f32 %v1285, %v1285
        %v1736 = vmul.f32 %v1290, %v1290
        %v1737 = vmul.f32 %v1295, %v1295
        %v1738 = vmul.f32 %v1300, %v1300
        %v1739 = vmul.f32 %v1305, %v1305
        %v1740 = vmul.f32 %v1310, %v1310
        %v1741 = vmul.f32 %v1315, %v1315
        %v1742 = vmul.f32 %v1320, %v1320
        %v1743 = vmul.f32 %v1325, %v1325
        %v1744 = vmul.f32 %v1330, %v1330
        %v1745 = vmul.f32 %v1335, %v1335
        %v1746 = vmul.f32 %v1340, %v1340
        %v1747 = vmul.f32 %v1345, %v1345
        %v1748 = vmul.f32 %v1350, %v1350
        %v1749 = vmul.f32 %v1355, %v1355
        %v1750 = vmul.f32 %v1360, %v1360
        %v1751 = vmul.f32 %v1365, %v1365
        %v1752 = vmul.f32 %v1370, %v1370
        %v1753 = vmul.f32 %v1375, %v1375
        %v1754 = vmul.f32 %v1380, %v1380
        %v1755 = vmul.f32 %v1385, %v1385
        %v1756 = vmul.f32 %v1390, %v1390
        %v1757 = vmul.f32 %v1395, %v1395
        %v1758 = vmul.f32 %v1400, %v1400
        %v1759 = vmul.f32 %v1405, %v1405
        %v1760 = vmul.f32 %v1410, %v1410
        %v1761 = vmul.f32 %v1415, %v1415
        %v1762 = vmul.f32 %v1420, %v1420
        %v1763 = vmul.f32 %v1425, %v1425
        %v1764 = vmul.f32 %v1430, %v1430
        %v1765 = vmul.f32 %v1435, %v1435
        %v1766 = vmul.f32 %v1440, %v1440
        %v1767 = vmul.f32 %v1445, %v1445
        %v1768 = vmul.f32 %v1450, %v1450
        %v1769 = vmul.f32 %v1455, %v1455
        %v1770 = vmul.f32 %v1460, %v1460
        %v1771 = vmul.f32 %v1465, %v1465
        %v1772 = vmul.f32 %v1470, %v1470
        %v1773 = vmul.f32 %v1475, %v1475
        %v1774 = vmul.f32 %v1480, %v1480
        %v1775 = vmul.f32 %v1485, %v1485
        %v1776 = vmul.f32 %v1490, %v1490
        %v1777 = vmul.f32 %v1495, %v1495
        %v1778 = vmul.f32 %v1500, %v1500
        %v1779 = vmul.f32 %v1505, %v1505
        %v1780 = vmul.f32 %v1510, %v1510
        %v1781 = vmul.f32 %v1515, %v1515
        %v1782 = vmul.f32 %v1520, %v1520
        %v1783 = vsel %vm162, %v1718, 0.0
        %1784 = vadd.xlane.f32.xlu0 %v1783
        %v1785 = vpop.xlane.xlu0 %1784
        %v1786 = vsel %vm162, %v1719, 0.0
        %1787 = vadd.xlane.f32.xlu0 %v1786
        %v1788 = vpop.xlane.xlu0 %1787
        %v1789 = vsel %vm162, %v1720, 0.0
        %1790 = vadd.xlane.f32.xlu0 %v1789
        %v1791 = vpop.xlane.xlu0 %1790
        %v1792 = vsel %vm162, %v1721, 0.0
        %1793 = vadd.xlane.f32.xlu0 %v1792
        %v1794 = vpop.xlane.xlu0 %1793
        %v1795 = vsel %vm162, %v1722, 0.0
        %1796 = vadd.xlane.f32.xlu0 %v1795
        %v1797 = vpop.xlane.xlu0 %1796
        %v1798 = vsel %vm162, %v1723, 0.0
        %1799 = vadd.xlane.f32.xlu0 %v1798
        %v1800 = vpop.xlane.xlu0 %1799
        %v1801 = vsel %vm162, %v1724, 0.0
        %1802 = vadd.xlane.f32.xlu0 %v1801
        %v1803 = vpop.xlane.xlu0 %1802
        %v1804 = vsel %vm162, %v1725, 0.0
        %1805 = vadd.xlane.f32.xlu0 %v1804
        %v1806 = vpop.xlane.xlu0 %1805
        %v1807 = vsel %vm162, %v1726, 0.0
        %1808 = vadd.xlane.f32.xlu0 %v1807
        %v1809 = vpop.xlane.xlu0 %1808
        %v1810 = vsel %vm162, %v1727, 0.0
        %1811 = vadd.xlane.f32.xlu0 %v1810
        %v1812 = vpop.xlane.xlu0 %1811
        %v1813 = vsel %vm162, %v1728, 0.0
        %1814 = vadd.xlane.f32.xlu0 %v1813
        %v1815 = vpop.xlane.xlu0 %1814
        %v1816 = vsel %vm162, %v1729, 0.0
        %1817 = vadd.xlane.f32.xlu0 %v1816
        %v1818 = vpop.xlane.xlu0 %1817
        %v1819 = vsel %vm162, %v1730, 0.0
        %1820 = vadd.xlane.f32.xlu0 %v1819
        %v1821 = vpop.xlane.xlu0 %1820
        %v1822 = vsel %vm162, %v1731, 0.0
        %1823 = vadd.xlane.f32.xlu0 %v1822
        %v1824 = vpop.xlane.xlu0 %1823
        %v1825 = vsel %vm162, %v1732, 0.0
        %1826 = vadd.xlane.f32.xlu0 %v1825
        %v1827 = vpop.xlane.xlu0 %1826
        %v1828 = vsel %vm162, %v1733, 0.0
        %1829 = vadd.xlane.f32.xlu0 %v1828
        %v1830 = vpop.xlane.xlu0 %1829
        %v1831 = vsel %vm162, %v1734, 0.0
        %1832 = vadd.xlane.f32.xlu0 %v1831
        %v1833 = vpop.xlane.xlu0 %1832
        %v1834 = vsel %vm162, %v1735, 0.0
        %1835 = vadd.xlane.f32.xlu0 %v1834
        %v1836 = vpop.xlane.xlu0 %1835
        %v1837 = vsel %vm162, %v1736, 0.0
        %1838 = vadd.xlane.f32.xlu0 %v1837
        %v1839 = vpop.xlane.xlu0 %1838
        %v1840 = vsel %vm162, %v1737, 0.0
        %1841 = vadd.xlane.f32.xlu0 %v1840
        %v1842 = vpop.xlane.xlu0 %1841
        %v1843 = vsel %vm162, %v1738, 0.0
        %1844 = vadd.xlane.f32.xlu0 %v1843
        %v1845 = vpop.xlane.xlu0 %1844
        %v1846 = vsel %vm162, %v1739, 0.0
        %1847 = vadd.xlane.f32.xlu0 %v1846
        %v1848 = vpop.xlane.xlu0 %1847
        %v1849 = vsel %vm162, %v1740, 0.0
        %1850 = vadd.xlane.f32.xlu0 %v1849
        %v1851 = vpop.xlane.xlu0 %1850
        %v1852 = vsel %vm162, %v1741, 0.0
        %1853 = vadd.xlane.f32.xlu0 %v1852
        %v1854 = vpop.xlane.xlu0 %1853
        %v1855 = vsel %vm162, %v1742, 0.0
        %1856 = vadd.xlane.f32.xlu0 %v1855
        %v1857 = vpop.xlane.xlu0 %1856
        %v1858 = vsel %vm162, %v1743, 0.0
        %1859 = vadd.xlane.f32.xlu0 %v1858
        %v1860 = vpop.xlane.xlu0 %1859
        %v1861 = vsel %vm162, %v1744, 0.0
        %1862 = vadd.xlane.f32.xlu0 %v1861
        %v1863 = vpop.xlane.xlu0 %1862
        %v1864 = vsel %vm162, %v1745, 0.0
        %1865 = vadd.xlane.f32.xlu0 %v1864
        %v1866 = vpop.xlane.xlu0 %1865
        %v1867 = vsel %vm162, %v1746, 0.0
        %1868 = vadd.xlane.f32.xlu0 %v1867
        %v1869 = vpop.xlane.xlu0 %1868
        %v1870 = vsel %vm162, %v1747, 0.0
        %1871 = vadd.xlane.f32.xlu0 %v1870
        %v1872 = vpop.xlane.xlu0 %1871
        %v1873 = vsel %vm162, %v1748, 0.0
        %1874 = vadd.xlane.f32.xlu0 %v1873
        %v1875 = vpop.xlane.xlu0 %1874
        %v1876 = vsel %vm162, %v1749, 0.0
        %1877 = vadd.xlane.f32.xlu0 %v1876
        %v1878 = vpop.xlane.xlu0 %1877
        %v1879 = vsel %vm162, %v1750, 0.0
        %1880 = vadd.xlane.f32.xlu0 %v1879
        %v1881 = vpop.xlane.xlu0 %1880
        %v1882 = vsel %vm162, %v1751, 0.0
        %1883 = vadd.xlane.f32.xlu0 %v1882
        %v1884 = vpop.xlane.xlu0 %1883
        %v1885 = vsel %vm162, %v1752, 0.0
        %1886 = vadd.xlane.f32.xlu0 %v1885
        %v1887 = vpop.xlane.xlu0 %1886
        %v1888 = vsel %vm162, %v1753, 0.0
        %1889 = vadd.xlane.f32.xlu0 %v1888
        %v1890 = vpop.xlane.xlu0 %1889
        %v1891 = vsel %vm162, %v1754, 0.0
        %1892 = vadd.xlane.f32.xlu0 %v1891
        %v1893 = vpop.xlane.xlu0 %1892
        %v1894 = vsel %vm162, %v1755, 0.0
        %1895 = vadd.xlane.f32.xlu0 %v1894
        %v1896 = vpop.xlane.xlu0 %1895
        %v1897 = vsel %vm162, %v1756, 0.0
        %1898 = vadd.xlane.f32.xlu0 %v1897
        %v1899 = vpop.xlane.xlu0 %1898
        %v1900 = vsel %vm162, %v1757, 0.0
        %1901 = vadd.xlane.f32.xlu0 %v1900
        %v1902 = vpop.xlane.xlu0 %1901
        %v1903 = vsel %vm162, %v1758, 0.0
        %1904 = vadd.xlane.f32.xlu0 %v1903
        %v1905 = vpop.xlane.xlu0 %1904
        %v1906 = vsel %vm162, %v1759, 0.0
        %1907 = vadd.xlane.f32.xlu0 %v1906
        %v1908 = vpop.xlane.xlu0 %1907
        %v1909 = vsel %vm162, %v1760, 0.0
        %1910 = vadd.xlane.f32.xlu0 %v1909
        %v1911 = vpop.xlane.xlu0 %1910
        %v1912 = vsel %vm162, %v1761, 0.0
        %1913 = vadd.xlane.f32.xlu0 %v1912
        %v1914 = vpop.xlane.xlu0 %1913
        %v1915 = vsel %vm162, %v1762, 0.0
        %1916 = vadd.xlane.f32.xlu0 %v1915
        %v1917 = vpop.xlane.xlu0 %1916
        %v1918 = vsel %vm162, %v1763, 0.0
        %1919 = vadd.xlane.f32.xlu0 %v1918
        %v1920 = vpop.xlane.xlu0 %1919
        %v1921 = vsel %vm162, %v1764, 0.0
        %1922 = vadd.xlane.f32.xlu0 %v1921
        %v1923 = vpop.xlane.xlu0 %1922
        %v1924 = vsel %vm162, %v1765, 0.0
        %1925 = vadd.xlane.f32.xlu0 %v1924
        %v1926 = vpop.xlane.xlu0 %1925
        %v1927 = vsel %vm162, %v1766, 0.0
        %1928 = vadd.xlane.f32.xlu0 %v1927
        %v1929 = vpop.xlane.xlu0 %1928
        %v1930 = vsel %vm162, %v1767, 0.0
        %1931 = vadd.xlane.f32.xlu0 %v1930
        %v1932 = vpop.xlane.xlu0 %1931
        %v1933 = vsel %vm162, %v1768, 0.0
        %1934 = vadd.xlane.f32.xlu0 %v1933
        %v1935 = vpop.xlane.xlu0 %1934
        %v1936 = vsel %vm162, %v1769, 0.0
        %1937 = vadd.xlane.f32.xlu0 %v1936
        %v1938 = vpop.xlane.xlu0 %1937
        %v1939 = vsel %vm162, %v1770, 0.0
        %1940 = vadd.xlane.f32.xlu0 %v1939
        %v1941 = vpop.xlane.xlu0 %1940
        %v1942 = vsel %vm162, %v1771, 0.0
        %1943 = vadd.xlane.f32.xlu0 %v1942
        %v1944 = vpop.xlane.xlu0 %1943
        %v1945 = vsel %vm162, %v1772, 0.0
        %1946 = vadd.xlane.f32.xlu0 %v1945
        %v1947 = vpop.xlane.xlu0 %1946
        %v1948 = vsel %vm162, %v1773, 0.0
        %1949 = vadd.xlane.f32.xlu0 %v1948
        %v1950 = vpop.xlane.xlu0 %1949
        %v1951 = vsel %vm162, %v1774, 0.0
        %1952 = vadd.xlane.f32.xlu0 %v1951
        %v1953 = vpop.xlane.xlu0 %1952
        %v1954 = vsel %vm162, %v1775, 0.0
        %1955 = vadd.xlane.f32.xlu0 %v1954
        %v1956 = vpop.xlane.xlu0 %1955
        %v1957 = vsel %vm162, %v1776, 0.0
        %1958 = vadd.xlane.f32.xlu0 %v1957
        %v1959 = vpop.xlane.xlu0 %1958
        %v1960 = vsel %vm162, %v1777, 0.0
        %1961 = vadd.xlane.f32.xlu0 %v1960
        %v1962 = vpop.xlane.xlu0 %1961
        %v1963 = vsel %vm162, %v1778, 0.0
        %1964 = vadd.xlane.f32.xlu0 %v1963
        %v1965 = vpop.xlane.xlu0 %1964
        %v1966 = vsel %vm162, %v1779, 0.0
        %1967 = vadd.xlane.f32.xlu0 %v1966
        %v1968 = vpop.xlane.xlu0 %1967
        %v1969 = vsel %vm162, %v1780, 0.0
        %1970 = vadd.xlane.f32.xlu0 %v1969
        %v1971 = vpop.xlane.xlu0 %1970
        %v1972 = vsel %vm162, %v1781, 0.0
        %1973 = vadd.xlane.f32.xlu0 %v1972
        %v1974 = vpop.xlane.xlu0 %1973
        %v1975 = vsel %vm162, %v1782, 0.0
        %1976 = vadd.xlane.f32.xlu0 %v1975
        %v1977 = vpop.xlane.xlu0 %1976
        %vm1978 = vcmask 7168
        %v1979 = vsel %vm1978, %v1525, %v1785
        %v1980 = vsel %vm1978, %v1528, %v1788
        %v1981 = vsel %vm1978, %v1531, %v1791
        %v1982 = vsel %vm1978, %v1534, %v1794
        %v1983 = vsel %vm1978, %v1537, %v1797
        %v1984 = vsel %vm1978, %v1540, %v1800
        %v1985 = vsel %vm1978, %v1543, %v1803
        %v1986 = vsel %vm1978, %v1546, %v1806
        %v1987 = vsel %vm1978, %v1549, %v1809
        %v1988 = vsel %vm1978, %v1552, %v1812
        %v1989 = vsel %vm1978, %v1555, %v1815
        %v1990 = vsel %vm1978, %v1558, %v1818
        %v1991 = vsel %vm1978, %v1561, %v1821
        %v1992 = vsel %vm1978, %v1564, %v1824
        %v1993 = vsel %vm1978, %v1567, %v1827
        %v1994 = vsel %vm1978, %v1570, %v1830
        %v1995 = vsel %vm1978, %v1573, %v1833
        %v1996 = vsel %vm1978, %v1576, %v1836
        %v1997 = vsel %vm1978, %v1579, %v1839
        %v1998 = vsel %vm1978, %v1582, %v1842
        %v1999 = vsel %vm1978, %v1585, %v1845
        %v2000 = vsel %vm1978, %v1588, %v1848
        %v2001 = vsel %vm1978, %v1591, %v1851
        %v2002 = vsel %vm1978, %v1594, %v1854
        %v2003 = vsel %vm1978, %v1597, %v1857
        %v2004 = vsel %vm1978, %v1600, %v1860
        %v2005 = vsel %vm1978, %v1603, %v1863
        %v2006 = vsel %vm1978, %v1606, %v1866
        %v2007 = vsel %vm1978, %v1609, %v1869
        %v2008 = vsel %vm1978, %v1612, %v1872
        %v2009 = vsel %vm1978, %v1615, %v1875
        %v2010 = vsel %vm1978, %v1618, %v1878
        %v2011 = vsel %vm1978, %v1621, %v1881
        %v2012 = vsel %vm1978, %v1624, %v1884
        %v2013 = vsel %vm1978, %v1627, %v1887
        %v2014 = vsel %vm1978, %v1630, %v1890
        %v2015 = vsel %vm1978, %v1633, %v1893
        %v2016 = vsel %vm1978, %v1636, %v1896
        %v2017 = vsel %vm1978, %v1639, %v1899
        %v2018 = vsel %vm1978, %v1642, %v1902
        %v2019 = vsel %vm1978, %v1645, %v1905
        %v2020 = vsel %vm1978, %v1648, %v1908
        %v2021 = vsel %vm1978, %v1651, %v1911
        %v2022 = vsel %vm1978, %v1654, %v1914
        %v2023 = vsel %vm1978, %v1657, %v1917
        %v2024 = vsel %vm1978, %v1660, %v1920
        %v2025 = vsel %vm1978, %v1663, %v1923
        %v2026 = vsel %vm1978, %v1666, %v1926
        %v2027 = vsel %vm1978, %v1669, %v1929
        %v2028 = vsel %vm1978, %v1672, %v1932
        %v2029 = vsel %vm1978, %v1675, %v1935
        %v2030 = vsel %vm1978, %v1678, %v1938
        %v2031 = vsel %vm1978, %v1681, %v1941
        %v2032 = vsel %vm1978, %v1684, %v1944
        %v2033 = vsel %vm1978, %v1687, %v1947
        %v2034 = vsel %vm1978, %v1690, %v1950
        %v2035 = vsel %vm1978, %v1693, %v1953
        %v2036 = vsel %vm1978, %v1696, %v1956
        %v2037 = vsel %vm1978, %v1699, %v1959
        %v2038 = vsel %vm1978, %v1702, %v1962
        %v2039 = vsel %vm1978, %v1705, %v1965
        %v2040 = vsel %vm1978, %v1708, %v1968
        %v2041 = vsel %vm1978, %v1711, %v1971
        %v2042 = vsel %vm1978, %v1714, %v1974
        %v2043 = vsel %vm1978, %v1717, %v1977
        %vm2044 = vcmask 15360
        %2045 = vst.msk [vmem:[%s158] sm:$0xff] %vm2044, %v1979
        %2046 = vst.msk [vmem:[%s158 + $0x8] sm:$0xff] %vm2044, %v1980
        %2047 = vst.msk [vmem:[%s158 + $0x10] sm:$0xff] %vm2044, %v1981
        %2048 = vst.msk [vmem:[%s158 + $0x18] sm:$0xff] %vm2044, %v1982
        %2049 = vst.msk [vmem:[%s158 + $0x20] sm:$0xff] %vm2044, %v1983
        %2050 = vst.msk [vmem:[%s158 + $0x28] sm:$0xff] %vm2044, %v1984
        %2051 = vst.msk [vmem:[%s158 + $0x30] sm:$0xff] %vm2044, %v1985
        %2052 = vst.msk [vmem:[%s158 + $0x38] sm:$0xff] %vm2044, %v1986
        %2053 = vst.msk [vmem:[%s158 + $0x40] sm:$0xff] %vm2044, %v1987
        %2054 = vst.msk [vmem:[%s158 + $0x48] sm:$0xff] %vm2044, %v1988
        %2055 = vst.msk [vmem:[%s158 + $0x50] sm:$0xff] %vm2044, %v1989
        %2056 = vst.msk [vmem:[%s158 + $0x58] sm:$0xff] %vm2044, %v1990
        %2057 = vst.msk [vmem:[%s158 + $0x60] sm:$0xff] %vm2044, %v1991
        %2058 = vst.msk [vmem:[%s158 + $0x68] sm:$0xff] %vm2044, %v1992
        %2059 = vst.msk [vmem:[%s158 + $0x70] sm:$0xff] %vm2044, %v1993
        %2060 = vst.msk [vmem:[%s158 + $0x78] sm:$0xff] %vm2044, %v1994
        %2061 = vst.msk [vmem:[%s158 + $0x80] sm:$0xff] %vm2044, %v1995
        %2062 = vst.msk [vmem:[%s158 + $0x88] sm:$0xff] %vm2044, %v1996
        %2063 = vst.msk [vmem:[%s158 + $0x90] sm:$0xff] %vm2044, %v1997
        %2064 = vst.msk [vmem:[%s158 + $0x98] sm:$0xff] %vm2044, %v1998
        %2065 = vst.msk [vmem:[%s158 + $0xa0] sm:$0xff] %vm2044, %v1999
        %2066 = vst.msk [vmem:[%s158 + $0xa8] sm:$0xff] %vm2044, %v2000
        %2067 = vst.msk [vmem:[%s158 + $0xb0] sm:$0xff] %vm2044, %v2001
        %2068 = vst.msk [vmem:[%s158 + $0xb8] sm:$0xff] %vm2044, %v2002
        %2069 = vst.msk [vmem:[%s158 + $0xc0] sm:$0xff] %vm2044, %v2003
        %2070 = vst.msk [vmem:[%s158 + $0xc8] sm:$0xff] %vm2044, %v2004
        %2071 = vst.msk [vmem:[%s158 + $0xd0] sm:$0xff] %vm2044, %v2005
        %2072 = vst.msk [vmem:[%s158 + $0xd8] sm:$0xff] %vm2044, %v2006
        %2073 = vst.msk [vmem:[%s158 + $0xe0] sm:$0xff] %vm2044, %v2007
        %2074 = vst.msk [vmem:[%s158 + $0xe8] sm:$0xff] %vm2044, %v2008
        %2075 = vst.msk [vmem:[%s158 + $0xf0] sm:$0xff] %vm2044, %v2009
        %2076 = vst.msk [vmem:[%s158 + $0xf8] sm:$0xff] %vm2044, %v2010
        %2077 = vst.msk [vmem:[%s158 + $0x100] sm:$0xff] %vm2044, %v2011
        %2078 = vst.msk [vmem:[%s158 + $0x108] sm:$0xff] %vm2044, %v2012
        %2079 = vst.msk [vmem:[%s158 + $0x110] sm:$0xff] %vm2044, %v2013
        %2080 = vst.msk [vmem:[%s158 + $0x118] sm:$0xff] %vm2044, %v2014
        %2081 = vst.msk [vmem:[%s158 + $0x120] sm:$0xff] %vm2044, %v2015
        %2082 = vst.msk [vmem:[%s158 + $0x128] sm:$0xff] %vm2044, %v2016
        %2083 = vst.msk [vmem:[%s158 + $0x130] sm:$0xff] %vm2044, %v2017
        %2084 = vst.msk [vmem:[%s158 + $0x138] sm:$0xff] %vm2044, %v2018
        %2085 = vst.msk [vmem:[%s158 + $0x140] sm:$0xff] %vm2044, %v2019
        %2086 = vst.msk [vmem:[%s158 + $0x148] sm:$0xff] %vm2044, %v2020
        %2087 = vst.msk [vmem:[%s158 + $0x150] sm:$0xff] %vm2044, %v2021
        %2088 = vst.msk [vmem:[%s158 + $0x158] sm:$0xff] %vm2044, %v2022
        %2089 = vst.msk [vmem:[%s158 + $0x160] sm:$0xff] %vm2044, %v2023
        %2090 = vst.msk [vmem:[%s158 + $0x168] sm:$0xff] %vm2044, %v2024
        %2091 = vst.msk [vmem:[%s158 + $0x170] sm:$0xff] %vm2044, %v2025
        %2092 = vst.msk [vmem:[%s158 + $0x178] sm:$0xff] %vm2044, %v2026
        %2093 = vst.msk [vmem:[%s158 + $0x180] sm:$0xff] %vm2044, %v2027
        %2094 = vst.msk [vmem:[%s158 + $0x188] sm:$0xff] %vm2044, %v2028
        %2095 = vst.msk [vmem:[%s158 + $0x190] sm:$0xff] %vm2044, %v2029
        %2096 = vst.msk [vmem:[%s158 + $0x198] sm:$0xff] %vm2044, %v2030
        %2097 = vst.msk [vmem:[%s158 + $0x1a0] sm:$0xff] %vm2044, %v2031
        %2098 = vst.msk [vmem:[%s158 + $0x1a8] sm:$0xff] %vm2044, %v2032
        %2099 = vst.msk [vmem:[%s158 + $0x1b0] sm:$0xff] %vm2044, %v2033
        %2100 = vst.msk [vmem:[%s158 + $0x1b8] sm:$0xff] %vm2044, %v2034
        %2101 = vst.msk [vmem:[%s158 + $0x1c0] sm:$0xff] %vm2044, %v2035
        %2102 = vst.msk [vmem:[%s158 + $0x1c8] sm:$0xff] %vm2044, %v2036
        %2103 = vst.msk [vmem:[%s158 + $0x1d0] sm:$0xff] %vm2044, %v2037
        %2104 = vst.msk [vmem:[%s158 + $0x1d8] sm:$0xff] %vm2044, %v2038
        %2105 = vst.msk [vmem:[%s158 + $0x1e0] sm:$0xff] %vm2044, %v2039
        %2106 = vst.msk [vmem:[%s158 + $0x1e8] sm:$0xff] %vm2044, %v2040
        %2107 = vst.msk [vmem:[%s158 + $0x1f0] sm:$0xff] %vm2044, %v2041
        %2108 = vst.msk [vmem:[%s158 + $0x1f8] sm:$0xff] %vm2044, %v2042
        %2109 = vst.msk [vmem:[%s158 + $0x200] sm:$0xff] %vm2044, %v2043
        %p2110 = scmp.lt.s32.totalorder %s14, 1
        %s2111 = scalar_select %p2110, %s14, 1
        %s2112 = smul.addr %s2111, 65
        %s2113 = smul.addr %s2112, 8
        %s2114 = scalar_lea.vmem %s2, %s2113
        // Predicated region
        $region33: #{shallow_convnet_forward.2} parent=27 // pred_check
          %p2115 = pneg %p79
        $region34: #{shallow_convnet_forward.2} parent=27 // pred_check_branch
          %2117 = sbr.rel (%p2115) target = $region36
        $region35: #{shallow_convnet_forward.2} parent=27 // pred_region
          _
        $region36: #{shallow_convnet_forward.2} parent=27 // pred_fallthru
          _
      $region28: #{shallow_convnet_forward.2} parent=5 // pred_fallthru
        _
      %p2118 = scmp.le.s32.totalorder 2, %s9
      // Predicated region
      $region37: #{shallow_convnet_forward.2} parent=5 // pred_check
        %p2119 = pneg %p2118
      $region38: #{shallow_convnet_forward.2} parent=5 // pred_check_branch
        %2121 = sbr.rel (%p2119) target = $region40
      $region39: #{shallow_convnet_forward.2} parent=5 // pred_region
        %s2122 = ssub.s32 %s9, 2
        // Predicated region
        $region41: #{shallow_convnet_forward.2} parent=39 // pred_check
          %p2123 = pneg %p85
        $region42: #{shallow_convnet_forward.2} parent=39 // pred_check_branch
          %2125 = sbr.rel (%p2123) target = $region44
        $region43: #{shallow_convnet_forward.2} parent=39 // pred_region
          %p2126 = scmp.lt.s32.totalorder %s15, 1
          %s2127 = scalar_select %p2126, %s15, 1
          %s2128 = smul.addr %s2127, 65
          %s2129 = smul.addr %s2128, 8
          %s2130 = scalar_lea.vmem %s2, %s2129
        $region44: #{shallow_convnet_forward.2} parent=39 // pred_fallthru
          _
      $region40: #{shallow_convnet_forward.2} parent=5 // pred_fallthru
        _
    $region6: #{shallow_convnet_forward.2} parent=1 // loop_footer
      %s13 = sadd.s32 1, %s9
    $region7: #{shallow_convnet_forward.2} parent=1 // loop_footer_branch
      %8 = sbr.rel target = $region3
    $region8: #{shallow_convnet_forward.2} parent=1 // loop_exit
      _
    %2131 = vsyncpa [#allocation4], 1
    %s2132 = scalar_lea.sflag [#allocation4], 1
    %2133 = vsyncpa %s2132, 1

// kernel: shallow_convnet_forward.3
$region0: #{shallow_convnet_forward.3}
  #allocation0 [shape = 'u32[]', space=smem, size = 0x4, offset = 0x4, fixed_abs, tag = 'smem constant byte address 0x4 - core index']
  #allocation1 [shape = 'u32[144,128]{1,0:T(1,128)}', space=vmem, size = 0x12000, scoped, tag = 'internal scratch']
  #allocation2 [shape = 'f32[312,42]{1,0:T(8,128)}', space=vmem, size = 0x27000, scoped, tag = 'scratch operand']
  %s0 = inlined_call_operand.vmem [shape: f32[2,24,54], index: 0, kind: input, shape index: {}]
  %s1 = inlined_call_operand.vmem [shape: f32[520,312], index: 1, kind: input, shape index: {}]
  %s2 = inlined_call_operand.vmem [shape: f32[520,1], index: 2, kind: input, shape index: {}]
  %s3 = inlined_call_operand.vmem [shape: f32[520,1], index: 3, kind: input, shape index: {}]
  %s4 = inlined_call_operand.vmem [shape: f32[42,2], index: 4, kind: input, shape index: {}]
  %s5 = inlined_call_operand.vmem [shape: f32[4,520,2], index: 5, kind: input, shape index: {}]
  %s6 = inlined_call_operand.vmem [shape: f32[4,1], index: 6, kind: input, shape index: {}]
  %s7 = inlined_call_operand.vmem [shape: f32[2,4,1], index: 7, kind: output, shape index: {}]
  %s8 = sld [smem:[#allocation0]]
  $region61: #{shallow_convnet_forward.3} parent=0
    _
  %s10 = ssub.s32 1, %s8
  %s11 = scalar_select 0, %s10, %s8
  loop: start=0, step=1, limit=4
  $region2: #{shallow_convnet_forward.3} parent=0 // loop_pre_header
    _
  $region3: #{shallow_convnet_forward.3} parent=0 // loop_header
    %s13 = sphi 0, %s17
    %p14 = scmp.ge.s32.totalorder %s13, 4
    %s23 = sphi 0, %s25
    %s26 = sphi 0, %s23
    %s27 = sphi 0, %s26
    %s43 = sphi 0, %s27
    %s47 = sphi 0, %s47
    %s49 = sphi 0, %s47
    %s50 = sphi 0, %s49
    %s64 = sphi 0, %s50
    %s68 = sphi 0, %s68
    %s70 = sphi 0, %s68
    %s71 = sphi 0, %s70
    %s85 = sphi 0, %s71
    %s89 = sphi 0, %s89
    %s91 = sphi 0, %s89
    %s92 = sphi 0, %s91
    %s106 = sphi 0, %s92
    %s110 = sphi 0, %s110
    %s112 = sphi 0, %s110
    %s113 = sphi 0, %s112
    %s127 = sphi 0, %s113
    %s131 = sphi 0, %s131
    %s133 = sphi 0, %s131
    %s134 = sphi 0, %s133
    %s148 = sphi 0, %s134
    %s152 = sphi 0, %s152
    %s154 = sphi 0, %s152
    %s155 = sphi 0, %s154
    %s169 = sphi 0, %s155
    %s175 = sphi 0, %s177
    %s178 = sphi 0, %s175
    %s179 = sphi 0, %s178
    %s195 = sphi 0, %s179
  $region4: #{shallow_convnet_forward.3} parent=0 // loop_header_branch
    %16 = sbr.rel (%p14) target = $region8
  $region5: #{shallow_convnet_forward.3} parent=0 // loop_body
    %s18 = ssub.s32 %s13, 1
    %s19 = ssub.s32 %s13, 2
    %s20 = sadd.s32 %s13, 1
    %s21 = ssub.s32 %s13, %s20
    %p22 = scmp.eq.s32.totalorder %s21, 0
    %s24 = sadd.s32 %s23, 1
    %s25 = scalar_select %p22, %s23, %s24
    %p28 = pneg %p22
    %p29 = scmp.eq.s32.totalorder %s13, 1
    %p30 = por %p28, %p29
    %p31 = scmp.ne.s32.totalorder %s23, %s26
    %p32 = scmp.eq.s32.totalorder %s13, 0
    %p33 = por %p31, %p32
    %p34 = scmp.ne.s32.totalorder %s23, %s26
    %p35 = scmp.eq.s32.totalorder %s18, 1
    %p36 = por %p34, %p35
    %p37 = scmp.ne.s32.totalorder %s26, %s27
    %p38 = scmp.eq.s32.totalorder %s18, 0
    %p39 = por %p37, %p38
    %p40 = scmp.ne.s32.totalorder %s26, %s27
    %p41 = scmp.eq.s32.totalorder %s19, 1
    %p42 = por %p40, %p41
    %p44 = scmp.ne.s32.totalorder %s27, %s43
    %p45 = scmp.eq.s32.totalorder %s19, 0
    %p46 = por %p44, %p45
    %s48 = sadd.s32 %s47, 1
    %p51 = scmp.eq.s32.totalorder %s13, 1
    %p52 = scmp.ne.s32.totalorder %s47, %s49
    %p53 = scmp.eq.s32.totalorder %s13, 0
    %p54 = por %p52, %p53
    %p55 = scmp.ne.s32.totalorder %s47, %s49
    %p56 = scmp.eq.s32.totalorder %s18, 1
    %p57 = por %p55, %p56
    %p58 = scmp.ne.s32.totalorder %s49, %s50
    %p59 = scmp.eq.s32.totalorder %s18, 0
    %p60 = por %p58, %p59
    %p61 = scmp.ne.s32.totalorder %s49, %s50
    %p62 = scmp.eq.s32.totalorder %s19, 1
    %p63 = por %p61, %p62
    %p65 = scmp.ne.s32.totalorder %s50, %s64
    %p66 = scmp.eq.s32.totalorder %s19, 0
    %p67 = por %p65, %p66
    %s69 = sadd.s32 %s68, 1
    %p72 = scmp.eq.s32.totalorder %s13, 1
    %p73 = scmp.ne.s32.totalorder %s68, %s70
    %p74 = scmp.eq.s32.totalorder %s13, 0
    %p75 = por %p73, %p74
    %p76 = scmp.ne.s32.totalorder %s68, %s70
    %p77 = scmp.eq.s32.totalorder %s18, 1
    %p78 = por %p76, %p77
    %p79 = scmp.ne.s32.totalorder %s70, %s71
    %p80 = scmp.eq.s32.totalorder %s18, 0
    %p81 = por %p79, %p80
    %p82 = scmp.ne.s32.totalorder %s70, %s71
    %p83 = scmp.eq.s32.totalorder %s19, 1
    %p84 = por %p82, %p83
    %p86 = scmp.ne.s32.totalorder %s71, %s85
    %p87 = scmp.eq.s32.totalorder %s19, 0
    %p88 = por %p86, %p87
    %s90 = sadd.s32 %s89, 1
    %p93 = scmp.eq.s32.totalorder %s13, 1
    %p94 = scmp.ne.s32.totalorder %s89, %s91
    %p95 = scmp.eq.s32.totalorder %s13, 0
    %p96 = por %p94, %p95
    %p97 = scmp.ne.s32.totalorder %s89, %s91
    %p98 = scmp.eq.s32.totalorder %s18, 1
    %p99 = por %p97, %p98
    %p100 = scmp.ne.s32.totalorder %s91, %s92
    %p101 = scmp.eq.s32.totalorder %s18, 0
    %p102 = por %p100, %p101
    %p103 = scmp.ne.s32.totalorder %s91, %s92
    %p104 = scmp.eq.s32.totalorder %s19, 1
    %p105 = por %p103, %p104
    %p107 = scmp.ne.s32.totalorder %s92, %s106
    %p108 = scmp.eq.s32.totalorder %s19, 0
    %p109 = por %p107, %p108
    %s111 = sadd.s32 %s110, 1
    %p114 = scmp.eq.s32.totalorder %s13, 1
    %p115 = scmp.ne.s32.totalorder %s110, %s112
    %p116 = scmp.eq.s32.totalorder %s13, 0
    %p117 = por %p115, %p116
    %p118 = scmp.ne.s32.totalorder %s110, %s112
    %p119 = scmp.eq.s32.totalorder %s18, 1
    %p120 = por %p118, %p119
    %p121 = scmp.ne.s32.totalorder %s112, %s113
    %p122 = scmp.eq.s32.totalorder %s18, 0
    %p123 = por %p121, %p122
    %p124 = scmp.ne.s32.totalorder %s112, %s113
    %p125 = scmp.eq.s32.totalorder %s19, 1
    %p126 = por %p124, %p125
    %p128 = scmp.ne.s32.totalorder %s113, %s127
    %p129 = scmp.eq.s32.totalorder %s19, 0
    %p130 = por %p128, %p129
    %s132 = sadd.s32 %s131, 1
    %p135 = scmp.eq.s32.totalorder %s13, 1
    %p136 = scmp.ne.s32.totalorder %s131, %s133
    %p137 = scmp.eq.s32.totalorder %s13, 0
    %p138 = por %p136, %p137
    %p139 = scmp.ne.s32.totalorder %s131, %s133
    %p140 = scmp.eq.s32.totalorder %s18, 1
    %p141 = por %p139, %p140
    %p142 = scmp.ne.s32.totalorder %s133, %s134
    %p143 = scmp.eq.s32.totalorder %s18, 0
    %p144 = por %p142, %p143
    %p145 = scmp.ne.s32.totalorder %s133, %s134
    %p146 = scmp.eq.s32.totalorder %s19, 1
    %p147 = por %p145, %p146
    %p149 = scmp.ne.s32.totalorder %s134, %s148
    %p150 = scmp.eq.s32.totalorder %s19, 0
    %p151 = por %p149, %p150
    %s153 = sadd.s32 %s152, 1
    %p156 = scmp.eq.s32.totalorder %s13, 1
    %p157 = scmp.ne.s32.totalorder %s152, %s154
    %p158 = scmp.eq.s32.totalorder %s13, 0
    %p159 = por %p157, %p158
    %p160 = scmp.ne.s32.totalorder %s152, %s154
    %p161 = scmp.eq.s32.totalorder %s18, 1
    %p162 = por %p160, %p161
    %p163 = scmp.ne.s32.totalorder %s154, %s155
    %p164 = scmp.eq.s32.totalorder %s18, 0
    %p165 = por %p163, %p164
    %p166 = scmp.ne.s32.totalorder %s154, %s155
    %p167 = scmp.eq.s32.totalorder %s19, 1
    %p168 = por %p166, %p167
    %p170 = scmp.ne.s32.totalorder %s155, %s169
    %p171 = scmp.eq.s32.totalorder %s19, 0
    %p172 = por %p170, %p171
    %s173 = ssub.s32 %s13, %s20
    %p174 = scmp.eq.s32.totalorder %s173, 0
    %s176 = sadd.s32 %s175, 1
    %s177 = scalar_select %p174, %s175, %s176
    %p180 = pneg %p174
    %p181 = scmp.eq.s32.totalorder %s13, 1
    %p182 = por %p180, %p181
    %p183 = scmp.ne.s32.totalorder %s175, %s178
    %p184 = scmp.eq.s32.totalorder %s13, 0
    %p185 = por %p183, %p184
    %p186 = scmp.ne.s32.totalorder %s175, %s178
    %p187 = scmp.eq.s32.totalorder %s18, 1
    %p188 = por %p186, %p187
    %p189 = scmp.ne.s32.totalorder %s178, %s179
    %p190 = scmp.eq.s32.totalorder %s18, 0
    %p191 = por %p189, %p190
    %p192 = scmp.ne.s32.totalorder %s178, %s179
    %p193 = scmp.eq.s32.totalorder %s19, 1
    %p194 = por %p192, %p193
    %p196 = scmp.ne.s32.totalorder %s179, %s195
    %p197 = scmp.eq.s32.totalorder %s19, 0
    %p198 = por %p196, %p197
    %p199 = scmp.le.s32.totalorder 1, %s13
    %p200 = scmp.lt.s32.totalorder %s13, 3
    %p201 = pnand %p199, %p200
    %p202 = pneg %p201
    // Predicated region
    $region9: #{shallow_convnet_forward.3} parent=5 // pred_check
      _
    $region10: #{shallow_convnet_forward.3} parent=5 // pred_check_branch
      %204 = sbr.rel (%p201) target = $region12
    $region11: #{shallow_convnet_forward.3} parent=5 // pred_region
      %s205 = ssub.s32 %s13, 1
      // Predicated region
      $region13: #{shallow_convnet_forward.3} parent=11 // pred_check
        %p206 = pneg %p60
      $region14: #{shallow_convnet_forward.3} parent=11 // pred_check_branch
        %208 = sbr.rel (%p206) target = $region16
      $region15: #{shallow_convnet_forward.3} parent=11 // pred_region
        _
      $region16: #{shallow_convnet_forward.3} parent=11 // pred_fallthru
        _
      // Predicated region
      $region17: #{shallow_convnet_forward.3} parent=11 // pred_check
        %p209 = pneg %p81
      $region18: #{shallow_convnet_forward.3} parent=11 // pred_check_branch
        %211 = sbr.rel (%p209) target = $region20
      $region19: #{shallow_convnet_forward.3} parent=11 // pred_region
        _
      $region20: #{shallow_convnet_forward.3} parent=11 // pred_fallthru
        _
      // Predicated region
      $region21: #{shallow_convnet_forward.3} parent=11 // pred_check
        %p212 = pneg %p102
      $region22: #{shallow_convnet_forward.3} parent=11 // pred_check_branch
        %214 = sbr.rel (%p212) target = $region24
      $region23: #{shallow_convnet_forward.3} parent=11 // pred_region
        _
      $region24: #{shallow_convnet_forward.3} parent=11 // pred_fallthru
        _
      // Predicated region
      $region25: #{shallow_convnet_forward.3} parent=11 // pred_check
        %p215 = pneg %p123
      $region26: #{shallow_convnet_forward.3} parent=11 // pred_check_branch
        %217 = sbr.rel (%p215) target = $region28
      $region27: #{shallow_convnet_forward.3} parent=11 // pred_region
        _
      $region28: #{shallow_convnet_forward.3} parent=11 // pred_fallthru
        _
      // Predicated region
      $region29: #{shallow_convnet_forward.3} parent=11 // pred_check
        %p218 = pneg %p144
      $region30: #{shallow_convnet_forward.3} parent=11 // pred_check_branch
        %220 = sbr.rel (%p218) target = $region32
      $region31: #{shallow_convnet_forward.3} parent=11 // pred_region
        _
      $region32: #{shallow_convnet_forward.3} parent=11 // pred_fallthru
        _
      // Predicated region
      $region33: #{shallow_convnet_forward.3} parent=11 // pred_check
        %p221 = pneg %p165
      $region34: #{shallow_convnet_forward.3} parent=11 // pred_check_branch
        %223 = sbr.rel (%p221) target = $region36
      $region35: #{shallow_convnet_forward.3} parent=11 // pred_region
        _
      $region36: #{shallow_convnet_forward.3} parent=11 // pred_fallthru
        _
    $region12: #{shallow_convnet_forward.3} parent=5 // pred_fallthru
      _
    %p224 = scmp.lt.s32.totalorder %s13, 2
    // Predicated region
    $region37: #{shallow_convnet_forward.3} parent=5 // pred_check
      %p225 = pneg %p224
    $region38: #{shallow_convnet_forward.3} parent=5 // pred_check_branch
      %227 = sbr.rel (%p225) target = $region40
    $region39: #{shallow_convnet_forward.3} parent=5 // pred_region
      // Predicated region
      $region41: #{shallow_convnet_forward.3} parent=39 // pred_check
        %p228 = pneg %p33
      $region42: #{shallow_convnet_forward.3} parent=39 // pred_check_branch
        %230 = sbr.rel (%p228) target = $region44
      $region43: #{shallow_convnet_forward.3} parent=39 // pred_region
        %p231 = scmp.lt.s32.totalorder %s13, 1
        %s232 = scalar_select %p231, %s13, 1
        %s233 = smul.addr %s232, 3
        %s234 = smul.addr %s233, 8
        %s235 = scalar_lea.vmem %s0, %s234
      $region44: #{shallow_convnet_forward.3} parent=39 // pred_fallthru
        _
    $region40: #{shallow_convnet_forward.3} parent=5 // pred_fallthru
      _
    %p236 = scmp.le.s32.totalorder 1, %s13
    %p237 = scmp.lt.s32.totalorder %s13, 3
    %p238 = pnand %p236, %p237
    %p239 = pneg %p238
    // Predicated region
    $region45: #{shallow_convnet_forward.3} parent=5 // pred_check
      _
    $region46: #{shallow_convnet_forward.3} parent=5 // pred_check_branch
      %241 = sbr.rel (%p238) target = $region48
    $region47: #{shallow_convnet_forward.3} parent=5 // pred_region
      %s242 = ssub.s32 %s13, 1
      %p243 = scmp.lt.s32.totalorder %s18, 1
      %s244 = scalar_select %p243, %s18, 1
      %s245 = smul.addr %s244, 3
      %s246 = smul.addr %s245, 8
      %s247 = scalar_lea.vmem %s0, %s246
      %p248 = pneg %p39
      %p249 = pneg %p36
      %p250 = pneg %p60
      %p251 = pneg %p57
      %p252 = pneg %p81
      %p253 = pneg %p78
      %p254 = pneg %p102
      %p255 = pneg %p99
      %p256 = pneg %p123
      %p257 = pneg %p120
      %p258 = pneg %p144
      %p259 = pneg %p141
      %p260 = pneg %p165
      %p261 = pneg %p162
      %p262 = pneg %p191
      %p263 = pneg %p188
      %p264 = scmp.lt.s32.totalorder %s18, 1
      %s265 = scalar_select %p264, %s18, 1
      %s266 = smul.addr %s265, 4
      %s267 = scalar_lea.vmem %s7, %s266
      %p268 = scmp.lt.s32.totalorder %s18, 1
      %s269 = scalar_select %p268, %s18, 1
      %s270 = smul.addr %s269, 3
      %s271 = smul.addr %s270, 8
      %s272 = scalar_lea.vmem %s0, %s271
      %p273 = scmp.lt.s32.totalorder %s18, 1
      %s274 = scalar_select %p273, %s18, 1
      %s275 = smul.addr %s274, 4
      %s276 = scalar_lea.vmem %s7, %s275
      %v277 = vld [vmem:[%s272] sm:$0xff]
      %v278 = vld [vmem:[%s272 + $0x8] sm:$0xff]
      %v279 = vld [vmem:[%s272 + $0x10] sm:$0xff]
      %vm280 = vcmask 343040
      %281 = vst.msk [vmem:[#allocation2] sm:$0xff] %vm280, %v277
      %282 = vst.msk [vmem:[#allocation2 + $0x8] sm:$0xff] %vm280, %v278
      %283 = vst.msk [vmem:[#allocation2 + $0x10] sm:$0xff] %vm280, %v279
      %287 = vrot.lane.b32.xlu0 %v277, 127
      %v288 = vpop.permute.xlu0 %287
      %289 = vrot.lane.b32.xlu0 %v278, 127
      %v290 = vpop.permute.xlu0 %289
      %291 = vrot.lane.b32.xlu0 %v279, 127
      %v292 = vpop.permute.xlu0 %291
      %296 = vst.msk [vmem:[#allocation2 + $0x18] sm:$0xff] %vm280, %v288
      %297 = vst.msk [vmem:[#allocation2 + $0x20] sm:$0xff] %vm280, %v290
      %298 = vst.msk [vmem:[#allocation2 + $0x28] sm:$0xff] %vm280, %v292
      %299 = vrot.lane.b32.xlu0 %v277, 126
      %v300 = vpop.permute.xlu0 %299
      %301 = vrot.lane.b32.xlu0 %v278, 126
      %v302 = vpop.permute.xlu0 %301
      %303 = vrot.lane.b32.xlu0 %v279, 126
      %v304 = vpop.permute.xlu0 %303
      %308 = vst.msk [vmem:[#allocation2 + $0x30] sm:$0xff] %vm280, %v300
      %309 = vst.msk [vmem:[#allocation2 + $0x38] sm:$0xff] %vm280, %v302
      %310 = vst.msk [vmem:[#allocation2 + $0x40] sm:$0xff] %vm280, %v304
      %311 = vrot.lane.b32.xlu0 %v277, 125
      %v312 = vpop.permute.xlu0 %311
      %313 = vrot.lane.b32.xlu0 %v278, 125
      %v314 = vpop.permute.xlu0 %313
      %315 = vrot.lane.b32.xlu0 %v279, 125
      %v316 = vpop.permute.xlu0 %315
      %320 = vst.msk [vmem:[#allocation2 + $0x48] sm:$0xff] %vm280, %v312
      %321 = vst.msk [vmem:[#allocation2 + $0x50] sm:$0xff] %vm280, %v314
      %322 = vst.msk [vmem:[#allocation2 + $0x58] sm:$0xff] %vm280, %v316
      %323 = vrot.lane.b32.xlu0 %v277, 124
      %v324 = vpop.permute.xlu0 %323
      %325 = vrot.lane.b32.xlu0 %v278, 124
      %v326 = vpop.permute.xlu0 %325
      %327 = vrot.lane.b32.xlu0 %v279, 124
      %v328 = vpop.permute.xlu0 %327
      %332 = vst.msk [vmem:[#allocation2 + $0x60] sm:$0xff] %vm280, %v324
      %333 = vst.msk [vmem:[#allocation2 + $0x68] sm:$0xff] %vm280, %v326
      %334 = vst.msk [vmem:[#allocation2 + $0x70] sm:$0xff] %vm280, %v328
      %335 = vrot.lane.b32.xlu0 %v277, 123
      %v336 = vpop.permute.xlu0 %335
      %337 = vrot.lane.b32.xlu0 %v278, 123
      %v338 = vpop.permute.xlu0 %337
      %339 = vrot.lane.b32.xlu0 %v279, 123
      %v340 = vpop.permute.xlu0 %339
      %344 = vst.msk [vmem:[#allocation2 + $0x78] sm:$0xff] %vm280, %v336
      %345 = vst.msk [vmem:[#allocation2 + $0x80] sm:$0xff] %vm280, %v338
      %346 = vst.msk [vmem:[#allocation2 + $0x88] sm:$0xff] %vm280, %v340
      %347 = vrot.lane.b32.xlu0 %v277, 122
      %v348 = vpop.permute.xlu0 %347
      %349 = vrot.lane.b32.xlu0 %v278, 122
      %v350 = vpop.permute.xlu0 %349
      %351 = vrot.lane.b32.xlu0 %v279, 122
      %v352 = vpop.permute.xlu0 %351
      %356 = vst.msk [vmem:[#allocation2 + $0x90] sm:$0xff] %vm280, %v348
      %357 = vst.msk [vmem:[#allocation2 + $0x98] sm:$0xff] %vm280, %v350
      %358 = vst.msk [vmem:[#allocation2 + $0xa0] sm:$0xff] %vm280, %v352
      %359 = vrot.lane.b32.xlu0 %v277, 121
      %v360 = vpop.permute.xlu0 %359
      %361 = vrot.lane.b32.xlu0 %v278, 121
      %v362 = vpop.permute.xlu0 %361
      %363 = vrot.lane.b32.xlu0 %v279, 121
      %v364 = vpop.permute.xlu0 %363
      %368 = vst.msk [vmem:[#allocation2 + $0xa8] sm:$0xff] %vm280, %v360
      %369 = vst.msk [vmem:[#allocation2 + $0xb0] sm:$0xff] %vm280, %v362
      %370 = vst.msk [vmem:[#allocation2 + $0xb8] sm:$0xff] %vm280, %v364
      %371 = vrot.lane.b32.xlu0 %v277, 120
      %v372 = vpop.permute.xlu0 %371
      %373 = vrot.lane.b32.xlu0 %v278, 120
      %v374 = vpop.permute.xlu0 %373
      %375 = vrot.lane.b32.xlu0 %v279, 120
      %v376 = vpop.permute.xlu0 %375
      %380 = vst.msk [vmem:[#allocation2 + $0xc0] sm:$0xff] %vm280, %v372
      %381 = vst.msk [vmem:[#allocation2 + $0xc8] sm:$0xff] %vm280, %v374
      %382 = vst.msk [vmem:[#allocation2 + $0xd0] sm:$0xff] %vm280, %v376
      %383 = vrot.lane.b32.xlu0 %v277, 119
      %v384 = vpop.permute.xlu0 %383
      %385 = vrot.lane.b32.xlu0 %v278, 119
      %v386 = vpop.permute.xlu0 %385
      %387 = vrot.lane.b32.xlu0 %v279, 119
      %v388 = vpop.permute.xlu0 %387
      %392 = vst.msk [vmem:[#allocation2 + $0xd8] sm:$0xff] %vm280, %v384
      %393 = vst.msk [vmem:[#allocation2 + $0xe0] sm:$0xff] %vm280, %v386
      %394 = vst.msk [vmem:[#allocation2 + $0xe8] sm:$0xff] %vm280, %v388
      %395 = vrot.lane.b32.xlu0 %v277, 118
      %v396 = vpop.permute.xlu0 %395
      %397 = vrot.lane.b32.xlu0 %v278, 118
      %v398 = vpop.permute.xlu0 %397
      %399 = vrot.lane.b32.xlu0 %v279, 118
      %v400 = vpop.permute.xlu0 %399
      %404 = vst.msk [vmem:[#allocation2 + $0xf0] sm:$0xff] %vm280, %v396
      %405 = vst.msk [vmem:[#allocation2 + $0xf8] sm:$0xff] %vm280, %v398
      %406 = vst.msk [vmem:[#allocation2 + $0x100] sm:$0xff] %vm280, %v400
      %407 = vrot.lane.b32.xlu0 %v277, 117
      %v408 = vpop.permute.xlu0 %407
      %409 = vrot.lane.b32.xlu0 %v278, 117
      %v410 = vpop.permute.xlu0 %409
      %411 = vrot.lane.b32.xlu0 %v279, 117
      %v412 = vpop.permute.xlu0 %411
      %416 = vst.msk [vmem:[#allocation2 + $0x108] sm:$0xff] %vm280, %v408
      %417 = vst.msk [vmem:[#allocation2 + $0x110] sm:$0xff] %vm280, %v410
      %418 = vst.msk [vmem:[#allocation2 + $0x118] sm:$0xff] %vm280, %v412
      %419 = vrot.lane.b32.xlu0 %v277, 116
      %v420 = vpop.permute.xlu0 %419
      %421 = vrot.lane.b32.xlu0 %v278, 116
      %v422 = vpop.permute.xlu0 %421
      %423 = vrot.lane.b32.xlu0 %v279, 116
      %v424 = vpop.permute.xlu0 %423
      %428 = vst.msk [vmem:[#allocation2 + $0x120] sm:$0xff] %vm280, %v420
      %429 = vst.msk [vmem:[#allocation2 + $0x128] sm:$0xff] %vm280, %v422
      %430 = vst.msk [vmem:[#allocation2 + $0x130] sm:$0xff] %vm280, %v424
      %v431 = vld [vmem:[%s1] sm:$0xff]
      %v432 = vld [vmem:[%s1 + $0x8] sm:$0xff]
      %v433 = vld [vmem:[%s1 + $0x10] sm:$0xff]
      %v434 = vld [vmem:[%s1 + $0x18] sm:$0xff]
      %v435 = vld [vmem:[%s1 + $0x20] sm:$0xff]
      %v436 = vld [vmem:[%s1 + $0x28] sm:$0xff]
      %v437 = vld [vmem:[%s1 + $0x30] sm:$0xff]
      %v438 = vld [vmem:[%s1 + $0x38] sm:$0xff]
      %v439 = vld [vmem:[%s1 + $0x40] sm:$0xff]
      %v440 = vld [vmem:[%s1 + $0x48] sm:$0xff]
      %v441 = vld [vmem:[%s1 + $0x50] sm:$0xff]
      %v442 = vld [vmem:[%s1 + $0x58] sm:$0xff]
      %v443 = vld [vmem:[%s1 + $0x60] sm:$0xff]
      %v444 = vld [vmem:[%s1 + $0x68] sm:$0xff]
      %v445 = vld [vmem:[%s1 + $0x70] sm:$0xff]
      %v446 = vld [vmem:[%s1 + $0x78] sm:$0xff]
      %v447 = vld [vmem:[%s1 + $0x80] sm:$0xff]
      %v448 = vld [vmem:[%s1 + $0x88] sm:$0xff]
      %v449 = vld [vmem:[%s1 + $0x90] sm:$0xff]
      %v450 = vld [vmem:[%s1 + $0x98] sm:$0xff]
      %v451 = vld [vmem:[%s1 + $0xa0] sm:$0xff]
      %v452 = vld [vmem:[%s1 + $0xa8] sm:$0xff]
      %v453 = vld [vmem:[%s1 + $0xb0] sm:$0xff]
      %v454 = vld [vmem:[%s1 + $0xb8] sm:$0xff]
      %v455 = vld [vmem:[%s1 + $0xc0] sm:$0xff]
      %v456 = vld [vmem:[%s1 + $0xc8] sm:$0xff]
      %v457 = vld [vmem:[%s1 + $0xd0] sm:$0xff]
      %v458 = vld [vmem:[%s1 + $0xd8] sm:$0xff]
      %v459 = vld [vmem:[%s1 + $0xe0] sm:$0xff]
      %v460 = vld [vmem:[%s1 + $0xe8] sm:$0xff]
      %v461 = vld [vmem:[%s1 + $0xf0] sm:$0xff]
      %v462 = vld [vmem:[%s1 + $0xf8] sm:$0xff]
      %v463 = vld [vmem:[%s1 + $0x100] sm:$0xff]
      %v464 = vld [vmem:[%s1 + $0x108] sm:$0xff]
      %v465 = vld [vmem:[%s1 + $0x110] sm:$0xff]
      %v466 = vld [vmem:[%s1 + $0x118] sm:$0xff]
      %v467 = vld [vmem:[%s1 + $0x120] sm:$0xff]
      %v468 = vld [vmem:[%s1 + $0x128] sm:$0xff]
      %v469 = vld [vmem:[%s1 + $0x130] sm:$0xff]
      %v470 = vld [vmem:[%s1 + $0x138] sm:$0xff]
      %v471 = vld [vmem:[%s1 + $0x140] sm:$0xff]
      %v472 = vld [vmem:[%s1 + $0x148] sm:$0xff]
      %v473 = vld [vmem:[%s1 + $0x150] sm:$0xff]
      %v474 = vld [vmem:[%s1 + $0x158] sm:$0xff]
      %v475 = vld [vmem:[%s1 + $0x160] sm:$0xff]
      %v476 = vld [vmem:[%s1 + $0x168] sm:$0xff]
      %v477 = vld [vmem:[%s1 + $0x170] sm:$0xff]
      %v478 = vld [vmem:[%s1 + $0x178] sm:$0xff]
      %v479 = vld [vmem:[%s1 + $0x180] sm:$0xff]
      %v480 = vld [vmem:[%s1 + $0x188] sm:$0xff]
      %v481 = vld [vmem:[%s1 + $0x190] sm:$0xff]
      %v482 = vld [vmem:[%s1 + $0x198] sm:$0xff]
      %v483 = vld [vmem:[%s1 + $0x1a0] sm:$0xff]
      %v484 = vld [vmem:[%s1 + $0x1a8] sm:$0xff]
      %v485 = vld [vmem:[%s1 + $0x1b0] sm:$0xff]
      %v486 = vld [vmem:[%s1 + $0x1b8] sm:$0xff]
      %v487 = vld [vmem:[%s1 + $0x1c0] sm:$0xff]
      %v488 = vld [vmem:[%s1 + $0x1c8] sm:$0xff]
      %v489 = vld [vmem:[%s1 + $0x1d0] sm:$0xff]
      %v490 = vld [vmem:[%s1 + $0x1d8] sm:$0xff]
      %v491 = vld [vmem:[%s1 + $0x1e0] sm:$0xff]
      %v492 = vld [vmem:[%s1 + $0x1e8] sm:$0xff]
      %v493 = vld [vmem:[%s1 + $0x1f0] sm:$0xff]
      %v494 = vld [vmem:[%s1 + $0x1f8] sm:$0xff]
      %v495 = vld [vmem:[%s1 + $0x200] sm:$0xff]
      %v496 = vld [vmem:[%s1 + $0x208] sm:$0xff]
      %v497 = vld [vmem:[%s1 + $0x210] sm:$0xff]
      %v498 = vld [vmem:[%s1 + $0x218] sm:$0xff]
      %v499 = vld [vmem:[%s1 + $0x220] sm:$0xff]
      %v500 = vld [vmem:[%s1 + $0x228] sm:$0xff]
      %v501 = vld [vmem:[%s1 + $0x230] sm:$0xff]
      %v502 = vld [vmem:[%s1 + $0x238] sm:$0xff]
      %v503 = vld [vmem:[%s1 + $0x240] sm:$0xff]
      %v504 = vld [vmem:[%s1 + $0x248] sm:$0xff]
      %v505 = vld [vmem:[%s1 + $0x250] sm:$0xff]
      %v506 = vld [vmem:[%s1 + $0x258] sm:$0xff]
      %v507 = vld [vmem:[%s1 + $0x260] sm:$0xff]
      %v508 = vld [vmem:[%s1 + $0x268] sm:$0xff]
      %v509 = vld [vmem:[%s1 + $0x270] sm:$0xff]
      %v510 = vld [vmem:[%s1 + $0x278] sm:$0xff]
      %v511 = vld [vmem:[%s1 + $0x280] sm:$0xff]
      %v512 = vld [vmem:[%s1 + $0x288] sm:$0xff]
      %v513 = vld [vmem:[%s1 + $0x290] sm:$0xff]
      %v514 = vld [vmem:[%s1 + $0x298] sm:$0xff]
      %v515 = vld [vmem:[%s1 + $0x2a0] sm:$0xff]
      %v516 = vld [vmem:[%s1 + $0x2a8] sm:$0xff]
      %v517 = vld [vmem:[%s1 + $0x2b0] sm:$0xff]
      %v518 = vld [vmem:[%s1 + $0x2b8] sm:$0xff]
      %v519 = vld [vmem:[%s1 + $0x2c0] sm:$0xff]
      %v520 = vld [vmem:[%s1 + $0x2c8] sm:$0xff]
      %v521 = vld [vmem:[%s1 + $0x2d0] sm:$0xff]
      %v522 = vld [vmem:[%s1 + $0x2d8] sm:$0xff]
      %v523 = vld [vmem:[%s1 + $0x2e0] sm:$0xff]
      %v524 = vld [vmem:[%s1 + $0x2e8] sm:$0xff]
      %v525 = vld [vmem:[%s1 + $0x2f0] sm:$0xff]
      %v526 = vld [vmem:[%s1 + $0x2f8] sm:$0xff]
      %v527 = vld [vmem:[%s1 + $0x300] sm:$0xff]
      %v528 = vld [vmem:[%s1 + $0x308] sm:$0xff]
      %v529 = vld [vmem:[%s1 + $0x310] sm:$0xff]
      %v530 = vld [vmem:[%s1 + $0x318] sm:$0xff]
      %v531 = vld [vmem:[%s1 + $0x320] sm:$0xff]
      %v532 = vld [vmem:[%s1 + $0x328] sm:$0xff]
      %v533 = vld [vmem:[%s1 + $0x330] sm:$0xff]
      %v534 = vld [vmem:[%s1 + $0x338] sm:$0xff]
      %v535 = vld [vmem:[%s1 + $0x340] sm:$0xff]
      %v536 = vld [vmem:[%s1 + $0x348] sm:$0xff]
      %v537 = vld [vmem:[%s1 + $0x350] sm:$0xff]
      %v538 = vld [vmem:[%s1 + $0x358] sm:$0xff]
      %v539 = vld [vmem:[%s1 + $0x360] sm:$0xff]
      %v540 = vld [vmem:[%s1 + $0x368] sm:$0xff]
      %v541 = vld [vmem:[%s1 + $0x370] sm:$0xff]
      %v542 = vld [vmem:[%s1 + $0x378] sm:$0xff]
      %v543 = vld [vmem:[%s1 + $0x380] sm:$0xff]
      %v544 = vld [vmem:[%s1 + $0x388] sm:$0xff]
      %v545 = vld [vmem:[%s1 + $0x390] sm:$0xff]
      %v546 = vld [vmem:[%s1 + $0x398] sm:$0xff]
      %v547 = vld [vmem:[%s1 + $0x3a0] sm:$0xff]
      %v548 = vld [vmem:[%s1 + $0x3a8] sm:$0xff]
      %v549 = vld [vmem:[%s1 + $0x3b0] sm:$0xff]
      %v550 = vld [vmem:[%s1 + $0x3b8] sm:$0xff]
      %v551 = vld [vmem:[%s1 + $0x3c0] sm:$0xff]
      %v552 = vld [vmem:[%s1 + $0x3c8] sm:$0xff]
      %v553 = vld [vmem:[%s1 + $0x3d0] sm:$0xff]
      %v554 = vld [vmem:[%s1 + $0x3d8] sm:$0xff]
      %v555 = vld [vmem:[%s1 + $0x3e0] sm:$0xff]
      %v556 = vld [vmem:[%s1 + $0x3e8] sm:$0xff]
      %v557 = vld [vmem:[%s1 + $0x3f0] sm:$0xff]
      %v558 = vld [vmem:[%s1 + $0x3f8] sm:$0xff]
      %v559 = vld [vmem:[%s1 + $0x400] sm:$0xff]
      %v560 = vld [vmem:[%s1 + $0x408] sm:$0xff]
      %v561 = vld [vmem:[%s1 + $0x410] sm:$0xff]
      %v562 = vld [vmem:[%s1 + $0x418] sm:$0xff]
      %v563 = vld [vmem:[%s1 + $0x420] sm:$0xff]
      %v564 = vld [vmem:[%s1 + $0x428] sm:$0xff]
      %v565 = vld [vmem:[%s1 + $0x430] sm:$0xff]
      %v566 = vld [vmem:[%s1 + $0x438] sm:$0xff]
      %v567 = vld [vmem:[%s1 + $0x440] sm:$0xff]
      %v568 = vld [vmem:[%s1 + $0x448] sm:$0xff]
      %v569 = vld [vmem:[%s1 + $0x450] sm:$0xff]
      %v570 = vld [vmem:[%s1 + $0x458] sm:$0xff]
      %v571 = vld [vmem:[%s1 + $0x460] sm:$0xff]
      %v572 = vld [vmem:[%s1 + $0x468] sm:$0xff]
      %v573 = vld [vmem:[%s1 + $0x470] sm:$0xff]
      %v574 = vld [vmem:[%s1 + $0x478] sm:$0xff]
      %v575 = vld [vmem:[%s1 + $0x480] sm:$0xff]
      %v576 = vld [vmem:[%s1 + $0x488] sm:$0xff]
      %v577 = vld [vmem:[%s1 + $0x490] sm:$0xff]
      %v578 = vld [vmem:[%s1 + $0x498] sm:$0xff]
      %v579 = vld [vmem:[%s1 + $0x4a0] sm:$0xff]
      %v580 = vld [vmem:[%s1 + $0x4a8] sm:$0xff]
      %v581 = vld [vmem:[%s1 + $0x4b0] sm:$0xff]
      %v582 = vld [vmem:[%s1 + $0x4b8] sm:$0xff]
      %v583 = vld [vmem:[%s1 + $0x4c0] sm:$0xff]
      %v584 = vld [vmem:[%s1 + $0x4c8] sm:$0xff]
      %v585 = vld [vmem:[%s1 + $0x4d0] sm:$0xff]
      %v586 = vld [vmem:[%s1 + $0x4d8] sm:$0xff]
      %v587 = vld [vmem:[%s1 + $0x4e0] sm:$0xff]
      %v588 = vld [vmem:[%s1 + $0x4e8] sm:$0xff]
      %v589 = vld [vmem:[%s1 + $0x4f0] sm:$0xff]
      %v590 = vld [vmem:[%s1 + $0x4f8] sm:$0xff]
      %v591 = vld [vmem:[%s1 + $0x500] sm:$0xff]
      %v592 = vld [vmem:[%s1 + $0x508] sm:$0xff]
      %v593 = vld [vmem:[%s1 + $0x510] sm:$0xff]
      %v594 = vld [vmem:[%s1 + $0x518] sm:$0xff]
      %v595 = vld [vmem:[%s1 + $0x520] sm:$0xff]
      %v596 = vld [vmem:[%s1 + $0x528] sm:$0xff]
      %v597 = vld [vmem:[%s1 + $0x530] sm:$0xff]
      %v598 = vld [vmem:[%s1 + $0x538] sm:$0xff]
      %v599 = vld [vmem:[%s1 + $0x540] sm:$0xff]
      %v600 = vld [vmem:[%s1 + $0x548] sm:$0xff]
      %v601 = vld [vmem:[%s1 + $0x550] sm:$0xff]
      %v602 = vld [vmem:[%s1 + $0x558] sm:$0xff]
      %v603 = vld [vmem:[%s1 + $0x560] sm:$0xff]
      %v604 = vld [vmem:[%s1 + $0x568] sm:$0xff]
      %v605 = vld [vmem:[%s1 + $0x570] sm:$0xff]
      %v606 = vld [vmem:[%s1 + $0x578] sm:$0xff]
      %v607 = vld [vmem:[%s1 + $0x580] sm:$0xff]
      %v608 = vld [vmem:[%s1 + $0x588] sm:$0xff]
      %v609 = vld [vmem:[%s1 + $0x590] sm:$0xff]
      %v610 = vld [vmem:[%s1 + $0x598] sm:$0xff]
      %v611 = vld [vmem:[%s1 + $0x5a0] sm:$0xff]
      %v612 = vld [vmem:[%s1 + $0x5a8] sm:$0xff]
      %v613 = vld [vmem:[%s1 + $0x5b0] sm:$0xff]
      %v614 = vld [vmem:[%s1 + $0x5b8] sm:$0xff]
      %v615 = vld [vmem:[%s1 + $0x5c0] sm:$0xff]
      %v616 = vld [vmem:[%s1 + $0x5c8] sm:$0xff]
      %v617 = vld [vmem:[%s1 + $0x5d0] sm:$0xff]
      %v618 = vld [vmem:[%s1 + $0x5d8] sm:$0xff]
      %v619 = vld [vmem:[%s1 + $0x5e0] sm:$0xff]
      %v620 = vld [vmem:[%s1 + $0x5e8] sm:$0xff]
      %v621 = vld [vmem:[%s1 + $0x5f0] sm:$0xff]
      %v622 = vld [vmem:[%s1 + $0x5f8] sm:$0xff]
      %v623 = vld [vmem:[%s1 + $0x600] sm:$0xff]
      %v624 = vld [vmem:[%s1 + $0x608] sm:$0xff]
      %v625 = vld [vmem:[%s1 + $0x610] sm:$0xff]
      %v626 = vld [vmem:[#allocation2] sm:$0xff]
      %v627 = vld [vmem:[#allocation2 + $0x8] sm:$0xff]
      %v628 = vld [vmem:[#allocation2 + $0x10] sm:$0xff]
      %v629 = vld [vmem:[#allocation2 + $0x18] sm:$0xff]
      %v630 = vld [vmem:[#allocation2 + $0x20] sm:$0xff]
      %v631 = vld [vmem:[#allocation2 + $0x28] sm:$0xff]
      %v632 = vld [vmem:[#allocation2 + $0x30] sm:$0xff]
      %v633 = vld [vmem:[#allocation2 + $0x38] sm:$0xff]
      %v634 = vld [vmem:[#allocation2 + $0x40] sm:$0xff]
      %v635 = vld [vmem:[#allocation2 + $0x48] sm:$0xff]
      %v636 = vld [vmem:[#allocation2 + $0x50] sm:$0xff]
      %v637 = vld [vmem:[#allocation2 + $0x58] sm:$0xff]
      %v638 = vld [vmem:[#allocation2 + $0x60] sm:$0xff]
      %v639 = vld [vmem:[#allocation2 + $0x68] sm:$0xff]
      %v640 = vld [vmem:[#allocation2 + $0x70] sm:$0xff]
      %v641 = vld [vmem:[#allocation2 + $0x78] sm:$0xff]
      %v642 = vld [vmem:[#allocation2 + $0x80] sm:$0xff]
      %v643 = vld [vmem:[#allocation2 + $0x88] sm:$0xff]
      %v644 = vld [vmem:[#allocation2 + $0x90] sm:$0xff]
      %v645 = vld [vmem:[#allocation2 + $0x98] sm:$0xff]
      %v646 = vld [vmem:[#allocation2 + $0xa0] sm:$0xff]
      %v647 = vld [vmem:[#allocation2 + $0xa8] sm:$0xff]
      %v648 = vld [vmem:[#allocation2 + $0xb0] sm:$0xff]
      %v649 = vld [vmem:[#allocation2 + $0xb8] sm:$0xff]
      %v650 = vld [vmem:[#allocation2 + $0xc0] sm:$0xff]
      %v651 = vld [vmem:[#allocation2 + $0xc8] sm:$0xff]
      %v652 = vld [vmem:[#allocation2 + $0xd0] sm:$0xff]
      %v653 = vld [vmem:[#allocation2 + $0xd8] sm:$0xff]
      %v654 = vld [vmem:[#allocation2 + $0xe0] sm:$0xff]
      %v655 = vld [vmem:[#allocation2 + $0xe8] sm:$0xff]
      %v656 = vld [vmem:[#allocation2 + $0xf0] sm:$0xff]
      %v657 = vld [vmem:[#allocation2 + $0xf8] sm:$0xff]
      %v658 = vld [vmem:[#allocation2 + $0x100] sm:$0xff]
      %v659 = vld [vmem:[#allocation2 + $0x108] sm:$0xff]
      %v660 = vld [vmem:[#allocation2 + $0x110] sm:$0xff]
      %v661 = vld [vmem:[#allocation2 + $0x118] sm:$0xff]
      %v662 = vld [vmem:[#allocation2 + $0x120] sm:$0xff]
      %v663 = vld [vmem:[#allocation2 + $0x128] sm:$0xff]
      %v664 = vld [vmem:[#allocation2 + $0x130] sm:$0xff]
      %vm665 = vcmask 457728
      %v667 = vsel %vm665, %v433, 0
      %v670 = vsel %vm665, %v436, 0
      %v673 = vsel %vm665, %v439, 0
      %v676 = vsel %vm665, %v442, 0
      %v679 = vsel %vm665, %v445, 0
      %v682 = vsel %vm665, %v448, 0
      %v685 = vsel %vm665, %v451, 0
      %v688 = vsel %vm665, %v454, 0
      %v691 = vsel %vm665, %v457, 0
      %v694 = vsel %vm665, %v460, 0
      %v697 = vsel %vm665, %v463, 0
      %v700 = vsel %vm665, %v466, 0
      %v703 = vsel %vm665, %v469, 0
      %v706 = vsel %vm665, %v472, 0
      %v709 = vsel %vm665, %v475, 0
      %v712 = vsel %vm665, %v478, 0
      %v715 = vsel %vm665, %v481, 0
      %v718 = vsel %vm665, %v484, 0
      %v721 = vsel %vm665, %v487, 0
      %v724 = vsel %vm665, %v490, 0
      %v727 = vsel %vm665, %v493, 0
      %v730 = vsel %vm665, %v496, 0
      %v733 = vsel %vm665, %v499, 0
      %v736 = vsel %vm665, %v502, 0
      %v739 = vsel %vm665, %v505, 0
      %v742 = vsel %vm665, %v508, 0
      %v745 = vsel %vm665, %v511, 0
      %v748 = vsel %vm665, %v514, 0
      %v751 = vsel %vm665, %v517, 0
      %v754 = vsel %vm665, %v520, 0
      %v757 = vsel %vm665, %v523, 0
      %v760 = vsel %vm665, %v526, 0
      %v763 = vsel %vm665, %v529, 0
      %v766 = vsel %vm665, %v532, 0
      %v769 = vsel %vm665, %v535, 0
      %v772 = vsel %vm665, %v538, 0
      %v775 = vsel %vm665, %v541, 0
      %v778 = vsel %vm665, %v544, 0
      %v781 = vsel %vm665, %v547, 0
      %v784 = vsel %vm665, %v550, 0
      %v787 = vsel %vm665, %v553, 0
      %v790 = vsel %vm665, %v556, 0
      %v793 = vsel %vm665, %v559, 0
      %v796 = vsel %vm665, %v562, 0
      %v799 = vsel %vm665, %v565, 0
      %v802 = vsel %vm665, %v568, 0
      %v805 = vsel %vm665, %v571, 0
      %v808 = vsel %vm665, %v574, 0
      %v811 = vsel %vm665, %v577, 0
      %v814 = vsel %vm665, %v580, 0
      %v817 = vsel %vm665, %v583, 0
      %v820 = vsel %vm665, %v586, 0
      %v823 = vsel %vm665, %v589, 0
      %v826 = vsel %vm665, %v592, 0
      %v829 = vsel %vm665, %v595, 0
      %v832 = vsel %vm665, %v598, 0
      %v835 = vsel %vm665, %v601, 0
      %v838 = vsel %vm665, %v604, 0
      %v841 = vsel %vm665, %v607, 0
      %v844 = vsel %vm665, %v610, 0
      %v847 = vsel %vm665, %v613, 0
      %v850 = vsel %vm665, %v616, 0
      %v853 = vsel %vm665, %v619, 0
      %v856 = vsel %vm665, %v622, 0
      %v859 = vsel %vm665, %v625, 0
      %861 = vmatprep.subr.mxu0 0.0
      %862 = vmatpush1.msra.mxu0 %v626
      %863 = vmatprep.subr.mxu0 0.0
      %864 = vmatpush1.msra.mxu0 %v627
      %865 = vmatprep.subr.mxu0 0.0
      %866 = vmatpush1.msra.mxu0 %v628
      %867 = vmatprep.subr.mxu0 0.0
      %868 = vmatpush1.msra.mxu0 %v629
      %869 = vmatprep.subr.mxu0 0.0
      %870 = vmatpush1.msra.mxu0 %v630
      %871 = vmatprep.subr.mxu0 0.0
      %872 = vmatpush1.msra.mxu0 %v631
      %873 = vmatprep.subr.mxu0 0.0
      %874 = vmatpush1.msra.mxu0 %v632
      %875 = vmatprep.subr.mxu0 0.0
      %876 = vmatpush1.msra.mxu0 %v633
      %877 = vmatprep.subr.mxu0 0.0
      %878 = vmatpush1.msra.mxu0 %v634
      %879 = vmatprep.subr.mxu0 0.0
      %880 = vmatpush1.msra.mxu0 %v635
      %881 = vmatprep.subr.mxu0 0.0
      %882 = vmatpush1.msra.mxu0 %v636
      %883 = vmatprep.subr.mxu0 0.0
      %884 = vmatpush1.msra.mxu0 %v637
      %885 = vmatprep.subr.mxu0 0.0
      %886 = vmatpush1.msra.mxu0 %v638
      %887 = vmatprep.subr.mxu0 0.0
      %888 = vmatpush1.msra.mxu0 %v639
      %889 = vmatprep.subr.mxu0 0.0
      %890 = vmatpush1.msra.mxu0 %v640
      %891 = vmatprep.subr.mxu0 0.0
      %892 = vmatpush1.msra.mxu0 %v641
      %893 = vmatprep.subr.mxu0 0.0
      %894 = vmatpush1.msra.mxu0 %v642
      %895 = vmatprep.subr.mxu0 0.0
      %896 = vmatpush1.msra.mxu0 %v643
      %897 = vmatprep.subr.mxu0 0.0
      %898 = vmatpush1.msra.mxu0 %v644
      %899 = vmatprep.subr.mxu0 0.0
      %900 = vmatpush1.msra.mxu0 %v645
      %901 = vmatprep.subr.mxu0 0.0
      %902 = vmatpush1.msra.mxu0 %v646
      %903 = vmatprep.subr.mxu0 0.0
      %904 = vmatpush1.msra.mxu0 %v647
      %905 = vmatprep.subr.mxu0 0.0
      %906 = vmatpush1.msra.mxu0 %v648
      %907 = vmatprep.subr.mxu0 0.0
      %908 = vmatpush1.msra.mxu0 %v649
      %909 = vmatprep.subr.mxu0 0.0
      %910 = vmatpush1.msra.mxu0 %v650
      %911 = vmatprep.subr.mxu0 0.0
      %912 = vmatpush1.msra.mxu0 %v651
      %913 = vmatprep.subr.mxu0 0.0
      %914 = vmatpush1.msra.mxu0 %v652
      %915 = vmatprep.subr.mxu0 0.0
      %916 = vmatpush1.msra.mxu0 %v653
      %917 = vmatprep.subr.mxu0 0.0
      %918 = vmatpush1.msra.mxu0 %v654
      %919 = vmatprep.subr.mxu0 0.0
      %920 = vmatpush1.msra.mxu0 %v655
      %921 = vmatprep.subr.mxu0 0.0
      %922 = vmatpush1.msra.mxu0 %v656
      %923 = vmatprep.subr.mxu0 0.0
      %924 = vmatpush1.msra.mxu0 %v657
      %925 = vmatprep.mubr.f32.mxu0 %v432
      %926 = vmatmul.mubr.f32.gmra.mrb[0].mxu0 %v431
      %v927 = vpop.f32.mrb[0].mxu0
      %v928 = vadd.f32 0.0, %v927
      %v929 = vpop.f32.mrb[0].mxu0
      %930 = vmatprep.mubr.f32.mxu0 %v435
      %931 = vmatmul.mubr.f32.gmra.mrb[0].mxu0 %v434
      %v932 = vpop.f32.mrb[0].mxu0
      %v933 = vadd.f32 0.0, %v932
      %v934 = vpop.f32.mrb[0].mxu0
      %935 = vmatprep.mubr.f32.mxu0 %v438
      %936 = vmatmul.mubr.f32.gmra.mrb[0].mxu0 %v437
      %v937 = vpop.f32.mrb[0].mxu0
      %v938 = vadd.f32 0.0, %v937
      %v939 = vpop.f32.mrb[0].mxu0
      %940 = vmatprep.mubr.f32.mxu0 %v441
      %941 = vmatmul.mubr.f32.gmra.mrb[0].mxu0 %v440
      %v942 = vpop.f32.mrb[0].mxu0
      %v943 = vadd.f32 0.0, %v942
      %v944 = vpop.f32.mrb[0].mxu0
      %945 = vmatprep.mubr.f32.mxu0 %v444
      %946 = vmatmul.mubr.f32.gmra.mrb[0].mxu0 %v443
      %v947 = vpop.f32.mrb[0].mxu0
      %v948 = vadd.f32 0.0, %v947
      %v949 = vpop.f32.mrb[0].mxu0
      %950 = vmatprep.mubr.f32.mxu0 %v447
      %951 = vmatmul.mubr.f32.gmra.mrb[0].mxu0 %v446
      %v952 = vpop.f32.mrb[0].mxu0
      %v953 = vadd.f32 0.0, %v952
      %v954 = vpop.f32.mrb[0].mxu0
      %955 = vmatprep.mubr.f32.mxu0 %v450
      %956 = vmatmul.mubr.f32.gmra.mrb[0].mxu0 %v449
      %v957 = vpop.f32.mrb[0].mxu0
      %v958 = vadd.f32 0.0, %v957
      %v959 = vpop.f32.mrb[0].mxu0
      %960 = vmatprep.mubr.f32.mxu0 %v453
      %961 = vmatmul.mubr.f32.gmra.mrb[0].mxu0 %v452
      %v962 = vpop.f32.mrb[0].mxu0
      %v963 = vadd.f32 0.0, %v962
      %v964 = vpop.f32.mrb[0].mxu0
      %965 = vmatprep.mubr.f32.mxu0 %v456
      %966 = vmatmul.mubr.f32.gmra.mrb[0].mxu0 %v455
      %v967 = vpop.f32.mrb[0].mxu0
      %v968 = vadd.f32 0.0, %v967
      %v969 = vpop.f32.mrb[0].mxu0
      %970 = vmatprep.mubr.f32.mxu0 %v459
      %971 = vmatmul.mubr.f32.gmra.mrb[0].mxu0 %v458
      %v972 = vpop.f32.mrb[0].mxu0
      %v973 = vadd.f32 0.0, %v972
      %v974 = vpop.f32.mrb[0].mxu0
      %975 = vmatprep.mubr.f32.mxu0 %v462
      %976 = vmatmul.mubr.f32.gmra.mrb[0].mxu0 %v461
      %v977 = vpop.f32.mrb[0].mxu0
      %v978 = vadd.f32 0.0, %v977
      %v979 = vpop.f32.mrb[0].mxu0
      %980 = vmatprep.mubr.f32.mxu0 %v465
      %981 = vmatmul.mubr.f32.gmra.mrb[0].mxu0 %v464
      %v982 = vpop.f32.mrb[0].mxu0
      %v983 = vadd.f32 0.0, %v982
      %v984 = vpop.f32.mrb[0].mxu0
      %985 = vmatprep.mubr.f32.mxu0 %v468
      %986 = vmatmul.mubr.f32.gmra.mrb[0].mxu0 %v467
      %v987 = vpop.f32.mrb[0].mxu0
      %v988 = vadd.f32 0.0, %v987
      %v989 = vpop.f32.mrb[0].mxu0
      %990 = vmatprep.mubr.f32.mxu0 %v471
      %991 = vmatmul.mubr.f32.gmra.mrb[0].mxu0 %v470
      %v992 = vpop.f32.mrb[0].mxu0
      %v993 = vadd.f32 0.0, %v992
      %v994 = vpop.f32.mrb[0].mxu0
      %995 = vmatprep.mubr.f32.mxu0 %v474
      %996 = vmatmul.mubr.f32.gmra.mrb[0].mxu0 %v473
      %v997 = vpop.f32.mrb[0].mxu0
      %v998 = vadd.f32 0.0, %v997
      %v999 = vpop.f32.mrb[0].mxu0
      %1000 = vmatprep.mubr.f32.mxu0 %v477
      %1001 = vmatmul.mubr.f32.gmra.mrb[0].mxu0 %v476
      %v1002 = vpop.f32.mrb[0].mxu0
      %v1003 = vadd.f32 0.0, %v1002
      %v1004 = vpop.f32.mrb[0].mxu0
      %1005 = vmatprep.mubr.f32.mxu0 %v480
      %1006 = vmatmul.mubr.f32.gmra.mrb[0].mxu0 %v479
      %v1007 = vpop.f32.mrb[0].mxu0
      %v1008 = vadd.f32 0.0, %v1007
      %v1009 = vpop.f32.mrb[0].mxu0
      %1010 = vmatprep.mubr.f32.mxu0 %v483
      %1011 = vmatmul.mubr.f32.gmra.mrb[0].mxu0 %v482
      %v1012 = vpop.f32.mrb[0].mxu0
      %v1013 = vadd.f32 0.0, %v1012
      %v1014 = vpop.f32.mrb[0].mxu0
      %1015 = vmatprep.mubr.f32.mxu0 %v486
      %1016 = vmatmul.mubr.f32.gmra.mrb[0].mxu0 %v485
      %v1017 = vpop.f32.mrb[0].mxu0
      %v1018 = vadd.f32 0.0, %v1017
      %v1019 = vpop.f32.mrb[0].mxu0
      %1020 = vmatprep.mubr.f32.mxu0 %v489
      %1021 = vmatmul.mubr.f32.gmra.mrb[0].mxu0 %v488
      %v1022 = vpop.f32.mrb[0].mxu0
      %v1023 = vadd.f32 0.0, %v1022
      %v1024 = vpop.f32.mrb[0].mxu0
      %1025 = vmatprep.mubr.f32.mxu0 %v492
      %1026 = vmatmul.mubr.f32.gmra.mrb[0].mxu0 %v491
      %v1027 = vpop.f32.mrb[0].mxu0
      %v1028 = vadd.f32 0.0, %v1027
      %v1029 = vpop.f32.mrb[0].mxu0
      %1030 = vmatprep.mubr.f32.mxu0 %v495
      %1031 = vmatmul.mubr.f32.gmra.mrb[0].mxu0 %v494
      %v1032 = vpop.f32.mrb[0].mxu0
      %v1033 = vadd.f32 0.0, %v1032
      %v1034 = vpop.f32.mrb[0].mxu0
      %1035 = vmatprep.mubr.f32.mxu0 %v498
      %1036 = vmatmul.mubr.f32.gmra.mrb[0].mxu0 %v497
      %v1037 = vpop.f32.mrb[0].mxu0
      %v1038 = vadd.f32 0.0, %v1037
      %v1039 = vpop.f32.mrb[0].mxu0
      %1040 = vmatprep.mubr.f32.mxu0 %v501
      %1041 = vmatmul.mubr.f32.gmra.mrb[0].mxu0 %v500
      %v1042 = vpop.f32.mrb[0].mxu0
      %v1043 = vadd.f32 0.0, %v1042
      %v1044 = vpop.f32.mrb[0].mxu0
      %1045 = vmatprep.mubr.f32.mxu0 %v504
      %1046 = vmatmul.mubr.f32.gmra.mrb[0].mxu0 %v503
      %v1047 = vpop.f32.mrb[0].mxu0
      %v1048 = vadd.f32 0.0, %v1047
      %v1049 = vpop.f32.mrb[0].mxu0
      %1050 = vmatprep.mubr.f32.mxu0 %v507
      %1051 = vmatmul.mubr.f32.gmra.mrb[0].mxu0 %v506
      %v1052 = vpop.f32.mrb[0].mxu0
      %v1053 = vadd.f32 0.0, %v1052
      %v1054 = vpop.f32.mrb[0].mxu0
      %1055 = vmatprep.mubr.f32.mxu0 %v510
      %1056 = vmatmul.mubr.f32.gmra.mrb[0].mxu0 %v509
      %v1057 = vpop.f32.mrb[0].mxu0
      %v1058 = vadd.f32 0.0, %v1057
      %v1059 = vpop.f32.mrb[0].mxu0
      %1060 = vmatprep.mubr.f32.mxu0 %v513
      %1061 = vmatmul.mubr.f32.gmra.mrb[0].mxu0 %v512
      %v1062 = vpop.f32.mrb[0].mxu0
      %v1063 = vadd.f32 0.0, %v1062
      %v1064 = vpop.f32.mrb[0].mxu0
      %1065 = vmatprep.mubr.f32.mxu0 %v516
      %1066 = vmatmul.mubr.f32.gmra.mrb[0].mxu0 %v515
      %v1067 = vpop.f32.mrb[0].mxu0
      %v1068 = vadd.f32 0.0, %v1067
      %v1069 = vpop.f32.mrb[0].mxu0
      %1070 = vmatprep.mubr.f32.mxu0 %v519
      %1071 = vmatmul.mubr.f32.gmra.mrb[0].mxu0 %v518
      %v1072 = vpop.f32.mrb[0].mxu0
      %v1073 = vadd.f32 0.0, %v1072
      %v1074 = vpop.f32.mrb[0].mxu0
      %1075 = vmatprep.mubr.f32.mxu0 %v522
      %1076 = vmatmul.mubr.f32.gmra.mrb[0].mxu0 %v521
      %v1077 = vpop.f32.mrb[0].mxu0
      %v1078 = vadd.f32 0.0, %v1077
      %v1079 = vpop.f32.mrb[0].mxu0
      %1080 = vmatprep.mubr.f32.mxu0 %v525
      %1081 = vmatmul.mubr.f32.gmra.mrb[0].mxu0 %v524
      %v1082 = vpop.f32.mrb[0].mxu0
      %v1083 = vadd.f32 0.0, %v1082
      %v1084 = vpop.f32.mrb[0].mxu0
      %1085 = vmatprep.mubr.f32.mxu0 %v528
      %1086 = vmatmul.mubr.f32.gmra.mrb[0].mxu0 %v527
      %v1087 = vpop.f32.mrb[0].mxu0
      %v1088 = vadd.f32 0.0, %v1087
      %v1089 = vpop.f32.mrb[0].mxu0
      %1090 = vmatprep.mubr.f32.mxu0 %v531
      %1091 = vmatmul.mubr.f32.gmra.mrb[0].mxu0 %v530
      %v1092 = vpop.f32.mrb[0].mxu0
      %v1093 = vadd.f32 0.0, %v1092
      %v1094 = vpop.f32.mrb[0].mxu0
      %1095 = vmatprep.mubr.f32.mxu0 %v534
      %1096 = vmatmul.mubr.f32.gmra.mrb[0].mxu0 %v533
      %v1097 = vpop.f32.mrb[0].mxu0
      %v1098 = vadd.f32 0.0, %v1097
      %v1099 = vpop.f32.mrb[0].mxu0
      %1100 = vmatprep.mubr.f32.mxu0 %v537
      %1101 = vmatmul.mubr.f32.gmra.mrb[0].mxu0 %v536
      %v1102 = vpop.f32.mrb[0].mxu0
      %v1103 = vadd.f32 0.0, %v1102
      %v1104 = vpop.f32.mrb[0].mxu0
      %1105 = vmatprep.mubr.f32.mxu0 %v540
      %1106 = vmatmul.mubr.f32.gmra.mrb[0].mxu0 %v539
      %v1107 = vpop.f32.mrb[0].mxu0
      %v1108 = vadd.f32 0.0, %v1107
      %v1109 = vpop.f32.mrb[0].mxu0
      %1110 = vmatprep.mubr.f32.mxu0 %v543
      %1111 = vmatmul.mubr.f32.gmra.mrb[0].mxu0 %v542
      %v1112 = vpop.f32.mrb[0].mxu0
      %v1113 = vadd.f32 0.0, %v1112
      %v1114 = vpop.f32.mrb[0].mxu0
      %1115 = vmatprep.mubr.f32.mxu0 %v546
      %1116 = vmatmul.mubr.f32.gmra.mrb[0].mxu0 %v545
      %v1117 = vpop.f32.mrb[0].mxu0
      %v1118 = vadd.f32 0.0, %v1117
      %v1119 = vpop.f32.mrb[0].mxu0
      %1120 = vmatprep.mubr.f32.mxu0 %v549
      %1121 = vmatmul.mubr.f32.gmra.mrb[0].mxu0 %v548
      %v1122 = vpop.f32.mrb[0].mxu0
      %v1123 = vadd.f32 0.0, %v1122
      %v1124 = vpop.f32.mrb[0].mxu0
      %1125 = vmatprep.mubr.f32.mxu0 %v552
      %1126 = vmatmul.mubr.f32.gmra.mrb[0].mxu0 %v551
      %v1127 = vpop.f32.mrb[0].mxu0
      %v1128 = vadd.f32 0.0, %v1127
      %v1129 = vpop.f32.mrb[0].mxu0
      %1130 = vmatprep.mubr.f32.mxu0 %v555
      %1131 = vmatmul.mubr.f32.gmra.mrb[0].mxu0 %v554
      %v1132 = vpop.f32.mrb[0].mxu0
      %v1133 = vadd.f32 0.0, %v1132
      %v1134 = vpop.f32.mrb[0].mxu0
      %1135 = vmatprep.mubr.f32.mxu0 %v558
      %1136 = vmatmul.mubr.f32.gmra.mrb[0].mxu0 %v557
      %v1137 = vpop.f32.mrb[0].mxu0
      %v1138 = vadd.f32 0.0, %v1137
      %v1139 = vpop.f32.mrb[0].mxu0
      %1140 = vmatprep.mubr.f32.mxu0 %v561
      %1141 = vmatmul.mubr.f32.gmra.mrb[0].mxu0 %v560
      %v1142 = vpop.f32.mrb[0].mxu0
      %v1143 = vadd.f32 0.0, %v1142
      %v1144 = vpop.f32.mrb[0].mxu0
      %1145 = vmatprep.mubr.f32.mxu0 %v564
      %1146 = vmatmul.mubr.f32.gmra.mrb[0].mxu0 %v563
      %v1147 = vpop.f32.mrb[0].mxu0
      %v1148 = vadd.f32 0.0, %v1147
      %v1149 = vpop.f32.mrb[0].mxu0
      %1150 = vmatprep.mubr.f32.mxu0 %v567
      %1151 = vmatmul.mubr.f32.gmra.mrb[0].mxu0 %v566
      %v1152 = vpop.f32.mrb[0].mxu0
      %v1153 = vadd.f32 0.0, %v1152
      %v1154 = vpop.f32.mrb[0].mxu0
      %1155 = vmatprep.mubr.f32.mxu0 %v570
      %1156 = vmatmul.mubr.f32.gmra.mrb[0].mxu0 %v569
      %v1157 = vpop.f32.mrb[0].mxu0
      %v1158 = vadd.f32 0.0, %v1157
      %v1159 = vpop.f32.mrb[0].mxu0
      %1160 = vmatprep.mubr.f32.mxu0 %v573
      %1161 = vmatmul.mubr.f32.gmra.mrb[0].mxu0 %v572
      %v1162 = vpop.f32.mrb[0].mxu0
      %v1163 = vadd.f32 0.0, %v1162
      %v1164 = vpop.f32.mrb[0].mxu0
      %1165 = vmatprep.mubr.f32.mxu0 %v576
      %1166 = vmatmul.mubr.f32.gmra.mrb[0].mxu0 %v575
      %v1167 = vpop.f32.mrb[0].mxu0
      %v1168 = vadd.f32 0.0, %v1167
      %v1169 = vpop.f32.mrb[0].mxu0
      %1170 = vmatprep.mubr.f32.mxu0 %v579
      %1171 = vmatmul.mubr.f32.gmra.mrb[0].mxu0 %v578
      %v1172 = vpop.f32.mrb[0].mxu0
      %v1173 = vadd.f32 0.0, %v1172
      %v1174 = vpop.f32.mrb[0].mxu0
      %1175 = vmatprep.mubr.f32.mxu0 %v582
      %1176 = vmatmul.mubr.f32.gmra.mrb[0].mxu0 %v581
      %v1177 = vpop.f32.mrb[0].mxu0
      %v1178 = vadd.f32 0.0, %v1177
      %v1179 = vpop.f32.mrb[0].mxu0
      %1180 = vmatprep.mubr.f32.mxu0 %v585
      %1181 = vmatmul.mubr.f32.gmra.mrb[0].mxu0 %v584
      %v1182 = vpop.f32.mrb[0].mxu0
      %v1183 = vadd.f32 0.0, %v1182
      %v1184 = vpop.f32.mrb[0].mxu0
      %1185 = vmatprep.mubr.f32.mxu0 %v588
      %1186 = vmatmul.mubr.f32.gmra.mrb[0].mxu0 %v587
      %v1187 = vpop.f32.mrb[0].mxu0
      %v1188 = vadd.f32 0.0, %v1187
      %v1189 = vpop.f32.mrb[0].mxu0
      %1190 = vmatprep.mubr.f32.mxu0 %v591
      %1191 = vmatmul.mubr.f32.gmra.mrb[0].mxu0 %v590
      %v1192 = vpop.f32.mrb[0].mxu0
      %v1193 = vadd.f32 0.0, %v1192
      %v1194 = vpop.f32.mrb[0].mxu0
      %1195 = vmatprep.mubr.f32.mxu0 %v594
      %1196 = vmatmul.mubr.f32.gmra.mrb[0].mxu0 %v593
      %v1197 = vpop.f32.mrb[0].mxu0
      %v1198 = vadd.f32 0.0, %v1197
      %v1199 = vpop.f32.mrb[0].mxu0
      %1200 = vmatprep.mubr.f32.mxu0 %v597
      %1201 = vmatmul.mubr.f32.gmra.mrb[0].mxu0 %v596
      %v1202 = vpop.f32.mrb[0].mxu0
      %v1203 = vadd.f32 0.0, %v1202
      %v1204 = vpop.f32.mrb[0].mxu0
      %1205 = vmatprep.mubr.f32.mxu0 %v600
      %1206 = vmatmul.mubr.f32.gmra.mrb[0].mxu0 %v599
      %v1207 = vpop.f32.mrb[0].mxu0
      %v1208 = vadd.f32 0.0, %v1207
      %v1209 = vpop.f32.mrb[0].mxu0
      %1210 = vmatprep.mubr.f32.mxu0 %v603
      %1211 = vmatmul.mubr.f32.gmra.mrb[0].mxu0 %v602
      %v1212 = vpop.f32.mrb[0].mxu0
      %v1213 = vadd.f32 0.0, %v1212
      %v1214 = vpop.f32.mrb[0].mxu0
      %1215 = vmatprep.mubr.f32.mxu0 %v606
      %1216 = vmatmul.mubr.f32.gmra.mrb[0].mxu0 %v605
      %v1217 = vpop.f32.mrb[0].mxu0
      %v1218 = vadd.f32 0.0, %v1217
      %v1219 = vpop.f32.mrb[0].mxu0
      %1220 = vmatprep.mubr.f32.mxu0 %v609
      %1221 = vmatmul.mubr.f32.gmra.mrb[0].mxu0 %v608
      %v1222 = vpop.f32.mrb[0].mxu0
      %v1223 = vadd.f32 0.0, %v1222
      %v1224 = vpop.f32.mrb[0].mxu0
      %1225 = vmatprep.mubr.f32.mxu0 %v612
      %1226 = vmatmul.mubr.f32.gmra.mrb[0].mxu0 %v611
      %v1227 = vpop.f32.mrb[0].mxu0
      %v1228 = vadd.f32 0.0, %v1227
      %v1229 = vpop.f32.mrb[0].mxu0
      %1230 = vmatprep.mubr.f32.mxu0 %v615
      %1231 = vmatmul.mubr.f32.gmra.mrb[0].mxu0 %v614
      %v1232 = vpop.f32.mrb[0].mxu0
      %v1233 = vadd.f32 0.0, %v1232
      %v1234 = vpop.f32.mrb[0].mxu0
      %1235 = vmatprep.mubr.f32.mxu0 %v618
      %1236 = vmatmul.mubr.f32.gmra.mrb[0].mxu0 %v617
      %v1237 = vpop.f32.mrb[0].mxu0
      %v1238 = vadd.f32 0.0, %v1237
      %v1239 = vpop.f32.mrb[0].mxu0
      %1240 = vmatprep.mubr.f32.mxu0 %v621
      %1241 = vmatmul.mubr.f32.gmra.mrb[0].mxu0 %v620
      %v1242 = vpop.f32.mrb[0].mxu0
      %v1243 = vadd.f32 0.0, %v1242
      %v1244 = vpop.f32.mrb[0].mxu0
      %1245 = vmatprep.mubr.f32.mxu0 %v624
      %1246 = vmatmul.mubr.f32.gmra.mrb[0].mxu0 %v623
      %v1247 = vpop.f32.mrb[0].mxu0
      %v1248 = vadd.f32 0.0, %v1247
      %v1249 = vpop.f32.mrb[0].mxu0
      %1250 = vdwg.mxu0
      %1251 = vmatprep.subr.mxu0 0.0
      %1252 = vmatpush1.msra.mxu0 %v658
      %1253 = vmatprep.subr.mxu0 0.0
      %1254 = vmatpush1.msra.mxu0 %v659
      %1255 = vmatprep.subr.mxu0 0.0
      %1256 = vmatpush1.msra.mxu0 %v660
      %1257 = vmatprep.subr.mxu0 0.0
      %1258 = vmatpush1.msra.mxu0 %v661
      %1259 = vmatprep.subr.mxu0 0.0
      %1260 = vmatpush1.msra.mxu0 %v662
      %1261 = vmatprep.subr.mxu0 0.0
      %1262 = vmatpush1.msra.mxu0 %v663
      %1263 = vmatprep.subr.mxu0 0.0
      %1264 = vmatpush1.msra.mxu0 %v664
      %1265 = vmatprep.subr.mxu0 0.0
      %1266 = vmatpush1.msra.mxu0 0.0
      %1267 = vmatprep.subr.mxu0 0.0
      %1268 = vmatpush1.msra.mxu0 0.0
      %1269 = vmatprep.subr.mxu0 0.0
      %1270 = vmatpush1.msra.mxu0 0.0
      %1271 = vmatprep.subr.mxu0 0.0
      %1272 = vmatpush1.msra.mxu0 0.0
      %1273 = vmatprep.subr.mxu0 0.0
      %1274 = vmatpush1.msra.mxu0 0.0
      %1275 = vmatprep.subr.mxu0 0.0
      %1276 = vmatpush1.msra.mxu0 0.0
      %1277 = vmatprep.subr.mxu0 0.0
      %1278 = vmatpush1.msra.mxu0 0.0
      %1279 = vmatprep.subr.mxu0 0.0
      %1280 = vmatpush1.msra.mxu0 0.0
      %1281 = vmatprep.subr.mxu0 0.0
      %1282 = vmatpush1.msra.mxu0 0.0
      %1283 = vmatprep.subr.mxu0 0.0
      %1284 = vmatpush1.msra.mxu0 0.0
      %1285 = vmatprep.subr.mxu0 0.0
      %1286 = vmatpush1.msra.mxu0 0.0
      %1287 = vmatprep.subr.mxu0 0.0
      %1288 = vmatpush1.msra.mxu0 0.0
      %1289 = vmatprep.subr.mxu0 0.0
      %1290 = vmatpush1.msra.mxu0 0.0
      %1291 = vmatprep.subr.mxu0 0.0
      %1292 = vmatpush1.msra.mxu0 0.0
      %1293 = vmatprep.subr.mxu0 0.0
      %1294 = vmatpush1.msra.mxu0 0.0
      %1295 = vmatprep.subr.mxu0 0.0
      %1296 = vmatpush1.msra.mxu0 0.0
      %1297 = vmatprep.subr.mxu0 0.0
      %1298 = vmatpush1.msra.mxu0 0.0
      %1299 = vmatprep.subr.mxu0 0.0
      %1300 = vmatpush1.msra.mxu0 0.0
      %1301 = vmatprep.subr.mxu0 0.0
      %1302 = vmatpush1.msra.mxu0 0.0
      %1303 = vmatprep.subr.mxu0 0.0
      %1304 = vmatpush1.msra.mxu0 0.0
      %1305 = vmatprep.subr.mxu0 0.0
      %1306 = vmatpush1.msra.mxu0 0.0
      %1307 = vmatprep.subr.mxu0 0.0
      %1308 = vmatpush1.msra.mxu0 0.0
      %1309 = vmatprep.subr.mxu0 0.0
      %1310 = vmatpush1.msra.mxu0 0.0
      %1311 = vmatprep.subr.mxu0 0.0
      %1312 = vmatpush1.msra.mxu0 0.0
      %1313 = vmatprep.subr.mxu0 0.0
      %1314 = vmatpush1.msra.mxu0 0.0
      %1315 = vmatprep.mubr.f32.mxu0 0.0
      %1316 = vmatmul.mubr.f32.gmra.mrb[0].mxu0 %v667
      %v1317 = vpop.f32.mrb[0].mxu0
      %v1318 = vadd.f32 %v928, %v1317
      %v1319 = vpop.f32.mrb[0].mxu0
      %1320 = vmatprep.mubr.f32.mxu0 0.0
      %1321 = vmatmul.mubr.f32.gmra.mrb[0].mxu0 %v670
      %v1322 = vpop.f32.mrb[0].mxu0
      %v1323 = vadd.f32 %v933, %v1322
      %v1324 = vpop.f32.mrb[0].mxu0
      %1325 = vmatprep.mubr.f32.mxu0 0.0
      %1326 = vmatmul.mubr.f32.gmra.mrb[0].mxu0 %v673
      %v1327 = vpop.f32.mrb[0].mxu0
      %v1328 = vadd.f32 %v938, %v1327
      %v1329 = vpop.f32.mrb[0].mxu0
      %1330 = vmatprep.mubr.f32.mxu0 0.0
      %1331 = vmatmul.mubr.f32.gmra.mrb[0].mxu0 %v676
      %v1332 = vpop.f32.mrb[0].mxu0
      %v1333 = vadd.f32 %v943, %v1332
      %v1334 = vpop.f32.mrb[0].mxu0
      %1335 = vmatprep.mubr.f32.mxu0 0.0
      %1336 = vmatmul.mubr.f32.gmra.mrb[0].mxu0 %v679
      %v1337 = vpop.f32.mrb[0].mxu0
      %v1338 = vadd.f32 %v948, %v1337
      %v1339 = vpop.f32.mrb[0].mxu0
      %1340 = vmatprep.mubr.f32.mxu0 0.0
      %1341 = vmatmul.mubr.f32.gmra.mrb[0].mxu0 %v682
      %v1342 = vpop.f32.mrb[0].mxu0
      %v1343 = vadd.f32 %v953, %v1342
      %v1344 = vpop.f32.mrb[0].mxu0
      %1345 = vmatprep.mubr.f32.mxu0 0.0
      %1346 = vmatmul.mubr.f32.gmra.mrb[0].mxu0 %v685
      %v1347 = vpop.f32.mrb[0].mxu0
      %v1348 = vadd.f32 %v958, %v1347
      %v1349 = vpop.f32.mrb[0].mxu0
      %1350 = vmatprep.mubr.f32.mxu0 0.0
      %1351 = vmatmul.mubr.f32.gmra.mrb[0].mxu0 %v688
      %v1352 = vpop.f32.mrb[0].mxu0
      %v1353 = vadd.f32 %v963, %v1352
      %v1354 = vpop.f32.mrb[0].mxu0
      %1355 = vmatprep.mubr.f32.mxu0 0.0
      %1356 = vmatmul.mubr.f32.gmra.mrb[0].mxu0 %v691
      %v1357 = vpop.f32.mrb[0].mxu0
      %v1358 = vadd.f32 %v968, %v1357
      %v1359 = vpop.f32.mrb[0].mxu0
      %1360 = vmatprep.mubr.f32.mxu0 0.0
      %1361 = vmatmul.mubr.f32.gmra.mrb[0].mxu0 %v694
      %v1362 = vpop.f32.mrb[0].mxu0
      %v1363 = vadd.f32 %v973, %v1362
      %v1364 = vpop.f32.mrb[0].mxu0
      %1365 = vmatprep.mubr.f32.mxu0 0.0
      %1366 = vmatmul.mubr.f32.gmra.mrb[0].mxu0 %v697
      %v1367 = vpop.f32.mrb[0].mxu0
      %v1368 = vadd.f32 %v978, %v1367
      %v1369 = vpop.f32.mrb[0].mxu0
      %1370 = vmatprep.mubr.f32.mxu0 0.0
      %1371 = vmatmul.mubr.f32.gmra.mrb[0].mxu0 %v700
      %v1372 = vpop.f32.mrb[0].mxu0
      %v1373 = vadd.f32 %v983, %v1372
      %v1374 = vpop.f32.mrb[0].mxu0
      %1375 = vmatprep.mubr.f32.mxu0 0.0
      %1376 = vmatmul.mubr.f32.gmra.mrb[0].mxu0 %v703
      %v1377 = vpop.f32.mrb[0].mxu0
      %v1378 = vadd.f32 %v988, %v1377
      %v1379 = vpop.f32.mrb[0].mxu0
      %1380 = vmatprep.mubr.f32.mxu0 0.0
      %1381 = vmatmul.mubr.f32.gmra.mrb[0].mxu0 %v706
      %v1382 = vpop.f32.mrb[0].mxu0
      %v1383 = vadd.f32 %v993, %v1382
      %v1384 = vpop.f32.mrb[0].mxu0
      %1385 = vmatprep.mubr.f32.mxu0 0.0
      %1386 = vmatmul.mubr.f32.gmra.mrb[0].mxu0 %v709
      %v1387 = vpop.f32.mrb[0].mxu0
      %v1388 = vadd.f32 %v998, %v1387
      %v1389 = vpop.f32.mrb[0].mxu0
      %1390 = vmatprep.mubr.f32.mxu0 0.0
      %1391 = vmatmul.mubr.f32.gmra.mrb[0].mxu0 %v712
      %v1392 = vpop.f32.mrb[0].mxu0
      %v1393 = vadd.f32 %v1003, %v1392
      %v1394 = vpop.f32.mrb[0].mxu0
      %1395 = vmatprep.mubr.f32.mxu0 0.0
      %1396 = vmatmul.mubr.f32.gmra.mrb[0].mxu0 %v715
      %v1397 = vpop.f32.mrb[0].mxu0
      %v1398 = vadd.f32 %v1008, %v1397
      %v1399 = vpop.f32.mrb[0].mxu0
      %1400 = vmatprep.mubr.f32.mxu0 0.0
      %1401 = vmatmul.mubr.f32.gmra.mrb[0].mxu0 %v718
      %v1402 = vpop.f32.mrb[0].mxu0
      %v1403 = vadd.f32 %v1013, %v1402
      %v1404 = vpop.f32.mrb[0].mxu0
      %1405 = vmatprep.mubr.f32.mxu0 0.0
      %1406 = vmatmul.mubr.f32.gmra.mrb[0].mxu0 %v721
      %v1407 = vpop.f32.mrb[0].mxu0
      %v1408 = vadd.f32 %v1018, %v1407
      %v1409 = vpop.f32.mrb[0].mxu0
      %1410 = vmatprep.mubr.f32.mxu0 0.0
      %1411 = vmatmul.mubr.f32.gmra.mrb[0].mxu0 %v724
      %v1412 = vpop.f32.mrb[0].mxu0
      %v1413 = vadd.f32 %v1023, %v1412
      %v1414 = vpop.f32.mrb[0].mxu0
      %1415 = vmatprep.mubr.f32.mxu0 0.0
      %1416 = vmatmul.mubr.f32.gmra.mrb[0].mxu0 %v727
      %v1417 = vpop.f32.mrb[0].mxu0
      %v1418 = vadd.f32 %v1028, %v1417
      %v1419 = vpop.f32.mrb[0].mxu0
      %1420 = vmatprep.mubr.f32.mxu0 0.0
      %1421 = vmatmul.mubr.f32.gmra.mrb[0].mxu0 %v730
      %v1422 = vpop.f32.mrb[0].mxu0
      %v1423 = vadd.f32 %v1033, %v1422
      %v1424 = vpop.f32.mrb[0].mxu0
      %1425 = vmatprep.mubr.f32.mxu0 0.0
      %1426 = vmatmul.mubr.f32.gmra.mrb[0].mxu0 %v733
      %v1427 = vpop.f32.mrb[0].mxu0
      %v1428 = vadd.f32 %v1038, %v1427
      %v1429 = vpop.f32.mrb[0].mxu0
      %1430 = vmatprep.mubr.f32.mxu0 0.0
      %1431 = vmatmul.mubr.f32.gmra.mrb[0].mxu0 %v736
      %v1432 = vpop.f32.mrb[0].mxu0
      %v1433 = vadd.f32 %v1043, %v1432
      %v1434 = vpop.f32.mrb[0].mxu0
      %1435 = vmatprep.mubr.f32.mxu0 0.0
      %1436 = vmatmul.mubr.f32.gmra.mrb[0].mxu0 %v739
      %v1437 = vpop.f32.mrb[0].mxu0
      %v1438 = vadd.f32 %v1048, %v1437
      %v1439 = vpop.f32.mrb[0].mxu0
      %1440 = vmatprep.mubr.f32.mxu0 0.0
      %1441 = vmatmul.mubr.f32.gmra.mrb[0].mxu0 %v742
      %v1442 = vpop.f32.mrb[0].mxu0
      %v1443 = vadd.f32 %v1053, %v1442
      %v1444 = vpop.f32.mrb[0].mxu0
      %1445 = vmatprep.mubr.f32.mxu0 0.0
      %1446 = vmatmul.mubr.f32.gmra.mrb[0].mxu0 %v745
      %v1447 = vpop.f32.mrb[0].mxu0
      %v1448 = vadd.f32 %v1058, %v1447
      %v1449 = vpop.f32.mrb[0].mxu0
      %1450 = vmatprep.mubr.f32.mxu0 0.0
      %1451 = vmatmul.mubr.f32.gmra.mrb[0].mxu0 %v748
      %v1452 = vpop.f32.mrb[0].mxu0
      %v1453 = vadd.f32 %v1063, %v1452
      %v1454 = vpop.f32.mrb[0].mxu0
      %1455 = vmatprep.mubr.f32.mxu0 0.0
      %1456 = vmatmul.mubr.f32.gmra.mrb[0].mxu0 %v751
      %v1457 = vpop.f32.mrb[0].mxu0
      %v1458 = vadd.f32 %v1068, %v1457
      %v1459 = vpop.f32.mrb[0].mxu0
      %1460 = vmatprep.mubr.f32.mxu0 0.0
      %1461 = vmatmul.mubr.f32.gmra.mrb[0].mxu0 %v754
      %v1462 = vpop.f32.mrb[0].mxu0
      %v1463 = vadd.f32 %v1073, %v1462
      %v1464 = vpop.f32.mrb[0].mxu0
      %1465 = vmatprep.mubr.f32.mxu0 0.0
      %1466 = vmatmul.mubr.f32.gmra.mrb[0].mxu0 %v757
      %v1467 = vpop.f32.mrb[0].mxu0
      %v1468 = vadd.f32 %v1078, %v1467
      %v1469 = vpop.f32.mrb[0].mxu0
      %1470 = vmatprep.mubr.f32.mxu0 0.0
      %1471 = vmatmul.mubr.f32.gmra.mrb[0].mxu0 %v760
      %v1472 = vpop.f32.mrb[0].mxu0
      %v1473 = vadd.f32 %v1083, %v1472
      %v1474 = vpop.f32.mrb[0].mxu0
      %1475 = vmatprep.mubr.f32.mxu0 0.0
      %1476 = vmatmul.mubr.f32.gmra.mrb[0].mxu0 %v763
      %v1477 = vpop.f32.mrb[0].mxu0
      %v1478 = vadd.f32 %v1088, %v1477
      %v1479 = vpop.f32.mrb[0].mxu0
      %1480 = vmatprep.mubr.f32.mxu0 0.0
      %1481 = vmatmul.mubr.f32.gmra.mrb[0].mxu0 %v766
      %v1482 = vpop.f32.mrb[0].mxu0
      %v1483 = vadd.f32 %v1093, %v1482
      %v1484 = vpop.f32.mrb[0].mxu0
      %1485 = vmatprep.mubr.f32.mxu0 0.0
      %1486 = vmatmul.mubr.f32.gmra.mrb[0].mxu0 %v769
      %v1487 = vpop.f32.mrb[0].mxu0
      %v1488 = vadd.f32 %v1098, %v1487
      %v1489 = vpop.f32.mrb[0].mxu0
      %1490 = vmatprep.mubr.f32.mxu0 0.0
      %1491 = vmatmul.mubr.f32.gmra.mrb[0].mxu0 %v772
      %v1492 = vpop.f32.mrb[0].mxu0
      %v1493 = vadd.f32 %v1103, %v1492
      %v1494 = vpop.f32.mrb[0].mxu0
      %1495 = vmatprep.mubr.f32.mxu0 0.0
      %1496 = vmatmul.mubr.f32.gmra.mrb[0].mxu0 %v775
      %v1497 = vpop.f32.mrb[0].mxu0
      %v1498 = vadd.f32 %v1108, %v1497
      %v1499 = vpop.f32.mrb[0].mxu0
      %1500 = vmatprep.mubr.f32.mxu0 0.0
      %1501 = vmatmul.mubr.f32.gmra.mrb[0].mxu0 %v778
      %v1502 = vpop.f32.mrb[0].mxu0
      %v1503 = vadd.f32 %v1113, %v1502
      %v1504 = vpop.f32.mrb[0].mxu0
      %1505 = vmatprep.mubr.f32.mxu0 0.0
      %1506 = vmatmul.mubr.f32.gmra.mrb[0].mxu0 %v781
      %v1507 = vpop.f32.mrb[0].mxu0
      %v1508 = vadd.f32 %v1118, %v1507
      %v1509 = vpop.f32.mrb[0].mxu0
      %1510 = vmatprep.mubr.f32.mxu0 0.0
      %1511 = vmatmul.mubr.f32.gmra.mrb[0].mxu0 %v784
      %v1512 = vpop.f32.mrb[0].mxu0
      %v1513 = vadd.f32 %v1123, %v1512
      %v1514 = vpop.f32.mrb[0].mxu0
      %1515 = vmatprep.mubr.f32.mxu0 0.0
      %1516 = vmatmul.mubr.f32.gmra.mrb[0].mxu0 %v787
      %v1517 = vpop.f32.mrb[0].mxu0
      %v1518 = vadd.f32 %v1128, %v1517
      %v1519 = vpop.f32.mrb[0].mxu0
      %1520 = vmatprep.mubr.f32.mxu0 0.0
      %1521 = vmatmul.mubr.f32.gmra.mrb[0].mxu0 %v790
      %v1522 = vpop.f32.mrb[0].mxu0
      %v1523 = vadd.f32 %v1133, %v1522
      %v1524 = vpop.f32.mrb[0].mxu0
      %1525 = vmatprep.mubr.f32.mxu0 0.0
      %1526 = vmatmul.mubr.f32.gmra.mrb[0].mxu0 %v793
      %v1527 = vpop.f32.mrb[0].mxu0
      %v1528 = vadd.f32 %v1138, %v1527
      %v1529 = vpop.f32.mrb[0].mxu0
      %1530 = vmatprep.mubr.f32.mxu0 0.0
      %1531 = vmatmul.mubr.f32.gmra.mrb[0].mxu0 %v796
      %v1532 = vpop.f32.mrb[0].mxu0
      %v1533 = vadd.f32 %v1143, %v1532
      %v1534 = vpop.f32.mrb[0].mxu0
      %1535 = vmatprep.mubr.f32.mxu0 0.0
      %1536 = vmatmul.mubr.f32.gmra.mrb[0].mxu0 %v799
      %v1537 = vpop.f32.mrb[0].mxu0
      %v1538 = vadd.f32 %v1148, %v1537
      %v1539 = vpop.f32.mrb[0].mxu0
      %1540 = vmatprep.mubr.f32.mxu0 0.0
      %1541 = vmatmul.mubr.f32.gmra.mrb[0].mxu0 %v802
      %v1542 = vpop.f32.mrb[0].mxu0
      %v1543 = vadd.f32 %v1153, %v1542
      %v1544 = vpop.f32.mrb[0].mxu0
      %1545 = vmatprep.mubr.f32.mxu0 0.0
      %1546 = vmatmul.mubr.f32.gmra.mrb[0].mxu0 %v805
      %v1547 = vpop.f32.mrb[0].mxu0
      %v1548 = vadd.f32 %v1158, %v1547
      %v1549 = vpop.f32.mrb[0].mxu0
      %1550 = vmatprep.mubr.f32.mxu0 0.0
      %1551 = vmatmul.mubr.f32.gmra.mrb[0].mxu0 %v808
      %v1552 = vpop.f32.mrb[0].mxu0
      %v1553 = vadd.f32 %v1163, %v1552
      %v1554 = vpop.f32.mrb[0].mxu0
      %1555 = vmatprep.mubr.f32.mxu0 0.0
      %1556 = vmatmul.mubr.f32.gmra.mrb[0].mxu0 %v811
      %v1557 = vpop.f32.mrb[0].mxu0
      %v1558 = vadd.f32 %v1168, %v1557
      %v1559 = vpop.f32.mrb[0].mxu0
      %1560 = vmatprep.mubr.f32.mxu0 0.0
      %1561 = vmatmul.mubr.f32.gmra.mrb[0].mxu0 %v814
      %v1562 = vpop.f32.mrb[0].mxu0
      %v1563 = vadd.f32 %v1173, %v1562
      %v1564 = vpop.f32.mrb[0].mxu0
      %1565 = vmatprep.mubr.f32.mxu0 0.0
      %1566 = vmatmul.mubr.f32.gmra.mrb[0].mxu0 %v817
      %v1567 = vpop.f32.mrb[0].mxu0
      %v1568 = vadd.f32 %v1178, %v1567
      %v1569 = vpop.f32.mrb[0].mxu0
      %1570 = vmatprep.mubr.f32.mxu0 0.0
      %1571 = vmatmul.mubr.f32.gmra.mrb[0].mxu0 %v820
      %v1572 = vpop.f32.mrb[0].mxu0
      %v1573 = vadd.f32 %v1183, %v1572
      %v1574 = vpop.f32.mrb[0].mxu0
      %1575 = vmatprep.mubr.f32.mxu0 0.0
      %1576 = vmatmul.mubr.f32.gmra.mrb[0].mxu0 %v823
      %v1577 = vpop.f32.mrb[0].mxu0
      %v1578 = vadd.f32 %v1188, %v1577
      %v1579 = vpop.f32.mrb[0].mxu0
      %1580 = vmatprep.mubr.f32.mxu0 0.0
      %1581 = vmatmul.mubr.f32.gmra.mrb[0].mxu0 %v826
      %v1582 = vpop.f32.mrb[0].mxu0
      %v1583 = vadd.f32 %v1193, %v1582
      %v1584 = vpop.f32.mrb[0].mxu0
      %1585 = vmatprep.mubr.f32.mxu0 0.0
      %1586 = vmatmul.mubr.f32.gmra.mrb[0].mxu0 %v829
      %v1587 = vpop.f32.mrb[0].mxu0
      %v1588 = vadd.f32 %v1198, %v1587
      %v1589 = vpop.f32.mrb[0].mxu0
      %1590 = vmatprep.mubr.f32.mxu0 0.0
      %1591 = vmatmul.mubr.f32.gmra.mrb[0].mxu0 %v832
      %v1592 = vpop.f32.mrb[0].mxu0
      %v1593 = vadd.f32 %v1203, %v1592
      %v1594 = vpop.f32.mrb[0].mxu0
      %1595 = vmatprep.mubr.f32.mxu0 0.0
      %1596 = vmatmul.mubr.f32.gmra.mrb[0].mxu0 %v835
      %v1597 = vpop.f32.mrb[0].mxu0
      %v1598 = vadd.f32 %v1208, %v1597
      %v1599 = vpop.f32.mrb[0].mxu0
      %1600 = vmatprep.mubr.f32.mxu0 0.0
      %1601 = vmatmul.mubr.f32.gmra.mrb[0].mxu0 %v838
      %v1602 = vpop.f32.mrb[0].mxu0
      %v1603 = vadd.f32 %v1213, %v1602
      %v1604 = vpop.f32.mrb[0].mxu0
      %1605 = vmatprep.mubr.f32.mxu0 0.0
      %1606 = vmatmul.mubr.f32.gmra.mrb[0].mxu0 %v841
      %v1607 = vpop.f32.mrb[0].mxu0
      %v1608 = vadd.f32 %v1218, %v1607
      %v1609 = vpop.f32.mrb[0].mxu0
      %1610 = vmatprep.mubr.f32.mxu0 0.0
      %1611 = vmatmul.mubr.f32.gmra.mrb[0].mxu0 %v844
      %v1612 = vpop.f32.mrb[0].mxu0
      %v1613 = vadd.f32 %v1223, %v1612
      %v1614 = vpop.f32.mrb[0].mxu0
      %1615 = vmatprep.mubr.f32.mxu0 0.0
      %1616 = vmatmul.mubr.f32.gmra.mrb[0].mxu0 %v847
      %v1617 = vpop.f32.mrb[0].mxu0
      %v1618 = vadd.f32 %v1228, %v1617
      %v1619 = vpop.f32.mrb[0].mxu0
      %1620 = vmatprep.mubr.f32.mxu0 0.0
      %1621 = vmatmul.mubr.f32.gmra.mrb[0].mxu0 %v850
      %v1622 = vpop.f32.mrb[0].mxu0
      %v1623 = vadd.f32 %v1233, %v1622
      %v1624 = vpop.f32.mrb[0].mxu0
      %1625 = vmatprep.mubr.f32.mxu0 0.0
      %1626 = vmatmul.mubr.f32.gmra.mrb[0].mxu0 %v853
      %v1627 = vpop.f32.mrb[0].mxu0
      %v1628 = vadd.f32 %v1238, %v1627
      %v1629 = vpop.f32.mrb[0].mxu0
      %1630 = vmatprep.mubr.f32.mxu0 0.0
      %1631 = vmatmul.mubr.f32.gmra.mrb[0].mxu0 %v856
      %v1632 = vpop.f32.mrb[0].mxu0
      %v1633 = vadd.f32 %v1243, %v1632
      %v1634 = vpop.f32.mrb[0].mxu0
      %1635 = vmatprep.mubr.f32.mxu0 0.0
      %1636 = vmatmul.mubr.f32.gmra.mrb[0].mxu0 %v859
      %v1637 = vpop.f32.mrb[0].mxu0
      %v1638 = vadd.f32 %v1248, %v1637
      %v1639 = vpop.f32.mrb[0].mxu0
      %1640 = vdwg.mxu0
      %v1641 = vld [vmem:[%s2] sm:$0xff]
      %v1642 = vld [vmem:[%s2 + $0x8] sm:$0xff]
      %v1643 = vld [vmem:[%s2 + $0x10] sm:$0xff]
      %v1644 = vld [vmem:[%s2 + $0x18] sm:$0xff]
      %v1645 = vld [vmem:[%s2 + $0x20] sm:$0xff]
      %v1646 = vld [vmem:[%s2 + $0x28] sm:$0xff]
      %v1647 = vld [vmem:[%s2 + $0x30] sm:$0xff]
      %v1648 = vld [vmem:[%s2 + $0x38] sm:$0xff]
      %v1649 = vld [vmem:[%s2 + $0x40] sm:$0xff]
      %v1650 = vld [vmem:[%s2 + $0x48] sm:$0xff]
      %v1651 = vld [vmem:[%s2 + $0x50] sm:$0xff]
      %v1652 = vld [vmem:[%s2 + $0x58] sm:$0xff]
      %v1653 = vld [vmem:[%s2 + $0x60] sm:$0xff]
      %v1654 = vld [vmem:[%s2 + $0x68] sm:$0xff]
      %v1655 = vld [vmem:[%s2 + $0x70] sm:$0xff]
      %v1656 = vld [vmem:[%s2 + $0x78] sm:$0xff]
      %v1657 = vld [vmem:[%s2 + $0x80] sm:$0xff]
      %v1658 = vld [vmem:[%s2 + $0x88] sm:$0xff]
      %v1659 = vld [vmem:[%s2 + $0x90] sm:$0xff]
      %v1660 = vld [vmem:[%s2 + $0x98] sm:$0xff]
      %v1661 = vld [vmem:[%s2 + $0xa0] sm:$0xff]
      %v1662 = vld [vmem:[%s2 + $0xa8] sm:$0xff]
      %v1663 = vld [vmem:[%s2 + $0xb0] sm:$0xff]
      %v1664 = vld [vmem:[%s2 + $0xb8] sm:$0xff]
      %v1665 = vld [vmem:[%s2 + $0xc0] sm:$0xff]
      %v1666 = vld [vmem:[%s2 + $0xc8] sm:$0xff]
      %v1667 = vld [vmem:[%s2 + $0xd0] sm:$0xff]
      %v1668 = vld [vmem:[%s2 + $0xd8] sm:$0xff]
      %v1669 = vld [vmem:[%s2 + $0xe0] sm:$0xff]
      %v1670 = vld [vmem:[%s2 + $0xe8] sm:$0xff]
      %v1671 = vld [vmem:[%s2 + $0xf0] sm:$0xff]
      %v1672 = vld [vmem:[%s2 + $0xf8] sm:$0xff]
      %v1673 = vld [vmem:[%s2 + $0x100] sm:$0xff]
      %v1674 = vld [vmem:[%s2 + $0x108] sm:$0xff]
      %v1675 = vld [vmem:[%s2 + $0x110] sm:$0xff]
      %v1676 = vld [vmem:[%s2 + $0x118] sm:$0xff]
      %v1677 = vld [vmem:[%s2 + $0x120] sm:$0xff]
      %v1678 = vld [vmem:[%s2 + $0x128] sm:$0xff]
      %v1679 = vld [vmem:[%s2 + $0x130] sm:$0xff]
      %v1680 = vld [vmem:[%s2 + $0x138] sm:$0xff]
      %v1681 = vld [vmem:[%s2 + $0x140] sm:$0xff]
      %v1682 = vld [vmem:[%s2 + $0x148] sm:$0xff]
      %v1683 = vld [vmem:[%s2 + $0x150] sm:$0xff]
      %v1684 = vld [vmem:[%s2 + $0x158] sm:$0xff]
      %v1685 = vld [vmem:[%s2 + $0x160] sm:$0xff]
      %v1686 = vld [vmem:[%s2 + $0x168] sm:$0xff]
      %v1687 = vld [vmem:[%s2 + $0x170] sm:$0xff]
      %v1688 = vld [vmem:[%s2 + $0x178] sm:$0xff]
      %v1689 = vld [vmem:[%s2 + $0x180] sm:$0xff]
      %v1690 = vld [vmem:[%s2 + $0x188] sm:$0xff]
      %v1691 = vld [vmem:[%s2 + $0x190] sm:$0xff]
      %v1692 = vld [vmem:[%s2 + $0x198] sm:$0xff]
      %v1693 = vld [vmem:[%s2 + $0x1a0] sm:$0xff]
      %v1694 = vld [vmem:[%s2 + $0x1a8] sm:$0xff]
      %v1695 = vld [vmem:[%s2 + $0x1b0] sm:$0xff]
      %v1696 = vld [vmem:[%s2 + $0x1b8] sm:$0xff]
      %v1697 = vld [vmem:[%s2 + $0x1c0] sm:$0xff]
      %v1698 = vld [vmem:[%s2 + $0x1c8] sm:$0xff]
      %v1699 = vld [vmem:[%s2 + $0x1d0] sm:$0xff]
      %v1700 = vld [vmem:[%s2 + $0x1d8] sm:$0xff]
      %v1701 = vld [vmem:[%s2 + $0x1e0] sm:$0xff]
      %v1702 = vld [vmem:[%s2 + $0x1e8] sm:$0xff]
      %v1703 = vld [vmem:[%s2 + $0x1f0] sm:$0xff]
      %v1704 = vld [vmem:[%s2 + $0x1f8] sm:$0xff]
      %v1705 = vld [vmem:[%s2 + $0x200] sm:$0xff]
      %1707 = vset.pattern.permute.xlu0 0
      %1708 = vperm.xlu0 %1707, %v1641
      %v1709 = vpop.permute.xlu0 %1708
      %1712 = vset.pattern.permute.xlu0 0
      %1713 = vperm.xlu0 %1712, %v1642
      %v1714 = vpop.permute.xlu0 %1713
      %1717 = vset.pattern.permute.xlu0 0
      %1718 = vperm.xlu0 %1717, %v1643
      %v1719 = vpop.permute.xlu0 %1718
      %1722 = vset.pattern.permute.xlu0 0
      %1723 = vperm.xlu0 %1722, %v1644
      %v1724 = vpop.permute.xlu0 %1723
      %1727 = vset.pattern.permute.xlu0 0
      %1728 = vperm.xlu0 %1727, %v1645
      %v1729 = vpop.permute.xlu0 %1728
      %1732 = vset.pattern.permute.xlu0 0
      %1733 = vperm.xlu0 %1732, %v1646
      %v1734 = vpop.permute.xlu0 %1733
      %1737 = vset.pattern.permute.xlu0 0
      %1738 = vperm.xlu0 %1737, %v1647
      %v1739 = vpop.permute.xlu0 %1738
      %1742 = vset.pattern.permute.xlu0 0
      %1743 = vperm.xlu0 %1742, %v1648
      %v1744 = vpop.permute.xlu0 %1743
      %1747 = vset.pattern.permute.xlu0 0
      %1748 = vperm.xlu0 %1747, %v1649
      %v1749 = vpop.permute.xlu0 %1748
      %1752 = vset.pattern.permute.xlu0 0
      %1753 = vperm.xlu0 %1752, %v1650
      %v1754 = vpop.permute.xlu0 %1753
      %1757 = vset.pattern.permute.xlu0 0
      %1758 = vperm.xlu0 %1757, %v1651
      %v1759 = vpop.permute.xlu0 %1758
      %1762 = vset.pattern.permute.xlu0 0
      %1763 = vperm.xlu0 %1762, %v1652
      %v1764 = vpop.permute.xlu0 %1763
      %1767 = vset.pattern.permute.xlu0 0
      %1768 = vperm.xlu0 %1767, %v1653
      %v1769 = vpop.permute.xlu0 %1768
      %1772 = vset.pattern.permute.xlu0 0
      %1773 = vperm.xlu0 %1772, %v1654
      %v1774 = vpop.permute.xlu0 %1773
      %1777 = vset.pattern.permute.xlu0 0
      %1778 = vperm.xlu0 %1777, %v1655
      %v1779 = vpop.permute.xlu0 %1778
      %1782 = vset.pattern.permute.xlu0 0
      %1783 = vperm.xlu0 %1782, %v1656
      %v1784 = vpop.permute.xlu0 %1783
      %1787 = vset.pattern.permute.xlu0 0
      %1788 = vperm.xlu0 %1787, %v1657
      %v1789 = vpop.permute.xlu0 %1788
      %1792 = vset.pattern.permute.xlu0 0
      %1793 = vperm.xlu0 %1792, %v1658
      %v1794 = vpop.permute.xlu0 %1793
      %1797 = vset.pattern.permute.xlu0 0
      %1798 = vperm.xlu0 %1797, %v1659
      %v1799 = vpop.permute.xlu0 %1798
      %1802 = vset.pattern.permute.xlu0 0
      %1803 = vperm.xlu0 %1802, %v1660
      %v1804 = vpop.permute.xlu0 %1803
      %1807 = vset.pattern.permute.xlu0 0
      %1808 = vperm.xlu0 %1807, %v1661
      %v1809 = vpop.permute.xlu0 %1808
      %1812 = vset.pattern.permute.xlu0 0
      %1813 = vperm.xlu0 %1812, %v1662
      %v1814 = vpop.permute.xlu0 %1813
      %1817 = vset.pattern.permute.xlu0 0
      %1818 = vperm.xlu0 %1817, %v1663
      %v1819 = vpop.permute.xlu0 %1818
      %1822 = vset.pattern.permute.xlu0 0
      %1823 = vperm.xlu0 %1822, %v1664
      %v1824 = vpop.permute.xlu0 %1823
      %1827 = vset.pattern.permute.xlu0 0
      %1828 = vperm.xlu0 %1827, %v1665
      %v1829 = vpop.permute.xlu0 %1828
      %1832 = vset.pattern.permute.xlu0 0
      %1833 = vperm.xlu0 %1832, %v1666
      %v1834 = vpop.permute.xlu0 %1833
      %1837 = vset.pattern.permute.xlu0 0
      %1838 = vperm.xlu0 %1837, %v1667
      %v1839 = vpop.permute.xlu0 %1838
      %1842 = vset.pattern.permute.xlu0 0
      %1843 = vperm.xlu0 %1842, %v1668
      %v1844 = vpop.permute.xlu0 %1843
      %1847 = vset.pattern.permute.xlu0 0
      %1848 = vperm.xlu0 %1847, %v1669
      %v1849 = vpop.permute.xlu0 %1848
      %1852 = vset.pattern.permute.xlu0 0
      %1853 = vperm.xlu0 %1852, %v1670
      %v1854 = vpop.permute.xlu0 %1853
      %1857 = vset.pattern.permute.xlu0 0
      %1858 = vperm.xlu0 %1857, %v1671
      %v1859 = vpop.permute.xlu0 %1858
      %1862 = vset.pattern.permute.xlu0 0
      %1863 = vperm.xlu0 %1862, %v1672
      %v1864 = vpop.permute.xlu0 %1863
      %1867 = vset.pattern.permute.xlu0 0
      %1868 = vperm.xlu0 %1867, %v1673
      %v1869 = vpop.permute.xlu0 %1868
      %1872 = vset.pattern.permute.xlu0 0
      %1873 = vperm.xlu0 %1872, %v1674
      %v1874 = vpop.permute.xlu0 %1873
      %1877 = vset.pattern.permute.xlu0 0
      %1878 = vperm.xlu0 %1877, %v1675
      %v1879 = vpop.permute.xlu0 %1878
      %1882 = vset.pattern.permute.xlu0 0
      %1883 = vperm.xlu0 %1882, %v1676
      %v1884 = vpop.permute.xlu0 %1883
      %1887 = vset.pattern.permute.xlu0 0
      %1888 = vperm.xlu0 %1887, %v1677
      %v1889 = vpop.permute.xlu0 %1888
      %1892 = vset.pattern.permute.xlu0 0
      %1893 = vperm.xlu0 %1892, %v1678
      %v1894 = vpop.permute.xlu0 %1893
      %1897 = vset.pattern.permute.xlu0 0
      %1898 = vperm.xlu0 %1897, %v1679
      %v1899 = vpop.permute.xlu0 %1898
      %1902 = vset.pattern.permute.xlu0 0
      %1903 = vperm.xlu0 %1902, %v1680
      %v1904 = vpop.permute.xlu0 %1903
      %1907 = vset.pattern.permute.xlu0 0
      %1908 = vperm.xlu0 %1907, %v1681
      %v1909 = vpop.permute.xlu0 %1908
      %1912 = vset.pattern.permute.xlu0 0
      %1913 = vperm.xlu0 %1912, %v1682
      %v1914 = vpop.permute.xlu0 %1913
      %1917 = vset.pattern.permute.xlu0 0
      %1918 = vperm.xlu0 %1917, %v1683
      %v1919 = vpop.permute.xlu0 %1918
      %1922 = vset.pattern.permute.xlu0 0
      %1923 = vperm.xlu0 %1922, %v1684
      %v1924 = vpop.permute.xlu0 %1923
      %1927 = vset.pattern.permute.xlu0 0
      %1928 = vperm.xlu0 %1927, %v1685
      %v1929 = vpop.permute.xlu0 %1928
      %1932 = vset.pattern.permute.xlu0 0
      %1933 = vperm.xlu0 %1932, %v1686
      %v1934 = vpop.permute.xlu0 %1933
      %1937 = vset.pattern.permute.xlu0 0
      %1938 = vperm.xlu0 %1937, %v1687
      %v1939 = vpop.permute.xlu0 %1938
      %1942 = vset.pattern.permute.xlu0 0
      %1943 = vperm.xlu0 %1942, %v1688
      %v1944 = vpop.permute.xlu0 %1943
      %1947 = vset.pattern.permute.xlu0 0
      %1948 = vperm.xlu0 %1947, %v1689
      %v1949 = vpop.permute.xlu0 %1948
      %1952 = vset.pattern.permute.xlu0 0
      %1953 = vperm.xlu0 %1952, %v1690
      %v1954 = vpop.permute.xlu0 %1953
      %1957 = vset.pattern.permute.xlu0 0
      %1958 = vperm.xlu0 %1957, %v1691
      %v1959 = vpop.permute.xlu0 %1958
      %1962 = vset.pattern.permute.xlu0 0
      %1963 = vperm.xlu0 %1962, %v1692
      %v1964 = vpop.permute.xlu0 %1963
      %1967 = vset.pattern.permute.xlu0 0
      %1968 = vperm.xlu0 %1967, %v1693
      %v1969 = vpop.permute.xlu0 %1968
      %1972 = vset.pattern.permute.xlu0 0
      %1973 = vperm.xlu0 %1972, %v1694
      %v1974 = vpop.permute.xlu0 %1973
      %1977 = vset.pattern.permute.xlu0 0
      %1978 = vperm.xlu0 %1977, %v1695
      %v1979 = vpop.permute.xlu0 %1978
      %1982 = vset.pattern.permute.xlu0 0
      %1983 = vperm.xlu0 %1982, %v1696
      %v1984 = vpop.permute.xlu0 %1983
      %1987 = vset.pattern.permute.xlu0 0
      %1988 = vperm.xlu0 %1987, %v1697
      %v1989 = vpop.permute.xlu0 %1988
      %1992 = vset.pattern.permute.xlu0 0
      %1993 = vperm.xlu0 %1992, %v1698
      %v1994 = vpop.permute.xlu0 %1993
      %1997 = vset.pattern.permute.xlu0 0
      %1998 = vperm.xlu0 %1997, %v1699
      %v1999 = vpop.permute.xlu0 %1998
      %2002 = vset.pattern.permute.xlu0 0
      %2003 = vperm.xlu0 %2002, %v1700
      %v2004 = vpop.permute.xlu0 %2003
      %2007 = vset.pattern.permute.xlu0 0
      %2008 = vperm.xlu0 %2007, %v1701
      %v2009 = vpop.permute.xlu0 %2008
      %2012 = vset.pattern.permute.xlu0 0
      %2013 = vperm.xlu0 %2012, %v1702
      %v2014 = vpop.permute.xlu0 %2013
      %2017 = vset.pattern.permute.xlu0 0
      %2018 = vperm.xlu0 %2017, %v1703
      %v2019 = vpop.permute.xlu0 %2018
      %2022 = vset.pattern.permute.xlu0 0
      %2023 = vperm.xlu0 %2022, %v1704
      %v2024 = vpop.permute.xlu0 %2023
      %2027 = vset.pattern.permute.xlu0 0
      %2028 = vperm.xlu0 %2027, %v1705
      %v2029 = vpop.permute.xlu0 %2028
      %v2031 = vmul.f32 %v1318, %v1709
      %v2032 = vmul.f32 %v1323, %v1714
      %v2033 = vmul.f32 %v1328, %v1719
      %v2034 = vmul.f32 %v1333, %v1724
      %v2035 = vmul.f32 %v1338, %v1729
      %v2036 = vmul.f32 %v1343, %v1734
      %v2037 = vmul.f32 %v1348, %v1739
      %v2038 = vmul.f32 %v1353, %v1744
      %v2039 = vmul.f32 %v1358, %v1749
      %v2040 = vmul.f32 %v1363, %v1754
      %v2041 = vmul.f32 %v1368, %v1759
      %v2042 = vmul.f32 %v1373, %v1764
      %v2043 = vmul.f32 %v1378, %v1769
      %v2044 = vmul.f32 %v1383, %v1774
      %v2045 = vmul.f32 %v1388, %v1779
      %v2046 = vmul.f32 %v1393, %v1784
      %v2047 = vmul.f32 %v1398, %v1789
      %v2048 = vmul.f32 %v1403, %v1794
      %v2049 = vmul.f32 %v1408, %v1799
      %v2050 = vmul.f32 %v1413, %v1804
      %v2051 = vmul.f32 %v1418, %v1809
      %v2052 = vmul.f32 %v1423, %v1814
      %v2053 = vmul.f32 %v1428, %v1819
      %v2054 = vmul.f32 %v1433, %v1824
      %v2055 = vmul.f32 %v1438, %v1829
      %v2056 = vmul.f32 %v1443, %v1834
      %v2057 = vmul.f32 %v1448, %v1839
      %v2058 = vmul.f32 %v1453, %v1844
      %v2059 = vmul.f32 %v1458, %v1849
      %v2060 = vmul.f32 %v1463, %v1854
      %v2061 = vmul.f32 %v1468, %v1859
      %v2062 = vmul.f32 %v1473, %v1864
      %v2063 = vmul.f32 %v1478, %v1869
      %v2064 = vmul.f32 %v1483, %v1874
      %v2065 = vmul.f32 %v1488, %v1879
      %v2066 = vmul.f32 %v1493, %v1884
      %v2067 = vmul.f32 %v1498, %v1889
      %v2068 = vmul.f32 %v1503, %v1894
      %v2069 = vmul.f32 %v1508, %v1899
      %v2070 = vmul.f32 %v1513, %v1904
      %v2071 = vmul.f32 %v1518, %v1909
      %v2072 = vmul.f32 %v1523, %v1914
      %v2073 = vmul.f32 %v1528, %v1919
      %v2074 = vmul.f32 %v1533, %v1924
      %v2075 = vmul.f32 %v1538, %v1929
      %v2076 = vmul.f32 %v1543, %v1934
      %v2077 = vmul.f32 %v1548, %v1939
      %v2078 = vmul.f32 %v1553, %v1944
      %v2079 = vmul.f32 %v1558, %v1949
      %v2080 = vmul.f32 %v1563, %v1954
      %v2081 = vmul.f32 %v1568, %v1959
      %v2082 = vmul.f32 %v1573, %v1964
      %v2083 = vmul.f32 %v1578, %v1969
      %v2084 = vmul.f32 %v1583, %v1974
      %v2085 = vmul.f32 %v1588, %v1979
      %v2086 = vmul.f32 %v1593, %v1984
      %v2087 = vmul.f32 %v1598, %v1989
      %v2088 = vmul.f32 %v1603, %v1994
      %v2089 = vmul.f32 %v1608, %v1999
      %v2090 = vmul.f32 %v1613, %v2004
      %v2091 = vmul.f32 %v1618, %v2009
      %v2092 = vmul.f32 %v1623, %v2014
      %v2093 = vmul.f32 %v1628, %v2019
      %v2094 = vmul.f32 %v1633, %v2024
      %v2095 = vmul.f32 %v1638, %v2029
      %v2096 = vld [vmem:[%s3] sm:$0xff]
      %v2097 = vld [vmem:[%s3 + $0x8] sm:$0xff]
      %v2098 = vld [vmem:[%s3 + $0x10] sm:$0xff]
      %v2099 = vld [vmem:[%s3 + $0x18] sm:$0xff]
      %v2100 = vld [vmem:[%s3 + $0x20] sm:$0xff]
      %v2101 = vld [vmem:[%s3 + $0x28] sm:$0xff]
      %v2102 = vld [vmem:[%s3 + $0x30] sm:$0xff]
      %v2103 = vld [vmem:[%s3 + $0x38] sm:$0xff]
      %v2104 = vld [vmem:[%s3 + $0x40] sm:$0xff]
      %v2105 = vld [vmem:[%s3 + $0x48] sm:$0xff]
      %v2106 = vld [vmem:[%s3 + $0x50] sm:$0xff]
      %v2107 = vld [vmem:[%s3 + $0x58] sm:$0xff]
      %v2108 = vld [vmem:[%s3 + $0x60] sm:$0xff]
      %v2109 = vld [vmem:[%s3 + $0x68] sm:$0xff]
      %v2110 = vld [vmem:[%s3 + $0x70] sm:$0xff]
      %v2111 = vld [vmem:[%s3 + $0x78] sm:$0xff]
      %v2112 = vld [vmem:[%s3 + $0x80] sm:$0xff]
      %v2113 = vld [vmem:[%s3 + $0x88] sm:$0xff]
      %v2114 = vld [vmem:[%s3 + $0x90] sm:$0xff]
      %v2115 = vld [vmem:[%s3 + $0x98] sm:$0xff]
      %v2116 = vld [vmem:[%s3 + $0xa0] sm:$0xff]
      %v2117 = vld [vmem:[%s3 + $0xa8] sm:$0xff]
      %v2118 = vld [vmem:[%s3 + $0xb0] sm:$0xff]
      %v2119 = vld [vmem:[%s3 + $0xb8] sm:$0xff]
      %v2120 = vld [vmem:[%s3 + $0xc0] sm:$0xff]
      %v2121 = vld [vmem:[%s3 + $0xc8] sm:$0xff]
      %v2122 = vld [vmem:[%s3 + $0xd0] sm:$0xff]
      %v2123 = vld [vmem:[%s3 + $0xd8] sm:$0xff]
      %v2124 = vld [vmem:[%s3 + $0xe0] sm:$0xff]
      %v2125 = vld [vmem:[%s3 + $0xe8] sm:$0xff]
      %v2126 = vld [vmem:[%s3 + $0xf0] sm:$0xff]
      %v2127 = vld [vmem:[%s3 + $0xf8] sm:$0xff]
      %v2128 = vld [vmem:[%s3 + $0x100] sm:$0xff]
      %v2129 = vld [vmem:[%s3 + $0x108] sm:$0xff]
      %v2130 = vld [vmem:[%s3 + $0x110] sm:$0xff]
      %v2131 = vld [vmem:[%s3 + $0x118] sm:$0xff]
      %v2132 = vld [vmem:[%s3 + $0x120] sm:$0xff]
      %v2133 = vld [vmem:[%s3 + $0x128] sm:$0xff]
      %v2134 = vld [vmem:[%s3 + $0x130] sm:$0xff]
      %v2135 = vld [vmem:[%s3 + $0x138] sm:$0xff]
      %v2136 = vld [vmem:[%s3 + $0x140] sm:$0xff]
      %v2137 = vld [vmem:[%s3 + $0x148] sm:$0xff]
      %v2138 = vld [vmem:[%s3 + $0x150] sm:$0xff]
      %v2139 = vld [vmem:[%s3 + $0x158] sm:$0xff]
      %v2140 = vld [vmem:[%s3 + $0x160] sm:$0xff]
      %v2141 = vld [vmem:[%s3 + $0x168] sm:$0xff]
      %v2142 = vld [vmem:[%s3 + $0x170] sm:$0xff]
      %v2143 = vld [vmem:[%s3 + $0x178] sm:$0xff]
      %v2144 = vld [vmem:[%s3 + $0x180] sm:$0xff]
      %v2145 = vld [vmem:[%s3 + $0x188] sm:$0xff]
      %v2146 = vld [vmem:[%s3 + $0x190] sm:$0xff]
      %v2147 = vld [vmem:[%s3 + $0x198] sm:$0xff]
      %v2148 = vld [vmem:[%s3 + $0x1a0] sm:$0xff]
      %v2149 = vld [vmem:[%s3 + $0x1a8] sm:$0xff]
      %v2150 = vld [vmem:[%s3 + $0x1b0] sm:$0xff]
      %v2151 = vld [vmem:[%s3 + $0x1b8] sm:$0xff]
      %v2152 = vld [vmem:[%s3 + $0x1c0] sm:$0xff]
      %v2153 = vld [vmem:[%s3 + $0x1c8] sm:$0xff]
      %v2154 = vld [vmem:[%s3 + $0x1d0] sm:$0xff]
      %v2155 = vld [vmem:[%s3 + $0x1d8] sm:$0xff]
      %v2156 = vld [vmem:[%s3 + $0x1e0] sm:$0xff]
      %v2157 = vld [vmem:[%s3 + $0x1e8] sm:$0xff]
      %v2158 = vld [vmem:[%s3 + $0x1f0] sm:$0xff]
      %v2159 = vld [vmem:[%s3 + $0x1f8] sm:$0xff]
      %v2160 = vld [vmem:[%s3 + $0x200] sm:$0xff]
      %2162 = vset.pattern.permute.xlu0 0
      %2163 = vperm.xlu0 %2162, %v2096
      %v2164 = vpop.permute.xlu0 %2163
      %2167 = vset.pattern.permute.xlu0 0
      %2168 = vperm.xlu0 %2167, %v2097
      %v2169 = vpop.permute.xlu0 %2168
      %2172 = vset.pattern.permute.xlu0 0
      %2173 = vperm.xlu0 %2172, %v2098
      %v2174 = vpop.permute.xlu0 %2173
      %2177 = vset.pattern.permute.xlu0 0
      %2178 = vperm.xlu0 %2177, %v2099
      %v2179 = vpop.permute.xlu0 %2178
      %2182 = vset.pattern.permute.xlu0 0
      %2183 = vperm.xlu0 %2182, %v2100
      %v2184 = vpop.permute.xlu0 %2183
      %2187 = vset.pattern.permute.xlu0 0
      %2188 = vperm.xlu0 %2187, %v2101
      %v2189 = vpop.permute.xlu0 %2188
      %2192 = vset.pattern.permute.xlu0 0
      %2193 = vperm.xlu0 %2192, %v2102
      %v2194 = vpop.permute.xlu0 %2193
      %2197 = vset.pattern.permute.xlu0 0
      %2198 = vperm.xlu0 %2197, %v2103
      %v2199 = vpop.permute.xlu0 %2198
      %2202 = vset.pattern.permute.xlu0 0
      %2203 = vperm.xlu0 %2202, %v2104
      %v2204 = vpop.permute.xlu0 %2203
      %2207 = vset.pattern.permute.xlu0 0
      %2208 = vperm.xlu0 %2207, %v2105
      %v2209 = vpop.permute.xlu0 %2208
      %2212 = vset.pattern.permute.xlu0 0
      %2213 = vperm.xlu0 %2212, %v2106
      %v2214 = vpop.permute.xlu0 %2213
      %2217 = vset.pattern.permute.xlu0 0
      %2218 = vperm.xlu0 %2217, %v2107
      %v2219 = vpop.permute.xlu0 %2218
      %2222 = vset.pattern.permute.xlu0 0
      %2223 = vperm.xlu0 %2222, %v2108
      %v2224 = vpop.permute.xlu0 %2223
      %2227 = vset.pattern.permute.xlu0 0
      %2228 = vperm.xlu0 %2227, %v2109
      %v2229 = vpop.permute.xlu0 %2228
      %2232 = vset.pattern.permute.xlu0 0
      %2233 = vperm.xlu0 %2232, %v2110
      %v2234 = vpop.permute.xlu0 %2233
      %2237 = vset.pattern.permute.xlu0 0
      %2238 = vperm.xlu0 %2237, %v2111
      %v2239 = vpop.permute.xlu0 %2238
      %2242 = vset.pattern.permute.xlu0 0
      %2243 = vperm.xlu0 %2242, %v2112
      %v2244 = vpop.permute.xlu0 %2243
      %2247 = vset.pattern.permute.xlu0 0
      %2248 = vperm.xlu0 %2247, %v2113
      %v2249 = vpop.permute.xlu0 %2248
      %2252 = vset.pattern.permute.xlu0 0
      %2253 = vperm.xlu0 %2252, %v2114
      %v2254 = vpop.permute.xlu0 %2253
      %2257 = vset.pattern.permute.xlu0 0
      %2258 = vperm.xlu0 %2257, %v2115
      %v2259 = vpop.permute.xlu0 %2258
      %2262 = vset.pattern.permute.xlu0 0
      %2263 = vperm.xlu0 %2262, %v2116
      %v2264 = vpop.permute.xlu0 %2263
      %2267 = vset.pattern.permute.xlu0 0
      %2268 = vperm.xlu0 %2267, %v2117
      %v2269 = vpop.permute.xlu0 %2268
      %2272 = vset.pattern.permute.xlu0 0
      %2273 = vperm.xlu0 %2272, %v2118
      %v2274 = vpop.permute.xlu0 %2273
      %2277 = vset.pattern.permute.xlu0 0
      %2278 = vperm.xlu0 %2277, %v2119
      %v2279 = vpop.permute.xlu0 %2278
      %2282 = vset.pattern.permute.xlu0 0
      %2283 = vperm.xlu0 %2282, %v2120
      %v2284 = vpop.permute.xlu0 %2283
      %2287 = vset.pattern.permute.xlu0 0
      %2288 = vperm.xlu0 %2287, %v2121
      %v2289 = vpop.permute.xlu0 %2288
      %2292 = vset.pattern.permute.xlu0 0
      %2293 = vperm.xlu0 %2292, %v2122
      %v2294 = vpop.permute.xlu0 %2293
      %2297 = vset.pattern.permute.xlu0 0
      %2298 = vperm.xlu0 %2297, %v2123
      %v2299 = vpop.permute.xlu0 %2298
      %2302 = vset.pattern.permute.xlu0 0
      %2303 = vperm.xlu0 %2302, %v2124
      %v2304 = vpop.permute.xlu0 %2303
      %2307 = vset.pattern.permute.xlu0 0
      %2308 = vperm.xlu0 %2307, %v2125
      %v2309 = vpop.permute.xlu0 %2308
      %2312 = vset.pattern.permute.xlu0 0
      %2313 = vperm.xlu0 %2312, %v2126
      %v2314 = vpop.permute.xlu0 %2313
      %2317 = vset.pattern.permute.xlu0 0
      %2318 = vperm.xlu0 %2317, %v2127
      %v2319 = vpop.permute.xlu0 %2318
      %2322 = vset.pattern.permute.xlu0 0
      %2323 = vperm.xlu0 %2322, %v2128
      %v2324 = vpop.permute.xlu0 %2323
      %2327 = vset.pattern.permute.xlu0 0
      %2328 = vperm.xlu0 %2327, %v2129
      %v2329 = vpop.permute.xlu0 %2328
      %2332 = vset.pattern.permute.xlu0 0
      %2333 = vperm.xlu0 %2332, %v2130
      %v2334 = vpop.permute.xlu0 %2333
      %2337 = vset.pattern.permute.xlu0 0
      %2338 = vperm.xlu0 %2337, %v2131
      %v2339 = vpop.permute.xlu0 %2338
      %2342 = vset.pattern.permute.xlu0 0
      %2343 = vperm.xlu0 %2342, %v2132
      %v2344 = vpop.permute.xlu0 %2343
      %2347 = vset.pattern.permute.xlu0 0
      %2348 = vperm.xlu0 %2347, %v2133
      %v2349 = vpop.permute.xlu0 %2348
      %2352 = vset.pattern.permute.xlu0 0
      %2353 = vperm.xlu0 %2352, %v2134
      %v2354 = vpop.permute.xlu0 %2353
      %2357 = vset.pattern.permute.xlu0 0
      %2358 = vperm.xlu0 %2357, %v2135
      %v2359 = vpop.permute.xlu0 %2358
      %2362 = vset.pattern.permute.xlu0 0
      %2363 = vperm.xlu0 %2362, %v2136
      %v2364 = vpop.permute.xlu0 %2363
      %2367 = vset.pattern.permute.xlu0 0
      %2368 = vperm.xlu0 %2367, %v2137
      %v2369 = vpop.permute.xlu0 %2368
      %2372 = vset.pattern.permute.xlu0 0
      %2373 = vperm.xlu0 %2372, %v2138
      %v2374 = vpop.permute.xlu0 %2373
      %2377 = vset.pattern.permute.xlu0 0
      %2378 = vperm.xlu0 %2377, %v2139
      %v2379 = vpop.permute.xlu0 %2378
      %2382 = vset.pattern.permute.xlu0 0
      %2383 = vperm.xlu0 %2382, %v2140
      %v2384 = vpop.permute.xlu0 %2383
      %2387 = vset.pattern.permute.xlu0 0
      %2388 = vperm.xlu0 %2387, %v2141
      %v2389 = vpop.permute.xlu0 %2388
      %2392 = vset.pattern.permute.xlu0 0
      %2393 = vperm.xlu0 %2392, %v2142
      %v2394 = vpop.permute.xlu0 %2393
      %2397 = vset.pattern.permute.xlu0 0
      %2398 = vperm.xlu0 %2397, %v2143
      %v2399 = vpop.permute.xlu0 %2398
      %2402 = vset.pattern.permute.xlu0 0
      %2403 = vperm.xlu0 %2402, %v2144
      %v2404 = vpop.permute.xlu0 %2403
      %2407 = vset.pattern.permute.xlu0 0
      %2408 = vperm.xlu0 %2407, %v2145
      %v2409 = vpop.permute.xlu0 %2408
      %2412 = vset.pattern.permute.xlu0 0
      %2413 = vperm.xlu0 %2412, %v2146
      %v2414 = vpop.permute.xlu0 %2413
      %2417 = vset.pattern.permute.xlu0 0
      %2418 = vperm.xlu0 %2417, %v2147
      %v2419 = vpop.permute.xlu0 %2418
      %2422 = vset.pattern.permute.xlu0 0
      %2423 = vperm.xlu0 %2422, %v2148
      %v2424 = vpop.permute.xlu0 %2423
      %2427 = vset.pattern.permute.xlu0 0
      %2428 = vperm.xlu0 %2427, %v2149
      %v2429 = vpop.permute.xlu0 %2428
      %2432 = vset.pattern.permute.xlu0 0
      %2433 = vperm.xlu0 %2432, %v2150
      %v2434 = vpop.permute.xlu0 %2433
      %2437 = vset.pattern.permute.xlu0 0
      %2438 = vperm.xlu0 %2437, %v2151
      %v2439 = vpop.permute.xlu0 %2438
      %2442 = vset.pattern.permute.xlu0 0
      %2443 = vperm.xlu0 %2442, %v2152
      %v2444 = vpop.permute.xlu0 %2443
      %2447 = vset.pattern.permute.xlu0 0
      %2448 = vperm.xlu0 %2447, %v2153
      %v2449 = vpop.permute.xlu0 %2448
      %2452 = vset.pattern.permute.xlu0 0
      %2453 = vperm.xlu0 %2452, %v2154
      %v2454 = vpop.permute.xlu0 %2453
      %2457 = vset.pattern.permute.xlu0 0
      %2458 = vperm.xlu0 %2457, %v2155
      %v2459 = vpop.permute.xlu0 %2458
      %2462 = vset.pattern.permute.xlu0 0
      %2463 = vperm.xlu0 %2462, %v2156
      %v2464 = vpop.permute.xlu0 %2463
      %2467 = vset.pattern.permute.xlu0 0
      %2468 = vperm.xlu0 %2467, %v2157
      %v2469 = vpop.permute.xlu0 %2468
      %2472 = vset.pattern.permute.xlu0 0
      %2473 = vperm.xlu0 %2472, %v2158
      %v2474 = vpop.permute.xlu0 %2473
      %2477 = vset.pattern.permute.xlu0 0
      %2478 = vperm.xlu0 %2477, %v2159
      %v2479 = vpop.permute.xlu0 %2478
      %2482 = vset.pattern.permute.xlu0 0
      %2483 = vperm.xlu0 %2482, %v2160
      %v2484 = vpop.permute.xlu0 %2483
      %v2486 = vadd.f32 %v2031, %v2164
      %v2487 = vadd.f32 %v2032, %v2169
      %v2488 = vadd.f32 %v2033, %v2174
      %v2489 = vadd.f32 %v2034, %v2179
      %v2490 = vadd.f32 %v2035, %v2184
      %v2491 = vadd.f32 %v2036, %v2189
      %v2492 = vadd.f32 %v2037, %v2194
      %v2493 = vadd.f32 %v2038, %v2199
      %v2494 = vadd.f32 %v2039, %v2204
      %v2495 = vadd.f32 %v2040, %v2209
      %v2496 = vadd.f32 %v2041, %v2214
      %v2497 = vadd.f32 %v2042, %v2219
      %v2498 = vadd.f32 %v2043, %v2224
      %v2499 = vadd.f32 %v2044, %v2229
      %v2500 = vadd.f32 %v2045, %v2234
      %v2501 = vadd.f32 %v2046, %v2239
      %v2502 = vadd.f32 %v2047, %v2244
      %v2503 = vadd.f32 %v2048, %v2249
      %v2504 = vadd.f32 %v2049, %v2254
      %v2505 = vadd.f32 %v2050, %v2259
      %v2506 = vadd.f32 %v2051, %v2264
      %v2507 = vadd.f32 %v2052, %v2269
      %v2508 = vadd.f32 %v2053, %v2274
      %v2509 = vadd.f32 %v2054, %v2279
      %v2510 = vadd.f32 %v2055, %v2284
      %v2511 = vadd.f32 %v2056, %v2289
      %v2512 = vadd.f32 %v2057, %v2294
      %v2513 = vadd.f32 %v2058, %v2299
      %v2514 = vadd.f32 %v2059, %v2304
      %v2515 = vadd.f32 %v2060, %v2309
      %v2516 = vadd.f32 %v2061, %v2314
      %v2517 = vadd.f32 %v2062, %v2319
      %v2518 = vadd.f32 %v2063, %v2324
      %v2519 = vadd.f32 %v2064, %v2329
      %v2520 = vadd.f32 %v2065, %v2334
      %v2521 = vadd.f32 %v2066, %v2339
      %v2522 = vadd.f32 %v2067, %v2344
      %v2523 = vadd.f32 %v2068, %v2349
      %v2524 = vadd.f32 %v2069, %v2354
      %v2525 = vadd.f32 %v2070, %v2359
      %v2526 = vadd.f32 %v2071, %v2364
      %v2527 = vadd.f32 %v2072, %v2369
      %v2528 = vadd.f32 %v2073, %v2374
      %v2529 = vadd.f32 %v2074, %v2379
      %v2530 = vadd.f32 %v2075, %v2384
      %v2531 = vadd.f32 %v2076, %v2389
      %v2532 = vadd.f32 %v2077, %v2394
      %v2533 = vadd.f32 %v2078, %v2399
      %v2534 = vadd.f32 %v2079, %v2404
      %v2535 = vadd.f32 %v2080, %v2409
      %v2536 = vadd.f32 %v2081, %v2414
      %v2537 = vadd.f32 %v2082, %v2419
      %v2538 = vadd.f32 %v2083, %v2424
      %v2539 = vadd.f32 %v2084, %v2429
      %v2540 = vadd.f32 %v2085, %v2434
      %v2541 = vadd.f32 %v2086, %v2439
      %v2542 = vadd.f32 %v2087, %v2444
      %v2543 = vadd.f32 %v2088, %v2449
      %v2544 = vadd.f32 %v2089, %v2454
      %v2545 = vadd.f32 %v2090, %v2459
      %v2546 = vadd.f32 %v2091, %v2464
      %v2547 = vadd.f32 %v2092, %v2469
      %v2548 = vadd.f32 %v2093, %v2474
      %v2549 = vadd.f32 %v2094, %v2479
      %v2550 = vadd.f32 %v2095, %v2484
      %v2551 = vmul.f32 %v2486, %v2486
      %v2552 = vmul.f32 %v2487, %v2487
      %v2553 = vmul.f32 %v2488, %v2488
      %v2554 = vmul.f32 %v2489, %v2489
      %v2555 = vmul.f32 %v2490, %v2490
      %v2556 = vmul.f32 %v2491, %v2491
      %v2557 = vmul.f32 %v2492, %v2492
      %v2558 = vmul.f32 %v2493, %v2493
      %v2559 = vmul.f32 %v2494, %v2494
      %v2560 = vmul.f32 %v2495, %v2495
      %v2561 = vmul.f32 %v2496, %v2496
      %v2562 = vmul.f32 %v2497, %v2497
      %v2563 = vmul.f32 %v2498, %v2498
      %v2564 = vmul.f32 %v2499, %v2499
      %v2565 = vmul.f32 %v2500, %v2500
      %v2566 = vmul.f32 %v2501, %v2501
      %v2567 = vmul.f32 %v2502, %v2502
      %v2568 = vmul.f32 %v2503, %v2503
      %v2569 = vmul.f32 %v2504, %v2504
      %v2570 = vmul.f32 %v2505, %v2505
      %v2571 = vmul.f32 %v2506, %v2506
      %v2572 = vmul.f32 %v2507, %v2507
      %v2573 = vmul.f32 %v2508, %v2508
      %v2574 = vmul.f32 %v2509, %v2509
      %v2575 = vmul.f32 %v2510, %v2510
      %v2576 = vmul.f32 %v2511, %v2511
      %v2577 = vmul.f32 %v2512, %v2512
      %v2578 = vmul.f32 %v2513, %v2513
      %v2579 = vmul.f32 %v2514, %v2514
      %v2580 = vmul.f32 %v2515, %v2515
      %v2581 = vmul.f32 %v2516, %v2516
      %v2582 = vmul.f32 %v2517, %v2517
      %v2583 = vmul.f32 %v2518, %v2518
      %v2584 = vmul.f32 %v2519, %v2519
      %v2585 = vmul.f32 %v2520, %v2520
      %v2586 = vmul.f32 %v2521, %v2521
      %v2587 = vmul.f32 %v2522, %v2522
      %v2588 = vmul.f32 %v2523, %v2523
      %v2589 = vmul.f32 %v2524, %v2524
      %v2590 = vmul.f32 %v2525, %v2525
      %v2591 = vmul.f32 %v2526, %v2526
      %v2592 = vmul.f32 %v2527, %v2527
      %v2593 = vmul.f32 %v2528, %v2528
      %v2594 = vmul.f32 %v2529, %v2529
      %v2595 = vmul.f32 %v2530, %v2530
      %v2596 = vmul.f32 %v2531, %v2531
      %v2597 = vmul.f32 %v2532, %v2532
      %v2598 = vmul.f32 %v2533, %v2533
      %v2599 = vmul.f32 %v2534, %v2534
      %v2600 = vmul.f32 %v2535, %v2535
      %v2601 = vmul.f32 %v2536, %v2536
      %v2602 = vmul.f32 %v2537, %v2537
      %v2603 = vmul.f32 %v2538, %v2538
      %v2604 = vmul.f32 %v2539, %v2539
      %v2605 = vmul.f32 %v2540, %v2540
      %v2606 = vmul.f32 %v2541, %v2541
      %v2607 = vmul.f32 %v2542, %v2542
      %v2608 = vmul.f32 %v2543, %v2543
      %v2609 = vmul.f32 %v2544, %v2544
      %v2610 = vmul.f32 %v2545, %v2545
      %v2611 = vmul.f32 %v2546, %v2546
      %v2612 = vmul.f32 %v2547, %v2547
      %v2613 = vmul.f32 %v2548, %v2548
      %v2614 = vmul.f32 %v2549, %v2549
      %v2615 = vmul.f32 %v2550, %v2550
      %v2616 = vld [vmem:[%s4] sm:$0xff]
      %v2617 = vld [vmem:[%s4 + $0x8] sm:$0xff]
      %v2618 = vld [vmem:[%s4 + $0x10] sm:$0xff]
      %v2619 = vld [vmem:[%s4 + $0x18] sm:$0xff]
      %v2620 = vld [vmem:[%s4 + $0x20] sm:$0xff]
      %v2621 = vld [vmem:[%s4 + $0x28] sm:$0x3]
      %v2623 = vsel %vm280, %v2551, 0
      %v2626 = vsel %vm280, %v2552, 0
      %v2629 = vsel %vm280, %v2553, 0
      %v2632 = vsel %vm280, %v2554, 0
      %v2635 = vsel %vm280, %v2555, 0
      %v2638 = vsel %vm280, %v2556, 0
      %v2641 = vsel %vm280, %v2557, 0
      %v2644 = vsel %vm280, %v2558, 0
      %v2647 = vsel %vm280, %v2559, 0
      %v2650 = vsel %vm280, %v2560, 0
      %v2653 = vsel %vm280, %v2561, 0
      %v2656 = vsel %vm280, %v2562, 0
      %v2659 = vsel %vm280, %v2563, 0
      %v2662 = vsel %vm280, %v2564, 0
      %v2665 = vsel %vm280, %v2565, 0
      %v2668 = vsel %vm280, %v2566, 0
      %v2671 = vsel %vm280, %v2567, 0
      %v2674 = vsel %vm280, %v2568, 0
      %v2677 = vsel %vm280, %v2569, 0
      %v2680 = vsel %vm280, %v2570, 0
      %v2683 = vsel %vm280, %v2571, 0
      %v2686 = vsel %vm280, %v2572, 0
      %v2689 = vsel %vm280, %v2573, 0
      %v2692 = vsel %vm280, %v2574, 0
      %v2695 = vsel %vm280, %v2575, 0
      %v2698 = vsel %vm280, %v2576, 0
      %v2701 = vsel %vm280, %v2577, 0
      %v2704 = vsel %vm280, %v2578, 0
      %v2707 = vsel %vm280, %v2579, 0
      %v2710 = vsel %vm280, %v2580, 0
      %v2713 = vsel %vm280, %v2581, 0
      %v2716 = vsel %vm280, %v2582, 0
      %v2719 = vsel %vm280, %v2583, 0
      %v2722 = vsel %vm280, %v2584, 0
      %v2725 = vsel %vm280, %v2585, 0
      %v2728 = vsel %vm280, %v2586, 0
      %v2731 = vsel %vm280, %v2587, 0
      %v2734 = vsel %vm280, %v2588, 0
      %v2737 = vsel %vm280, %v2589, 0
      %v2740 = vsel %vm280, %v2590, 0
      %v2743 = vsel %vm280, %v2591, 0
      %v2746 = vsel %vm280, %v2592, 0
      %v2749 = vsel %vm280, %v2593, 0
      %v2752 = vsel %vm280, %v2594, 0
      %v2755 = vsel %vm280, %v2595, 0
      %v2758 = vsel %vm280, %v2596, 0
      %v2761 = vsel %vm280, %v2597, 0
      %v2764 = vsel %vm280, %v2598, 0
      %v2767 = vsel %vm280, %v2599, 0
      %v2770 = vsel %vm280, %v2600, 0
      %v2773 = vsel %vm280, %v2601, 0
      %v2776 = vsel %vm280, %v2602, 0
      %v2779 = vsel %vm280, %v2603, 0
      %v2782 = vsel %vm280, %v2604, 0
      %v2785 = vsel %vm280, %v2605, 0
      %v2788 = vsel %vm280, %v2606, 0
      %v2791 = vsel %vm280, %v2607, 0
      %v2794 = vsel %vm280, %v2608, 0
      %v2797 = vsel %vm280, %v2609, 0
      %v2800 = vsel %vm280, %v2610, 0
      %v2803 = vsel %vm280, %v2611, 0
      %v2806 = vsel %vm280, %v2612, 0
      %v2809 = vsel %vm280, %v2613, 0
      %v2812 = vsel %vm280, %v2614, 0
      %v2815 = vsel %vm280, %v2615, 0
      %vm2817 = vcmask 1041408
      %v2819 = vsel %vm2817, %v2621, 0
      %2821 = vmatprep.subr.mxu0 0.0
      %2822 = vmatpush1.msra.mxu0 %v2616
      %2823 = vmatprep.subr.mxu0 0.0
      %2824 = vmatpush1.msra.mxu0 %v2617
      %2825 = vmatprep.subr.mxu0 0.0
      %2826 = vmatpush1.msra.mxu0 %v2618
      %2827 = vmatprep.subr.mxu0 0.0
      %2828 = vmatpush1.msra.mxu0 %v2619
      %2829 = vmatprep.subr.mxu0 0.0
      %2830 = vmatpush1.msra.mxu0 %v2620
      %2831 = vmatprep.subr.mxu0 0.0
      %2832 = vmatpush1.msra.mxu0 %v2819
      %2833 = vmatprep.subr.mxu0 0.0
      %2834 = vmatpush1.msra.mxu0 0.0
      %2835 = vmatprep.subr.mxu0 0.0
      %2836 = vmatpush1.msra.mxu0 0.0
      %2837 = vmatprep.subr.mxu0 0.0
      %2838 = vmatpush1.msra.mxu0 0.0
      %2839 = vmatprep.subr.mxu0 0.0
      %2840 = vmatpush1.msra.mxu0 0.0
      %2841 = vmatprep.subr.mxu0 0.0
      %2842 = vmatpush1.msra.mxu0 0.0
      %2843 = vmatprep.subr.mxu0 0.0
      %2844 = vmatpush1.msra.mxu0 0.0
      %2845 = vmatprep.subr.mxu0 0.0
      %2846 = vmatpush1.msra.mxu0 0.0
      %2847 = vmatprep.subr.mxu0 0.0
      %2848 = vmatpush1.msra.mxu0 0.0
      %2849 = vmatprep.subr.mxu0 0.0
      %2850 = vmatpush1.msra.mxu0 0.0
      %2851 = vmatprep.subr.mxu0 0.0
      %2852 = vmatpush1.msra.mxu0 0.0
      %2853 = vmatprep.subr.mxu0 0.0
      %2854 = vmatpush1.msra.mxu0 0.0
      %2855 = vmatprep.subr.mxu0 0.0
      %2856 = vmatpush1.msra.mxu0 0.0
      %2857 = vmatprep.subr.mxu0 0.0
      %2858 = vmatpush1.msra.mxu0 0.0
      %2859 = vmatprep.subr.mxu0 0.0
      %2860 = vmatpush1.msra.mxu0 0.0
      %2861 = vmatprep.subr.mxu0 0.0
      %2862 = vmatpush1.msra.mxu0 0.0
      %2863 = vmatprep.subr.mxu0 0.0
      %2864 = vmatpush1.msra.mxu0 0.0
      %2865 = vmatprep.subr.mxu0 0.0
      %2866 = vmatpush1.msra.mxu0 0.0
      %2867 = vmatprep.subr.mxu0 0.0
      %2868 = vmatpush1.msra.mxu0 0.0
      %2869 = vmatprep.subr.mxu0 0.0
      %2870 = vmatpush1.msra.mxu0 0.0
      %2871 = vmatprep.subr.mxu0 0.0
      %2872 = vmatpush1.msra.mxu0 0.0
      %2873 = vmatprep.subr.mxu0 0.0
      %2874 = vmatpush1.msra.mxu0 0.0
      %2875 = vmatprep.subr.mxu0 0.0
      %2876 = vmatpush1.msra.mxu0 0.0
      %2877 = vmatprep.subr.mxu0 0.0
      %2878 = vmatpush1.msra.mxu0 0.0
      %2879 = vmatprep.subr.mxu0 0.0
      %2880 = vmatpush1.msra.mxu0 0.0
      %2881 = vmatprep.subr.mxu0 0.0
      %2882 = vmatpush1.msra.mxu0 0.0
      %2883 = vmatprep.subr.mxu0 0.0
      %2884 = vmatpush1.msra.mxu0 0.0
      %2885 = vmatprep.mubr.f32.mxu0 0.0
      %2886 = vmatmul.mubr.f32.gmra.mrb[0].mxu0 %v2623
      %v2887 = vpop.f32.mrb[0].mxu0
      %v2888 = vadd.f32 0.0, %v2887
      %v2889 = vpop.f32.mrb[0].mxu0
      %2890 = vmatprep.mubr.f32.mxu0 0.0
      %2891 = vmatmul.mubr.f32.gmra.mrb[0].mxu0 %v2626
      %v2892 = vpop.f32.mrb[0].mxu0
      %v2893 = vadd.f32 0.0, %v2892
      %v2894 = vpop.f32.mrb[0].mxu0
      %2895 = vmatprep.mubr.f32.mxu0 0.0
      %2896 = vmatmul.mubr.f32.gmra.mrb[0].mxu0 %v2629
      %v2897 = vpop.f32.mrb[0].mxu0
      %v2898 = vadd.f32 0.0, %v2897
      %v2899 = vpop.f32.mrb[0].mxu0
      %2900 = vmatprep.mubr.f32.mxu0 0.0
      %2901 = vmatmul.mubr.f32.gmra.mrb[0].mxu0 %v2632
      %v2902 = vpop.f32.mrb[0].mxu0
      %v2903 = vadd.f32 0.0, %v2902
      %v2904 = vpop.f32.mrb[0].mxu0
      %2905 = vmatprep.mubr.f32.mxu0 0.0
      %2906 = vmatmul.mubr.f32.gmra.mrb[0].mxu0 %v2635
      %v2907 = vpop.f32.mrb[0].mxu0
      %v2908 = vadd.f32 0.0, %v2907
      %v2909 = vpop.f32.mrb[0].mxu0
      %2910 = vmatprep.mubr.f32.mxu0 0.0
      %2911 = vmatmul.mubr.f32.gmra.mrb[0].mxu0 %v2638
      %v2912 = vpop.f32.mrb[0].mxu0
      %v2913 = vadd.f32 0.0, %v2912
      %v2914 = vpop.f32.mrb[0].mxu0
      %2915 = vmatprep.mubr.f32.mxu0 0.0
      %2916 = vmatmul.mubr.f32.gmra.mrb[0].mxu0 %v2641
      %v2917 = vpop.f32.mrb[0].mxu0
      %v2918 = vadd.f32 0.0, %v2917
      %v2919 = vpop.f32.mrb[0].mxu0
      %2920 = vmatprep.mubr.f32.mxu0 0.0
      %2921 = vmatmul.mubr.f32.gmra.mrb[0].mxu0 %v2644
      %v2922 = vpop.f32.mrb[0].mxu0
      %v2923 = vadd.f32 0.0, %v2922
      %v2924 = vpop.f32.mrb[0].mxu0
      %2925 = vmatprep.mubr.f32.mxu0 0.0
      %2926 = vmatmul.mubr.f32.gmra.mrb[0].mxu0 %v2647
      %v2927 = vpop.f32.mrb[0].mxu0
      %v2928 = vadd.f32 0.0, %v2927
      %v2929 = vpop.f32.mrb[0].mxu0
      %2930 = vmatprep.mubr.f32.mxu0 0.0
      %2931 = vmatmul.mubr.f32.gmra.mrb[0].mxu0 %v2650
      %v2932 = vpop.f32.mrb[0].mxu0
      %v2933 = vadd.f32 0.0, %v2932
      %v2934 = vpop.f32.mrb[0].mxu0
      %2935 = vmatprep.mubr.f32.mxu0 0.0
      %2936 = vmatmul.mubr.f32.gmra.mrb[0].mxu0 %v2653
      %v2937 = vpop.f32.mrb[0].mxu0
      %v2938 = vadd.f32 0.0, %v2937
      %v2939 = vpop.f32.mrb[0].mxu0
      %2940 = vmatprep.mubr.f32.mxu0 0.0
      %2941 = vmatmul.mubr.f32.gmra.mrb[0].mxu0 %v2656
      %v2942 = vpop.f32.mrb[0].mxu0
      %v2943 = vadd.f32 0.0, %v2942
      %v2944 = vpop.f32.mrb[0].mxu0
      %2945 = vmatprep.mubr.f32.mxu0 0.0
      %2946 = vmatmul.mubr.f32.gmra.mrb[0].mxu0 %v2659
      %v2947 = vpop.f32.mrb[0].mxu0
      %v2948 = vadd.f32 0.0, %v2947
      %v2949 = vpop.f32.mrb[0].mxu0
      %2950 = vmatprep.mubr.f32.mxu0 0.0
      %2951 = vmatmul.mubr.f32.gmra.mrb[0].mxu0 %v2662
      %v2952 = vpop.f32.mrb[0].mxu0
      %v2953 = vadd.f32 0.0, %v2952
      %v2954 = vpop.f32.mrb[0].mxu0
      %2955 = vmatprep.mubr.f32.mxu0 0.0
      %2956 = vmatmul.mubr.f32.gmra.mrb[0].mxu0 %v2665
      %v2957 = vpop.f32.mrb[0].mxu0
      %v2958 = vadd.f32 0.0, %v2957
      %v2959 = vpop.f32.mrb[0].mxu0
      %2960 = vmatprep.mubr.f32.mxu0 0.0
      %2961 = vmatmul.mubr.f32.gmra.mrb[0].mxu0 %v2668
      %v2962 = vpop.f32.mrb[0].mxu0
      %v2963 = vadd.f32 0.0, %v2962
      %v2964 = vpop.f32.mrb[0].mxu0
      %2965 = vmatprep.mubr.f32.mxu0 0.0
      %2966 = vmatmul.mubr.f32.gmra.mrb[0].mxu0 %v2671
      %v2967 = vpop.f32.mrb[0].mxu0
      %v2968 = vadd.f32 0.0, %v2967
      %v2969 = vpop.f32.mrb[0].mxu0
      %2970 = vmatprep.mubr.f32.mxu0 0.0
      %2971 = vmatmul.mubr.f32.gmra.mrb[0].mxu0 %v2674
      %v2972 = vpop.f32.mrb[0].mxu0
      %v2973 = vadd.f32 0.0, %v2972
      %v2974 = vpop.f32.mrb[0].mxu0
      %2975 = vmatprep.mubr.f32.mxu0 0.0
      %2976 = vmatmul.mubr.f32.gmra.mrb[0].mxu0 %v2677
      %v2977 = vpop.f32.mrb[0].mxu0
      %v2978 = vadd.f32 0.0, %v2977
      %v2979 = vpop.f32.mrb[0].mxu0
      %2980 = vmatprep.mubr.f32.mxu0 0.0
      %2981 = vmatmul.mubr.f32.gmra.mrb[0].mxu0 %v2680
      %v2982 = vpop.f32.mrb[0].mxu0
      %v2983 = vadd.f32 0.0, %v2982
      %v2984 = vpop.f32.mrb[0].mxu0
      %2985 = vmatprep.mubr.f32.mxu0 0.0
      %2986 = vmatmul.mubr.f32.gmra.mrb[0].mxu0 %v2683
      %v2987 = vpop.f32.mrb[0].mxu0
      %v2988 = vadd.f32 0.0, %v2987
      %v2989 = vpop.f32.mrb[0].mxu0
      %2990 = vmatprep.mubr.f32.mxu0 0.0
      %2991 = vmatmul.mubr.f32.gmra.mrb[0].mxu0 %v2686
      %v2992 = vpop.f32.mrb[0].mxu0
      %v2993 = vadd.f32 0.0, %v2992
      %v2994 = vpop.f32.mrb[0].mxu0
      %2995 = vmatprep.mubr.f32.mxu0 0.0
      %2996 = vmatmul.mubr.f32.gmra.mrb[0].mxu0 %v2689
      %v2997 = vpop.f32.mrb[0].mxu0
      %v2998 = vadd.f32 0.0, %v2997
      %v2999 = vpop.f32.mrb[0].mxu0
      %3000 = vmatprep.mubr.f32.mxu0 0.0
      %3001 = vmatmul.mubr.f32.gmra.mrb[0].mxu0 %v2692
      %v3002 = vpop.f32.mrb[0].mxu0
      %v3003 = vadd.f32 0.0, %v3002
      %v3004 = vpop.f32.mrb[0].mxu0
      %3005 = vmatprep.mubr.f32.mxu0 0.0
      %3006 = vmatmul.mubr.f32.gmra.mrb[0].mxu0 %v2695
      %v3007 = vpop.f32.mrb[0].mxu0
      %v3008 = vadd.f32 0.0, %v3007
      %v3009 = vpop.f32.mrb[0].mxu0
      %3010 = vmatprep.mubr.f32.mxu0 0.0
      %3011 = vmatmul.mubr.f32.gmra.mrb[0].mxu0 %v2698
      %v3012 = vpop.f32.mrb[0].mxu0
      %v3013 = vadd.f32 0.0, %v3012
      %v3014 = vpop.f32.mrb[0].mxu0
      %3015 = vmatprep.mubr.f32.mxu0 0.0
      %3016 = vmatmul.mubr.f32.gmra.mrb[0].mxu0 %v2701
      %v3017 = vpop.f32.mrb[0].mxu0
      %v3018 = vadd.f32 0.0, %v3017
      %v3019 = vpop.f32.mrb[0].mxu0
      %3020 = vmatprep.mubr.f32.mxu0 0.0
      %3021 = vmatmul.mubr.f32.gmra.mrb[0].mxu0 %v2704
      %v3022 = vpop.f32.mrb[0].mxu0
      %v3023 = vadd.f32 0.0, %v3022
      %v3024 = vpop.f32.mrb[0].mxu0
      %3025 = vmatprep.mubr.f32.mxu0 0.0
      %3026 = vmatmul.mubr.f32.gmra.mrb[0].mxu0 %v2707
      %v3027 = vpop.f32.mrb[0].mxu0
      %v3028 = vadd.f32 0.0, %v3027
      %v3029 = vpop.f32.mrb[0].mxu0
      %3030 = vmatprep.mubr.f32.mxu0 0.0
      %3031 = vmatmul.mubr.f32.gmra.mrb[0].mxu0 %v2710
      %v3032 = vpop.f32.mrb[0].mxu0
      %v3033 = vadd.f32 0.0, %v3032
      %v3034 = vpop.f32.mrb[0].mxu0
      %3035 = vmatprep.mubr.f32.mxu0 0.0
      %3036 = vmatmul.mubr.f32.gmra.mrb[0].mxu0 %v2713
      %v3037 = vpop.f32.mrb[0].mxu0
      %v3038 = vadd.f32 0.0, %v3037
      %v3039 = vpop.f32.mrb[0].mxu0
      %3040 = vmatprep.mubr.f32.mxu0 0.0
      %3041 = vmatmul.mubr.f32.gmra.mrb[0].mxu0 %v2716
      %v3042 = vpop.f32.mrb[0].mxu0
      %v3043 = vadd.f32 0.0, %v3042
      %v3044 = vpop.f32.mrb[0].mxu0
      %3045 = vmatprep.mubr.f32.mxu0 0.0
      %3046 = vmatmul.mubr.f32.gmra.mrb[0].mxu0 %v2719
      %v3047 = vpop.f32.mrb[0].mxu0
      %v3048 = vadd.f32 0.0, %v3047
      %v3049 = vpop.f32.mrb[0].mxu0
      %3050 = vmatprep.mubr.f32.mxu0 0.0
      %3051 = vmatmul.mubr.f32.gmra.mrb[0].mxu0 %v2722
      %v3052 = vpop.f32.mrb[0].mxu0
      %v3053 = vadd.f32 0.0, %v3052
      %v3054 = vpop.f32.mrb[0].mxu0
      %3055 = vmatprep.mubr.f32.mxu0 0.0
      %3056 = vmatmul.mubr.f32.gmra.mrb[0].mxu0 %v2725
      %v3057 = vpop.f32.mrb[0].mxu0
      %v3058 = vadd.f32 0.0, %v3057
      %v3059 = vpop.f32.mrb[0].mxu0
      %3060 = vmatprep.mubr.f32.mxu0 0.0
      %3061 = vmatmul.mubr.f32.gmra.mrb[0].mxu0 %v2728
      %v3062 = vpop.f32.mrb[0].mxu0
      %v3063 = vadd.f32 0.0, %v3062
      %v3064 = vpop.f32.mrb[0].mxu0
      %3065 = vmatprep.mubr.f32.mxu0 0.0
      %3066 = vmatmul.mubr.f32.gmra.mrb[0].mxu0 %v2731
      %v3067 = vpop.f32.mrb[0].mxu0
      %v3068 = vadd.f32 0.0, %v3067
      %v3069 = vpop.f32.mrb[0].mxu0
      %3070 = vmatprep.mubr.f32.mxu0 0.0
      %3071 = vmatmul.mubr.f32.gmra.mrb[0].mxu0 %v2734
      %v3072 = vpop.f32.mrb[0].mxu0
      %v3073 = vadd.f32 0.0, %v3072
      %v3074 = vpop.f32.mrb[0].mxu0
      %3075 = vmatprep.mubr.f32.mxu0 0.0
      %3076 = vmatmul.mubr.f32.gmra.mrb[0].mxu0 %v2737
      %v3077 = vpop.f32.mrb[0].mxu0
      %v3078 = vadd.f32 0.0, %v3077
      %v3079 = vpop.f32.mrb[0].mxu0
      %3080 = vmatprep.mubr.f32.mxu0 0.0
      %3081 = vmatmul.mubr.f32.gmra.mrb[0].mxu0 %v2740
      %v3082 = vpop.f32.mrb[0].mxu0
      %v3083 = vadd.f32 0.0, %v3082
      %v3084 = vpop.f32.mrb[0].mxu0
      %3085 = vmatprep.mubr.f32.mxu0 0.0
      %3086 = vmatmul.mubr.f32.gmra.mrb[0].mxu0 %v2743
      %v3087 = vpop.f32.mrb[0].mxu0
      %v3088 = vadd.f32 0.0, %v3087
      %v3089 = vpop.f32.mrb[0].mxu0
      %3090 = vmatprep.mubr.f32.mxu0 0.0
      %3091 = vmatmul.mubr.f32.gmra.mrb[0].mxu0 %v2746
      %v3092 = vpop.f32.mrb[0].mxu0
      %v3093 = vadd.f32 0.0, %v3092
      %v3094 = vpop.f32.mrb[0].mxu0
      %3095 = vmatprep.mubr.f32.mxu0 0.0
      %3096 = vmatmul.mubr.f32.gmra.mrb[0].mxu0 %v2749
      %v3097 = vpop.f32.mrb[0].mxu0
      %v3098 = vadd.f32 0.0, %v3097
      %v3099 = vpop.f32.mrb[0].mxu0
      %3100 = vmatprep.mubr.f32.mxu0 0.0
      %3101 = vmatmul.mubr.f32.gmra.mrb[0].mxu0 %v2752
      %v3102 = vpop.f32.mrb[0].mxu0
      %v3103 = vadd.f32 0.0, %v3102
      %v3104 = vpop.f32.mrb[0].mxu0
      %3105 = vmatprep.mubr.f32.mxu0 0.0
      %3106 = vmatmul.mubr.f32.gmra.mrb[0].mxu0 %v2755
      %v3107 = vpop.f32.mrb[0].mxu0
      %v3108 = vadd.f32 0.0, %v3107
      %v3109 = vpop.f32.mrb[0].mxu0
      %3110 = vmatprep.mubr.f32.mxu0 0.0
      %3111 = vmatmul.mubr.f32.gmra.mrb[0].mxu0 %v2758
      %v3112 = vpop.f32.mrb[0].mxu0
      %v3113 = vadd.f32 0.0, %v3112
      %v3114 = vpop.f32.mrb[0].mxu0
      %3115 = vmatprep.mubr.f32.mxu0 0.0
      %3116 = vmatmul.mubr.f32.gmra.mrb[0].mxu0 %v2761
      %v3117 = vpop.f32.mrb[0].mxu0
      %v3118 = vadd.f32 0.0, %v3117
      %v3119 = vpop.f32.mrb[0].mxu0
      %3120 = vmatprep.mubr.f32.mxu0 0.0
      %3121 = vmatmul.mubr.f32.gmra.mrb[0].mxu0 %v2764
      %v3122 = vpop.f32.mrb[0].mxu0
      %v3123 = vadd.f32 0.0, %v3122
      %v3124 = vpop.f32.mrb[0].mxu0
      %3125 = vmatprep.mubr.f32.mxu0 0.0
      %3126 = vmatmul.mubr.f32.gmra.mrb[0].mxu0 %v2767
      %v3127 = vpop.f32.mrb[0].mxu0
      %v3128 = vadd.f32 0.0, %v3127
      %v3129 = vpop.f32.mrb[0].mxu0
      %3130 = vmatprep.mubr.f32.mxu0 0.0
      %3131 = vmatmul.mubr.f32.gmra.mrb[0].mxu0 %v2770
      %v3132 = vpop.f32.mrb[0].mxu0
      %v3133 = vadd.f32 0.0, %v3132
      %v3134 = vpop.f32.mrb[0].mxu0
      %3135 = vmatprep.mubr.f32.mxu0 0.0
      %3136 = vmatmul.mubr.f32.gmra.mrb[0].mxu0 %v2773
      %v3137 = vpop.f32.mrb[0].mxu0
      %v3138 = vadd.f32 0.0, %v3137
      %v3139 = vpop.f32.mrb[0].mxu0
      %3140 = vmatprep.mubr.f32.mxu0 0.0
      %3141 = vmatmul.mubr.f32.gmra.mrb[0].mxu0 %v2776
      %v3142 = vpop.f32.mrb[0].mxu0
      %v3143 = vadd.f32 0.0, %v3142
      %v3144 = vpop.f32.mrb[0].mxu0
      %3145 = vmatprep.mubr.f32.mxu0 0.0
      %3146 = vmatmul.mubr.f32.gmra.mrb[0].mxu0 %v2779
      %v3147 = vpop.f32.mrb[0].mxu0
      %v3148 = vadd.f32 0.0, %v3147
      %v3149 = vpop.f32.mrb[0].mxu0
      %3150 = vmatprep.mubr.f32.mxu0 0.0
      %3151 = vmatmul.mubr.f32.gmra.mrb[0].mxu0 %v2782
      %v3152 = vpop.f32.mrb[0].mxu0
      %v3153 = vadd.f32 0.0, %v3152
      %v3154 = vpop.f32.mrb[0].mxu0
      %3155 = vmatprep.mubr.f32.mxu0 0.0
      %3156 = vmatmul.mubr.f32.gmra.mrb[0].mxu0 %v2785
      %v3157 = vpop.f32.mrb[0].mxu0
      %v3158 = vadd.f32 0.0, %v3157
      %v3159 = vpop.f32.mrb[0].mxu0
      %3160 = vmatprep.mubr.f32.mxu0 0.0
      %3161 = vmatmul.mubr.f32.gmra.mrb[0].mxu0 %v2788
      %v3162 = vpop.f32.mrb[0].mxu0
      %v3163 = vadd.f32 0.0, %v3162
      %v3164 = vpop.f32.mrb[0].mxu0
      %3165 = vmatprep.mubr.f32.mxu0 0.0
      %3166 = vmatmul.mubr.f32.gmra.mrb[0].mxu0 %v2791
      %v3167 = vpop.f32.mrb[0].mxu0
      %v3168 = vadd.f32 0.0, %v3167
      %v3169 = vpop.f32.mrb[0].mxu0
      %3170 = vmatprep.mubr.f32.mxu0 0.0
      %3171 = vmatmul.mubr.f32.gmra.mrb[0].mxu0 %v2794
      %v3172 = vpop.f32.mrb[0].mxu0
      %v3173 = vadd.f32 0.0, %v3172
      %v3174 = vpop.f32.mrb[0].mxu0
      %3175 = vmatprep.mubr.f32.mxu0 0.0
      %3176 = vmatmul.mubr.f32.gmra.mrb[0].mxu0 %v2797
      %v3177 = vpop.f32.mrb[0].mxu0
      %v3178 = vadd.f32 0.0, %v3177
      %v3179 = vpop.f32.mrb[0].mxu0
      %3180 = vmatprep.mubr.f32.mxu0 0.0
      %3181 = vmatmul.mubr.f32.gmra.mrb[0].mxu0 %v2800
      %v3182 = vpop.f32.mrb[0].mxu0
      %v3183 = vadd.f32 0.0, %v3182
      %v3184 = vpop.f32.mrb[0].mxu0
      %3185 = vmatprep.mubr.f32.mxu0 0.0
      %3186 = vmatmul.mubr.f32.gmra.mrb[0].mxu0 %v2803
      %v3187 = vpop.f32.mrb[0].mxu0
      %v3188 = vadd.f32 0.0, %v3187
      %v3189 = vpop.f32.mrb[0].mxu0
      %3190 = vmatprep.mubr.f32.mxu0 0.0
      %3191 = vmatmul.mubr.f32.gmra.mrb[0].mxu0 %v2806
      %v3192 = vpop.f32.mrb[0].mxu0
      %v3193 = vadd.f32 0.0, %v3192
      %v3194 = vpop.f32.mrb[0].mxu0
      %3195 = vmatprep.mubr.f32.mxu0 0.0
      %3196 = vmatmul.mubr.f32.gmra.mrb[0].mxu0 %v2809
      %v3197 = vpop.f32.mrb[0].mxu0
      %v3198 = vadd.f32 0.0, %v3197
      %v3199 = vpop.f32.mrb[0].mxu0
      %3200 = vmatprep.mubr.f32.mxu0 0.0
      %3201 = vmatmul.mubr.f32.gmra.mrb[0].mxu0 %v2812
      %v3202 = vpop.f32.mrb[0].mxu0
      %v3203 = vadd.f32 0.0, %v3202
      %v3204 = vpop.f32.mrb[0].mxu0
      %3205 = vmatprep.mubr.f32.mxu0 0.0
      %3206 = vmatmul.mubr.f32.gmra.mrb[0].mxu0 %v2815
      %v3207 = vpop.f32.mrb[0].mxu0
      %v3208 = vadd.f32 0.0, %v3207
      %v3209 = vpop.f32.mrb[0].mxu0
      %3210 = vdwg.mxu0
      %v3211 = vlog2.pop %v2888
      %v3212 = vmul.f32 %v3211, 0.6931472
      %v3213 = vlog2.pop %v2893
      %v3214 = vmul.f32 %v3213, 0.6931472
      %v3215 = vlog2.pop %v2898
      %v3216 = vmul.f32 %v3215, 0.6931472
      %v3217 = vlog2.pop %v2903
      %v3218 = vmul.f32 %v3217, 0.6931472
      %v3219 = vlog2.pop %v2908
      %v3220 = vmul.f32 %v3219, 0.6931472
      %v3221 = vlog2.pop %v2913
      %v3222 = vmul.f32 %v3221, 0.6931472
      %v3223 = vlog2.pop %v2918
      %v3224 = vmul.f32 %v3223, 0.6931472
      %v3225 = vlog2.pop %v2923
      %v3226 = vmul.f32 %v3225, 0.6931472
      %v3227 = vlog2.pop %v2928
      %v3228 = vmul.f32 %v3227, 0.6931472
      %v3229 = vlog2.pop %v2933
      %v3230 = vmul.f32 %v3229, 0.6931472
      %v3231 = vlog2.pop %v2938
      %v3232 = vmul.f32 %v3231, 0.6931472
      %v3233 = vlog2.pop %v2943
      %v3234 = vmul.f32 %v3233, 0.6931472
      %v3235 = vlog2.pop %v2948
      %v3236 = vmul.f32 %v3235, 0.6931472
      %v3237 = vlog2.pop %v2953
      %v3238 = vmul.f32 %v3237, 0.6931472
      %v3239 = vlog2.pop %v2958
      %v3240 = vmul.f32 %v3239, 0.6931472
      %v3241 = vlog2.pop %v2963
      %v3242 = vmul.f32 %v3241, 0.6931472
      %v3243 = vlog2.pop %v2968
      %v3244 = vmul.f32 %v3243, 0.6931472
      %v3245 = vlog2.pop %v2973
      %v3246 = vmul.f32 %v3245, 0.6931472
      %v3247 = vlog2.pop %v2978
      %v3248 = vmul.f32 %v3247, 0.6931472
      %v3249 = vlog2.pop %v2983
      %v3250 = vmul.f32 %v3249, 0.6931472
      %v3251 = vlog2.pop %v2988
      %v3252 = vmul.f32 %v3251, 0.6931472
      %v3253 = vlog2.pop %v2993
      %v3254 = vmul.f32 %v3253, 0.6931472
      %v3255 = vlog2.pop %v2998
      %v3256 = vmul.f32 %v3255, 0.6931472
      %v3257 = vlog2.pop %v3003
      %v3258 = vmul.f32 %v3257, 0.6931472
      %v3259 = vlog2.pop %v3008
      %v3260 = vmul.f32 %v3259, 0.6931472
      %v3261 = vlog2.pop %v3013
      %v3262 = vmul.f32 %v3261, 0.6931472
      %v3263 = vlog2.pop %v3018
      %v3264 = vmul.f32 %v3263, 0.6931472
      %v3265 = vlog2.pop %v3023
      %v3266 = vmul.f32 %v3265, 0.6931472
      %v3267 = vlog2.pop %v3028
      %v3268 = vmul.f32 %v3267, 0.6931472
      %v3269 = vlog2.pop %v3033
      %v3270 = vmul.f32 %v3269, 0.6931472
      %v3271 = vlog2.pop %v3038
      %v3272 = vmul.f32 %v3271, 0.6931472
      %v3273 = vlog2.pop %v3043
      %v3274 = vmul.f32 %v3273, 0.6931472
      %v3275 = vlog2.pop %v3048
      %v3276 = vmul.f32 %v3275, 0.6931472
      %v3277 = vlog2.pop %v3053
      %v3278 = vmul.f32 %v3277, 0.6931472
      %v3279 = vlog2.pop %v3058
      %v3280 = vmul.f32 %v3279, 0.6931472
      %v3281 = vlog2.pop %v3063
      %v3282 = vmul.f32 %v3281, 0.6931472
      %v3283 = vlog2.pop %v3068
      %v3284 = vmul.f32 %v3283, 0.6931472
      %v3285 = vlog2.pop %v3073
      %v3286 = vmul.f32 %v3285, 0.6931472
      %v3287 = vlog2.pop %v3078
      %v3288 = vmul.f32 %v3287, 0.6931472
      %v3289 = vlog2.pop %v3083
      %v3290 = vmul.f32 %v3289, 0.6931472
      %v3291 = vlog2.pop %v3088
      %v3292 = vmul.f32 %v3291, 0.6931472
      %v3293 = vlog2.pop %v3093
      %v3294 = vmul.f32 %v3293, 0.6931472
      %v3295 = vlog2.pop %v3098
      %v3296 = vmul.f32 %v3295, 0.6931472
      %v3297 = vlog2.pop %v3103
      %v3298 = vmul.f32 %v3297, 0.6931472
      %v3299 = vlog2.pop %v3108
      %v3300 = vmul.f32 %v3299, 0.6931472
      %v3301 = vlog2.pop %v3113
      %v3302 = vmul.f32 %v3301, 0.6931472
      %v3303 = vlog2.pop %v3118
      %v3304 = vmul.f32 %v3303, 0.6931472
      %v3305 = vlog2.pop %v3123
      %v3306 = vmul.f32 %v3305, 0.6931472
      %v3307 = vlog2.pop %v3128
      %v3308 = vmul.f32 %v3307, 0.6931472
      %v3309 = vlog2.pop %v3133
      %v3310 = vmul.f32 %v3309, 0.6931472
      %v3311 = vlog2.pop %v3138
      %v3312 = vmul.f32 %v3311, 0.6931472
      %v3313 = vlog2.pop %v3143
      %v3314 = vmul.f32 %v3313, 0.6931472
      %v3315 = vlog2.pop %v3148
      %v3316 = vmul.f32 %v3315, 0.6931472
      %v3317 = vlog2.pop %v3153
      %v3318 = vmul.f32 %v3317, 0.6931472
      %v3319 = vlog2.pop %v3158
      %v3320 = vmul.f32 %v3319, 0.6931472
      %v3321 = vlog2.pop %v3163
      %v3322 = vmul.f32 %v3321, 0.6931472
      %v3323 = vlog2.pop %v3168
      %v3324 = vmul.f32 %v3323, 0.6931472
      %v3325 = vlog2.pop %v3173
      %v3326 = vmul.f32 %v3325, 0.6931472
      %v3327 = vlog2.pop %v3178
      %v3328 = vmul.f32 %v3327, 0.6931472
      %v3329 = vlog2.pop %v3183
      %v3330 = vmul.f32 %v3329, 0.6931472
      %v3331 = vlog2.pop %v3188
      %v3332 = vmul.f32 %v3331, 0.6931472
      %v3333 = vlog2.pop %v3193
      %v3334 = vmul.f32 %v3333, 0.6931472
      %v3335 = vlog2.pop %v3198
      %v3336 = vmul.f32 %v3335, 0.6931472
      %v3337 = vlog2.pop %v3203
      %v3338 = vmul.f32 %v3337, 0.6931472
      %v3339 = vlog2.pop %v3208
      %v3340 = vmul.f32 %v3339, 0.6931472
      %v3341 = vld [vmem:[%s5] sm:$0xff]
      %v3342 = vld [vmem:[%s5 + $0x8] sm:$0xff]
      %v3343 = vld [vmem:[%s5 + $0x10] sm:$0xff]
      %v3344 = vld [vmem:[%s5 + $0x18] sm:$0xff]
      %v3345 = vld [vmem:[%s5 + $0x20] sm:$0xff]
      %v3346 = vld [vmem:[%s5 + $0x28] sm:$0xff]
      %v3347 = vld [vmem:[%s5 + $0x30] sm:$0xff]
      %v3348 = vld [vmem:[%s5 + $0x38] sm:$0xff]
      %v3349 = vld [vmem:[%s5 + $0x40] sm:$0xff]
      %v3350 = vld [vmem:[%s5 + $0x48] sm:$0xff]
      %v3351 = vld [vmem:[%s5 + $0x50] sm:$0xff]
      %v3352 = vld [vmem:[%s5 + $0x58] sm:$0xff]
      %v3353 = vld [vmem:[%s5 + $0x60] sm:$0xff]
      %v3354 = vld [vmem:[%s5 + $0x68] sm:$0xff]
      %v3355 = vld [vmem:[%s5 + $0x70] sm:$0xff]
      %v3356 = vld [vmem:[%s5 + $0x78] sm:$0xff]
      %v3357 = vld [vmem:[%s5 + $0x80] sm:$0xff]
      %v3358 = vld [vmem:[%s5 + $0x88] sm:$0xff]
      %v3359 = vld [vmem:[%s5 + $0x90] sm:$0xff]
      %v3360 = vld [vmem:[%s5 + $0x98] sm:$0xff]
      %v3361 = vld [vmem:[%s5 + $0xa0] sm:$0xff]
      %v3362 = vld [vmem:[%s5 + $0xa8] sm:$0xff]
      %v3363 = vld [vmem:[%s5 + $0xb0] sm:$0xff]
      %v3364 = vld [vmem:[%s5 + $0xb8] sm:$0xff]
      %v3365 = vld [vmem:[%s5 + $0xc0] sm:$0xff]
      %v3366 = vld [vmem:[%s5 + $0xc8] sm:$0xff]
      %v3367 = vld [vmem:[%s5 + $0xd0] sm:$0xff]
      %v3368 = vld [vmem:[%s5 + $0xd8] sm:$0xff]
      %v3369 = vld [vmem:[%s5 + $0xe0] sm:$0xff]
      %v3370 = vld [vmem:[%s5 + $0xe8] sm:$0xff]
      %v3371 = vld [vmem:[%s5 + $0xf0] sm:$0xff]
      %v3372 = vld [vmem:[%s5 + $0xf8] sm:$0xff]
      %v3373 = vld [vmem:[%s5 + $0x100] sm:$0xff]
      %v3374 = vld [vmem:[%s5 + $0x108] sm:$0xff]
      %v3375 = vld [vmem:[%s5 + $0x110] sm:$0xff]
      %v3376 = vld [vmem:[%s5 + $0x118] sm:$0xff]
      %v3377 = vld [vmem:[%s5 + $0x120] sm:$0xff]
      %v3378 = vld [vmem:[%s5 + $0x128] sm:$0xff]
      %v3379 = vld [vmem:[%s5 + $0x130] sm:$0xff]
      %v3380 = vld [vmem:[%s5 + $0x138] sm:$0xff]
      %v3381 = vld [vmem:[%s5 + $0x140] sm:$0xff]
      %v3382 = vld [vmem:[%s5 + $0x148] sm:$0xff]
      %v3383 = vld [vmem:[%s5 + $0x150] sm:$0xff]
      %v3384 = vld [vmem:[%s5 + $0x158] sm:$0xff]
      %v3385 = vld [vmem:[%s5 + $0x160] sm:$0xff]
      %v3386 = vld [vmem:[%s5 + $0x168] sm:$0xff]
      %v3387 = vld [vmem:[%s5 + $0x170] sm:$0xff]
      %v3388 = vld [vmem:[%s5 + $0x178] sm:$0xff]
      %v3389 = vld [vmem:[%s5 + $0x180] sm:$0xff]
      %v3390 = vld [vmem:[%s5 + $0x188] sm:$0xff]
      %v3391 = vld [vmem:[%s5 + $0x190] sm:$0xff]
      %v3392 = vld [vmem:[%s5 + $0x198] sm:$0xff]
      %v3393 = vld [vmem:[%s5 + $0x1a0] sm:$0xff]
      %v3394 = vld [vmem:[%s5 + $0x1a8] sm:$0xff]
      %v3395 = vld [vmem:[%s5 + $0x1b0] sm:$0xff]
      %v3396 = vld [vmem:[%s5 + $0x1b8] sm:$0xff]
      %v3397 = vld [vmem:[%s5 + $0x1c0] sm:$0xff]
      %v3398 = vld [vmem:[%s5 + $0x1c8] sm:$0xff]
      %v3399 = vld [vmem:[%s5 + $0x1d0] sm:$0xff]
      %v3400 = vld [vmem:[%s5 + $0x1d8] sm:$0xff]
      %v3401 = vld [vmem:[%s5 + $0x1e0] sm:$0xff]
      %v3402 = vld [vmem:[%s5 + $0x1e8] sm:$0xff]
      %v3403 = vld [vmem:[%s5 + $0x1f0] sm:$0xff]
      %v3404 = vld [vmem:[%s5 + $0x1f8] sm:$0xff]
      %v3405 = vld [vmem:[%s5 + $0x200] sm:$0xff]
      %v3406 = vld [vmem:[%s5 + $0x208] sm:$0xff]
      %v3407 = vld [vmem:[%s5 + $0x210] sm:$0xff]
      %v3408 = vld [vmem:[%s5 + $0x218] sm:$0xff]
      %v3409 = vld [vmem:[%s5 + $0x220] sm:$0xff]
      %v3410 = vld [vmem:[%s5 + $0x228] sm:$0xff]
      %v3411 = vld [vmem:[%s5 + $0x230] sm:$0xff]
      %v3412 = vld [vmem:[%s5 + $0x238] sm:$0xff]
      %v3413 = vld [vmem:[%s5 + $0x240] sm:$0xff]
      %v3414 = vld [vmem:[%s5 + $0x248] sm:$0xff]
      %v3415 = vld [vmem:[%s5 + $0x250] sm:$0xff]
      %v3416 = vld [vmem:[%s5 + $0x258] sm:$0xff]
      %v3417 = vld [vmem:[%s5 + $0x260] sm:$0xff]
      %v3418 = vld [vmem:[%s5 + $0x268] sm:$0xff]
      %v3419 = vld [vmem:[%s5 + $0x270] sm:$0xff]
      %v3420 = vld [vmem:[%s5 + $0x278] sm:$0xff]
      %v3421 = vld [vmem:[%s5 + $0x280] sm:$0xff]
      %v3422 = vld [vmem:[%s5 + $0x288] sm:$0xff]
      %v3423 = vld [vmem:[%s5 + $0x290] sm:$0xff]
      %v3424 = vld [vmem:[%s5 + $0x298] sm:$0xff]
      %v3425 = vld [vmem:[%s5 + $0x2a0] sm:$0xff]
      %v3426 = vld [vmem:[%s5 + $0x2a8] sm:$0xff]
      %v3427 = vld [vmem:[%s5 + $0x2b0] sm:$0xff]
      %v3428 = vld [vmem:[%s5 + $0x2b8] sm:$0xff]
      %v3429 = vld [vmem:[%s5 + $0x2c0] sm:$0xff]
      %v3430 = vld [vmem:[%s5 + $0x2c8] sm:$0xff]
      %v3431 = vld [vmem:[%s5 + $0x2d0] sm:$0xff]
      %v3432 = vld [vmem:[%s5 + $0x2d8] sm:$0xff]
      %v3433 = vld [vmem:[%s5 + $0x2e0] sm:$0xff]
      %v3434 = vld [vmem:[%s5 + $0x2e8] sm:$0xff]
      %v3435 = vld [vmem:[%s5 + $0x2f0] sm:$0xff]
      %v3436 = vld [vmem:[%s5 + $0x2f8] sm:$0xff]
      %v3437 = vld [vmem:[%s5 + $0x300] sm:$0xff]
      %v3438 = vld [vmem:[%s5 + $0x308] sm:$0xff]
      %v3439 = vld [vmem:[%s5 + $0x310] sm:$0xff]
      %v3440 = vld [vmem:[%s5 + $0x318] sm:$0xff]
      %v3441 = vld [vmem:[%s5 + $0x320] sm:$0xff]
      %v3442 = vld [vmem:[%s5 + $0x328] sm:$0xff]
      %v3443 = vld [vmem:[%s5 + $0x330] sm:$0xff]
      %v3444 = vld [vmem:[%s5 + $0x338] sm:$0xff]
      %v3445 = vld [vmem:[%s5 + $0x340] sm:$0xff]
      %v3446 = vld [vmem:[%s5 + $0x348] sm:$0xff]
      %v3447 = vld [vmem:[%s5 + $0x350] sm:$0xff]
      %v3448 = vld [vmem:[%s5 + $0x358] sm:$0xff]
      %v3449 = vld [vmem:[%s5 + $0x360] sm:$0xff]
      %v3450 = vld [vmem:[%s5 + $0x368] sm:$0xff]
      %v3451 = vld [vmem:[%s5 + $0x370] sm:$0xff]
      %v3452 = vld [vmem:[%s5 + $0x378] sm:$0xff]
      %v3453 = vld [vmem:[%s5 + $0x380] sm:$0xff]
      %v3454 = vld [vmem:[%s5 + $0x388] sm:$0xff]
      %v3455 = vld [vmem:[%s5 + $0x390] sm:$0xff]
      %v3456 = vld [vmem:[%s5 + $0x398] sm:$0xff]
      %v3457 = vld [vmem:[%s5 + $0x3a0] sm:$0xff]
      %v3458 = vld [vmem:[%s5 + $0x3a8] sm:$0xff]
      %v3459 = vld [vmem:[%s5 + $0x3b0] sm:$0xff]
      %v3460 = vld [vmem:[%s5 + $0x3b8] sm:$0xff]
      %v3461 = vld [vmem:[%s5 + $0x3c0] sm:$0xff]
      %v3462 = vld [vmem:[%s5 + $0x3c8] sm:$0xff]
      %v3463 = vld [vmem:[%s5 + $0x3d0] sm:$0xff]
      %v3464 = vld [vmem:[%s5 + $0x3d8] sm:$0xff]
      %v3465 = vld [vmem:[%s5 + $0x3e0] sm:$0xff]
      %v3466 = vld [vmem:[%s5 + $0x3e8] sm:$0xff]
      %v3467 = vld [vmem:[%s5 + $0x3f0] sm:$0xff]
      %v3468 = vld [vmem:[%s5 + $0x3f8] sm:$0xff]
      %v3469 = vld [vmem:[%s5 + $0x400] sm:$0xff]
      %v3470 = vld [vmem:[%s5 + $0x408] sm:$0xff]
      %v3471 = vld [vmem:[%s5 + $0x410] sm:$0xff]
      %v3472 = vld [vmem:[%s5 + $0x418] sm:$0xff]
      %v3473 = vld [vmem:[%s5 + $0x420] sm:$0xff]
      %v3474 = vld [vmem:[%s5 + $0x428] sm:$0xff]
      %v3475 = vld [vmem:[%s5 + $0x430] sm:$0xff]
      %v3476 = vld [vmem:[%s5 + $0x438] sm:$0xff]
      %v3477 = vld [vmem:[%s5 + $0x440] sm:$0xff]
      %v3478 = vld [vmem:[%s5 + $0x448] sm:$0xff]
      %v3479 = vld [vmem:[%s5 + $0x450] sm:$0xff]
      %v3480 = vld [vmem:[%s5 + $0x458] sm:$0xff]
      %v3481 = vld [vmem:[%s5 + $0x460] sm:$0xff]
      %v3482 = vld [vmem:[%s5 + $0x468] sm:$0xff]
      %v3483 = vld [vmem:[%s5 + $0x470] sm:$0xff]
      %v3484 = vld [vmem:[%s5 + $0x478] sm:$0xff]
      %v3485 = vld [vmem:[%s5 + $0x480] sm:$0xff]
      %v3486 = vld [vmem:[%s5 + $0x488] sm:$0xff]
      %v3487 = vld [vmem:[%s5 + $0x490] sm:$0xff]
      %v3488 = vld [vmem:[%s5 + $0x498] sm:$0xff]
      %v3489 = vld [vmem:[%s5 + $0x4a0] sm:$0xff]
      %v3490 = vld [vmem:[%s5 + $0x4a8] sm:$0xff]
      %v3491 = vld [vmem:[%s5 + $0x4b0] sm:$0xff]
      %v3492 = vld [vmem:[%s5 + $0x4b8] sm:$0xff]
      %v3493 = vld [vmem:[%s5 + $0x4c0] sm:$0xff]
      %v3494 = vld [vmem:[%s5 + $0x4c8] sm:$0xff]
      %v3495 = vld [vmem:[%s5 + $0x4d0] sm:$0xff]
      %v3496 = vld [vmem:[%s5 + $0x4d8] sm:$0xff]
      %v3497 = vld [vmem:[%s5 + $0x4e0] sm:$0xff]
      %v3498 = vld [vmem:[%s5 + $0x4e8] sm:$0xff]
      %v3499 = vld [vmem:[%s5 + $0x4f0] sm:$0xff]
      %v3500 = vld [vmem:[%s5 + $0x4f8] sm:$0xff]
      %v3501 = vld [vmem:[%s5 + $0x500] sm:$0xff]
      %v3502 = vld [vmem:[%s5 + $0x508] sm:$0xff]
      %v3503 = vld [vmem:[%s5 + $0x510] sm:$0xff]
      %v3504 = vld [vmem:[%s5 + $0x518] sm:$0xff]
      %v3505 = vld [vmem:[%s5 + $0x520] sm:$0xff]
      %v3506 = vld [vmem:[%s5 + $0x528] sm:$0xff]
      %v3507 = vld [vmem:[%s5 + $0x530] sm:$0xff]
      %v3508 = vld [vmem:[%s5 + $0x538] sm:$0xff]
      %v3509 = vld [vmem:[%s5 + $0x540] sm:$0xff]
      %v3510 = vld [vmem:[%s5 + $0x548] sm:$0xff]
      %v3511 = vld [vmem:[%s5 + $0x550] sm:$0xff]
      %v3512 = vld [vmem:[%s5 + $0x558] sm:$0xff]
      %v3513 = vld [vmem:[%s5 + $0x560] sm:$0xff]
      %v3514 = vld [vmem:[%s5 + $0x568] sm:$0xff]
      %v3515 = vld [vmem:[%s5 + $0x570] sm:$0xff]
      %v3516 = vld [vmem:[%s5 + $0x578] sm:$0xff]
      %v3517 = vld [vmem:[%s5 + $0x580] sm:$0xff]
      %v3518 = vld [vmem:[%s5 + $0x588] sm:$0xff]
      %v3519 = vld [vmem:[%s5 + $0x590] sm:$0xff]
      %v3520 = vld [vmem:[%s5 + $0x598] sm:$0xff]
      %v3521 = vld [vmem:[%s5 + $0x5a0] sm:$0xff]
      %v3522 = vld [vmem:[%s5 + $0x5a8] sm:$0xff]
      %v3523 = vld [vmem:[%s5 + $0x5b0] sm:$0xff]
      %v3524 = vld [vmem:[%s5 + $0x5b8] sm:$0xff]
      %v3525 = vld [vmem:[%s5 + $0x5c0] sm:$0xff]
      %v3526 = vld [vmem:[%s5 + $0x5c8] sm:$0xff]
      %v3527 = vld [vmem:[%s5 + $0x5d0] sm:$0xff]
      %v3528 = vld [vmem:[%s5 + $0x5d8] sm:$0xff]
      %v3529 = vld [vmem:[%s5 + $0x5e0] sm:$0xff]
      %v3530 = vld [vmem:[%s5 + $0x5e8] sm:$0xff]
      %v3531 = vld [vmem:[%s5 + $0x5f0] sm:$0xff]
      %v3532 = vld [vmem:[%s5 + $0x5f8] sm:$0xff]
      %v3533 = vld [vmem:[%s5 + $0x600] sm:$0xff]
      %v3534 = vld [vmem:[%s5 + $0x608] sm:$0xff]
      %v3535 = vld [vmem:[%s5 + $0x610] sm:$0xff]
      %v3536 = vld [vmem:[%s5 + $0x618] sm:$0xff]
      %v3537 = vld [vmem:[%s5 + $0x620] sm:$0xff]
      %v3538 = vld [vmem:[%s5 + $0x628] sm:$0xff]
      %v3539 = vld [vmem:[%s5 + $0x630] sm:$0xff]
      %v3540 = vld [vmem:[%s5 + $0x638] sm:$0xff]
      %v3541 = vld [vmem:[%s5 + $0x640] sm:$0xff]
      %v3542 = vld [vmem:[%s5 + $0x648] sm:$0xff]
      %v3543 = vld [vmem:[%s5 + $0x650] sm:$0xff]
      %v3544 = vld [vmem:[%s5 + $0x658] sm:$0xff]
      %v3545 = vld [vmem:[%s5 + $0x660] sm:$0xff]
      %v3546 = vld [vmem:[%s5 + $0x668] sm:$0xff]
      %v3547 = vld [vmem:[%s5 + $0x670] sm:$0xff]
      %v3548 = vld [vmem:[%s5 + $0x678] sm:$0xff]
      %v3549 = vld [vmem:[%s5 + $0x680] sm:$0xff]
      %v3550 = vld [vmem:[%s5 + $0x688] sm:$0xff]
      %v3551 = vld [vmem:[%s5 + $0x690] sm:$0xff]
      %v3552 = vld [vmem:[%s5 + $0x698] sm:$0xff]
      %v3553 = vld [vmem:[%s5 + $0x6a0] sm:$0xff]
      %v3554 = vld [vmem:[%s5 + $0x6a8] sm:$0xff]
      %v3555 = vld [vmem:[%s5 + $0x6b0] sm:$0xff]
      %v3556 = vld [vmem:[%s5 + $0x6b8] sm:$0xff]
      %v3557 = vld [vmem:[%s5 + $0x6c0] sm:$0xff]
      %v3558 = vld [vmem:[%s5 + $0x6c8] sm:$0xff]
      %v3559 = vld [vmem:[%s5 + $0x6d0] sm:$0xff]
      %v3560 = vld [vmem:[%s5 + $0x6d8] sm:$0xff]
      %v3561 = vld [vmem:[%s5 + $0x6e0] sm:$0xff]
      %v3562 = vld [vmem:[%s5 + $0x6e8] sm:$0xff]
      %v3563 = vld [vmem:[%s5 + $0x6f0] sm:$0xff]
      %v3564 = vld [vmem:[%s5 + $0x6f8] sm:$0xff]
      %v3565 = vld [vmem:[%s5 + $0x700] sm:$0xff]
      %v3566 = vld [vmem:[%s5 + $0x708] sm:$0xff]
      %v3567 = vld [vmem:[%s5 + $0x710] sm:$0xff]
      %v3568 = vld [vmem:[%s5 + $0x718] sm:$0xff]
      %v3569 = vld [vmem:[%s5 + $0x720] sm:$0xff]
      %v3570 = vld [vmem:[%s5 + $0x728] sm:$0xff]
      %v3571 = vld [vmem:[%s5 + $0x730] sm:$0xff]
      %v3572 = vld [vmem:[%s5 + $0x738] sm:$0xff]
      %v3573 = vld [vmem:[%s5 + $0x740] sm:$0xff]
      %v3574 = vld [vmem:[%s5 + $0x748] sm:$0xff]
      %v3575 = vld [vmem:[%s5 + $0x750] sm:$0xff]
      %v3576 = vld [vmem:[%s5 + $0x758] sm:$0xff]
      %v3577 = vld [vmem:[%s5 + $0x760] sm:$0xff]
      %v3578 = vld [vmem:[%s5 + $0x768] sm:$0xff]
      %v3579 = vld [vmem:[%s5 + $0x770] sm:$0xff]
      %v3580 = vld [vmem:[%s5 + $0x778] sm:$0xff]
      %v3581 = vld [vmem:[%s5 + $0x780] sm:$0xff]
      %v3582 = vld [vmem:[%s5 + $0x788] sm:$0xff]
      %v3583 = vld [vmem:[%s5 + $0x790] sm:$0xff]
      %v3584 = vld [vmem:[%s5 + $0x798] sm:$0xff]
      %v3585 = vld [vmem:[%s5 + $0x7a0] sm:$0xff]
      %v3586 = vld [vmem:[%s5 + $0x7a8] sm:$0xff]
      %v3587 = vld [vmem:[%s5 + $0x7b0] sm:$0xff]
      %v3588 = vld [vmem:[%s5 + $0x7b8] sm:$0xff]
      %v3589 = vld [vmem:[%s5 + $0x7c0] sm:$0xff]
      %v3590 = vld [vmem:[%s5 + $0x7c8] sm:$0xff]
      %v3591 = vld [vmem:[%s5 + $0x7d0] sm:$0xff]
      %v3592 = vld [vmem:[%s5 + $0x7d8] sm:$0xff]
      %v3593 = vld [vmem:[%s5 + $0x7e0] sm:$0xff]
      %v3594 = vld [vmem:[%s5 + $0x7e8] sm:$0xff]
      %v3595 = vld [vmem:[%s5 + $0x7f0] sm:$0xff]
      %v3596 = vld [vmem:[%s5 + $0x7f8] sm:$0xff]
      %v3597 = vld [vmem:[%s5 + $0x800] sm:$0xff]
      %v3598 = vld [vmem:[%s5 + $0x808] sm:$0xff]
      %v3599 = vld [vmem:[%s5 + $0x810] sm:$0xff]
      %v3600 = vld [vmem:[%s5 + $0x818] sm:$0xff]
      %v3601 = vmul.f32 %v3341, %v3212
      %v3602 = vmul.f32 %v3342, %v3214
      %v3603 = vmul.f32 %v3343, %v3216
      %v3604 = vmul.f32 %v3344, %v3218
      %v3605 = vmul.f32 %v3345, %v3220
      %v3606 = vmul.f32 %v3346, %v3222
      %v3607 = vmul.f32 %v3347, %v3224
      %v3608 = vmul.f32 %v3348, %v3226
      %v3609 = vmul.f32 %v3349, %v3228
      %v3610 = vmul.f32 %v3350, %v3230
      %v3611 = vmul.f32 %v3351, %v3232
      %v3612 = vmul.f32 %v3352, %v3234
      %v3613 = vmul.f32 %v3353, %v3236
      %v3614 = vmul.f32 %v3354, %v3238
      %v3615 = vmul.f32 %v3355, %v3240
      %v3616 = vmul.f32 %v3356, %v3242
      %v3617 = vmul.f32 %v3357, %v3244
      %v3618 = vmul.f32 %v3358, %v3246
      %v3619 = vmul.f32 %v3359, %v3248
      %v3620 = vmul.f32 %v3360, %v3250
      %v3621 = vmul.f32 %v3361, %v3252
      %v3622 = vmul.f32 %v3362, %v3254
      %v3623 = vmul.f32 %v3363, %v3256
      %v3624 = vmul.f32 %v3364, %v3258
      %v3625 = vmul.f32 %v3365, %v3260
      %v3626 = vmul.f32 %v3366, %v3262
      %v3627 = vmul.f32 %v3367, %v3264
      %v3628 = vmul.f32 %v3368, %v3266
      %v3629 = vmul.f32 %v3369, %v3268
      %v3630 = vmul.f32 %v3370, %v3270
      %v3631 = vmul.f32 %v3371, %v3272
      %v3632 = vmul.f32 %v3372, %v3274
      %v3633 = vmul.f32 %v3373, %v3276
      %v3634 = vmul.f32 %v3374, %v3278
      %v3635 = vmul.f32 %v3375, %v3280
      %v3636 = vmul.f32 %v3376, %v3282
      %v3637 = vmul.f32 %v3377, %v3284
      %v3638 = vmul.f32 %v3378, %v3286
      %v3639 = vmul.f32 %v3379, %v3288
      %v3640 = vmul.f32 %v3380, %v3290
      %v3641 = vmul.f32 %v3381, %v3292
      %v3642 = vmul.f32 %v3382, %v3294
      %v3643 = vmul.f32 %v3383, %v3296
      %v3644 = vmul.f32 %v3384, %v3298
      %v3645 = vmul.f32 %v3385, %v3300
      %v3646 = vmul.f32 %v3386, %v3302
      %v3647 = vmul.f32 %v3387, %v3304
      %v3648 = vmul.f32 %v3388, %v3306
      %v3649 = vmul.f32 %v3389, %v3308
      %v3650 = vmul.f32 %v3390, %v3310
      %v3651 = vmul.f32 %v3391, %v3312
      %v3652 = vmul.f32 %v3392, %v3314
      %v3653 = vmul.f32 %v3393, %v3316
      %v3654 = vmul.f32 %v3394, %v3318
      %v3655 = vmul.f32 %v3395, %v3320
      %v3656 = vmul.f32 %v3396, %v3322
      %v3657 = vmul.f32 %v3397, %v3324
      %v3658 = vmul.f32 %v3398, %v3326
      %v3659 = vmul.f32 %v3399, %v3328
      %v3660 = vmul.f32 %v3400, %v3330
      %v3661 = vmul.f32 %v3401, %v3332
      %v3662 = vmul.f32 %v3402, %v3334
      %v3663 = vmul.f32 %v3403, %v3336
      %v3664 = vmul.f32 %v3404, %v3338
      %v3665 = vmul.f32 %v3405, %v3340
      %v3666 = vmul.f32 %v3406, %v3212
      %v3667 = vmul.f32 %v3407, %v3214
      %v3668 = vmul.f32 %v3408, %v3216
      %v3669 = vmul.f32 %v3409, %v3218
      %v3670 = vmul.f32 %v3410, %v3220
      %v3671 = vmul.f32 %v3411, %v3222
      %v3672 = vmul.f32 %v3412, %v3224
      %v3673 = vmul.f32 %v3413, %v3226
      %v3674 = vmul.f32 %v3414, %v3228
      %v3675 = vmul.f32 %v3415, %v3230
      %v3676 = vmul.f32 %v3416, %v3232
      %v3677 = vmul.f32 %v3417, %v3234
      %v3678 = vmul.f32 %v3418, %v3236
      %v3679 = vmul.f32 %v3419, %v3238
      %v3680 = vmul.f32 %v3420, %v3240
      %v3681 = vmul.f32 %v3421, %v3242
      %v3682 = vmul.f32 %v3422, %v3244
      %v3683 = vmul.f32 %v3423, %v3246
      %v3684 = vmul.f32 %v3424, %v3248
      %v3685 = vmul.f32 %v3425, %v3250
      %v3686 = vmul.f32 %v3426, %v3252
      %v3687 = vmul.f32 %v3427, %v3254
      %v3688 = vmul.f32 %v3428, %v3256
      %v3689 = vmul.f32 %v3429, %v3258
      %v3690 = vmul.f32 %v3430, %v3260
      %v3691 = vmul.f32 %v3431, %v3262
      %v3692 = vmul.f32 %v3432, %v3264
      %v3693 = vmul.f32 %v3433, %v3266
      %v3694 = vmul.f32 %v3434, %v3268
      %v3695 = vmul.f32 %v3435, %v3270
      %v3696 = vmul.f32 %v3436, %v3272
      %v3697 = vmul.f32 %v3437, %v3274
      %v3698 = vmul.f32 %v3438, %v3276
      %v3699 = vmul.f32 %v3439, %v3278
      %v3700 = vmul.f32 %v3440, %v3280
      %v3701 = vmul.f32 %v3441, %v3282
      %v3702 = vmul.f32 %v3442, %v3284
      %v3703 = vmul.f32 %v3443, %v3286
      %v3704 = vmul.f32 %v3444, %v3288
      %v3705 = vmul.f32 %v3445, %v3290
      %v3706 = vmul.f32 %v3446, %v3292
      %v3707 = vmul.f32 %v3447, %v3294
      %v3708 = vmul.f32 %v3448, %v3296
      %v3709 = vmul.f32 %v3449, %v3298
      %v3710 = vmul.f32 %v3450, %v3300
      %v3711 = vmul.f32 %v3451, %v3302
      %v3712 = vmul.f32 %v3452, %v3304
      %v3713 = vmul.f32 %v3453, %v3306
      %v3714 = vmul.f32 %v3454, %v3308
      %v3715 = vmul.f32 %v3455, %v3310
      %v3716 = vmul.f32 %v3456, %v3312
      %v3717 = vmul.f32 %v3457, %v3314
      %v3718 = vmul.f32 %v3458, %v3316
      %v3719 = vmul.f32 %v3459, %v3318
      %v3720 = vmul.f32 %v3460, %v3320
      %v3721 = vmul.f32 %v3461, %v3322
      %v3722 = vmul.f32 %v3462, %v3324
      %v3723 = vmul.f32 %v3463, %v3326
      %v3724 = vmul.f32 %v3464, %v3328
      %v3725 = vmul.f32 %v3465, %v3330
      %v3726 = vmul.f32 %v3466, %v3332
      %v3727 = vmul.f32 %v3467, %v3334
      %v3728 = vmul.f32 %v3468, %v3336
      %v3729 = vmul.f32 %v3469, %v3338
      %v3730 = vmul.f32 %v3470, %v3340
      %v3731 = vmul.f32 %v3471, %v3212
      %v3732 = vmul.f32 %v3472, %v3214
      %v3733 = vmul.f32 %v3473, %v3216
      %v3734 = vmul.f32 %v3474, %v3218
      %v3735 = vmul.f32 %v3475, %v3220
      %v3736 = vmul.f32 %v3476, %v3222
      %v3737 = vmul.f32 %v3477, %v3224
      %v3738 = vmul.f32 %v3478, %v3226
      %v3739 = vmul.f32 %v3479, %v3228
      %v3740 = vmul.f32 %v3480, %v3230
      %v3741 = vmul.f32 %v3481, %v3232
      %v3742 = vmul.f32 %v3482, %v3234
      %v3743 = vmul.f32 %v3483, %v3236
      %v3744 = vmul.f32 %v3484, %v3238
      %v3745 = vmul.f32 %v3485, %v3240
      %v3746 = vmul.f32 %v3486, %v3242
      %v3747 = vmul.f32 %v3487, %v3244
      %v3748 = vmul.f32 %v3488, %v3246
      %v3749 = vmul.f32 %v3489, %v3248
      %v3750 = vmul.f32 %v3490, %v3250
      %v3751 = vmul.f32 %v3491, %v3252
      %v3752 = vmul.f32 %v3492, %v3254
      %v3753 = vmul.f32 %v3493, %v3256
      %v3754 = vmul.f32 %v3494, %v3258
      %v3755 = vmul.f32 %v3495, %v3260
      %v3756 = vmul.f32 %v3496, %v3262
      %v3757 = vmul.f32 %v3497, %v3264
      %v3758 = vmul.f32 %v3498, %v3266
      %v3759 = vmul.f32 %v3499, %v3268
      %v3760 = vmul.f32 %v3500, %v3270
      %v3761 = vmul.f32 %v3501, %v3272
      %v3762 = vmul.f32 %v3502, %v3274
      %v3763 = vmul.f32 %v3503, %v3276
      %v3764 = vmul.f32 %v3504, %v3278
      %v3765 = vmul.f32 %v3505, %v3280
      %v3766 = vmul.f32 %v3506, %v3282
      %v3767 = vmul.f32 %v3507, %v3284
      %v3768 = vmul.f32 %v3508, %v3286
      %v3769 = vmul.f32 %v3509, %v3288
      %v3770 = vmul.f32 %v3510, %v3290
      %v3771 = vmul.f32 %v3511, %v3292
      %v3772 = vmul.f32 %v3512, %v3294
      %v3773 = vmul.f32 %v3513, %v3296
      %v3774 = vmul.f32 %v3514, %v3298
      %v3775 = vmul.f32 %v3515, %v3300
      %v3776 = vmul.f32 %v3516, %v3302
      %v3777 = vmul.f32 %v3517, %v3304
      %v3778 = vmul.f32 %v3518, %v3306
      %v3779 = vmul.f32 %v3519, %v3308
      %v3780 = vmul.f32 %v3520, %v3310
      %v3781 = vmul.f32 %v3521, %v3312
      %v3782 = vmul.f32 %v3522, %v3314
      %v3783 = vmul.f32 %v3523, %v3316
      %v3784 = vmul.f32 %v3524, %v3318
      %v3785 = vmul.f32 %v3525, %v3320
      %v3786 = vmul.f32 %v3526, %v3322
      %v3787 = vmul.f32 %v3527, %v3324
      %v3788 = vmul.f32 %v3528, %v3326
      %v3789 = vmul.f32 %v3529, %v3328
      %v3790 = vmul.f32 %v3530, %v3330
      %v3791 = vmul.f32 %v3531, %v3332
      %v3792 = vmul.f32 %v3532, %v3334
      %v3793 = vmul.f32 %v3533, %v3336
      %v3794 = vmul.f32 %v3534, %v3338
      %v3795 = vmul.f32 %v3535, %v3340
      %v3796 = vmul.f32 %v3536, %v3212
      %v3797 = vmul.f32 %v3537, %v3214
      %v3798 = vmul.f32 %v3538, %v3216
      %v3799 = vmul.f32 %v3539, %v3218
      %v3800 = vmul.f32 %v3540, %v3220
      %v3801 = vmul.f32 %v3541, %v3222
      %v3802 = vmul.f32 %v3542, %v3224
      %v3803 = vmul.f32 %v3543, %v3226
      %v3804 = vmul.f32 %v3544, %v3228
      %v3805 = vmul.f32 %v3545, %v3230
      %v3806 = vmul.f32 %v3546, %v3232
      %v3807 = vmul.f32 %v3547, %v3234
      %v3808 = vmul.f32 %v3548, %v3236
      %v3809 = vmul.f32 %v3549, %v3238
      %v3810 = vmul.f32 %v3550, %v3240
      %v3811 = vmul.f32 %v3551, %v3242
      %v3812 = vmul.f32 %v3552, %v3244
      %v3813 = vmul.f32 %v3553, %v3246
      %v3814 = vmul.f32 %v3554, %v3248
      %v3815 = vmul.f32 %v3555, %v3250
      %v3816 = vmul.f32 %v3556, %v3252
      %v3817 = vmul.f32 %v3557, %v3254
      %v3818 = vmul.f32 %v3558, %v3256
      %v3819 = vmul.f32 %v3559, %v3258
      %v3820 = vmul.f32 %v3560, %v3260
      %v3821 = vmul.f32 %v3561, %v3262
      %v3822 = vmul.f32 %v3562, %v3264
      %v3823 = vmul.f32 %v3563, %v3266
      %v3824 = vmul.f32 %v3564, %v3268
      %v3825 = vmul.f32 %v3565, %v3270
      %v3826 = vmul.f32 %v3566, %v3272
      %v3827 = vmul.f32 %v3567, %v3274
      %v3828 = vmul.f32 %v3568, %v3276
      %v3829 = vmul.f32 %v3569, %v3278
      %v3830 = vmul.f32 %v3570, %v3280
      %v3831 = vmul.f32 %v3571, %v3282
      %v3832 = vmul.f32 %v3572, %v3284
      %v3833 = vmul.f32 %v3573, %v3286
      %v3834 = vmul.f32 %v3574, %v3288
      %v3835 = vmul.f32 %v3575, %v3290
      %v3836 = vmul.f32 %v3576, %v3292
      %v3837 = vmul.f32 %v3577, %v3294
      %v3838 = vmul.f32 %v3578, %v3296
      %v3839 = vmul.f32 %v3579, %v3298
      %v3840 = vmul.f32 %v3580, %v3300
      %v3841 = vmul.f32 %v3581, %v3302
      %v3842 = vmul.f32 %v3582, %v3304
      %v3843 = vmul.f32 %v3583, %v3306
      %v3844 = vmul.f32 %v3584, %v3308
      %v3845 = vmul.f32 %v3585, %v3310
      %v3846 = vmul.f32 %v3586, %v3312
      %v3847 = vmul.f32 %v3587, %v3314
      %v3848 = vmul.f32 %v3588, %v3316
      %v3849 = vmul.f32 %v3589, %v3318
      %v3850 = vmul.f32 %v3590, %v3320
      %v3851 = vmul.f32 %v3591, %v3322
      %v3852 = vmul.f32 %v3592, %v3324
      %v3853 = vmul.f32 %v3593, %v3326
      %v3854 = vmul.f32 %v3594, %v3328
      %v3855 = vmul.f32 %v3595, %v3330
      %v3856 = vmul.f32 %v3596, %v3332
      %v3857 = vmul.f32 %v3597, %v3334
      %v3858 = vmul.f32 %v3598, %v3336
      %v3859 = vmul.f32 %v3599, %v3338
      %v3860 = vmul.f32 %v3600, %v3340
      %vm3861 = vcmask 15360
      %v3862 = vsel %vm3861, %v3601, 0.0
      %3863 = vadd.xlane.f32.xlu0 %v3862
      %v3864 = vpop.xlane.xlu0 %3863
      %v3865 = vsel %vm3861, %v3602, 0.0
      %3866 = vadd.xlane.f32.xlu0 %v3865
      %v3867 = vpop.xlane.xlu0 %3866
      %v3868 = vsel %vm3861, %v3603, 0.0
      %3869 = vadd.xlane.f32.xlu0 %v3868
      %v3870 = vpop.xlane.xlu0 %3869
      %v3871 = vsel %vm3861, %v3604, 0.0
      %3872 = vadd.xlane.f32.xlu0 %v3871
      %v3873 = vpop.xlane.xlu0 %3872
      %v3874 = vsel %vm3861, %v3605, 0.0
      %3875 = vadd.xlane.f32.xlu0 %v3874
      %v3876 = vpop.xlane.xlu0 %3875
      %v3877 = vsel %vm3861, %v3606, 0.0
      %3878 = vadd.xlane.f32.xlu0 %v3877
      %v3879 = vpop.xlane.xlu0 %3878
      %v3880 = vsel %vm3861, %v3607, 0.0
      %3881 = vadd.xlane.f32.xlu0 %v3880
      %v3882 = vpop.xlane.xlu0 %3881
      %v3883 = vsel %vm3861, %v3608, 0.0
      %3884 = vadd.xlane.f32.xlu0 %v3883
      %v3885 = vpop.xlane.xlu0 %3884
      %v3886 = vsel %vm3861, %v3609, 0.0
      %3887 = vadd.xlane.f32.xlu0 %v3886
      %v3888 = vpop.xlane.xlu0 %3887
      %v3889 = vsel %vm3861, %v3610, 0.0
      %3890 = vadd.xlane.f32.xlu0 %v3889
      %v3891 = vpop.xlane.xlu0 %3890
      %v3892 = vsel %vm3861, %v3611, 0.0
      %3893 = vadd.xlane.f32.xlu0 %v3892
      %v3894 = vpop.xlane.xlu0 %3893
      %v3895 = vsel %vm3861, %v3612, 0.0
      %3896 = vadd.xlane.f32.xlu0 %v3895
      %v3897 = vpop.xlane.xlu0 %3896
      %v3898 = vsel %vm3861, %v3613, 0.0
      %3899 = vadd.xlane.f32.xlu0 %v3898
      %v3900 = vpop.xlane.xlu0 %3899
      %v3901 = vsel %vm3861, %v3614, 0.0
      %3902 = vadd.xlane.f32.xlu0 %v3901
      %v3903 = vpop.xlane.xlu0 %3902
      %v3904 = vsel %vm3861, %v3615, 0.0
      %3905 = vadd.xlane.f32.xlu0 %v3904
      %v3906 = vpop.xlane.xlu0 %3905
      %v3907 = vsel %vm3861, %v3616, 0.0
      %3908 = vadd.xlane.f32.xlu0 %v3907
      %v3909 = vpop.xlane.xlu0 %3908
      %v3910 = vsel %vm3861, %v3617, 0.0
      %3911 = vadd.xlane.f32.xlu0 %v3910
      %v3912 = vpop.xlane.xlu0 %3911
      %v3913 = vsel %vm3861, %v3618, 0.0
      %3914 = vadd.xlane.f32.xlu0 %v3913
      %v3915 = vpop.xlane.xlu0 %3914
      %v3916 = vsel %vm3861, %v3619, 0.0
      %3917 = vadd.xlane.f32.xlu0 %v3916
      %v3918 = vpop.xlane.xlu0 %3917
      %v3919 = vsel %vm3861, %v3620, 0.0
      %3920 = vadd.xlane.f32.xlu0 %v3919
      %v3921 = vpop.xlane.xlu0 %3920
      %v3922 = vsel %vm3861, %v3621, 0.0
      %3923 = vadd.xlane.f32.xlu0 %v3922
      %v3924 = vpop.xlane.xlu0 %3923
      %v3925 = vsel %vm3861, %v3622, 0.0
      %3926 = vadd.xlane.f32.xlu0 %v3925
      %v3927 = vpop.xlane.xlu0 %3926
      %v3928 = vsel %vm3861, %v3623, 0.0
      %3929 = vadd.xlane.f32.xlu0 %v3928
      %v3930 = vpop.xlane.xlu0 %3929
      %v3931 = vsel %vm3861, %v3624, 0.0
      %3932 = vadd.xlane.f32.xlu0 %v3931
      %v3933 = vpop.xlane.xlu0 %3932
      %v3934 = vsel %vm3861, %v3625, 0.0
      %3935 = vadd.xlane.f32.xlu0 %v3934
      %v3936 = vpop.xlane.xlu0 %3935
      %v3937 = vsel %vm3861, %v3626, 0.0
      %3938 = vadd.xlane.f32.xlu0 %v3937
      %v3939 = vpop.xlane.xlu0 %3938
      %v3940 = vsel %vm3861, %v3627, 0.0
      %3941 = vadd.xlane.f32.xlu0 %v3940
      %v3942 = vpop.xlane.xlu0 %3941
      %v3943 = vsel %vm3861, %v3628, 0.0
      %3944 = vadd.xlane.f32.xlu0 %v3943
      %v3945 = vpop.xlane.xlu0 %3944
      %v3946 = vsel %vm3861, %v3629, 0.0
      %3947 = vadd.xlane.f32.xlu0 %v3946
      %v3948 = vpop.xlane.xlu0 %3947
      %v3949 = vsel %vm3861, %v3630, 0.0
      %3950 = vadd.xlane.f32.xlu0 %v3949
      %v3951 = vpop.xlane.xlu0 %3950
      %v3952 = vsel %vm3861, %v3631, 0.0
      %3953 = vadd.xlane.f32.xlu0 %v3952
      %v3954 = vpop.xlane.xlu0 %3953
      %v3955 = vsel %vm3861, %v3632, 0.0
      %3956 = vadd.xlane.f32.xlu0 %v3955
      %v3957 = vpop.xlane.xlu0 %3956
      %v3958 = vsel %vm3861, %v3633, 0.0
      %3959 = vadd.xlane.f32.xlu0 %v3958
      %v3960 = vpop.xlane.xlu0 %3959
      %v3961 = vsel %vm3861, %v3634, 0.0
      %3962 = vadd.xlane.f32.xlu0 %v3961
      %v3963 = vpop.xlane.xlu0 %3962
      %v3964 = vsel %vm3861, %v3635, 0.0
      %3965 = vadd.xlane.f32.xlu0 %v3964
      %v3966 = vpop.xlane.xlu0 %3965
      %v3967 = vsel %vm3861, %v3636, 0.0
      %3968 = vadd.xlane.f32.xlu0 %v3967
      %v3969 = vpop.xlane.xlu0 %3968
      %v3970 = vsel %vm3861, %v3637, 0.0
      %3971 = vadd.xlane.f32.xlu0 %v3970
      %v3972 = vpop.xlane.xlu0 %3971
      %v3973 = vsel %vm3861, %v3638, 0.0
      %3974 = vadd.xlane.f32.xlu0 %v3973
      %v3975 = vpop.xlane.xlu0 %3974
      %v3976 = vsel %vm3861, %v3639, 0.0
      %3977 = vadd.xlane.f32.xlu0 %v3976
      %v3978 = vpop.xlane.xlu0 %3977
      %v3979 = vsel %vm3861, %v3640, 0.0
      %3980 = vadd.xlane.f32.xlu0 %v3979
      %v3981 = vpop.xlane.xlu0 %3980
      %v3982 = vsel %vm3861, %v3641, 0.0
      %3983 = vadd.xlane.f32.xlu0 %v3982
      %v3984 = vpop.xlane.xlu0 %3983
      %v3985 = vsel %vm3861, %v3642, 0.0
      %3986 = vadd.xlane.f32.xlu0 %v3985
      %v3987 = vpop.xlane.xlu0 %3986
      %v3988 = vsel %vm3861, %v3643, 0.0
      %3989 = vadd.xlane.f32.xlu0 %v3988
      %v3990 = vpop.xlane.xlu0 %3989
      %v3991 = vsel %vm3861, %v3644, 0.0
      %3992 = vadd.xlane.f32.xlu0 %v3991
      %v3993 = vpop.xlane.xlu0 %3992
      %v3994 = vsel %vm3861, %v3645, 0.0
      %3995 = vadd.xlane.f32.xlu0 %v3994
      %v3996 = vpop.xlane.xlu0 %3995
      %v3997 = vsel %vm3861, %v3646, 0.0
      %3998 = vadd.xlane.f32.xlu0 %v3997
      %v3999 = vpop.xlane.xlu0 %3998
      %v4000 = vsel %vm3861, %v3647, 0.0
      %4001 = vadd.xlane.f32.xlu0 %v4000
      %v4002 = vpop.xlane.xlu0 %4001
      %v4003 = vsel %vm3861, %v3648, 0.0
      %4004 = vadd.xlane.f32.xlu0 %v4003
      %v4005 = vpop.xlane.xlu0 %4004
      %v4006 = vsel %vm3861, %v3649, 0.0
      %4007 = vadd.xlane.f32.xlu0 %v4006
      %v4008 = vpop.xlane.xlu0 %4007
      %v4009 = vsel %vm3861, %v3650, 0.0
      %4010 = vadd.xlane.f32.xlu0 %v4009
      %v4011 = vpop.xlane.xlu0 %4010
      %v4012 = vsel %vm3861, %v3651, 0.0
      %4013 = vadd.xlane.f32.xlu0 %v4012
      %v4014 = vpop.xlane.xlu0 %4013
      %v4015 = vsel %vm3861, %v3652, 0.0
      %4016 = vadd.xlane.f32.xlu0 %v4015
      %v4017 = vpop.xlane.xlu0 %4016
      %v4018 = vsel %vm3861, %v3653, 0.0
      %4019 = vadd.xlane.f32.xlu0 %v4018
      %v4020 = vpop.xlane.xlu0 %4019
      %v4021 = vsel %vm3861, %v3654, 0.0
      %4022 = vadd.xlane.f32.xlu0 %v4021
      %v4023 = vpop.xlane.xlu0 %4022
      %v4024 = vsel %vm3861, %v3655, 0.0
      %4025 = vadd.xlane.f32.xlu0 %v4024
      %v4026 = vpop.xlane.xlu0 %4025
      %v4027 = vsel %vm3861, %v3656, 0.0
      %4028 = vadd.xlane.f32.xlu0 %v4027
      %v4029 = vpop.xlane.xlu0 %4028
      %v4030 = vsel %vm3861, %v3657, 0.0
      %4031 = vadd.xlane.f32.xlu0 %v4030
      %v4032 = vpop.xlane.xlu0 %4031
      %v4033 = vsel %vm3861, %v3658, 0.0
      %4034 = vadd.xlane.f32.xlu0 %v4033
      %v4035 = vpop.xlane.xlu0 %4034
      %v4036 = vsel %vm3861, %v3659, 0.0
      %4037 = vadd.xlane.f32.xlu0 %v4036
      %v4038 = vpop.xlane.xlu0 %4037
      %v4039 = vsel %vm3861, %v3660, 0.0
      %4040 = vadd.xlane.f32.xlu0 %v4039
      %v4041 = vpop.xlane.xlu0 %4040
      %v4042 = vsel %vm3861, %v3661, 0.0
      %4043 = vadd.xlane.f32.xlu0 %v4042
      %v4044 = vpop.xlane.xlu0 %4043
      %v4045 = vsel %vm3861, %v3662, 0.0
      %4046 = vadd.xlane.f32.xlu0 %v4045
      %v4047 = vpop.xlane.xlu0 %4046
      %v4048 = vsel %vm3861, %v3663, 0.0
      %4049 = vadd.xlane.f32.xlu0 %v4048
      %v4050 = vpop.xlane.xlu0 %4049
      %v4051 = vsel %vm3861, %v3664, 0.0
      %4052 = vadd.xlane.f32.xlu0 %v4051
      %v4053 = vpop.xlane.xlu0 %4052
      %v4054 = vsel %vm3861, %v3665, 0.0
      %4055 = vadd.xlane.f32.xlu0 %v4054
      %v4056 = vpop.xlane.xlu0 %4055
      %v4057 = vsel %vm3861, %v3666, 0.0
      %4058 = vadd.xlane.f32.xlu0 %v4057
      %v4059 = vpop.xlane.xlu0 %4058
      %v4060 = vsel %vm3861, %v3667, 0.0
      %4061 = vadd.xlane.f32.xlu0 %v4060
      %v4062 = vpop.xlane.xlu0 %4061
      %v4063 = vsel %vm3861, %v3668, 0.0
      %4064 = vadd.xlane.f32.xlu0 %v4063
      %v4065 = vpop.xlane.xlu0 %4064
      %v4066 = vsel %vm3861, %v3669, 0.0
      %4067 = vadd.xlane.f32.xlu0 %v4066
      %v4068 = vpop.xlane.xlu0 %4067
      %v4069 = vsel %vm3861, %v3670, 0.0
      %4070 = vadd.xlane.f32.xlu0 %v4069
      %v4071 = vpop.xlane.xlu0 %4070
      %v4072 = vsel %vm3861, %v3671, 0.0
      %4073 = vadd.xlane.f32.xlu0 %v4072
      %v4074 = vpop.xlane.xlu0 %4073
      %v4075 = vsel %vm3861, %v3672, 0.0
      %4076 = vadd.xlane.f32.xlu0 %v4075
      %v4077 = vpop.xlane.xlu0 %4076
      %v4078 = vsel %vm3861, %v3673, 0.0
      %4079 = vadd.xlane.f32.xlu0 %v4078
      %v4080 = vpop.xlane.xlu0 %4079
      %v4081 = vsel %vm3861, %v3674, 0.0
      %4082 = vadd.xlane.f32.xlu0 %v4081
      %v4083 = vpop.xlane.xlu0 %4082
      %v4084 = vsel %vm3861, %v3675, 0.0
      %4085 = vadd.xlane.f32.xlu0 %v4084
      %v4086 = vpop.xlane.xlu0 %4085
      %v4087 = vsel %vm3861, %v3676, 0.0
      %4088 = vadd.xlane.f32.xlu0 %v4087
      %v4089 = vpop.xlane.xlu0 %4088
      %v4090 = vsel %vm3861, %v3677, 0.0
      %4091 = vadd.xlane.f32.xlu0 %v4090
      %v4092 = vpop.xlane.xlu0 %4091
      %v4093 = vsel %vm3861, %v3678, 0.0
      %4094 = vadd.xlane.f32.xlu0 %v4093
      %v4095 = vpop.xlane.xlu0 %4094
      %v4096 = vsel %vm3861, %v3679, 0.0
      %4097 = vadd.xlane.f32.xlu0 %v4096
      %v4098 = vpop.xlane.xlu0 %4097
      %v4099 = vsel %vm3861, %v3680, 0.0
      %4100 = vadd.xlane.f32.xlu0 %v4099
      %v4101 = vpop.xlane.xlu0 %4100
      %v4102 = vsel %vm3861, %v3681, 0.0
      %4103 = vadd.xlane.f32.xlu0 %v4102
      %v4104 = vpop.xlane.xlu0 %4103
      %v4105 = vsel %vm3861, %v3682, 0.0
      %4106 = vadd.xlane.f32.xlu0 %v4105
      %v4107 = vpop.xlane.xlu0 %4106
      %v4108 = vsel %vm3861, %v3683, 0.0
      %4109 = vadd.xlane.f32.xlu0 %v4108
      %v4110 = vpop.xlane.xlu0 %4109
      %v4111 = vsel %vm3861, %v3684, 0.0
      %4112 = vadd.xlane.f32.xlu0 %v4111
      %v4113 = vpop.xlane.xlu0 %4112
      %v4114 = vsel %vm3861, %v3685, 0.0
      %4115 = vadd.xlane.f32.xlu0 %v4114
      %v4116 = vpop.xlane.xlu0 %4115
      %v4117 = vsel %vm3861, %v3686, 0.0
      %4118 = vadd.xlane.f32.xlu0 %v4117
      %v4119 = vpop.xlane.xlu0 %4118
      %v4120 = vsel %vm3861, %v3687, 0.0
      %4121 = vadd.xlane.f32.xlu0 %v4120
      %v4122 = vpop.xlane.xlu0 %4121
      %v4123 = vsel %vm3861, %v3688, 0.0
      %4124 = vadd.xlane.f32.xlu0 %v4123
      %v4125 = vpop.xlane.xlu0 %4124
      %v4126 = vsel %vm3861, %v3689, 0.0
      %4127 = vadd.xlane.f32.xlu0 %v4126
      %v4128 = vpop.xlane.xlu0 %4127
      %v4129 = vsel %vm3861, %v3690, 0.0
      %4130 = vadd.xlane.f32.xlu0 %v4129
      %v4131 = vpop.xlane.xlu0 %4130
      %v4132 = vsel %vm3861, %v3691, 0.0
      %4133 = vadd.xlane.f32.xlu0 %v4132
      %v4134 = vpop.xlane.xlu0 %4133
      %v4135 = vsel %vm3861, %v3692, 0.0
      %4136 = vadd.xlane.f32.xlu0 %v4135
      %v4137 = vpop.xlane.xlu0 %4136
      %v4138 = vsel %vm3861, %v3693, 0.0
      %4139 = vadd.xlane.f32.xlu0 %v4138
      %v4140 = vpop.xlane.xlu0 %4139
      %v4141 = vsel %vm3861, %v3694, 0.0
      %4142 = vadd.xlane.f32.xlu0 %v4141
      %v4143 = vpop.xlane.xlu0 %4142
      %v4144 = vsel %vm3861, %v3695, 0.0
      %4145 = vadd.xlane.f32.xlu0 %v4144
      %v4146 = vpop.xlane.xlu0 %4145
      %v4147 = vsel %vm3861, %v3696, 0.0
      %4148 = vadd.xlane.f32.xlu0 %v4147
      %v4149 = vpop.xlane.xlu0 %4148
      %v4150 = vsel %vm3861, %v3697, 0.0
      %4151 = vadd.xlane.f32.xlu0 %v4150
      %v4152 = vpop.xlane.xlu0 %4151
      %v4153 = vsel %vm3861, %v3698, 0.0
      %4154 = vadd.xlane.f32.xlu0 %v4153
      %v4155 = vpop.xlane.xlu0 %4154
      %v4156 = vsel %vm3861, %v3699, 0.0
      %4157 = vadd.xlane.f32.xlu0 %v4156
      %v4158 = vpop.xlane.xlu0 %4157
      %v4159 = vsel %vm3861, %v3700, 0.0
      %4160 = vadd.xlane.f32.xlu0 %v4159
      %v4161 = vpop.xlane.xlu0 %4160
      %v4162 = vsel %vm3861, %v3701, 0.0
      %4163 = vadd.xlane.f32.xlu0 %v4162
      %v4164 = vpop.xlane.xlu0 %4163
      %v4165 = vsel %vm3861, %v3702, 0.0
      %4166 = vadd.xlane.f32.xlu0 %v4165
      %v4167 = vpop.xlane.xlu0 %4166
      %v4168 = vsel %vm3861, %v3703, 0.0
      %4169 = vadd.xlane.f32.xlu0 %v4168
      %v4170 = vpop.xlane.xlu0 %4169
      %v4171 = vsel %vm3861, %v3704, 0.0
      %4172 = vadd.xlane.f32.xlu0 %v4171
      %v4173 = vpop.xlane.xlu0 %4172
      %v4174 = vsel %vm3861, %v3705, 0.0
      %4175 = vadd.xlane.f32.xlu0 %v4174
      %v4176 = vpop.xlane.xlu0 %4175
      %v4177 = vsel %vm3861, %v3706, 0.0
      %4178 = vadd.xlane.f32.xlu0 %v4177
      %v4179 = vpop.xlane.xlu0 %4178
      %v4180 = vsel %vm3861, %v3707, 0.0
      %4181 = vadd.xlane.f32.xlu0 %v4180
      %v4182 = vpop.xlane.xlu0 %4181
      %v4183 = vsel %vm3861, %v3708, 0.0
      %4184 = vadd.xlane.f32.xlu0 %v4183
      %v4185 = vpop.xlane.xlu0 %4184
      %v4186 = vsel %vm3861, %v3709, 0.0
      %4187 = vadd.xlane.f32.xlu0 %v4186
      %v4188 = vpop.xlane.xlu0 %4187
      %v4189 = vsel %vm3861, %v3710, 0.0
      %4190 = vadd.xlane.f32.xlu0 %v4189
      %v4191 = vpop.xlane.xlu0 %4190
      %v4192 = vsel %vm3861, %v3711, 0.0
      %4193 = vadd.xlane.f32.xlu0 %v4192
      %v4194 = vpop.xlane.xlu0 %4193
      %v4195 = vsel %vm3861, %v3712, 0.0
      %4196 = vadd.xlane.f32.xlu0 %v4195
      %v4197 = vpop.xlane.xlu0 %4196
      %v4198 = vsel %vm3861, %v3713, 0.0
      %4199 = vadd.xlane.f32.xlu0 %v4198
      %v4200 = vpop.xlane.xlu0 %4199
      %v4201 = vsel %vm3861, %v3714, 0.0
      %4202 = vadd.xlane.f32.xlu0 %v4201
      %v4203 = vpop.xlane.xlu0 %4202
      %v4204 = vsel %vm3861, %v3715, 0.0
      %4205 = vadd.xlane.f32.xlu0 %v4204
      %v4206 = vpop.xlane.xlu0 %4205
      %v4207 = vsel %vm3861, %v3716, 0.0
      %4208 = vadd.xlane.f32.xlu0 %v4207
      %v4209 = vpop.xlane.xlu0 %4208
      %v4210 = vsel %vm3861, %v3717, 0.0
      %4211 = vadd.xlane.f32.xlu0 %v4210
      %v4212 = vpop.xlane.xlu0 %4211
      %v4213 = vsel %vm3861, %v3718, 0.0
      %4214 = vadd.xlane.f32.xlu0 %v4213
      %v4215 = vpop.xlane.xlu0 %4214
      %v4216 = vsel %vm3861, %v3719, 0.0
      %4217 = vadd.xlane.f32.xlu0 %v4216
      %v4218 = vpop.xlane.xlu0 %4217
      %v4219 = vsel %vm3861, %v3720, 0.0
      %4220 = vadd.xlane.f32.xlu0 %v4219
      %v4221 = vpop.xlane.xlu0 %4220
      %v4222 = vsel %vm3861, %v3721, 0.0
      %4223 = vadd.xlane.f32.xlu0 %v4222
      %v4224 = vpop.xlane.xlu0 %4223
      %v4225 = vsel %vm3861, %v3722, 0.0
      %4226 = vadd.xlane.f32.xlu0 %v4225
      %v4227 = vpop.xlane.xlu0 %4226
      %v4228 = vsel %vm3861, %v3723, 0.0
      %4229 = vadd.xlane.f32.xlu0 %v4228
      %v4230 = vpop.xlane.xlu0 %4229
      %v4231 = vsel %vm3861, %v3724, 0.0
      %4232 = vadd.xlane.f32.xlu0 %v4231
      %v4233 = vpop.xlane.xlu0 %4232
      %v4234 = vsel %vm3861, %v3725, 0.0
      %4235 = vadd.xlane.f32.xlu0 %v4234
      %v4236 = vpop.xlane.xlu0 %4235
      %v4237 = vsel %vm3861, %v3726, 0.0
      %4238 = vadd.xlane.f32.xlu0 %v4237
      %v4239 = vpop.xlane.xlu0 %4238
      %v4240 = vsel %vm3861, %v3727, 0.0
      %4241 = vadd.xlane.f32.xlu0 %v4240
      %v4242 = vpop.xlane.xlu0 %4241
      %v4243 = vsel %vm3861, %v3728, 0.0
      %4244 = vadd.xlane.f32.xlu0 %v4243
      %v4245 = vpop.xlane.xlu0 %4244
      %v4246 = vsel %vm3861, %v3729, 0.0
      %4247 = vadd.xlane.f32.xlu0 %v4246
      %v4248 = vpop.xlane.xlu0 %4247
      %v4249 = vsel %vm3861, %v3730, 0.0
      %4250 = vadd.xlane.f32.xlu0 %v4249
      %v4251 = vpop.xlane.xlu0 %4250
      %v4252 = vsel %vm3861, %v3731, 0.0
      %4253 = vadd.xlane.f32.xlu0 %v4252
      %v4254 = vpop.xlane.xlu0 %4253
      %v4255 = vsel %vm3861, %v3732, 0.0
      %4256 = vadd.xlane.f32.xlu0 %v4255
      %v4257 = vpop.xlane.xlu0 %4256
      %v4258 = vsel %vm3861, %v3733, 0.0
      %4259 = vadd.xlane.f32.xlu0 %v4258
      %v4260 = vpop.xlane.xlu0 %4259
      %v4261 = vsel %vm3861, %v3734, 0.0
      %4262 = vadd.xlane.f32.xlu0 %v4261
      %v4263 = vpop.xlane.xlu0 %4262
      %v4264 = vsel %vm3861, %v3735, 0.0
      %4265 = vadd.xlane.f32.xlu0 %v4264
      %v4266 = vpop.xlane.xlu0 %4265
      %v4267 = vsel %vm3861, %v3736, 0.0
      %4268 = vadd.xlane.f32.xlu0 %v4267
      %v4269 = vpop.xlane.xlu0 %4268
      %v4270 = vsel %vm3861, %v3737, 0.0
      %4271 = vadd.xlane.f32.xlu0 %v4270
      %v4272 = vpop.xlane.xlu0 %4271
      %v4273 = vsel %vm3861, %v3738, 0.0
      %4274 = vadd.xlane.f32.xlu0 %v4273
      %v4275 = vpop.xlane.xlu0 %4274
      %v4276 = vsel %vm3861, %v3739, 0.0
      %4277 = vadd.xlane.f32.xlu0 %v4276
      %v4278 = vpop.xlane.xlu0 %4277
      %v4279 = vsel %vm3861, %v3740, 0.0
      %4280 = vadd.xlane.f32.xlu0 %v4279
      %v4281 = vpop.xlane.xlu0 %4280
      %v4282 = vsel %vm3861, %v3741, 0.0
      %4283 = vadd.xlane.f32.xlu0 %v4282
      %v4284 = vpop.xlane.xlu0 %4283
      %v4285 = vsel %vm3861, %v3742, 0.0
      %4286 = vadd.xlane.f32.xlu0 %v4285
      %v4287 = vpop.xlane.xlu0 %4286
      %v4288 = vsel %vm3861, %v3743, 0.0
      %4289 = vadd.xlane.f32.xlu0 %v4288
      %v4290 = vpop.xlane.xlu0 %4289
      %v4291 = vsel %vm3861, %v3744, 0.0
      %4292 = vadd.xlane.f32.xlu0 %v4291
      %v4293 = vpop.xlane.xlu0 %4292
      %v4294 = vsel %vm3861, %v3745, 0.0
      %4295 = vadd.xlane.f32.xlu0 %v4294
      %v4296 = vpop.xlane.xlu0 %4295
      %v4297 = vsel %vm3861, %v3746, 0.0
      %4298 = vadd.xlane.f32.xlu0 %v4297
      %v4299 = vpop.xlane.xlu0 %4298
      %v4300 = vsel %vm3861, %v3747, 0.0
      %4301 = vadd.xlane.f32.xlu0 %v4300
      %v4302 = vpop.xlane.xlu0 %4301
      %v4303 = vsel %vm3861, %v3748, 0.0
      %4304 = vadd.xlane.f32.xlu0 %v4303
      %v4305 = vpop.xlane.xlu0 %4304
      %v4306 = vsel %vm3861, %v3749, 0.0
      %4307 = vadd.xlane.f32.xlu0 %v4306
      %v4308 = vpop.xlane.xlu0 %4307
      %v4309 = vsel %vm3861, %v3750, 0.0
      %4310 = vadd.xlane.f32.xlu0 %v4309
      %v4311 = vpop.xlane.xlu0 %4310
      %v4312 = vsel %vm3861, %v3751, 0.0
      %4313 = vadd.xlane.f32.xlu0 %v4312
      %v4314 = vpop.xlane.xlu0 %4313
      %v4315 = vsel %vm3861, %v3752, 0.0
      %4316 = vadd.xlane.f32.xlu0 %v4315
      %v4317 = vpop.xlane.xlu0 %4316
      %v4318 = vsel %vm3861, %v3753, 0.0
      %4319 = vadd.xlane.f32.xlu0 %v4318
      %v4320 = vpop.xlane.xlu0 %4319
      %v4321 = vsel %vm3861, %v3754, 0.0
      %4322 = vadd.xlane.f32.xlu0 %v4321
      %v4323 = vpop.xlane.xlu0 %4322
      %v4324 = vsel %vm3861, %v3755, 0.0
      %4325 = vadd.xlane.f32.xlu0 %v4324
      %v4326 = vpop.xlane.xlu0 %4325
      %v4327 = vsel %vm3861, %v3756, 0.0
      %4328 = vadd.xlane.f32.xlu0 %v4327
      %v4329 = vpop.xlane.xlu0 %4328
      %v4330 = vsel %vm3861, %v3757, 0.0
      %4331 = vadd.xlane.f32.xlu0 %v4330
      %v4332 = vpop.xlane.xlu0 %4331
      %v4333 = vsel %vm3861, %v3758, 0.0
      %4334 = vadd.xlane.f32.xlu0 %v4333
      %v4335 = vpop.xlane.xlu0 %4334
      %v4336 = vsel %vm3861, %v3759, 0.0
      %4337 = vadd.xlane.f32.xlu0 %v4336
      %v4338 = vpop.xlane.xlu0 %4337
      %v4339 = vsel %vm3861, %v3760, 0.0
      %4340 = vadd.xlane.f32.xlu0 %v4339
      %v4341 = vpop.xlane.xlu0 %4340
      %v4342 = vsel %vm3861, %v3761, 0.0
      %4343 = vadd.xlane.f32.xlu0 %v4342
      %v4344 = vpop.xlane.xlu0 %4343
      %v4345 = vsel %vm3861, %v3762, 0.0
      %4346 = vadd.xlane.f32.xlu0 %v4345
      %v4347 = vpop.xlane.xlu0 %4346
      %v4348 = vsel %vm3861, %v3763, 0.0
      %4349 = vadd.xlane.f32.xlu0 %v4348
      %v4350 = vpop.xlane.xlu0 %4349
      %v4351 = vsel %vm3861, %v3764, 0.0
      %4352 = vadd.xlane.f32.xlu0 %v4351
      %v4353 = vpop.xlane.xlu0 %4352
      %v4354 = vsel %vm3861, %v3765, 0.0
      %4355 = vadd.xlane.f32.xlu0 %v4354
      %v4356 = vpop.xlane.xlu0 %4355
      %v4357 = vsel %vm3861, %v3766, 0.0
      %4358 = vadd.xlane.f32.xlu0 %v4357
      %v4359 = vpop.xlane.xlu0 %4358
      %v4360 = vsel %vm3861, %v3767, 0.0
      %4361 = vadd.xlane.f32.xlu0 %v4360
      %v4362 = vpop.xlane.xlu0 %4361
      %v4363 = vsel %vm3861, %v3768, 0.0
      %4364 = vadd.xlane.f32.xlu0 %v4363
      %v4365 = vpop.xlane.xlu0 %4364
      %v4366 = vsel %vm3861, %v3769, 0.0
      %4367 = vadd.xlane.f32.xlu0 %v4366
      %v4368 = vpop.xlane.xlu0 %4367
      %v4369 = vsel %vm3861, %v3770, 0.0
      %4370 = vadd.xlane.f32.xlu0 %v4369
      %v4371 = vpop.xlane.xlu0 %4370
      %v4372 = vsel %vm3861, %v3771, 0.0
      %4373 = vadd.xlane.f32.xlu0 %v4372
      %v4374 = vpop.xlane.xlu0 %4373
      %v4375 = vsel %vm3861, %v3772, 0.0
      %4376 = vadd.xlane.f32.xlu0 %v4375
      %v4377 = vpop.xlane.xlu0 %4376
      %v4378 = vsel %vm3861, %v3773, 0.0
      %4379 = vadd.xlane.f32.xlu0 %v4378
      %v4380 = vpop.xlane.xlu0 %4379
      %v4381 = vsel %vm3861, %v3774, 0.0
      %4382 = vadd.xlane.f32.xlu0 %v4381
      %v4383 = vpop.xlane.xlu0 %4382
      %v4384 = vsel %vm3861, %v3775, 0.0
      %4385 = vadd.xlane.f32.xlu0 %v4384
      %v4386 = vpop.xlane.xlu0 %4385
      %v4387 = vsel %vm3861, %v3776, 0.0
      %4388 = vadd.xlane.f32.xlu0 %v4387
      %v4389 = vpop.xlane.xlu0 %4388
      %v4390 = vsel %vm3861, %v3777, 0.0
      %4391 = vadd.xlane.f32.xlu0 %v4390
      %v4392 = vpop.xlane.xlu0 %4391
      %v4393 = vsel %vm3861, %v3778, 0.0
      %4394 = vadd.xlane.f32.xlu0 %v4393
      %v4395 = vpop.xlane.xlu0 %4394
      %v4396 = vsel %vm3861, %v3779, 0.0
      %4397 = vadd.xlane.f32.xlu0 %v4396
      %v4398 = vpop.xlane.xlu0 %4397
      %v4399 = vsel %vm3861, %v3780, 0.0
      %4400 = vadd.xlane.f32.xlu0 %v4399
      %v4401 = vpop.xlane.xlu0 %4400
      %v4402 = vsel %vm3861, %v3781, 0.0
      %4403 = vadd.xlane.f32.xlu0 %v4402
      %v4404 = vpop.xlane.xlu0 %4403
      %v4405 = vsel %vm3861, %v3782, 0.0
      %4406 = vadd.xlane.f32.xlu0 %v4405
      %v4407 = vpop.xlane.xlu0 %4406
      %v4408 = vsel %vm3861, %v3783, 0.0
      %4409 = vadd.xlane.f32.xlu0 %v4408
      %v4410 = vpop.xlane.xlu0 %4409
      %v4411 = vsel %vm3861, %v3784, 0.0
      %4412 = vadd.xlane.f32.xlu0 %v4411
      %v4413 = vpop.xlane.xlu0 %4412
      %v4414 = vsel %vm3861, %v3785, 0.0
      %4415 = vadd.xlane.f32.xlu0 %v4414
      %v4416 = vpop.xlane.xlu0 %4415
      %v4417 = vsel %vm3861, %v3786, 0.0
      %4418 = vadd.xlane.f32.xlu0 %v4417
      %v4419 = vpop.xlane.xlu0 %4418
      %v4420 = vsel %vm3861, %v3787, 0.0
      %4421 = vadd.xlane.f32.xlu0 %v4420
      %v4422 = vpop.xlane.xlu0 %4421
      %v4423 = vsel %vm3861, %v3788, 0.0
      %4424 = vadd.xlane.f32.xlu0 %v4423
      %v4425 = vpop.xlane.xlu0 %4424
      %v4426 = vsel %vm3861, %v3789, 0.0
      %4427 = vadd.xlane.f32.xlu0 %v4426
      %v4428 = vpop.xlane.xlu0 %4427
      %v4429 = vsel %vm3861, %v3790, 0.0
      %4430 = vadd.xlane.f32.xlu0 %v4429
      %v4431 = vpop.xlane.xlu0 %4430
      %v4432 = vsel %vm3861, %v3791, 0.0
      %4433 = vadd.xlane.f32.xlu0 %v4432
      %v4434 = vpop.xlane.xlu0 %4433
      %v4435 = vsel %vm3861, %v3792, 0.0
      %4436 = vadd.xlane.f32.xlu0 %v4435
      %v4437 = vpop.xlane.xlu0 %4436
      %v4438 = vsel %vm3861, %v3793, 0.0
      %4439 = vadd.xlane.f32.xlu0 %v4438
      %v4440 = vpop.xlane.xlu0 %4439
      %v4441 = vsel %vm3861, %v3794, 0.0
      %4442 = vadd.xlane.f32.xlu0 %v4441
      %v4443 = vpop.xlane.xlu0 %4442
      %v4444 = vsel %vm3861, %v3795, 0.0
      %4445 = vadd.xlane.f32.xlu0 %v4444
      %v4446 = vpop.xlane.xlu0 %4445
      %v4447 = vsel %vm3861, %v3796, 0.0
      %4448 = vadd.xlane.f32.xlu0 %v4447
      %v4449 = vpop.xlane.xlu0 %4448
      %v4450 = vsel %vm3861, %v3797, 0.0
      %4451 = vadd.xlane.f32.xlu0 %v4450
      %v4452 = vpop.xlane.xlu0 %4451
      %v4453 = vsel %vm3861, %v3798, 0.0
      %4454 = vadd.xlane.f32.xlu0 %v4453
      %v4455 = vpop.xlane.xlu0 %4454
      %v4456 = vsel %vm3861, %v3799, 0.0
      %4457 = vadd.xlane.f32.xlu0 %v4456
      %v4458 = vpop.xlane.xlu0 %4457
      %v4459 = vsel %vm3861, %v3800, 0.0
      %4460 = vadd.xlane.f32.xlu0 %v4459
      %v4461 = vpop.xlane.xlu0 %4460
      %v4462 = vsel %vm3861, %v3801, 0.0
      %4463 = vadd.xlane.f32.xlu0 %v4462
      %v4464 = vpop.xlane.xlu0 %4463
      %v4465 = vsel %vm3861, %v3802, 0.0
      %4466 = vadd.xlane.f32.xlu0 %v4465
      %v4467 = vpop.xlane.xlu0 %4466
      %v4468 = vsel %vm3861, %v3803, 0.0
      %4469 = vadd.xlane.f32.xlu0 %v4468
      %v4470 = vpop.xlane.xlu0 %4469
      %v4471 = vsel %vm3861, %v3804, 0.0
      %4472 = vadd.xlane.f32.xlu0 %v4471
      %v4473 = vpop.xlane.xlu0 %4472
      %v4474 = vsel %vm3861, %v3805, 0.0
      %4475 = vadd.xlane.f32.xlu0 %v4474
      %v4476 = vpop.xlane.xlu0 %4475
      %v4477 = vsel %vm3861, %v3806, 0.0
      %4478 = vadd.xlane.f32.xlu0 %v4477
      %v4479 = vpop.xlane.xlu0 %4478
      %v4480 = vsel %vm3861, %v3807, 0.0
      %4481 = vadd.xlane.f32.xlu0 %v4480
      %v4482 = vpop.xlane.xlu0 %4481
      %v4483 = vsel %vm3861, %v3808, 0.0
      %4484 = vadd.xlane.f32.xlu0 %v4483
      %v4485 = vpop.xlane.xlu0 %4484
      %v4486 = vsel %vm3861, %v3809, 0.0
      %4487 = vadd.xlane.f32.xlu0 %v4486
      %v4488 = vpop.xlane.xlu0 %4487
      %v4489 = vsel %vm3861, %v3810, 0.0
      %4490 = vadd.xlane.f32.xlu0 %v4489
      %v4491 = vpop.xlane.xlu0 %4490
      %v4492 = vsel %vm3861, %v3811, 0.0
      %4493 = vadd.xlane.f32.xlu0 %v4492
      %v4494 = vpop.xlane.xlu0 %4493
      %v4495 = vsel %vm3861, %v3812, 0.0
      %4496 = vadd.xlane.f32.xlu0 %v4495
      %v4497 = vpop.xlane.xlu0 %4496
      %v4498 = vsel %vm3861, %v3813, 0.0
      %4499 = vadd.xlane.f32.xlu0 %v4498
      %v4500 = vpop.xlane.xlu0 %4499
      %v4501 = vsel %vm3861, %v3814, 0.0
      %4502 = vadd.xlane.f32.xlu0 %v4501
      %v4503 = vpop.xlane.xlu0 %4502
      %v4504 = vsel %vm3861, %v3815, 0.0
      %4505 = vadd.xlane.f32.xlu0 %v4504
      %v4506 = vpop.xlane.xlu0 %4505
      %v4507 = vsel %vm3861, %v3816, 0.0
      %4508 = vadd.xlane.f32.xlu0 %v4507
      %v4509 = vpop.xlane.xlu0 %4508
      %v4510 = vsel %vm3861, %v3817, 0.0
      %4511 = vadd.xlane.f32.xlu0 %v4510
      %v4512 = vpop.xlane.xlu0 %4511
      %v4513 = vsel %vm3861, %v3818, 0.0
      %4514 = vadd.xlane.f32.xlu0 %v4513
      %v4515 = vpop.xlane.xlu0 %4514
      %v4516 = vsel %vm3861, %v3819, 0.0
      %4517 = vadd.xlane.f32.xlu0 %v4516
      %v4518 = vpop.xlane.xlu0 %4517
      %v4519 = vsel %vm3861, %v3820, 0.0
      %4520 = vadd.xlane.f32.xlu0 %v4519
      %v4521 = vpop.xlane.xlu0 %4520
      %v4522 = vsel %vm3861, %v3821, 0.0
      %4523 = vadd.xlane.f32.xlu0 %v4522
      %v4524 = vpop.xlane.xlu0 %4523
      %v4525 = vsel %vm3861, %v3822, 0.0
      %4526 = vadd.xlane.f32.xlu0 %v4525
      %v4527 = vpop.xlane.xlu0 %4526
      %v4528 = vsel %vm3861, %v3823, 0.0
      %4529 = vadd.xlane.f32.xlu0 %v4528
      %v4530 = vpop.xlane.xlu0 %4529
      %v4531 = vsel %vm3861, %v3824, 0.0
      %4532 = vadd.xlane.f32.xlu0 %v4531
      %v4533 = vpop.xlane.xlu0 %4532
      %v4534 = vsel %vm3861, %v3825, 0.0
      %4535 = vadd.xlane.f32.xlu0 %v4534
      %v4536 = vpop.xlane.xlu0 %4535
      %v4537 = vsel %vm3861, %v3826, 0.0
      %4538 = vadd.xlane.f32.xlu0 %v4537
      %v4539 = vpop.xlane.xlu0 %4538
      %v4540 = vsel %vm3861, %v3827, 0.0
      %4541 = vadd.xlane.f32.xlu0 %v4540
      %v4542 = vpop.xlane.xlu0 %4541
      %v4543 = vsel %vm3861, %v3828, 0.0
      %4544 = vadd.xlane.f32.xlu0 %v4543
      %v4545 = vpop.xlane.xlu0 %4544
      %v4546 = vsel %vm3861, %v3829, 0.0
      %4547 = vadd.xlane.f32.xlu0 %v4546
      %v4548 = vpop.xlane.xlu0 %4547
      %v4549 = vsel %vm3861, %v3830, 0.0
      %4550 = vadd.xlane.f32.xlu0 %v4549
      %v4551 = vpop.xlane.xlu0 %4550
      %v4552 = vsel %vm3861, %v3831, 0.0
      %4553 = vadd.xlane.f32.xlu0 %v4552
      %v4554 = vpop.xlane.xlu0 %4553
      %v4555 = vsel %vm3861, %v3832, 0.0
      %4556 = vadd.xlane.f32.xlu0 %v4555
      %v4557 = vpop.xlane.xlu0 %4556
      %v4558 = vsel %vm3861, %v3833, 0.0
      %4559 = vadd.xlane.f32.xlu0 %v4558
      %v4560 = vpop.xlane.xlu0 %4559
      %v4561 = vsel %vm3861, %v3834, 0.0
      %4562 = vadd.xlane.f32.xlu0 %v4561
      %v4563 = vpop.xlane.xlu0 %4562
      %v4564 = vsel %vm3861, %v3835, 0.0
      %4565 = vadd.xlane.f32.xlu0 %v4564
      %v4566 = vpop.xlane.xlu0 %4565
      %v4567 = vsel %vm3861, %v3836, 0.0
      %4568 = vadd.xlane.f32.xlu0 %v4567
      %v4569 = vpop.xlane.xlu0 %4568
      %v4570 = vsel %vm3861, %v3837, 0.0
      %4571 = vadd.xlane.f32.xlu0 %v4570
      %v4572 = vpop.xlane.xlu0 %4571
      %v4573 = vsel %vm3861, %v3838, 0.0
      %4574 = vadd.xlane.f32.xlu0 %v4573
      %v4575 = vpop.xlane.xlu0 %4574
      %v4576 = vsel %vm3861, %v3839, 0.0
      %4577 = vadd.xlane.f32.xlu0 %v4576
      %v4578 = vpop.xlane.xlu0 %4577
      %v4579 = vsel %vm3861, %v3840, 0.0
      %4580 = vadd.xlane.f32.xlu0 %v4579
      %v4581 = vpop.xlane.xlu0 %4580
      %v4582 = vsel %vm3861, %v3841, 0.0
      %4583 = vadd.xlane.f32.xlu0 %v4582
      %v4584 = vpop.xlane.xlu0 %4583
      %v4585 = vsel %vm3861, %v3842, 0.0
      %4586 = vadd.xlane.f32.xlu0 %v4585
      %v4587 = vpop.xlane.xlu0 %4586
      %v4588 = vsel %vm3861, %v3843, 0.0
      %4589 = vadd.xlane.f32.xlu0 %v4588
      %v4590 = vpop.xlane.xlu0 %4589
      %v4591 = vsel %vm3861, %v3844, 0.0
      %4592 = vadd.xlane.f32.xlu0 %v4591
      %v4593 = vpop.xlane.xlu0 %4592
      %v4594 = vsel %vm3861, %v3845, 0.0
      %4595 = vadd.xlane.f32.xlu0 %v4594
      %v4596 = vpop.xlane.xlu0 %4595
      %v4597 = vsel %vm3861, %v3846, 0.0
      %4598 = vadd.xlane.f32.xlu0 %v4597
      %v4599 = vpop.xlane.xlu0 %4598
      %v4600 = vsel %vm3861, %v3847, 0.0
      %4601 = vadd.xlane.f32.xlu0 %v4600
      %v4602 = vpop.xlane.xlu0 %4601
      %v4603 = vsel %vm3861, %v3848, 0.0
      %4604 = vadd.xlane.f32.xlu0 %v4603
      %v4605 = vpop.xlane.xlu0 %4604
      %v4606 = vsel %vm3861, %v3849, 0.0
      %4607 = vadd.xlane.f32.xlu0 %v4606
      %v4608 = vpop.xlane.xlu0 %4607
      %v4609 = vsel %vm3861, %v3850, 0.0
      %4610 = vadd.xlane.f32.xlu0 %v4609
      %v4611 = vpop.xlane.xlu0 %4610
      %v4612 = vsel %vm3861, %v3851, 0.0
      %4613 = vadd.xlane.f32.xlu0 %v4612
      %v4614 = vpop.xlane.xlu0 %4613
      %v4615 = vsel %vm3861, %v3852, 0.0
      %4616 = vadd.xlane.f32.xlu0 %v4615
      %v4617 = vpop.xlane.xlu0 %4616
      %v4618 = vsel %vm3861, %v3853, 0.0
      %4619 = vadd.xlane.f32.xlu0 %v4618
      %v4620 = vpop.xlane.xlu0 %4619
      %v4621 = vsel %vm3861, %v3854, 0.0
      %4622 = vadd.xlane.f32.xlu0 %v4621
      %v4623 = vpop.xlane.xlu0 %4622
      %v4624 = vsel %vm3861, %v3855, 0.0
      %4625 = vadd.xlane.f32.xlu0 %v4624
      %v4626 = vpop.xlane.xlu0 %4625
      %v4627 = vsel %vm3861, %v3856, 0.0
      %4628 = vadd.xlane.f32.xlu0 %v4627
      %v4629 = vpop.xlane.xlu0 %4628
      %v4630 = vsel %vm3861, %v3857, 0.0
      %4631 = vadd.xlane.f32.xlu0 %v4630
      %v4632 = vpop.xlane.xlu0 %4631
      %v4633 = vsel %vm3861, %v3858, 0.0
      %4634 = vadd.xlane.f32.xlu0 %v4633
      %v4635 = vpop.xlane.xlu0 %4634
      %v4636 = vsel %vm3861, %v3859, 0.0
      %4637 = vadd.xlane.f32.xlu0 %v4636
      %v4638 = vpop.xlane.xlu0 %4637
      %v4639 = vsel %vm3861, %v3860, 0.0
      %4640 = vadd.xlane.f32.xlu0 %v4639
      %v4641 = vpop.xlane.xlu0 %4640
      %v4902 = vlaneseq
      %v4903 = vand.u32 %v4902, 127
      %v4904 = vlaneseq
      %v4905 = vshrl.u32 %v4904, 7
      %v4906 = vsub.s32 %v4903, %v4905
      %v4907 = vrot.slane %v3864, %v4906
      %v4908 = vadd.s32 %v4903, 4294967288
      %v4909 = vlaneseq
      %v4910 = vshrl.u32 %v4909, 7
      %v4911 = vsub.s32 %v4908, %v4910
      %v4912 = vrot.slane %v3867, %v4911
      %vm4913 = vcmask 130112
      %v4914 = vsel %vm4913, %v4912, %v4907
      %v4915 = vadd.s32 %v4903, 4294967280
      %v4916 = vlaneseq
      %v4917 = vshrl.u32 %v4916, 7
      %v4918 = vsub.s32 %v4915, %v4917
      %v4919 = vrot.slane %v3870, %v4918
      %vm4920 = vcmask 195712
      %v4921 = vsel %vm4920, %v4919, %v4914
      %v4922 = vadd.s32 %v4903, 4294967272
      %v4923 = vlaneseq
      %v4924 = vshrl.u32 %v4923, 7
      %v4925 = vsub.s32 %v4922, %v4924
      %v4926 = vrot.slane %v3873, %v4925
      %vm4927 = vcmask 261312
      %v4928 = vsel %vm4927, %v4926, %v4921
      %v4929 = vadd.s32 %v4903, 4294967264
      %v4930 = vlaneseq
      %v4931 = vshrl.u32 %v4930, 7
      %v4932 = vsub.s32 %v4929, %v4931
      %v4933 = vrot.slane %v3876, %v4932
      %vm4934 = vcmask 326912
      %v4935 = vsel %vm4934, %v4933, %v4928
      %v4936 = vadd.s32 %v4903, 4294967256
      %v4937 = vlaneseq
      %v4938 = vshrl.u32 %v4937, 7
      %v4939 = vsub.s32 %v4936, %v4938
      %v4940 = vrot.slane %v3879, %v4939
      %vm4941 = vcmask 392512
      %v4942 = vsel %vm4941, %v4940, %v4935
      %v4943 = vadd.s32 %v4903, 4294967248
      %v4944 = vlaneseq
      %v4945 = vshrl.u32 %v4944, 7
      %v4946 = vsub.s32 %v4943, %v4945
      %v4947 = vrot.slane %v3882, %v4946
      %vm4948 = vcmask 458112
      %v4949 = vsel %vm4948, %v4947, %v4942
      %v4950 = vadd.s32 %v4903, 4294967240
      %v4951 = vlaneseq
      %v4952 = vshrl.u32 %v4951, 7
      %v4953 = vsub.s32 %v4950, %v4952
      %v4954 = vrot.slane %v3885, %v4953
      %vm4955 = vcmask 523712
      %v4956 = vsel %vm4955, %v4954, %v4949
      %v4957 = vadd.s32 %v4903, 4294967232
      %v4958 = vlaneseq
      %v4959 = vshrl.u32 %v4958, 7
      %v4960 = vsub.s32 %v4957, %v4959
      %v4961 = vrot.slane %v3888, %v4960
      %vm4962 = vcmask 589312
      %v4963 = vsel %vm4962, %v4961, %v4956
      %v4964 = vadd.s32 %v4903, 4294967224
      %v4965 = vlaneseq
      %v4966 = vshrl.u32 %v4965, 7
      %v4967 = vsub.s32 %v4964, %v4966
      %v4968 = vrot.slane %v3891, %v4967
      %vm4969 = vcmask 654912
      %v4970 = vsel %vm4969, %v4968, %v4963
      %v4971 = vadd.s32 %v4903, 4294967216
      %v4972 = vlaneseq
      %v4973 = vshrl.u32 %v4972, 7
      %v4974 = vsub.s32 %v4971, %v4973
      %v4975 = vrot.slane %v3894, %v4974
      %vm4976 = vcmask 720512
      %v4977 = vsel %vm4976, %v4975, %v4970
      %v4978 = vadd.s32 %v4903, 4294967208
      %v4979 = vlaneseq
      %v4980 = vshrl.u32 %v4979, 7
      %v4981 = vsub.s32 %v4978, %v4980
      %v4982 = vrot.slane %v3897, %v4981
      %vm4983 = vcmask 786112
      %v4984 = vsel %vm4983, %v4982, %v4977
      %v4985 = vadd.s32 %v4903, 4294967200
      %v4986 = vlaneseq
      %v4987 = vshrl.u32 %v4986, 7
      %v4988 = vsub.s32 %v4985, %v4987
      %v4989 = vrot.slane %v3900, %v4988
      %vm4990 = vcmask 851712
      %v4991 = vsel %vm4990, %v4989, %v4984
      %v4992 = vadd.s32 %v4903, 4294967192
      %v4993 = vlaneseq
      %v4994 = vshrl.u32 %v4993, 7
      %v4995 = vsub.s32 %v4992, %v4994
      %v4996 = vrot.slane %v3903, %v4995
      %vm4997 = vcmask 917312
      %v4998 = vsel %vm4997, %v4996, %v4991
      %v4999 = vadd.s32 %v4903, 4294967184
      %v5000 = vlaneseq
      %v5001 = vshrl.u32 %v5000, 7
      %v5002 = vsub.s32 %v4999, %v5001
      %v5003 = vrot.slane %v3906, %v5002
      %vm5004 = vcmask 982912
      %v5005 = vsel %vm5004, %v5003, %v4998
      %v5006 = vadd.s32 %v4903, 4294967176
      %v5007 = vlaneseq
      %v5008 = vshrl.u32 %v5007, 7
      %v5009 = vsub.s32 %v5006, %v5008
      %v5010 = vrot.slane %v3909, %v5009
      %vm5011 = vcmask 1048512
      %v5012 = vsel %vm5011, %v5010, %v5005
      %v5013 = vlaneseq
      %v5014 = vshrl.u32 %v5013, 7
      %v5015 = vsub.s32 %v4903, %v5014
      %v5016 = vrot.slane %v3912, %v5015
      %v5017 = vlaneseq
      %v5018 = vshrl.u32 %v5017, 7
      %v5019 = vsub.s32 %v4908, %v5018
      %v5020 = vrot.slane %v3915, %v5019
      %v5021 = vsel %vm4913, %v5020, %v5016
      %v5022 = vlaneseq
      %v5023 = vshrl.u32 %v5022, 7
      %v5024 = vsub.s32 %v4915, %v5023
      %v5025 = vrot.slane %v3918, %v5024
      %v5026 = vsel %vm4920, %v5025, %v5021
      %v5027 = vlaneseq
      %v5028 = vshrl.u32 %v5027, 7
      %v5029 = vsub.s32 %v4922, %v5028
      %v5030 = vrot.slane %v3921, %v5029
      %v5031 = vsel %vm4927, %v5030, %v5026
      %v5032 = vlaneseq
      %v5033 = vshrl.u32 %v5032, 7
      %v5034 = vsub.s32 %v4929, %v5033
      %v5035 = vrot.slane %v3924, %v5034
      %v5036 = vsel %vm4934, %v5035, %v5031
      %v5037 = vlaneseq
      %v5038 = vshrl.u32 %v5037, 7
      %v5039 = vsub.s32 %v4936, %v5038
      %v5040 = vrot.slane %v3927, %v5039
      %v5041 = vsel %vm4941, %v5040, %v5036
      %v5042 = vlaneseq
      %v5043 = vshrl.u32 %v5042, 7
      %v5044 = vsub.s32 %v4943, %v5043
      %v5045 = vrot.slane %v3930, %v5044
      %v5046 = vsel %vm4948, %v5045, %v5041
      %v5047 = vlaneseq
      %v5048 = vshrl.u32 %v5047, 7
      %v5049 = vsub.s32 %v4950, %v5048
      %v5050 = vrot.slane %v3933, %v5049
      %v5051 = vsel %vm4955, %v5050, %v5046
      %v5052 = vlaneseq
      %v5053 = vshrl.u32 %v5052, 7
      %v5054 = vsub.s32 %v4957, %v5053
      %v5055 = vrot.slane %v3936, %v5054
      %v5056 = vsel %vm4962, %v5055, %v5051
      %v5057 = vlaneseq
      %v5058 = vshrl.u32 %v5057, 7
      %v5059 = vsub.s32 %v4964, %v5058
      %v5060 = vrot.slane %v3939, %v5059
      %v5061 = vsel %vm4969, %v5060, %v5056
      %v5062 = vlaneseq
      %v5063 = vshrl.u32 %v5062, 7
      %v5064 = vsub.s32 %v4971, %v5063
      %v5065 = vrot.slane %v3942, %v5064
      %v5066 = vsel %vm4976, %v5065, %v5061
      %v5067 = vlaneseq
      %v5068 = vshrl.u32 %v5067, 7
      %v5069 = vsub.s32 %v4978, %v5068
      %v5070 = vrot.slane %v3945, %v5069
      %v5071 = vsel %vm4983, %v5070, %v5066
      %v5072 = vlaneseq
      %v5073 = vshrl.u32 %v5072, 7
      %v5074 = vsub.s32 %v4985, %v5073
      %v5075 = vrot.slane %v3948, %v5074
      %v5076 = vsel %vm4990, %v5075, %v5071
      %v5077 = vlaneseq
      %v5078 = vshrl.u32 %v5077, 7
      %v5079 = vsub.s32 %v4992, %v5078
      %v5080 = vrot.slane %v3951, %v5079
      %v5081 = vsel %vm4997, %v5080, %v5076
      %v5082 = vlaneseq
      %v5083 = vshrl.u32 %v5082, 7
      %v5084 = vsub.s32 %v4999, %v5083
      %v5085 = vrot.slane %v3954, %v5084
      %v5086 = vsel %vm5004, %v5085, %v5081
      %v5087 = vlaneseq
      %v5088 = vshrl.u32 %v5087, 7
      %v5089 = vsub.s32 %v5006, %v5088
      %v5090 = vrot.slane %v3957, %v5089
      %v5091 = vsel %vm5011, %v5090, %v5086
      %v5092 = vlaneseq
      %v5093 = vshrl.u32 %v5092, 7
      %v5094 = vsub.s32 %v4903, %v5093
      %v5095 = vrot.slane %v3960, %v5094
      %v5096 = vlaneseq
      %v5097 = vshrl.u32 %v5096, 7
      %v5098 = vsub.s32 %v4908, %v5097
      %v5099 = vrot.slane %v3963, %v5098
      %v5100 = vsel %vm4913, %v5099, %v5095
      %v5101 = vlaneseq
      %v5102 = vshrl.u32 %v5101, 7
      %v5103 = vsub.s32 %v4915, %v5102
      %v5104 = vrot.slane %v3966, %v5103
      %v5105 = vsel %vm4920, %v5104, %v5100
      %v5106 = vlaneseq
      %v5107 = vshrl.u32 %v5106, 7
      %v5108 = vsub.s32 %v4922, %v5107
      %v5109 = vrot.slane %v3969, %v5108
      %v5110 = vsel %vm4927, %v5109, %v5105
      %v5111 = vlaneseq
      %v5112 = vshrl.u32 %v5111, 7
      %v5113 = vsub.s32 %v4929, %v5112
      %v5114 = vrot.slane %v3972, %v5113
      %v5115 = vsel %vm4934, %v5114, %v5110
      %v5116 = vlaneseq
      %v5117 = vshrl.u32 %v5116, 7
      %v5118 = vsub.s32 %v4936, %v5117
      %v5119 = vrot.slane %v3975, %v5118
      %v5120 = vsel %vm4941, %v5119, %v5115
      %v5121 = vlaneseq
      %v5122 = vshrl.u32 %v5121, 7
      %v5123 = vsub.s32 %v4943, %v5122
      %v5124 = vrot.slane %v3978, %v5123
      %v5125 = vsel %vm4948, %v5124, %v5120
      %v5126 = vlaneseq
      %v5127 = vshrl.u32 %v5126, 7
      %v5128 = vsub.s32 %v4950, %v5127
      %v5129 = vrot.slane %v3981, %v5128
      %v5130 = vsel %vm4955, %v5129, %v5125
      %v5131 = vlaneseq
      %v5132 = vshrl.u32 %v5131, 7
      %v5133 = vsub.s32 %v4957, %v5132
      %v5134 = vrot.slane %v3984, %v5133
      %v5135 = vsel %vm4962, %v5134, %v5130
      %v5136 = vlaneseq
      %v5137 = vshrl.u32 %v5136, 7
      %v5138 = vsub.s32 %v4964, %v5137
      %v5139 = vrot.slane %v3987, %v5138
      %v5140 = vsel %vm4969, %v5139, %v5135
      %v5141 = vlaneseq
      %v5142 = vshrl.u32 %v5141, 7
      %v5143 = vsub.s32 %v4971, %v5142
      %v5144 = vrot.slane %v3990, %v5143
      %v5145 = vsel %vm4976, %v5144, %v5140
      %v5146 = vlaneseq
      %v5147 = vshrl.u32 %v5146, 7
      %v5148 = vsub.s32 %v4978, %v5147
      %v5149 = vrot.slane %v3993, %v5148
      %v5150 = vsel %vm4983, %v5149, %v5145
      %v5151 = vlaneseq
      %v5152 = vshrl.u32 %v5151, 7
      %v5153 = vsub.s32 %v4985, %v5152
      %v5154 = vrot.slane %v3996, %v5153
      %v5155 = vsel %vm4990, %v5154, %v5150
      %v5156 = vlaneseq
      %v5157 = vshrl.u32 %v5156, 7
      %v5158 = vsub.s32 %v4992, %v5157
      %v5159 = vrot.slane %v3999, %v5158
      %v5160 = vsel %vm4997, %v5159, %v5155
      %v5161 = vlaneseq
      %v5162 = vshrl.u32 %v5161, 7
      %v5163 = vsub.s32 %v4999, %v5162
      %v5164 = vrot.slane %v4002, %v5163
      %v5165 = vsel %vm5004, %v5164, %v5160
      %v5166 = vlaneseq
      %v5167 = vshrl.u32 %v5166, 7
      %v5168 = vsub.s32 %v5006, %v5167
      %v5169 = vrot.slane %v4005, %v5168
      %v5170 = vsel %vm5011, %v5169, %v5165
      %v5171 = vlaneseq
      %v5172 = vshrl.u32 %v5171, 7
      %v5173 = vsub.s32 %v4903, %v5172
      %v5174 = vrot.slane %v4008, %v5173
      %v5175 = vlaneseq
      %v5176 = vshrl.u32 %v5175, 7
      %v5177 = vsub.s32 %v4908, %v5176
      %v5178 = vrot.slane %v4011, %v5177
      %v5179 = vsel %vm4913, %v5178, %v5174
      %v5180 = vlaneseq
      %v5181 = vshrl.u32 %v5180, 7
      %v5182 = vsub.s32 %v4915, %v5181
      %v5183 = vrot.slane %v4014, %v5182
      %v5184 = vsel %vm4920, %v5183, %v5179
      %v5185 = vlaneseq
      %v5186 = vshrl.u32 %v5185, 7
      %v5187 = vsub.s32 %v4922, %v5186
      %v5188 = vrot.slane %v4017, %v5187
      %v5189 = vsel %vm4927, %v5188, %v5184
      %v5190 = vlaneseq
      %v5191 = vshrl.u32 %v5190, 7
      %v5192 = vsub.s32 %v4929, %v5191
      %v5193 = vrot.slane %v4020, %v5192
      %v5194 = vsel %vm4934, %v5193, %v5189
      %v5195 = vlaneseq
      %v5196 = vshrl.u32 %v5195, 7
      %v5197 = vsub.s32 %v4936, %v5196
      %v5198 = vrot.slane %v4023, %v5197
      %v5199 = vsel %vm4941, %v5198, %v5194
      %v5200 = vlaneseq
      %v5201 = vshrl.u32 %v5200, 7
      %v5202 = vsub.s32 %v4943, %v5201
      %v5203 = vrot.slane %v4026, %v5202
      %v5204 = vsel %vm4948, %v5203, %v5199
      %v5205 = vlaneseq
      %v5206 = vshrl.u32 %v5205, 7
      %v5207 = vsub.s32 %v4950, %v5206
      %v5208 = vrot.slane %v4029, %v5207
      %v5209 = vsel %vm4955, %v5208, %v5204
      %v5210 = vlaneseq
      %v5211 = vshrl.u32 %v5210, 7
      %v5212 = vsub.s32 %v4957, %v5211
      %v5213 = vrot.slane %v4032, %v5212
      %v5214 = vsel %vm4962, %v5213, %v5209
      %v5215 = vlaneseq
      %v5216 = vshrl.u32 %v5215, 7
      %v5217 = vsub.s32 %v4964, %v5216
      %v5218 = vrot.slane %v4035, %v5217
      %v5219 = vsel %vm4969, %v5218, %v5214
      %v5220 = vlaneseq
      %v5221 = vshrl.u32 %v5220, 7
      %v5222 = vsub.s32 %v4971, %v5221
      %v5223 = vrot.slane %v4038, %v5222
      %v5224 = vsel %vm4976, %v5223, %v5219
      %v5225 = vlaneseq
      %v5226 = vshrl.u32 %v5225, 7
      %v5227 = vsub.s32 %v4978, %v5226
      %v5228 = vrot.slane %v4041, %v5227
      %v5229 = vsel %vm4983, %v5228, %v5224
      %v5230 = vlaneseq
      %v5231 = vshrl.u32 %v5230, 7
      %v5232 = vsub.s32 %v4985, %v5231
      %v5233 = vrot.slane %v4044, %v5232
      %v5234 = vsel %vm4990, %v5233, %v5229
      %v5235 = vlaneseq
      %v5236 = vshrl.u32 %v5235, 7
      %v5237 = vsub.s32 %v4992, %v5236
      %v5238 = vrot.slane %v4047, %v5237
      %v5239 = vsel %vm4997, %v5238, %v5234
      %v5240 = vlaneseq
      %v5241 = vshrl.u32 %v5240, 7
      %v5242 = vsub.s32 %v4999, %v5241
      %v5243 = vrot.slane %v4050, %v5242
      %v5244 = vsel %vm5004, %v5243, %v5239
      %v5245 = vlaneseq
      %v5246 = vshrl.u32 %v5245, 7
      %v5247 = vsub.s32 %v5006, %v5246
      %v5248 = vrot.slane %v4053, %v5247
      %v5249 = vsel %vm5011, %v5248, %v5244
      %v5250 = vlaneseq
      %v5251 = vshrl.u32 %v5250, 7
      %v5252 = vsub.s32 %v4903, %v5251
      %v5253 = vrot.slane %v4056, %v5252
      %v5254 = vlaneseq
      %v5255 = vshrl.u32 %v5254, 7
      %v5256 = vsub.s32 %v4903, %v5255
      %v5257 = vrot.slane %v4059, %v5256
      %v5258 = vlaneseq
      %v5259 = vshrl.u32 %v5258, 7
      %v5260 = vsub.s32 %v4908, %v5259
      %v5261 = vrot.slane %v4062, %v5260
      %v5262 = vsel %vm4913, %v5261, %v5257
      %v5263 = vlaneseq
      %v5264 = vshrl.u32 %v5263, 7
      %v5265 = vsub.s32 %v4915, %v5264
      %v5266 = vrot.slane %v4065, %v5265
      %v5267 = vsel %vm4920, %v5266, %v5262
      %v5268 = vlaneseq
      %v5269 = vshrl.u32 %v5268, 7
      %v5270 = vsub.s32 %v4922, %v5269
      %v5271 = vrot.slane %v4068, %v5270
      %v5272 = vsel %vm4927, %v5271, %v5267
      %v5273 = vlaneseq
      %v5274 = vshrl.u32 %v5273, 7
      %v5275 = vsub.s32 %v4929, %v5274
      %v5276 = vrot.slane %v4071, %v5275
      %v5277 = vsel %vm4934, %v5276, %v5272
      %v5278 = vlaneseq
      %v5279 = vshrl.u32 %v5278, 7
      %v5280 = vsub.s32 %v4936, %v5279
      %v5281 = vrot.slane %v4074, %v5280
      %v5282 = vsel %vm4941, %v5281, %v5277
      %v5283 = vlaneseq
      %v5284 = vshrl.u32 %v5283, 7
      %v5285 = vsub.s32 %v4943, %v5284
      %v5286 = vrot.slane %v4077, %v5285
      %v5287 = vsel %vm4948, %v5286, %v5282
      %v5288 = vlaneseq
      %v5289 = vshrl.u32 %v5288, 7
      %v5290 = vsub.s32 %v4950, %v5289
      %v5291 = vrot.slane %v4080, %v5290
      %v5292 = vsel %vm4955, %v5291, %v5287
      %v5293 = vlaneseq
      %v5294 = vshrl.u32 %v5293, 7
      %v5295 = vsub.s32 %v4957, %v5294
      %v5296 = vrot.slane %v4083, %v5295
      %v5297 = vsel %vm4962, %v5296, %v5292
      %v5298 = vlaneseq
      %v5299 = vshrl.u32 %v5298, 7
      %v5300 = vsub.s32 %v4964, %v5299
      %v5301 = vrot.slane %v4086, %v5300
      %v5302 = vsel %vm4969, %v5301, %v5297
      %v5303 = vlaneseq
      %v5304 = vshrl.u32 %v5303, 7
      %v5305 = vsub.s32 %v4971, %v5304
      %v5306 = vrot.slane %v4089, %v5305
      %v5307 = vsel %vm4976, %v5306, %v5302
      %v5308 = vlaneseq
      %v5309 = vshrl.u32 %v5308, 7
      %v5310 = vsub.s32 %v4978, %v5309
      %v5311 = vrot.slane %v4092, %v5310
      %v5312 = vsel %vm4983, %v5311, %v5307
      %v5313 = vlaneseq
      %v5314 = vshrl.u32 %v5313, 7
      %v5315 = vsub.s32 %v4985, %v5314
      %v5316 = vrot.slane %v4095, %v5315
      %v5317 = vsel %vm4990, %v5316, %v5312
      %v5318 = vlaneseq
      %v5319 = vshrl.u32 %v5318, 7
      %v5320 = vsub.s32 %v4992, %v5319
      %v5321 = vrot.slane %v4098, %v5320
      %v5322 = vsel %vm4997, %v5321, %v5317
      %v5323 = vlaneseq
      %v5324 = vshrl.u32 %v5323, 7
      %v5325 = vsub.s32 %v4999, %v5324
      %v5326 = vrot.slane %v4101, %v5325
      %v5327 = vsel %vm5004, %v5326, %v5322
      %v5328 = vlaneseq
      %v5329 = vshrl.u32 %v5328, 7
      %v5330 = vsub.s32 %v5006, %v5329
      %v5331 = vrot.slane %v4104, %v5330
      %v5332 = vsel %vm5011, %v5331, %v5327
      %v5333 = vlaneseq
      %v5334 = vshrl.u32 %v5333, 7
      %v5335 = vsub.s32 %v4903, %v5334
      %v5336 = vrot.slane %v4107, %v5335
      %v5337 = vlaneseq
      %v5338 = vshrl.u32 %v5337, 7
      %v5339 = vsub.s32 %v4908, %v5338
      %v5340 = vrot.slane %v4110, %v5339
      %v5341 = vsel %vm4913, %v5340, %v5336
      %v5342 = vlaneseq
      %v5343 = vshrl.u32 %v5342, 7
      %v5344 = vsub.s32 %v4915, %v5343
      %v5345 = vrot.slane %v4113, %v5344
      %v5346 = vsel %vm4920, %v5345, %v5341
      %v5347 = vlaneseq
      %v5348 = vshrl.u32 %v5347, 7
      %v5349 = vsub.s32 %v4922, %v5348
      %v5350 = vrot.slane %v4116, %v5349
      %v5351 = vsel %vm4927, %v5350, %v5346
      %v5352 = vlaneseq
      %v5353 = vshrl.u32 %v5352, 7
      %v5354 = vsub.s32 %v4929, %v5353
      %v5355 = vrot.slane %v4119, %v5354
      %v5356 = vsel %vm4934, %v5355, %v5351
      %v5357 = vlaneseq
      %v5358 = vshrl.u32 %v5357, 7
      %v5359 = vsub.s32 %v4936, %v5358
      %v5360 = vrot.slane %v4122, %v5359
      %v5361 = vsel %vm4941, %v5360, %v5356
      %v5362 = vlaneseq
      %v5363 = vshrl.u32 %v5362, 7
      %v5364 = vsub.s32 %v4943, %v5363
      %v5365 = vrot.slane %v4125, %v5364
      %v5366 = vsel %vm4948, %v5365, %v5361
      %v5367 = vlaneseq
      %v5368 = vshrl.u32 %v5367, 7
      %v5369 = vsub.s32 %v4950, %v5368
      %v5370 = vrot.slane %v4128, %v5369
      %v5371 = vsel %vm4955, %v5370, %v5366
      %v5372 = vlaneseq
      %v5373 = vshrl.u32 %v5372, 7
      %v5374 = vsub.s32 %v4957, %v5373
      %v5375 = vrot.slane %v4131, %v5374
      %v5376 = vsel %vm4962, %v5375, %v5371
      %v5377 = vlaneseq
      %v5378 = vshrl.u32 %v5377, 7
      %v5379 = vsub.s32 %v4964, %v5378
      %v5380 = vrot.slane %v4134, %v5379
      %v5381 = vsel %vm4969, %v5380, %v5376
      %v5382 = vlaneseq
      %v5383 = vshrl.u32 %v5382, 7
      %v5384 = vsub.s32 %v4971, %v5383
      %v5385 = vrot.slane %v4137, %v5384
      %v5386 = vsel %vm4976, %v5385, %v5381
      %v5387 = vlaneseq
      %v5388 = vshrl.u32 %v5387, 7
      %v5389 = vsub.s32 %v4978, %v5388
      %v5390 = vrot.slane %v4140, %v5389
      %v5391 = vsel %vm4983, %v5390, %v5386
      %v5392 = vlaneseq
      %v5393 = vshrl.u32 %v5392, 7
      %v5394 = vsub.s32 %v4985, %v5393
      %v5395 = vrot.slane %v4143, %v5394
      %v5396 = vsel %vm4990, %v5395, %v5391
      %v5397 = vlaneseq
      %v5398 = vshrl.u32 %v5397, 7
      %v5399 = vsub.s32 %v4992, %v5398
      %v5400 = vrot.slane %v4146, %v5399
      %v5401 = vsel %vm4997, %v5400, %v5396
      %v5402 = vlaneseq
      %v5403 = vshrl.u32 %v5402, 7
      %v5404 = vsub.s32 %v4999, %v5403
      %v5405 = vrot.slane %v4149, %v5404
      %v5406 = vsel %vm5004, %v5405, %v5401
      %v5407 = vlaneseq
      %v5408 = vshrl.u32 %v5407, 7
      %v5409 = vsub.s32 %v5006, %v5408
      %v5410 = vrot.slane %v4152, %v5409
      %v5411 = vsel %vm5011, %v5410, %v5406
      %v5412 = vlaneseq
      %v5413 = vshrl.u32 %v5412, 7
      %v5414 = vsub.s32 %v4903, %v5413
      %v5415 = vrot.slane %v4155, %v5414
      %v5416 = vlaneseq
      %v5417 = vshrl.u32 %v5416, 7
      %v5418 = vsub.s32 %v4908, %v5417
      %v5419 = vrot.slane %v4158, %v5418
      %v5420 = vsel %vm4913, %v5419, %v5415
      %v5421 = vlaneseq
      %v5422 = vshrl.u32 %v5421, 7
      %v5423 = vsub.s32 %v4915, %v5422
      %v5424 = vrot.slane %v4161, %v5423
      %v5425 = vsel %vm4920, %v5424, %v5420
      %v5426 = vlaneseq
      %v5427 = vshrl.u32 %v5426, 7
      %v5428 = vsub.s32 %v4922, %v5427
      %v5429 = vrot.slane %v4164, %v5428
      %v5430 = vsel %vm4927, %v5429, %v5425
      %v5431 = vlaneseq
      %v5432 = vshrl.u32 %v5431, 7
      %v5433 = vsub.s32 %v4929, %v5432
      %v5434 = vrot.slane %v4167, %v5433
      %v5435 = vsel %vm4934, %v5434, %v5430
      %v5436 = vlaneseq
      %v5437 = vshrl.u32 %v5436, 7
      %v5438 = vsub.s32 %v4936, %v5437
      %v5439 = vrot.slane %v4170, %v5438
      %v5440 = vsel %vm4941, %v5439, %v5435
      %v5441 = vlaneseq
      %v5442 = vshrl.u32 %v5441, 7
      %v5443 = vsub.s32 %v4943, %v5442
      %v5444 = vrot.slane %v4173, %v5443
      %v5445 = vsel %vm4948, %v5444, %v5440
      %v5446 = vlaneseq
      %v5447 = vshrl.u32 %v5446, 7
      %v5448 = vsub.s32 %v4950, %v5447
      %v5449 = vrot.slane %v4176, %v5448
      %v5450 = vsel %vm4955, %v5449, %v5445
      %v5451 = vlaneseq
      %v5452 = vshrl.u32 %v5451, 7
      %v5453 = vsub.s32 %v4957, %v5452
      %v5454 = vrot.slane %v4179, %v5453
      %v5455 = vsel %vm4962, %v5454, %v5450
      %v5456 = vlaneseq
      %v5457 = vshrl.u32 %v5456, 7
      %v5458 = vsub.s32 %v4964, %v5457
      %v5459 = vrot.slane %v4182, %v5458
      %v5460 = vsel %vm4969, %v5459, %v5455
      %v5461 = vlaneseq
      %v5462 = vshrl.u32 %v5461, 7
      %v5463 = vsub.s32 %v4971, %v5462
      %v5464 = vrot.slane %v4185, %v5463
      %v5465 = vsel %vm4976, %v5464, %v5460
      %v5466 = vlaneseq
      %v5467 = vshrl.u32 %v5466, 7
      %v5468 = vsub.s32 %v4978, %v5467
      %v5469 = vrot.slane %v4188, %v5468
      %v5470 = vsel %vm4983, %v5469, %v5465
      %v5471 = vlaneseq
      %v5472 = vshrl.u32 %v5471, 7
      %v5473 = vsub.s32 %v4985, %v5472
      %v5474 = vrot.slane %v4191, %v5473
      %v5475 = vsel %vm4990, %v5474, %v5470
      %v5476 = vlaneseq
      %v5477 = vshrl.u32 %v5476, 7
      %v5478 = vsub.s32 %v4992, %v5477
      %v5479 = vrot.slane %v4194, %v5478
      %v5480 = vsel %vm4997, %v5479, %v5475
      %v5481 = vlaneseq
      %v5482 = vshrl.u32 %v5481, 7
      %v5483 = vsub.s32 %v4999, %v5482
      %v5484 = vrot.slane %v4197, %v5483
      %v5485 = vsel %vm5004, %v5484, %v5480
      %v5486 = vlaneseq
      %v5487 = vshrl.u32 %v5486, 7
      %v5488 = vsub.s32 %v5006, %v5487
      %v5489 = vrot.slane %v4200, %v5488
      %v5490 = vsel %vm5011, %v5489, %v5485
      %v5491 = vlaneseq
      %v5492 = vshrl.u32 %v5491, 7
      %v5493 = vsub.s32 %v4903, %v5492
      %v5494 = vrot.slane %v4203, %v5493
      %v5495 = vlaneseq
      %v5496 = vshrl.u32 %v5495, 7
      %v5497 = vsub.s32 %v4908, %v5496
      %v5498 = vrot.slane %v4206, %v5497
      %v5499 = vsel %vm4913, %v5498, %v5494
      %v5500 = vlaneseq
      %v5501 = vshrl.u32 %v5500, 7
      %v5502 = vsub.s32 %v4915, %v5501
      %v5503 = vrot.slane %v4209, %v5502
      %v5504 = vsel %vm4920, %v5503, %v5499
      %v5505 = vlaneseq
      %v5506 = vshrl.u32 %v5505, 7
      %v5507 = vsub.s32 %v4922, %v5506
      %v5508 = vrot.slane %v4212, %v5507
      %v5509 = vsel %vm4927, %v5508, %v5504
      %v5510 = vlaneseq
      %v5511 = vshrl.u32 %v5510, 7
      %v5512 = vsub.s32 %v4929, %v5511
      %v5513 = vrot.slane %v4215, %v5512
      %v5514 = vsel %vm4934, %v5513, %v5509
      %v5515 = vlaneseq
      %v5516 = vshrl.u32 %v5515, 7
      %v5517 = vsub.s32 %v4936, %v5516
      %v5518 = vrot.slane %v4218, %v5517
      %v5519 = vsel %vm4941, %v5518, %v5514
      %v5520 = vlaneseq
      %v5521 = vshrl.u32 %v5520, 7
      %v5522 = vsub.s32 %v4943, %v5521
      %v5523 = vrot.slane %v4221, %v5522
      %v5524 = vsel %vm4948, %v5523, %v5519
      %v5525 = vlaneseq
      %v5526 = vshrl.u32 %v5525, 7
      %v5527 = vsub.s32 %v4950, %v5526
      %v5528 = vrot.slane %v4224, %v5527
      %v5529 = vsel %vm4955, %v5528, %v5524
      %v5530 = vlaneseq
      %v5531 = vshrl.u32 %v5530, 7
      %v5532 = vsub.s32 %v4957, %v5531
      %v5533 = vrot.slane %v4227, %v5532
      %v5534 = vsel %vm4962, %v5533, %v5529
      %v5535 = vlaneseq
      %v5536 = vshrl.u32 %v5535, 7
      %v5537 = vsub.s32 %v4964, %v5536
      %v5538 = vrot.slane %v4230, %v5537
      %v5539 = vsel %vm4969, %v5538, %v5534
      %v5540 = vlaneseq
      %v5541 = vshrl.u32 %v5540, 7
      %v5542 = vsub.s32 %v4971, %v5541
      %v5543 = vrot.slane %v4233, %v5542
      %v5544 = vsel %vm4976, %v5543, %v5539
      %v5545 = vlaneseq
      %v5546 = vshrl.u32 %v5545, 7
      %v5547 = vsub.s32 %v4978, %v5546
      %v5548 = vrot.slane %v4236, %v5547
      %v5549 = vsel %vm4983, %v5548, %v5544
      %v5550 = vlaneseq
      %v5551 = vshrl.u32 %v5550, 7
      %v5552 = vsub.s32 %v4985, %v5551
      %v5553 = vrot.slane %v4239, %v5552
      %v5554 = vsel %vm4990, %v5553, %v5549
      %v5555 = vlaneseq
      %v5556 = vshrl.u32 %v5555, 7
      %v5557 = vsub.s32 %v4992, %v5556
      %v5558 = vrot.slane %v4242, %v5557
      %v5559 = vsel %vm4997, %v5558, %v5554
      %v5560 = vlaneseq
      %v5561 = vshrl.u32 %v5560, 7
      %v5562 = vsub.s32 %v4999, %v5561
      %v5563 = vrot.slane %v4245, %v5562
      %v5564 = vsel %vm5004, %v5563, %v5559
      %v5565 = vlaneseq
      %v5566 = vshrl.u32 %v5565, 7
      %v5567 = vsub.s32 %v5006, %v5566
      %v5568 = vrot.slane %v4248, %v5567
      %v5569 = vsel %vm5011, %v5568, %v5564
      %v5570 = vlaneseq
      %v5571 = vshrl.u32 %v5570, 7
      %v5572 = vsub.s32 %v4903, %v5571
      %v5573 = vrot.slane %v4251, %v5572
      %v5574 = vlaneseq
      %v5575 = vshrl.u32 %v5574, 7
      %v5576 = vsub.s32 %v4903, %v5575
      %v5577 = vrot.slane %v4254, %v5576
      %v5578 = vlaneseq
      %v5579 = vshrl.u32 %v5578, 7
      %v5580 = vsub.s32 %v4908, %v5579
      %v5581 = vrot.slane %v4257, %v5580
      %v5582 = vsel %vm4913, %v5581, %v5577
      %v5583 = vlaneseq
      %v5584 = vshrl.u32 %v5583, 7
      %v5585 = vsub.s32 %v4915, %v5584
      %v5586 = vrot.slane %v4260, %v5585
      %v5587 = vsel %vm4920, %v5586, %v5582
      %v5588 = vlaneseq
      %v5589 = vshrl.u32 %v5588, 7
      %v5590 = vsub.s32 %v4922, %v5589
      %v5591 = vrot.slane %v4263, %v5590
      %v5592 = vsel %vm4927, %v5591, %v5587
      %v5593 = vlaneseq
      %v5594 = vshrl.u32 %v5593, 7
      %v5595 = vsub.s32 %v4929, %v5594
      %v5596 = vrot.slane %v4266, %v5595
      %v5597 = vsel %vm4934, %v5596, %v5592
      %v5598 = vlaneseq
      %v5599 = vshrl.u32 %v5598, 7
      %v5600 = vsub.s32 %v4936, %v5599
      %v5601 = vrot.slane %v4269, %v5600
      %v5602 = vsel %vm4941, %v5601, %v5597
      %v5603 = vlaneseq
      %v5604 = vshrl.u32 %v5603, 7
      %v5605 = vsub.s32 %v4943, %v5604
      %v5606 = vrot.slane %v4272, %v5605
      %v5607 = vsel %vm4948, %v5606, %v5602
      %v5608 = vlaneseq
      %v5609 = vshrl.u32 %v5608, 7
      %v5610 = vsub.s32 %v4950, %v5609
      %v5611 = vrot.slane %v4275, %v5610
      %v5612 = vsel %vm4955, %v5611, %v5607
      %v5613 = vlaneseq
      %v5614 = vshrl.u32 %v5613, 7
      %v5615 = vsub.s32 %v4957, %v5614
      %v5616 = vrot.slane %v4278, %v5615
      %v5617 = vsel %vm4962, %v5616, %v5612
      %v5618 = vlaneseq
      %v5619 = vshrl.u32 %v5618, 7
      %v5620 = vsub.s32 %v4964, %v5619
      %v5621 = vrot.slane %v4281, %v5620
      %v5622 = vsel %vm4969, %v5621, %v5617
      %v5623 = vlaneseq
      %v5624 = vshrl.u32 %v5623, 7
      %v5625 = vsub.s32 %v4971, %v5624
      %v5626 = vrot.slane %v4284, %v5625
      %v5627 = vsel %vm4976, %v5626, %v5622
      %v5628 = vlaneseq
      %v5629 = vshrl.u32 %v5628, 7
      %v5630 = vsub.s32 %v4978, %v5629
      %v5631 = vrot.slane %v4287, %v5630
      %v5632 = vsel %vm4983, %v5631, %v5627
      %v5633 = vlaneseq
      %v5634 = vshrl.u32 %v5633, 7
      %v5635 = vsub.s32 %v4985, %v5634
      %v5636 = vrot.slane %v4290, %v5635
      %v5637 = vsel %vm4990, %v5636, %v5632
      %v5638 = vlaneseq
      %v5639 = vshrl.u32 %v5638, 7
      %v5640 = vsub.s32 %v4992, %v5639
      %v5641 = vrot.slane %v4293, %v5640
      %v5642 = vsel %vm4997, %v5641, %v5637
      %v5643 = vlaneseq
      %v5644 = vshrl.u32 %v5643, 7
      %v5645 = vsub.s32 %v4999, %v5644
      %v5646 = vrot.slane %v4296, %v5645
      %v5647 = vsel %vm5004, %v5646, %v5642
      %v5648 = vlaneseq
      %v5649 = vshrl.u32 %v5648, 7
      %v5650 = vsub.s32 %v5006, %v5649
      %v5651 = vrot.slane %v4299, %v5650
      %v5652 = vsel %vm5011, %v5651, %v5647
      %v5653 = vlaneseq
      %v5654 = vshrl.u32 %v5653, 7
      %v5655 = vsub.s32 %v4903, %v5654
      %v5656 = vrot.slane %v4302, %v5655
      %v5657 = vlaneseq
      %v5658 = vshrl.u32 %v5657, 7
      %v5659 = vsub.s32 %v4908, %v5658
      %v5660 = vrot.slane %v4305, %v5659
      %v5661 = vsel %vm4913, %v5660, %v5656
      %v5662 = vlaneseq
      %v5663 = vshrl.u32 %v5662, 7
      %v5664 = vsub.s32 %v4915, %v5663
      %v5665 = vrot.slane %v4308, %v5664
      %v5666 = vsel %vm4920, %v5665, %v5661
      %v5667 = vlaneseq
      %v5668 = vshrl.u32 %v5667, 7
      %v5669 = vsub.s32 %v4922, %v5668
      %v5670 = vrot.slane %v4311, %v5669
      %v5671 = vsel %vm4927, %v5670, %v5666
      %v5672 = vlaneseq
      %v5673 = vshrl.u32 %v5672, 7
      %v5674 = vsub.s32 %v4929, %v5673
      %v5675 = vrot.slane %v4314, %v5674
      %v5676 = vsel %vm4934, %v5675, %v5671
      %v5677 = vlaneseq
      %v5678 = vshrl.u32 %v5677, 7
      %v5679 = vsub.s32 %v4936, %v5678
      %v5680 = vrot.slane %v4317, %v5679
      %v5681 = vsel %vm4941, %v5680, %v5676
      %v5682 = vlaneseq
      %v5683 = vshrl.u32 %v5682, 7
      %v5684 = vsub.s32 %v4943, %v5683
      %v5685 = vrot.slane %v4320, %v5684
      %v5686 = vsel %vm4948, %v5685, %v5681
      %v5687 = vlaneseq
      %v5688 = vshrl.u32 %v5687, 7
      %v5689 = vsub.s32 %v4950, %v5688
      %v5690 = vrot.slane %v4323, %v5689
      %v5691 = vsel %vm4955, %v5690, %v5686
      %v5692 = vlaneseq
      %v5693 = vshrl.u32 %v5692, 7
      %v5694 = vsub.s32 %v4957, %v5693
      %v5695 = vrot.slane %v4326, %v5694
      %v5696 = vsel %vm4962, %v5695, %v5691
      %v5697 = vlaneseq
      %v5698 = vshrl.u32 %v5697, 7
      %v5699 = vsub.s32 %v4964, %v5698
      %v5700 = vrot.slane %v4329, %v5699
      %v5701 = vsel %vm4969, %v5700, %v5696
      %v5702 = vlaneseq
      %v5703 = vshrl.u32 %v5702, 7
      %v5704 = vsub.s32 %v4971, %v5703
      %v5705 = vrot.slane %v4332, %v5704
      %v5706 = vsel %vm4976, %v5705, %v5701
      %v5707 = vlaneseq
      %v5708 = vshrl.u32 %v5707, 7
      %v5709 = vsub.s32 %v4978, %v5708
      %v5710 = vrot.slane %v4335, %v5709
      %v5711 = vsel %vm4983, %v5710, %v5706
      %v5712 = vlaneseq
      %v5713 = vshrl.u32 %v5712, 7
      %v5714 = vsub.s32 %v4985, %v5713
      %v5715 = vrot.slane %v4338, %v5714
      %v5716 = vsel %vm4990, %v5715, %v5711
      %v5717 = vlaneseq
      %v5718 = vshrl.u32 %v5717, 7
      %v5719 = vsub.s32 %v4992, %v5718
      %v5720 = vrot.slane %v4341, %v5719
      %v5721 = vsel %vm4997, %v5720, %v5716
      %v5722 = vlaneseq
      %v5723 = vshrl.u32 %v5722, 7
      %v5724 = vsub.s32 %v4999, %v5723
      %v5725 = vrot.slane %v4344, %v5724
      %v5726 = vsel %vm5004, %v5725, %v5721
      %v5727 = vlaneseq
      %v5728 = vshrl.u32 %v5727, 7
      %v5729 = vsub.s32 %v5006, %v5728
      %v5730 = vrot.slane %v4347, %v5729
      %v5731 = vsel %vm5011, %v5730, %v5726
      %v5732 = vlaneseq
      %v5733 = vshrl.u32 %v5732, 7
      %v5734 = vsub.s32 %v4903, %v5733
      %v5735 = vrot.slane %v4350, %v5734
      %v5736 = vlaneseq
      %v5737 = vshrl.u32 %v5736, 7
      %v5738 = vsub.s32 %v4908, %v5737
      %v5739 = vrot.slane %v4353, %v5738
      %v5740 = vsel %vm4913, %v5739, %v5735
      %v5741 = vlaneseq
      %v5742 = vshrl.u32 %v5741, 7
      %v5743 = vsub.s32 %v4915, %v5742
      %v5744 = vrot.slane %v4356, %v5743
      %v5745 = vsel %vm4920, %v5744, %v5740
      %v5746 = vlaneseq
      %v5747 = vshrl.u32 %v5746, 7
      %v5748 = vsub.s32 %v4922, %v5747
      %v5749 = vrot.slane %v4359, %v5748
      %v5750 = vsel %vm4927, %v5749, %v5745
      %v5751 = vlaneseq
      %v5752 = vshrl.u32 %v5751, 7
      %v5753 = vsub.s32 %v4929, %v5752
      %v5754 = vrot.slane %v4362, %v5753
      %v5755 = vsel %vm4934, %v5754, %v5750
      %v5756 = vlaneseq
      %v5757 = vshrl.u32 %v5756, 7
      %v5758 = vsub.s32 %v4936, %v5757
      %v5759 = vrot.slane %v4365, %v5758
      %v5760 = vsel %vm4941, %v5759, %v5755
      %v5761 = vlaneseq
      %v5762 = vshrl.u32 %v5761, 7
      %v5763 = vsub.s32 %v4943, %v5762
      %v5764 = vrot.slane %v4368, %v5763
      %v5765 = vsel %vm4948, %v5764, %v5760
      %v5766 = vlaneseq
      %v5767 = vshrl.u32 %v5766, 7
      %v5768 = vsub.s32 %v4950, %v5767
      %v5769 = vrot.slane %v4371, %v5768
      %v5770 = vsel %vm4955, %v5769, %v5765
      %v5771 = vlaneseq
      %v5772 = vshrl.u32 %v5771, 7
      %v5773 = vsub.s32 %v4957, %v5772
      %v5774 = vrot.slane %v4374, %v5773
      %v5775 = vsel %vm4962, %v5774, %v5770
      %v5776 = vlaneseq
      %v5777 = vshrl.u32 %v5776, 7
      %v5778 = vsub.s32 %v4964, %v5777
      %v5779 = vrot.slane %v4377, %v5778
      %v5780 = vsel %vm4969, %v5779, %v5775
      %v5781 = vlaneseq
      %v5782 = vshrl.u32 %v5781, 7
      %v5783 = vsub.s32 %v4971, %v5782
      %v5784 = vrot.slane %v4380, %v5783
      %v5785 = vsel %vm4976, %v5784, %v5780
      %v5786 = vlaneseq
      %v5787 = vshrl.u32 %v5786, 7
      %v5788 = vsub.s32 %v4978, %v5787
      %v5789 = vrot.slane %v4383, %v5788
      %v5790 = vsel %vm4983, %v5789, %v5785
      %v5791 = vlaneseq
      %v5792 = vshrl.u32 %v5791, 7
      %v5793 = vsub.s32 %v4985, %v5792
      %v5794 = vrot.slane %v4386, %v5793
      %v5795 = vsel %vm4990, %v5794, %v5790
      %v5796 = vlaneseq
      %v5797 = vshrl.u32 %v5796, 7
      %v5798 = vsub.s32 %v4992, %v5797
      %v5799 = vrot.slane %v4389, %v5798
      %v5800 = vsel %vm4997, %v5799, %v5795
      %v5801 = vlaneseq
      %v5802 = vshrl.u32 %v5801, 7
      %v5803 = vsub.s32 %v4999, %v5802
      %v5804 = vrot.slane %v4392, %v5803
      %v5805 = vsel %vm5004, %v5804, %v5800
      %v5806 = vlaneseq
      %v5807 = vshrl.u32 %v5806, 7
      %v5808 = vsub.s32 %v5006, %v5807
      %v5809 = vrot.slane %v4395, %v5808
      %v5810 = vsel %vm5011, %v5809, %v5805
      %v5811 = vlaneseq
      %v5812 = vshrl.u32 %v5811, 7
      %v5813 = vsub.s32 %v4903, %v5812
      %v5814 = vrot.slane %v4398, %v5813
      %v5815 = vlaneseq
      %v5816 = vshrl.u32 %v5815, 7
      %v5817 = vsub.s32 %v4908, %v5816
      %v5818 = vrot.slane %v4401, %v5817
      %v5819 = vsel %vm4913, %v5818, %v5814
      %v5820 = vlaneseq
      %v5821 = vshrl.u32 %v5820, 7
      %v5822 = vsub.s32 %v4915, %v5821
      %v5823 = vrot.slane %v4404, %v5822
      %v5824 = vsel %vm4920, %v5823, %v5819
      %v5825 = vlaneseq
      %v5826 = vshrl.u32 %v5825, 7
      %v5827 = vsub.s32 %v4922, %v5826
      %v5828 = vrot.slane %v4407, %v5827
      %v5829 = vsel %vm4927, %v5828, %v5824
      %v5830 = vlaneseq
      %v5831 = vshrl.u32 %v5830, 7
      %v5832 = vsub.s32 %v4929, %v5831
      %v5833 = vrot.slane %v4410, %v5832
      %v5834 = vsel %vm4934, %v5833, %v5829
      %v5835 = vlaneseq
      %v5836 = vshrl.u32 %v5835, 7
      %v5837 = vsub.s32 %v4936, %v5836
      %v5838 = vrot.slane %v4413, %v5837
      %v5839 = vsel %vm4941, %v5838, %v5834
      %v5840 = vlaneseq
      %v5841 = vshrl.u32 %v5840, 7
      %v5842 = vsub.s32 %v4943, %v5841
      %v5843 = vrot.slane %v4416, %v5842
      %v5844 = vsel %vm4948, %v5843, %v5839
      %v5845 = vlaneseq
      %v5846 = vshrl.u32 %v5845, 7
      %v5847 = vsub.s32 %v4950, %v5846
      %v5848 = vrot.slane %v4419, %v5847
      %v5849 = vsel %vm4955, %v5848, %v5844
      %v5850 = vlaneseq
      %v5851 = vshrl.u32 %v5850, 7
      %v5852 = vsub.s32 %v4957, %v5851
      %v5853 = vrot.slane %v4422, %v5852
      %v5854 = vsel %vm4962, %v5853, %v5849
      %v5855 = vlaneseq
      %v5856 = vshrl.u32 %v5855, 7
      %v5857 = vsub.s32 %v4964, %v5856
      %v5858 = vrot.slane %v4425, %v5857
      %v5859 = vsel %vm4969, %v5858, %v5854
      %v5860 = vlaneseq
      %v5861 = vshrl.u32 %v5860, 7
      %v5862 = vsub.s32 %v4971, %v5861
      %v5863 = vrot.slane %v4428, %v5862
      %v5864 = vsel %vm4976, %v5863, %v5859
      %v5865 = vlaneseq
      %v5866 = vshrl.u32 %v5865, 7
      %v5867 = vsub.s32 %v4978, %v5866
      %v5868 = vrot.slane %v4431, %v5867
      %v5869 = vsel %vm4983, %v5868, %v5864
      %v5870 = vlaneseq
      %v5871 = vshrl.u32 %v5870, 7
      %v5872 = vsub.s32 %v4985, %v5871
      %v5873 = vrot.slane %v4434, %v5872
      %v5874 = vsel %vm4990, %v5873, %v5869
      %v5875 = vlaneseq
      %v5876 = vshrl.u32 %v5875, 7
      %v5877 = vsub.s32 %v4992, %v5876
      %v5878 = vrot.slane %v4437, %v5877
      %v5879 = vsel %vm4997, %v5878, %v5874
      %v5880 = vlaneseq
      %v5881 = vshrl.u32 %v5880, 7
      %v5882 = vsub.s32 %v4999, %v5881
      %v5883 = vrot.slane %v4440, %v5882
      %v5884 = vsel %vm5004, %v5883, %v5879
      %v5885 = vlaneseq
      %v5886 = vshrl.u32 %v5885, 7
      %v5887 = vsub.s32 %v5006, %v5886
      %v5888 = vrot.slane %v4443, %v5887
      %v5889 = vsel %vm5011, %v5888, %v5884
      %v5890 = vlaneseq
      %v5891 = vshrl.u32 %v5890, 7
      %v5892 = vsub.s32 %v4903, %v5891
      %v5893 = vrot.slane %v4446, %v5892
      %v5894 = vlaneseq
      %v5895 = vshrl.u32 %v5894, 7
      %v5896 = vsub.s32 %v4903, %v5895
      %v5897 = vrot.slane %v4449, %v5896
      %v5898 = vlaneseq
      %v5899 = vshrl.u32 %v5898, 7
      %v5900 = vsub.s32 %v4908, %v5899
      %v5901 = vrot.slane %v4452, %v5900
      %v5902 = vsel %vm4913, %v5901, %v5897
      %v5903 = vlaneseq
      %v5904 = vshrl.u32 %v5903, 7
      %v5905 = vsub.s32 %v4915, %v5904
      %v5906 = vrot.slane %v4455, %v5905
      %v5907 = vsel %vm4920, %v5906, %v5902
      %v5908 = vlaneseq
      %v5909 = vshrl.u32 %v5908, 7
      %v5910 = vsub.s32 %v4922, %v5909
      %v5911 = vrot.slane %v4458, %v5910
      %v5912 = vsel %vm4927, %v5911, %v5907
      %v5913 = vlaneseq
      %v5914 = vshrl.u32 %v5913, 7
      %v5915 = vsub.s32 %v4929, %v5914
      %v5916 = vrot.slane %v4461, %v5915
      %v5917 = vsel %vm4934, %v5916, %v5912
      %v5918 = vlaneseq
      %v5919 = vshrl.u32 %v5918, 7
      %v5920 = vsub.s32 %v4936, %v5919
      %v5921 = vrot.slane %v4464, %v5920
      %v5922 = vsel %vm4941, %v5921, %v5917
      %v5923 = vlaneseq
      %v5924 = vshrl.u32 %v5923, 7
      %v5925 = vsub.s32 %v4943, %v5924
      %v5926 = vrot.slane %v4467, %v5925
      %v5927 = vsel %vm4948, %v5926, %v5922
      %v5928 = vlaneseq
      %v5929 = vshrl.u32 %v5928, 7
      %v5930 = vsub.s32 %v4950, %v5929
      %v5931 = vrot.slane %v4470, %v5930
      %v5932 = vsel %vm4955, %v5931, %v5927
      %v5933 = vlaneseq
      %v5934 = vshrl.u32 %v5933, 7
      %v5935 = vsub.s32 %v4957, %v5934
      %v5936 = vrot.slane %v4473, %v5935
      %v5937 = vsel %vm4962, %v5936, %v5932
      %v5938 = vlaneseq
      %v5939 = vshrl.u32 %v5938, 7
      %v5940 = vsub.s32 %v4964, %v5939
      %v5941 = vrot.slane %v4476, %v5940
      %v5942 = vsel %vm4969, %v5941, %v5937
      %v5943 = vlaneseq
      %v5944 = vshrl.u32 %v5943, 7
      %v5945 = vsub.s32 %v4971, %v5944
      %v5946 = vrot.slane %v4479, %v5945
      %v5947 = vsel %vm4976, %v5946, %v5942
      %v5948 = vlaneseq
      %v5949 = vshrl.u32 %v5948, 7
      %v5950 = vsub.s32 %v4978, %v5949
      %v5951 = vrot.slane %v4482, %v5950
      %v5952 = vsel %vm4983, %v5951, %v5947
      %v5953 = vlaneseq
      %v5954 = vshrl.u32 %v5953, 7
      %v5955 = vsub.s32 %v4985, %v5954
      %v5956 = vrot.slane %v4485, %v5955
      %v5957 = vsel %vm4990, %v5956, %v5952
      %v5958 = vlaneseq
      %v5959 = vshrl.u32 %v5958, 7
      %v5960 = vsub.s32 %v4992, %v5959
      %v5961 = vrot.slane %v4488, %v5960
      %v5962 = vsel %vm4997, %v5961, %v5957
      %v5963 = vlaneseq
      %v5964 = vshrl.u32 %v5963, 7
      %v5965 = vsub.s32 %v4999, %v5964
      %v5966 = vrot.slane %v4491, %v5965
      %v5967 = vsel %vm5004, %v5966, %v5962
      %v5968 = vlaneseq
      %v5969 = vshrl.u32 %v5968, 7
      %v5970 = vsub.s32 %v5006, %v5969
      %v5971 = vrot.slane %v4494, %v5970
      %v5972 = vsel %vm5011, %v5971, %v5967
      %v5973 = vlaneseq
      %v5974 = vshrl.u32 %v5973, 7
      %v5975 = vsub.s32 %v4903, %v5974
      %v5976 = vrot.slane %v4497, %v5975
      %v5977 = vlaneseq
      %v5978 = vshrl.u32 %v5977, 7
      %v5979 = vsub.s32 %v4908, %v5978
      %v5980 = vrot.slane %v4500, %v5979
      %v5981 = vsel %vm4913, %v5980, %v5976
      %v5982 = vlaneseq
      %v5983 = vshrl.u32 %v5982, 7
      %v5984 = vsub.s32 %v4915, %v5983
      %v5985 = vrot.slane %v4503, %v5984
      %v5986 = vsel %vm4920, %v5985, %v5981
      %v5987 = vlaneseq
      %v5988 = vshrl.u32 %v5987, 7
      %v5989 = vsub.s32 %v4922, %v5988
      %v5990 = vrot.slane %v4506, %v5989
      %v5991 = vsel %vm4927, %v5990, %v5986
      %v5992 = vlaneseq
      %v5993 = vshrl.u32 %v5992, 7
      %v5994 = vsub.s32 %v4929, %v5993
      %v5995 = vrot.slane %v4509, %v5994
      %v5996 = vsel %vm4934, %v5995, %v5991
      %v5997 = vlaneseq
      %v5998 = vshrl.u32 %v5997, 7
      %v5999 = vsub.s32 %v4936, %v5998
      %v6000 = vrot.slane %v4512, %v5999
      %v6001 = vsel %vm4941, %v6000, %v5996
      %v6002 = vlaneseq
      %v6003 = vshrl.u32 %v6002, 7
      %v6004 = vsub.s32 %v4943, %v6003
      %v6005 = vrot.slane %v4515, %v6004
      %v6006 = vsel %vm4948, %v6005, %v6001
      %v6007 = vlaneseq
      %v6008 = vshrl.u32 %v6007, 7
      %v6009 = vsub.s32 %v4950, %v6008
      %v6010 = vrot.slane %v4518, %v6009
      %v6011 = vsel %vm4955, %v6010, %v6006
      %v6012 = vlaneseq
      %v6013 = vshrl.u32 %v6012, 7
      %v6014 = vsub.s32 %v4957, %v6013
      %v6015 = vrot.slane %v4521, %v6014
      %v6016 = vsel %vm4962, %v6015, %v6011
      %v6017 = vlaneseq
      %v6018 = vshrl.u32 %v6017, 7
      %v6019 = vsub.s32 %v4964, %v6018
      %v6020 = vrot.slane %v4524, %v6019
      %v6021 = vsel %vm4969, %v6020, %v6016
      %v6022 = vlaneseq
      %v6023 = vshrl.u32 %v6022, 7
      %v6024 = vsub.s32 %v4971, %v6023
      %v6025 = vrot.slane %v4527, %v6024
      %v6026 = vsel %vm4976, %v6025, %v6021
      %v6027 = vlaneseq
      %v6028 = vshrl.u32 %v6027, 7
      %v6029 = vsub.s32 %v4978, %v6028
      %v6030 = vrot.slane %v4530, %v6029
      %v6031 = vsel %vm4983, %v6030, %v6026
      %v6032 = vlaneseq
      %v6033 = vshrl.u32 %v6032, 7
      %v6034 = vsub.s32 %v4985, %v6033
      %v6035 = vrot.slane %v4533, %v6034
      %v6036 = vsel %vm4990, %v6035, %v6031
      %v6037 = vlaneseq
      %v6038 = vshrl.u32 %v6037, 7
      %v6039 = vsub.s32 %v4992, %v6038
      %v6040 = vrot.slane %v4536, %v6039
      %v6041 = vsel %vm4997, %v6040, %v6036
      %v6042 = vlaneseq
      %v6043 = vshrl.u32 %v6042, 7
      %v6044 = vsub.s32 %v4999, %v6043
      %v6045 = vrot.slane %v4539, %v6044
      %v6046 = vsel %vm5004, %v6045, %v6041
      %v6047 = vlaneseq
      %v6048 = vshrl.u32 %v6047, 7
      %v6049 = vsub.s32 %v5006, %v6048
      %v6050 = vrot.slane %v4542, %v6049
      %v6051 = vsel %vm5011, %v6050, %v6046
      %v6052 = vlaneseq
      %v6053 = vshrl.u32 %v6052, 7
      %v6054 = vsub.s32 %v4903, %v6053
      %v6055 = vrot.slane %v4545, %v6054
      %v6056 = vlaneseq
      %v6057 = vshrl.u32 %v6056, 7
      %v6058 = vsub.s32 %v4908, %v6057
      %v6059 = vrot.slane %v4548, %v6058
      %v6060 = vsel %vm4913, %v6059, %v6055
      %v6061 = vlaneseq
      %v6062 = vshrl.u32 %v6061, 7
      %v6063 = vsub.s32 %v4915, %v6062
      %v6064 = vrot.slane %v4551, %v6063
      %v6065 = vsel %vm4920, %v6064, %v6060
      %v6066 = vlaneseq
      %v6067 = vshrl.u32 %v6066, 7
      %v6068 = vsub.s32 %v4922, %v6067
      %v6069 = vrot.slane %v4554, %v6068
      %v6070 = vsel %vm4927, %v6069, %v6065
      %v6071 = vlaneseq
      %v6072 = vshrl.u32 %v6071, 7
      %v6073 = vsub.s32 %v4929, %v6072
      %v6074 = vrot.slane %v4557, %v6073
      %v6075 = vsel %vm4934, %v6074, %v6070
      %v6076 = vlaneseq
      %v6077 = vshrl.u32 %v6076, 7
      %v6078 = vsub.s32 %v4936, %v6077
      %v6079 = vrot.slane %v4560, %v6078
      %v6080 = vsel %vm4941, %v6079, %v6075
      %v6081 = vlaneseq
      %v6082 = vshrl.u32 %v6081, 7
      %v6083 = vsub.s32 %v4943, %v6082
      %v6084 = vrot.slane %v4563, %v6083
      %v6085 = vsel %vm4948, %v6084, %v6080
      %v6086 = vlaneseq
      %v6087 = vshrl.u32 %v6086, 7
      %v6088 = vsub.s32 %v4950, %v6087
      %v6089 = vrot.slane %v4566, %v6088
      %v6090 = vsel %vm4955, %v6089, %v6085
      %v6091 = vlaneseq
      %v6092 = vshrl.u32 %v6091, 7
      %v6093 = vsub.s32 %v4957, %v6092
      %v6094 = vrot.slane %v4569, %v6093
      %v6095 = vsel %vm4962, %v6094, %v6090
      %v6096 = vlaneseq
      %v6097 = vshrl.u32 %v6096, 7
      %v6098 = vsub.s32 %v4964, %v6097
      %v6099 = vrot.slane %v4572, %v6098
      %v6100 = vsel %vm4969, %v6099, %v6095
      %v6101 = vlaneseq
      %v6102 = vshrl.u32 %v6101, 7
      %v6103 = vsub.s32 %v4971, %v6102
      %v6104 = vrot.slane %v4575, %v6103
      %v6105 = vsel %vm4976, %v6104, %v6100
      %v6106 = vlaneseq
      %v6107 = vshrl.u32 %v6106, 7
      %v6108 = vsub.s32 %v4978, %v6107
      %v6109 = vrot.slane %v4578, %v6108
      %v6110 = vsel %vm4983, %v6109, %v6105
      %v6111 = vlaneseq
      %v6112 = vshrl.u32 %v6111, 7
      %v6113 = vsub.s32 %v4985, %v6112
      %v6114 = vrot.slane %v4581, %v6113
      %v6115 = vsel %vm4990, %v6114, %v6110
      %v6116 = vlaneseq
      %v6117 = vshrl.u32 %v6116, 7
      %v6118 = vsub.s32 %v4992, %v6117
      %v6119 = vrot.slane %v4584, %v6118
      %v6120 = vsel %vm4997, %v6119, %v6115
      %v6121 = vlaneseq
      %v6122 = vshrl.u32 %v6121, 7
      %v6123 = vsub.s32 %v4999, %v6122
      %v6124 = vrot.slane %v4587, %v6123
      %v6125 = vsel %vm5004, %v6124, %v6120
      %v6126 = vlaneseq
      %v6127 = vshrl.u32 %v6126, 7
      %v6128 = vsub.s32 %v5006, %v6127
      %v6129 = vrot.slane %v4590, %v6128
      %v6130 = vsel %vm5011, %v6129, %v6125
      %v6131 = vlaneseq
      %v6132 = vshrl.u32 %v6131, 7
      %v6133 = vsub.s32 %v4903, %v6132
      %v6134 = vrot.slane %v4593, %v6133
      %v6135 = vlaneseq
      %v6136 = vshrl.u32 %v6135, 7
      %v6137 = vsub.s32 %v4908, %v6136
      %v6138 = vrot.slane %v4596, %v6137
      %v6139 = vsel %vm4913, %v6138, %v6134
      %v6140 = vlaneseq
      %v6141 = vshrl.u32 %v6140, 7
      %v6142 = vsub.s32 %v4915, %v6141
      %v6143 = vrot.slane %v4599, %v6142
      %v6144 = vsel %vm4920, %v6143, %v6139
      %v6145 = vlaneseq
      %v6146 = vshrl.u32 %v6145, 7
      %v6147 = vsub.s32 %v4922, %v6146
      %v6148 = vrot.slane %v4602, %v6147
      %v6149 = vsel %vm4927, %v6148, %v6144
      %v6150 = vlaneseq
      %v6151 = vshrl.u32 %v6150, 7
      %v6152 = vsub.s32 %v4929, %v6151
      %v6153 = vrot.slane %v4605, %v6152
      %v6154 = vsel %vm4934, %v6153, %v6149
      %v6155 = vlaneseq
      %v6156 = vshrl.u32 %v6155, 7
      %v6157 = vsub.s32 %v4936, %v6156
      %v6158 = vrot.slane %v4608, %v6157
      %v6159 = vsel %vm4941, %v6158, %v6154
      %v6160 = vlaneseq
      %v6161 = vshrl.u32 %v6160, 7
      %v6162 = vsub.s32 %v4943, %v6161
      %v6163 = vrot.slane %v4611, %v6162
      %v6164 = vsel %vm4948, %v6163, %v6159
      %v6165 = vlaneseq
      %v6166 = vshrl.u32 %v6165, 7
      %v6167 = vsub.s32 %v4950, %v6166
      %v6168 = vrot.slane %v4614, %v6167
      %v6169 = vsel %vm4955, %v6168, %v6164
      %v6170 = vlaneseq
      %v6171 = vshrl.u32 %v6170, 7
      %v6172 = vsub.s32 %v4957, %v6171
      %v6173 = vrot.slane %v4617, %v6172
      %v6174 = vsel %vm4962, %v6173, %v6169
      %v6175 = vlaneseq
      %v6176 = vshrl.u32 %v6175, 7
      %v6177 = vsub.s32 %v4964, %v6176
      %v6178 = vrot.slane %v4620, %v6177
      %v6179 = vsel %vm4969, %v6178, %v6174
      %v6180 = vlaneseq
      %v6181 = vshrl.u32 %v6180, 7
      %v6182 = vsub.s32 %v4971, %v6181
      %v6183 = vrot.slane %v4623, %v6182
      %v6184 = vsel %vm4976, %v6183, %v6179
      %v6185 = vlaneseq
      %v6186 = vshrl.u32 %v6185, 7
      %v6187 = vsub.s32 %v4978, %v6186
      %v6188 = vrot.slane %v4626, %v6187
      %v6189 = vsel %vm4983, %v6188, %v6184
      %v6190 = vlaneseq
      %v6191 = vshrl.u32 %v6190, 7
      %v6192 = vsub.s32 %v4985, %v6191
      %v6193 = vrot.slane %v4629, %v6192
      %v6194 = vsel %vm4990, %v6193, %v6189
      %v6195 = vlaneseq
      %v6196 = vshrl.u32 %v6195, 7
      %v6197 = vsub.s32 %v4992, %v6196
      %v6198 = vrot.slane %v4632, %v6197
      %v6199 = vsel %vm4997, %v6198, %v6194
      %v6200 = vlaneseq
      %v6201 = vshrl.u32 %v6200, 7
      %v6202 = vsub.s32 %v4999, %v6201
      %v6203 = vrot.slane %v4635, %v6202
      %v6204 = vsel %vm5004, %v6203, %v6199
      %v6205 = vlaneseq
      %v6206 = vshrl.u32 %v6205, 7
      %v6207 = vsub.s32 %v5006, %v6206
      %v6208 = vrot.slane %v4638, %v6207
      %v6209 = vsel %vm5011, %v6208, %v6204
      %v6210 = vlaneseq
      %v6211 = vshrl.u32 %v6210, 7
      %v6212 = vsub.s32 %v4903, %v6211
      %v6213 = vrot.slane %v4641, %v6212
      %vm6214 = vcmask 1041409
      %v6215 = vsel %vm6214, %v5332, %v5012
      %vm6216 = vcmask 1042434
      %v6217 = vsel %vm6216, %v5652, %v6215
      %vm6218 = vcmask 1043459
      %v6219 = vsel %vm6218, %v5972, %v6217
      %v6220 = vsel %vm6214, %v5411, %v5091
      %v6221 = vsel %vm6216, %v5731, %v6220
      %v6222 = vsel %vm6218, %v6051, %v6221
      %v6223 = vsel %vm6214, %v5490, %v5170
      %v6224 = vsel %vm6216, %v5810, %v6223
      %v6225 = vsel %vm6218, %v6130, %v6224
      %v6226 = vsel %vm6214, %v5569, %v5249
      %v6227 = vsel %vm6216, %v5889, %v6226
      %v6228 = vsel %vm6218, %v6209, %v6227
      %v6229 = vsel %vm6214, %v5573, %v5253
      %v6230 = vsel %vm6216, %v5893, %v6229
      %v6231 = vsel %vm6218, %v6213, %v6230
      %vm6237 = vcmask 1043456
      %v6238 = vsel %vm6237, %v6219, 0.0
      %v6239 = vsel %vm6237, %v6222, 0.0
      %v6240 = vadd.f32 %v6238, %v6239
      %v6241 = vsel %vm6237, %v6225, 0.0
      %v6242 = vadd.f32 %v6240, %v6241
      %v6243 = vsel %vm6237, %v6228, 0.0
      %v6244 = vadd.f32 %v6242, %v6243
      %vm6245 = vcmask 60416
      %v6246 = vsel %vm6245, %v6231, 0.0
      %v6247 = vadd.f32 %v6244, %v6246
      %6248 = vadd.xlane.f32.xlu0 %v6247
      %v6249 = vpop.xlane.xlu0 %6248
      %v6250 = vld [vmem:[%s6] sm:$0xf]
      %v6251 = vadd.f32 %v6249, %v6250
      %vm6252 = vcmask 3072
      %6253 = vst.msk [vmem:[%s276] sm:$0xf] %vm6252, %v6251
      %p6254 = scmp.lt.s32.totalorder %s18, 1
      %s6255 = scalar_select %p6254, %s18, 1
      %s6256 = smul.addr %s6255, 4
      %s6257 = scalar_lea.vmem %s7, %s6256
      // Predicated region
      $region49: #{shallow_convnet_forward.3} parent=47 // pred_check
        %p6258 = pneg %p188
      $region50: #{shallow_convnet_forward.3} parent=47 // pred_check_branch
        %6260 = sbr.rel (%p6258) target = $region52
      $region51: #{shallow_convnet_forward.3} parent=47 // pred_region
        _
      $region52: #{shallow_convnet_forward.3} parent=47 // pred_fallthru
        _
    $region48: #{shallow_convnet_forward.3} parent=5 // pred_fallthru
      _
    %p6261 = scmp.le.s32.totalorder 2, %s13
    // Predicated region
    $region53: #{shallow_convnet_forward.3} parent=5 // pred_check
      %p6262 = pneg %p6261
    $region54: #{shallow_convnet_forward.3} parent=5 // pred_check_branch
      %6264 = sbr.rel (%p6262) target = $region56
    $region55: #{shallow_convnet_forward.3} parent=5 // pred_region
      %s6265 = ssub.s32 %s13, 2
      // Predicated region
      $region57: #{shallow_convnet_forward.3} parent=55 // pred_check
        %p6266 = pneg %p194
      $region58: #{shallow_convnet_forward.3} parent=55 // pred_check_branch
        %6268 = sbr.rel (%p6266) target = $region60
      $region59: #{shallow_convnet_forward.3} parent=55 // pred_region
        %p6269 = scmp.lt.s32.totalorder %s19, 1
        %s6270 = scalar_select %p6269, %s19, 1
        %s6271 = smul.addr %s6270, 4
        %s6272 = scalar_lea.vmem %s7, %s6271
      $region60: #{shallow_convnet_forward.3} parent=55 // pred_fallthru
        _
    $region56: #{shallow_convnet_forward.3} parent=5 // pred_fallthru
      _
  $region6: #{shallow_convnet_forward.3} parent=0 // loop_footer
    %s17 = sadd.s32 1, %s13
  $region7: #{shallow_convnet_forward.3} parent=0 // loop_footer_branch
    %12 = sbr.rel target = $region3
  $region8: #{shallow_convnet_forward.3} parent=0 // loop_exit
    _

</llo_original>
